<compile_context>
chip_gen: v7x
topology: tpu7x:2x2x1
jax: 0.10.0
libtpu: 0.0.40
codegen_flags: <defaults>
</compile_context>

<pallas_src>
import jax
import jax.numpy as jnp
from jax import lax
from jax.experimental import pallas as pl
from jax.experimental.pallas import tpu as pltpu

EPS = 1e-5  # BatchNorm2d default eps


# ----------------------------- Pallas kernels ---------------------------------

def _conv_kernel(p_ref, w_ref, b_ref, o_ref):
    # (TM, K) bf16 @ (K, Cout) bf16 on the MXU with f32 accumulation,
    # fused (BN-folded) bias + ReLU in f32, bf16 store.
    acc = jnp.dot(p_ref[...], w_ref[...], preferred_element_type=jnp.float32)
    o_ref[...] = jnp.maximum(acc + b_ref[...], 0.0).astype(o_ref.dtype)


def _splitk_kernel(pa_ref, pb_ref, wa_ref, wb_ref, b_ref, o_ref):
    # Split-K conv: the 160-ch input is consumed as its two un-concatenated sources
    # (96-ch conv branch + 64-ch pool branch); both 1x1 heads share the output tile.
    acc = jnp.dot(pa_ref[...], wa_ref[...], preferred_element_type=jnp.float32)
    acc = acc + jnp.dot(pb_ref[...], wb_ref[...], preferred_element_type=jnp.float32)
    o_ref[...] = jnp.maximum(acc + b_ref[...], 0.0).astype(o_ref.dtype)


def _dual_branch_kernel(pa_ref, pb_ref, wa_ref, wb_ref, ba_ref, bb_ref, o_ref):
    # Two sibling convs on different inputs writing one concatenated output tile.
    ya = jnp.maximum(
        jnp.dot(pa_ref[...], wa_ref[...], preferred_element_type=jnp.float32) + ba_ref[...], 0.0)
    yb = jnp.maximum(
        jnp.dot(pb_ref[...], wb_ref[...], preferred_element_type=jnp.float32) + bb_ref[...], 0.0)
    o_ref[...] = jnp.concatenate([ya, yb], axis=-1).astype(o_ref.dtype)


def _round_up(x, m):
    return (x + m - 1) // m * m


def _launch(kernel, streamed, resident, cout, out_dtype=jnp.bfloat16):
    """Generic conv-as-matmul launcher.

    streamed: list of (M, K_i) patch matrices tiled along M (double-buffered DMA).
    resident: list of small 2-D arrays (weights / biases) held whole in VMEM.
    Returns (M, cout) in out_dtype.
    """
    M = streamed[0].shape[0]
    Ks = [s.shape[1] for s in streamed]
    out_bytes = 2 if out_dtype == jnp.bfloat16 else 4

    def tile_vmem(t):
        stream = 2 * t * (sum(K * int(s.dtype.itemsize) for K, s in zip(Ks, streamed))
                          + cout * out_bytes)
        res = 2 * sum(int(r.size) * int(r.dtype.itemsize) for r in resident)
        return stream + res

    # Start large (per-grid-step overhead amortization; small-K layers especially),
    # shrink to the VMEM budget.
    tm = 2048
    while tm > 64 and tile_vmem(tm) > 24 * 2**20:
        tm //= 2
    if M <= tm:
        # Split into (up to) two tiles so both v7x TensorCores get work.
        tm = max(8, _round_up(-(-M // 2), 8)) if M > 8 else 8

    grid = (pl.cdiv(M, tm),)                       # ragged last block; no full-array pad
    vmem_limit = int(min(max(2 * tile_vmem(tm), 16 * 2**20), 40 * 2**20))

    in_specs = [pl.BlockSpec((tm, K), lambda i: (i, 0)) for K in Ks]
    in_specs += [pl.BlockSpec(r.shape, lambda i: (0, 0)) for r in resident]

    return pl.pallas_call(
        kernel,
        out_shape=jax.ShapeDtypeStruct((M, cout), out_dtype),
        grid=grid,
        in_specs=in_specs,
        out_specs=pl.BlockSpec((tm, cout), lambda i: (i, 0)),
        compiler_params=pltpu.CompilerParams(
            dimension_semantics=("parallel",),
            vmem_limit_bytes=vmem_limit,
        ),
    )(*streamed, *resident)


# ------------------------------ JAX glue --------------------------------------

def im2col(x, kh, kw, stride, ph, pw):
    """x: NHWC bf16. Returns (N*oh*ow, kh*kw*C) patch matrix, row order (kh, kw, cin)."""
    N, H, W, C = x.shape
    xp = jnp.pad(x, ((0, 0), (ph, ph), (pw, pw), (0, 0)))
    Hp, Wp = H + 2 * ph, W + 2 * pw
    oh = (Hp - kh) // stride + 1
    ow = (Wp - kw) // stride + 1
    cols = []
    for i in range(kh):
        for j in range(kw):
            cols.append(xp[:, i:i + stride * oh:stride, j:j + stride * ow:stride, :])
    p = jnp.concatenate(cols, axis=-1)                      # (N, oh, ow, kh*kw*C)
    return p.reshape(N * oh * ow, kh * kw * C), (N, oh, ow)


def basic_conv(x, p, stride, pad):
    kh, kw = p["ksize"]
    patches, (N, oh, ow) = im2col(x, kh, kw, stride, pad[0], pad[1])
    out = _launch(_conv_kernel, [patches], [p["wmat"], p["bias"]], p["wmat"].shape[1])
    return out.reshape(N, oh, ow, -1)


def fused_1x1_heads(a, b, pa, pb):
    """branch7x7a[0] / branch7x7b[0] 1x1 convs on cat([a, b], ch) computed WITHOUT
    materializing the 160-channel concat; one 128-lane-dense matmul."""
    N, H, W, Ca = a.shape
    Cb = b.shape[-1]
    pa_mat = a.reshape(N * H * W, Ca)          # free reshape (layout-preserving)
    pb_mat = b.reshape(N * H * W, Cb)
    # Split each 1x1 weight's input rows into conv-branch / pool-branch parts; fuse the
    # two heads along output columns (64 | 64 -> 128 lanes).
    wa = jnp.concatenate([pa["wmat"][:Ca], pb["wmat"][:Ca]], axis=1)      # (96, 128)
    wb = jnp.concatenate([pa["wmat"][Ca:], pb["wmat"][Ca:]], axis=1)      # (64, 128)
    bias = jnp.concatenate([pa["bias"], pb["bias"]], axis=1)              # (1, 128)
    out = _launch(_splitk_kernel, [pa_mat, pb_mat], [wa, wb, bias], wa.shape[1])
    out = out.reshape(N, H, W, -1)
    ca = pa["wmat"].shape[1]
    return out[..., :ca], out[..., ca:]


def fused_3x3_tails(a, b, pa, pb):
    """b7a_3 (a: 64->96 3x3) and b7b_1 (b: 64->96 3x3) fused into one pallas_call that
    writes the concatenated 192-channel output directly."""
    kh, kw = pa["ksize"]
    patches_a, (N, oh, ow) = im2col(a, kh, kw, 1, 0, 0)
    patches_b, _ = im2col(b, kh, kw, 1, 0, 0)
    cout = pa["wmat"].shape[1] + pb["wmat"].shape[1]
    out = _launch(_dual_branch_kernel, [patches_a, patches_b],
                  [pa["wmat"], pb["wmat"], pa["bias"], pb["bias"]], cout)
    return out.reshape(N, oh, ow, cout)


def maxpool2d(x, k=3, stride=2):
    # Running max over the k*k shifted strided views; XLA fuses into one pass over x.
    N, H, W, C = x.shape
    oh = (H - k) // stride + 1
    ow = (W - k) // stride + 1
    out = None
    for i in range(k):
        for j in range(k):
            win = x[:, i:i + stride * oh:stride, j:j + stride * ow:stride, :]
            out = win if out is None else jnp.maximum(out, win)
    return out


# --------------------------- Parameter creation --------------------------------

def make_bconv_params(key, cin, cout, ksize):
    kh, kw = (ksize, ksize) if isinstance(ksize, int) else ksize
    k1, k2, k3, k4, k5 = jax.random.split(key, 5)
    fan_in = cin * kh * kw
    w = jax.random.normal(k1, (cout, cin, kh, kw), jnp.float32) / jnp.sqrt(fan_in)
    gamma = 1.0 + 0.1 * jax.random.normal(k2, (cout,), jnp.float32)
    beta = 0.1 * jax.random.normal(k3, (cout,), jnp.float32)
    mean = 0.1 * jax.random.normal(k4, (cout,), jnp.float32)
    var = 1.0 + 0.1 * jnp.abs(jax.random.normal(k5, (cout,), jnp.float32))
    # BatchNorm in inference mode folded into a per-channel affine.
    scale = gamma / jnp.sqrt(var + EPS)
    bias = beta - mean * scale
    # (Cout, Cin, KH, KW) -> (KH*KW*Cin, Cout), matching im2col (kh, kw, cin) row order,
    # BN scale folded into the weights; bf16 for the MXU.
    wmat = jnp.transpose(w, (2, 3, 1, 0)).reshape(kh * kw * cin, cout) * scale[None, :]
    return dict(
        wmat=wmat.astype(jnp.bfloat16),
        bias=bias.reshape(1, cout).astype(jnp.float32),
        ksize=(kh, kw),
        cin=cin,
        # kept for the reference paths
        w_oihw=w, scale_ref=scale, bias_ref=bias,
    )


def init_stem_params(key, in_channels):
    specs = {
        "conv1_0": (in_channels, 32, 3),
        "conv1_1": (32, 32, 3),
        "conv1_2": (32, 64, 3),
        "b3x3":    (64, 96, 3),
        "b7a_0":   (160, 64, 1),
        "b7a_1":   (64, 64, (7, 1)),
        "b7a_2":   (64, 64, (1, 7)),
        "b7a_3":   (64, 96, 3),
        "b7b_0":   (160, 64, 1),
        "b7b_1":   (64, 96, 3),
        "poolb":   (192, 192, 3),
    }
    keys = jax.random.split(key, len(specs))
    return {name: make_bconv_params(k, *spec) for (name, spec), k in zip(specs.items(), keys)}


# ------------------------------ Stem forward -----------------------------------

def inception_stem_forward(x_nchw, P):
    x = jnp.transpose(x_nchw, (0, 2, 3, 1)).astype(jnp.bfloat16)   # NCHW -> NHWC, bf16
    x = basic_conv(x, P["conv1_0"], stride=2, pad=(0, 0))
    x = basic_conv(x, P["conv1_1"], stride=1, pad=(1, 1))
    x = basic_conv(x, P["conv1_2"], stride=1, pad=(0, 0))

    a = basic_conv(x, P["b3x3"], stride=2, pad=(0, 0))             # (N,h,w,96)
    b = maxpool2d(x, 3, 2)                                         # (N,h,w,64)
    # 160-ch concat never materialized: split-K fused 1x1 heads (lane-dense 128 out).
    a7, b7 = fused_1x1_heads(a, b, P["b7a_0"], P["b7b_0"])

    a7 = basic_conv(a7, P["b7a_1"], 1, (3, 0))
    a7 = basic_conv(a7, P["b7a_2"], 1, (0, 3))
    # Fused branch tails writing the concatenated 192-channel map directly.
    x = fused_3x3_tails(a7, b7, P["b7a_3"], P["b7b_1"])

    a = maxpool2d(x, 3, 2)
    b = basic_conv(x, P["poolb"], stride=2, pad=(0, 0))
    x = jnp.concatenate([a, b], axis=-1)
    return jnp.transpose(x, (0, 3, 1, 2)).astype(jnp.float32)      # NHWC -> NCHW, f32


# -------------------------- Pure-JAX references --------------------------------

def _ref_bconv_f32(x, p, stride, pad):
    # True module semantics: f32 conv, then BN affine + ReLU.
    w_hwio = jnp.transpose(p["w_oihw"], (2, 3, 1, 0))
    y = lax.conv_general_dilated(x, w_hwio, (stride, stride),
                                 [(pad[0], pad[0]), (pad[1], pad[1])],
                                 dimension_numbers=("NHWC", "HWIO", "NHWC"))
    s = p["scale_ref"].reshape(1, 1, 1, -1)
    b = p["bias_ref"].reshape(1, 1, 1, -1)
    return jnp.maximum(y * s + b, 0.0)


def _ref_bconv_matched(x, p, stride, pad):
    # Same bf16-operand / f32-accumulate / bf16-output quantization as the Pallas path.
    kh, kw = p["ksize"]
    w_hwio = p["wmat"].reshape(kh, kw, p["cin"], -1)
    y = lax.conv_general_dilated(x.astype(jnp.bfloat16), w_hwio, (stride, stride),
                                 [(pad[0], pad[0]), (pad[1], pad[1])],
                                 dimension_numbers=("NHWC", "HWIO", "NHWC"),
                                 preferred_element_type=jnp.float32)
    return jnp.maximum(y + p["bias"].reshape(1, 1, 1, -1), 0.0).astype(jnp.bfloat16)


def _ref_maxpool(x, k=3, s=2):
    return lax.reduce_window(x, jnp.array(-jnp.inf, x.dtype), lax.max,
                             (1, k, k, 1), (1, s, s, 1), "VALID")


def ref_stem_forward(x_nchw, P, bconv):
    x = jnp.transpose(x_nchw, (0, 2, 3, 1))
    x = bconv(x, P["conv1_0"], 2, (0, 0))
    x = bconv(x, P["conv1_1"], 1, (1, 1))
    x = bconv(x, P["conv1_2"], 1, (0, 0))
    a = bconv(x, P["b3x3"], 2, (0, 0))
    b = _ref_maxpool(x)
    x = jnp.concatenate([a, b], axis=-1)
    a = bconv(x, P["b7a_0"], 1, (0, 0))
    a = bconv(a, P["b7a_1"], 1, (3, 0))
    a = bconv(a, P["b7a_2"], 1, (0, 3))
    a = bconv(a, P["b7a_3"], 1, (0, 0))
    b = bconv(x, P["b7b_0"], 1, (0, 0))
    b = bconv(b, P["b7b_1"], 1, (0, 0))
    x = jnp.concatenate([a, b], axis=-1)
    a = _ref_maxpool(x)
    b = bconv(x, P["poolb"], 2, (0, 0))
    x = jnp.concatenate([a, b], axis=-1)
    return jnp.transpose(x, (0, 3, 1, 2)).astype(jnp.float32)


# ---------------------------------- main ----------------------------------------

if __name__ == "__main__":
    key = jax.random.PRNGKey(0)
    kx, kp = jax.random.split(key)
    # Smallest spatial size that keeps all stem stages valid is 27; use 32.
    x = jax.random.normal(kx, (2, 4, 32, 32), jnp.float32)      # NCHW, in_channels=4
    params = init_stem_params(kp, in_channels=4)

    fwd = jax.jit(lambda inp: inception_stem_forward(inp, params))
    out = jax.block_until_ready(fwd(x))
    assert out.shape == (2, 384, 1, 1), out.shape

    # 1) Tight check against a reference using the SAME bf16 quantization contract
    #    (bf16 operands, f32 accumulation, bf16 intermediate feature maps).
    ref_m = ref_stem_forward(x, params, _ref_bconv_matched)
    err_m = float(jnp.max(jnp.abs(out - ref_m)))
    assert jnp.allclose(out, ref_m, rtol=3e-2, atol=3e-2), f"matched-ref max abs err {err_m}"

    # 2) Aggregate sanity check against the true f32 module semantics
    #    (bf16 MXU operands / bf16 intermediates are a deliberate inference-precision
    #    contract and introduce a small, expected quantization error).
    ref32 = ref_stem_forward(x, params, _ref_bconv_f32)
    num = float(jnp.sqrt(jnp.sum((out - ref32) ** 2)))
    den = float(jnp.sqrt(jnp.sum(ref32 ** 2))) + 1e-12
    assert num / den < 8e-2, f"f32-ref relative error {num / den}"

    print("KERNEL_OK")
</pallas_src>

<mosaic_0001>
module attributes {stable_mosaic.version = 11 : i64} {
  func.func @_conv_kernel(%arg0: i32, %arg1: memref<232x36xbf16, #tpu.memory_space<vmem>>, %arg2: memref<36x32xbf16, #tpu.memory_space<vmem>>, %arg3: memref<1x32xf32, #tpu.memory_space<vmem>>, %arg4: memref<232x32xbf16, #tpu.memory_space<vmem>>) attributes {dimension_semantics = [#tpu.dimension_semantics<parallel>], iteration_bounds = array<i64: 2>, scalar_prefetch = 0 : i64, scratch_operands = 0 : i64, tpu.core_type = #tpu.core_type<tc>, window_params = [{transform_indices = @transform_0, window_bounds = array<i64: 232, 36>}, {pipeline_mode = #tpu.pipeline_mode<synchronous>, transform_indices = @transform_1, window_bounds = array<i64: 36, 32>}, {pipeline_mode = #tpu.pipeline_mode<synchronous>, transform_indices = @transform_2, window_bounds = array<i64: 1, 32>}, {transform_indices = @transform_3, window_bounds = array<i64: 232, 32>}]} {
    %c0 = arith.constant 0 : index
    %c0_0 = arith.constant 0 : index
    %0 = vector.load %arg1[%c0, %c0_0] : memref<232x36xbf16, #tpu.memory_space<vmem>>, vector<232x36xbf16>
    %c0_1 = arith.constant 0 : index
    %c0_2 = arith.constant 0 : index
    %1 = vector.load %arg2[%c0_1, %c0_2] : memref<36x32xbf16, #tpu.memory_space<vmem>>, vector<36x32xbf16>
    %cst = arith.constant dense<0.000000e+00> : vector<232x32xf32>
    %2 = tpu.matmul %0, %1, %cst {dimension_numbers = #tpu.dot_dimension_numbers<[1], [0], [0], [1], [0, 0, 1, 1], [], []>} : vector<232x36xbf16>, vector<36x32xbf16>, vector<232x32xf32> -> vector<232x32xf32>
    %c0_3 = arith.constant 0 : index
    %c0_4 = arith.constant 0 : index
    %3 = vector.load %arg3[%c0_3, %c0_4] : memref<1x32xf32, #tpu.memory_space<vmem>>, vector<1x32xf32>
    %4 = vector.broadcast %3 : vector<1x32xf32> to vector<232x32xf32>
    %5 = arith.addf %2, %4 : vector<232x32xf32>
    %cst_5 = arith.constant 0.000000e+00 : f32
    %6 = vector.broadcast %cst_5 : f32 to vector<232x32xf32>
    %7 = arith.maximumf %5, %6 : vector<232x32xf32>
    %8 = arith.truncf %7 : vector<232x32xf32> to vector<232x32xbf16>
    %c0_6 = arith.constant 0 : index
    %c0_7 = arith.constant 0 : index
    %9 = vector.load %arg4[%c0_6, %c0_7] : memref<232x32xbf16, #tpu.memory_space<vmem>>, vector<232x32xbf16>
    tpu.vector_store %arg4[%c0_6, %c0_7], %8 {strides = array<i32>} : memref<232x32xbf16, #tpu.memory_space<vmem>>, vector<232x32xbf16>,
    return
  }
  func.func @transform_0(%arg0: i32) -> (i32, i32) {
    %c0_i32 = arith.constant 0 : i32
    %c0_i32_0 = arith.constant 0 : i32
    return %arg0, %c0_i32 : i32, i32
  }
  func.func @transform_1(%arg0: i32) -> (i32, i32) {
    %c0_i32 = arith.constant 0 : i32
    %c0_i32_0 = arith.constant 0 : i32
    %c0_i32_1 = arith.constant 0 : i32
    return %c0_i32, %c0_i32_0 : i32, i32
  }
  func.func @transform_2(%arg0: i32) -> (i32, i32) {
    %c0_i32 = arith.constant 0 : i32
    %c0_i32_0 = arith.constant 0 : i32
    %c0_i32_1 = arith.constant 0 : i32
    return %c0_i32, %c0_i32_0 : i32, i32
  }
  func.func @transform_3(%arg0: i32) -> (i32, i32) {
    %c0_i32 = arith.constant 0 : i32
    %c0_i32_0 = arith.constant 0 : i32
    return %arg0, %c0_i32 : i32, i32
  }
}

module attributes {stable_mosaic.version = 11 : i64} {
  func.func @_conv_kernel(%arg0: i32, %arg1: memref<232x288xbf16, #tpu.memory_space<vmem>>, %arg2: memref<288x32xbf16, #tpu.memory_space<vmem>>, %arg3: memref<1x32xf32, #tpu.memory_space<vmem>>, %arg4: memref<232x32xbf16, #tpu.memory_space<vmem>>) attributes {dimension_semantics = [#tpu.dimension_semantics<parallel>], iteration_bounds = array<i64: 2>, scalar_prefetch = 0 : i64, scratch_operands = 0 : i64, tpu.core_type = #tpu.core_type<tc>, window_params = [{transform_indices = @transform_0, window_bounds = array<i64: 232, 288>}, {pipeline_mode = #tpu.pipeline_mode<synchronous>, transform_indices = @transform_1, window_bounds = array<i64: 288, 32>}, {pipeline_mode = #tpu.pipeline_mode<synchronous>, transform_indices = @transform_2, window_bounds = array<i64: 1, 32>}, {transform_indices = @transform_3, window_bounds = array<i64: 232, 32>}]} {
    %c0 = arith.constant 0 : index
    %c0_0 = arith.constant 0 : index
    %0 = vector.load %arg1[%c0, %c0_0] : memref<232x288xbf16, #tpu.memory_space<vmem>>, vector<232x288xbf16>
    %c0_1 = arith.constant 0 : index
    %c0_2 = arith.constant 0 : index
    %1 = vector.load %arg2[%c0_1, %c0_2] : memref<288x32xbf16, #tpu.memory_space<vmem>>, vector<288x32xbf16>
    %cst = arith.constant dense<0.000000e+00> : vector<232x32xf32>
    %2 = tpu.matmul %0, %1, %cst {dimension_numbers = #tpu.dot_dimension_numbers<[1], [0], [0], [1], [0, 0, 1, 1], [], []>} : vector<232x288xbf16>, vector<288x32xbf16>, vector<232x32xf32> -> vector<232x32xf32>
    %c0_3 = arith.constant 0 : index
    %c0_4 = arith.constant 0 : index
    %3 = vector.load %arg3[%c0_3, %c0_4] : memref<1x32xf32, #tpu.memory_space<vmem>>, vector<1x32xf32>
    %4 = vector.broadcast %3 : vector<1x32xf32> to vector<232x32xf32>
    %5 = arith.addf %2, %4 : vector<232x32xf32>
    %cst_5 = arith.constant 0.000000e+00 : f32
    %6 = vector.broadcast %cst_5 : f32 to vector<232x32xf32>
    %7 = arith.maximumf %5, %6 : vector<232x32xf32>
    %8 = arith.truncf %7 : vector<232x32xf32> to vector<232x32xbf16>
    %c0_6 = arith.constant 0 : index
    %c0_7 = arith.constant 0 : index
    %9 = vector.load %arg4[%c0_6, %c0_7] : memref<232x32xbf16, #tpu.memory_space<vmem>>, vector<232x32xbf16>
    tpu.vector_store %arg4[%c0_6, %c0_7], %8 {strides = array<i32>} : memref<232x32xbf16, #tpu.memory_space<vmem>>, vector<232x32xbf16>,
    return
  }
  func.func @transform_0(%arg0: i32) -> (i32, i32) {
    %c0_i32 = arith.constant 0 : i32
    %c0_i32_0 = arith.constant 0 : i32
    return %arg0, %c0_i32 : i32, i32
  }
  func.func @transform_1(%arg0: i32) -> (i32, i32) {
    %c0_i32 = arith.constant 0 : i32
    %c0_i32_0 = arith.constant 0 : i32
    %c0_i32_1 = arith.constant 0 : i32
    return %c0_i32, %c0_i32_0 : i32, i32
  }
  func.func @transform_2(%arg0: i32) -> (i32, i32) {
    %c0_i32 = arith.constant 0 : i32
    %c0_i32_0 = arith.constant 0 : i32
    %c0_i32_1 = arith.constant 0 : i32
    return %c0_i32, %c0_i32_0 : i32, i32
  }
  func.func @transform_3(%arg0: i32) -> (i32, i32) {
    %c0_i32 = arith.constant 0 : i32
    %c0_i32_0 = arith.constant 0 : i32
    return %arg0, %c0_i32 : i32, i32
  }
}

module attributes {stable_mosaic.version = 11 : i64} {
  func.func @_conv_kernel(%arg0: i32, %arg1: memref<176x288xbf16, #tpu.memory_space<vmem>>, %arg2: memref<288x64xbf16, #tpu.memory_space<vmem>>, %arg3: memref<1x64xf32, #tpu.memory_space<vmem>>, %arg4: memref<176x64xbf16, #tpu.memory_space<vmem>>) attributes {dimension_semantics = [#tpu.dimension_semantics<parallel>], iteration_bounds = array<i64: 2>, scalar_prefetch = 0 : i64, scratch_operands = 0 : i64, tpu.core_type = #tpu.core_type<tc>, window_params = [{transform_indices = @transform_0, window_bounds = array<i64: 176, 288>}, {pipeline_mode = #tpu.pipeline_mode<synchronous>, transform_indices = @transform_1, window_bounds = array<i64: 288, 64>}, {pipeline_mode = #tpu.pipeline_mode<synchronous>, transform_indices = @transform_2, window_bounds = array<i64: 1, 64>}, {transform_indices = @transform_3, window_bounds = array<i64: 176, 64>}]} {
    %c0 = arith.constant 0 : index
    %c0_0 = arith.constant 0 : index
    %0 = vector.load %arg1[%c0, %c0_0] : memref<176x288xbf16, #tpu.memory_space<vmem>>, vector<176x288xbf16>
    %c0_1 = arith.constant 0 : index
    %c0_2 = arith.constant 0 : index
    %1 = vector.load %arg2[%c0_1, %c0_2] : memref<288x64xbf16, #tpu.memory_space<vmem>>, vector<288x64xbf16>
    %cst = arith.constant dense<0.000000e+00> : vector<176x64xf32>
    %2 = tpu.matmul %0, %1, %cst {dimension_numbers = #tpu.dot_dimension_numbers<[1], [0], [0], [1], [0, 0, 1, 1], [], []>} : vector<176x288xbf16>, vector<288x64xbf16>, vector<176x64xf32> -> vector<176x64xf32>
    %c0_3 = arith.constant 0 : index
    %c0_4 = arith.constant 0 : index
    %3 = vector.load %arg3[%c0_3, %c0_4] : memref<1x64xf32, #tpu.memory_space<vmem>>, vector<1x64xf32>
    %4 = vector.broadcast %3 : vector<1x64xf32> to vector<176x64xf32>
    %5 = arith.addf %2, %4 : vector<176x64xf32>
    %cst_5 = arith.constant 0.000000e+00 : f32
    %6 = vector.broadcast %cst_5 : f32 to vector<176x64xf32>
    %7 = arith.maximumf %5, %6 : vector<176x64xf32>
    %8 = arith.truncf %7 : vector<176x64xf32> to vector<176x64xbf16>
    %c0_6 = arith.constant 0 : index
    %c0_7 = arith.constant 0 : index
    %9 = vector.load %arg4[%c0_6, %c0_7] : memref<176x64xbf16, #tpu.memory_space<vmem>>, vector<176x64xbf16>
    tpu.vector_store %arg4[%c0_6, %c0_7], %8 {strides = array<i32>} : memref<176x64xbf16, #tpu.memory_space<vmem>>, vector<176x64xbf16>,
    return
  }
  func.func @transform_0(%arg0: i32) -> (i32, i32) {
    %c0_i32 = arith.constant 0 : i32
    %c0_i32_0 = arith.constant 0 : i32
    return %arg0, %c0_i32 : i32, i32
  }
  func.func @transform_1(%arg0: i32) -> (i32, i32) {
    %c0_i32 = arith.constant 0 : i32
    %c0_i32_0 = arith.constant 0 : i32
    %c0_i32_1 = arith.constant 0 : i32
    return %c0_i32, %c0_i32_0 : i32, i32
  }
  func.func @transform_2(%arg0: i32) -> (i32, i32) {
    %c0_i32 = arith.constant 0 : i32
    %c0_i32_0 = arith.constant 0 : i32
    %c0_i32_1 = arith.constant 0 : i32
    return %c0_i32, %c0_i32_0 : i32, i32
  }
  func.func @transform_3(%arg0: i32) -> (i32, i32) {
    %c0_i32 = arith.constant 0 : i32
    %c0_i32_0 = arith.constant 0 : i32
    return %arg0, %c0_i32 : i32, i32
  }
}

module attributes {stable_mosaic.version = 11 : i64} {
  func.func @_conv_kernel(%arg0: i32, %arg1: memref<40x576xbf16, #tpu.memory_space<vmem>>, %arg2: memref<576x96xbf16, #tpu.memory_space<vmem>>, %arg3: memref<1x96xf32, #tpu.memory_space<vmem>>, %arg4: memref<40x96xbf16, #tpu.memory_space<vmem>>) attributes {dimension_semantics = [#tpu.dimension_semantics<parallel>], iteration_bounds = array<i64: 2>, scalar_prefetch = 0 : i64, scratch_operands = 0 : i64, tpu.core_type = #tpu.core_type<tc>, window_params = [{transform_indices = @transform_0, window_bounds = array<i64: 40, 576>}, {pipeline_mode = #tpu.pipeline_mode<synchronous>, transform_indices = @transform_1, window_bounds = array<i64: 576, 96>}, {pipeline_mode = #tpu.pipeline_mode<synchronous>, transform_indices = @transform_2, window_bounds = array<i64: 1, 96>}, {transform_indices = @transform_3, window_bounds = array<i64: 40, 96>}]} {
    %c0 = arith.constant 0 : index
    %c0_0 = arith.constant 0 : index
    %0 = vector.load %arg1[%c0, %c0_0] : memref<40x576xbf16, #tpu.memory_space<vmem>>, vector<40x576xbf16>
    %c0_1 = arith.constant 0 : index
    %c0_2 = arith.constant 0 : index
    %1 = vector.load %arg2[%c0_1, %c0_2] : memref<576x96xbf16, #tpu.memory_space<vmem>>, vector<576x96xbf16>
    %cst = arith.constant dense<0.000000e+00> : vector<40x96xf32>
    %2 = tpu.matmul %0, %1, %cst {dimension_numbers = #tpu.dot_dimension_numbers<[1], [0], [0], [1], [0, 0, 1, 1], [], []>} : vector<40x576xbf16>, vector<576x96xbf16>, vector<40x96xf32> -> vector<40x96xf32>
    %c0_3 = arith.constant 0 : index
    %c0_4 = arith.constant 0 : index
    %3 = vector.load %arg3[%c0_3, %c0_4] : memref<1x96xf32, #tpu.memory_space<vmem>>, vector<1x96xf32>
    %4 = vector.broadcast %3 : vector<1x96xf32> to vector<40x96xf32>
    %5 = arith.addf %2, %4 : vector<40x96xf32>
    %cst_5 = arith.constant 0.000000e+00 : f32
    %6 = vector.broadcast %cst_5 : f32 to vector<40x96xf32>
    %7 = arith.maximumf %5, %6 : vector<40x96xf32>
    %8 = arith.truncf %7 : vector<40x96xf32> to vector<40x96xbf16>
    %c0_6 = arith.constant 0 : index
    %c0_7 = arith.constant 0 : index
    %9 = vector.load %arg4[%c0_6, %c0_7] : memref<40x96xbf16, #tpu.memory_space<vmem>>, vector<40x96xbf16>
    tpu.vector_store %arg4[%c0_6, %c0_7], %8 {strides = array<i32>} : memref<40x96xbf16, #tpu.memory_space<vmem>>, vector<40x96xbf16>,
    return
  }
  func.func @transform_0(%arg0: i32) -> (i32, i32) {
    %c0_i32 = arith.constant 0 : i32
    %c0_i32_0 = arith.constant 0 : i32
    return %arg0, %c0_i32 : i32, i32
  }
  func.func @transform_1(%arg0: i32) -> (i32, i32) {
    %c0_i32 = arith.constant 0 : i32
    %c0_i32_0 = arith.constant 0 : i32
    %c0_i32_1 = arith.constant 0 : i32
    return %c0_i32, %c0_i32_0 : i32, i32
  }
  func.func @transform_2(%arg0: i32) -> (i32, i32) {
    %c0_i32 = arith.constant 0 : i32
    %c0_i32_0 = arith.constant 0 : i32
    %c0_i32_1 = arith.constant 0 : i32
    return %c0_i32, %c0_i32_0 : i32, i32
  }
  func.func @transform_3(%arg0: i32) -> (i32, i32) {
    %c0_i32 = arith.constant 0 : i32
    %c0_i32_0 = arith.constant 0 : i32
    return %arg0, %c0_i32 : i32, i32
  }
}

module attributes {stable_mosaic.version = 11 : i64} {
  func.func @_splitk_kernel(%arg0: i32, %arg1: memref<40x96xbf16, #tpu.memory_space<vmem>>, %arg2: memref<40x64xbf16, #tpu.memory_space<vmem>>, %arg3: memref<96x128xbf16, #tpu.memory_space<vmem>>, %arg4: memref<64x128xbf16, #tpu.memory_space<vmem>>, %arg5: memref<1x128xf32, #tpu.memory_space<vmem>>, %arg6: memref<40x128xbf16, #tpu.memory_space<vmem>>) attributes {dimension_semantics = [#tpu.dimension_semantics<parallel>], iteration_bounds = array<i64: 2>, scalar_prefetch = 0 : i64, scratch_operands = 0 : i64, tpu.core_type = #tpu.core_type<tc>, window_params = [{transform_indices = @transform_0, window_bounds = array<i64: 40, 96>}, {transform_indices = @transform_1, window_bounds = array<i64: 40, 64>}, {pipeline_mode = #tpu.pipeline_mode<synchronous>, transform_indices = @transform_2, window_bounds = array<i64: 96, 128>}, {pipeline_mode = #tpu.pipeline_mode<synchronous>, transform_indices = @transform_3, window_bounds = array<i64: 64, 128>}, {pipeline_mode = #tpu.pipeline_mode<synchronous>, transform_indices = @transform_4, window_bounds = array<i64: 1, 128>}, {transform_indices = @transform_5, window_bounds = array<i64: 40, 128>}]} {
    %c0 = arith.constant 0 : index
    %c0_0 = arith.constant 0 : index
    %0 = vector.load %arg1[%c0, %c0_0] : memref<40x96xbf16, #tpu.memory_space<vmem>>, vector<40x96xbf16>
    %c0_1 = arith.constant 0 : index
    %c0_2 = arith.constant 0 : index
    %1 = vector.load %arg3[%c0_1, %c0_2] : memref<96x128xbf16, #tpu.memory_space<vmem>>, vector<96x128xbf16>
    %cst = arith.constant dense<0.000000e+00> : vector<40x128xf32>
    %2 = tpu.matmul %0, %1, %cst {dimension_numbers = #tpu.dot_dimension_numbers<[1], [0], [0], [1], [0, 0, 1, 1], [], []>} : vector<40x96xbf16>, vector<96x128xbf16>, vector<40x128xf32> -> vector<40x128xf32>
    %c0_3 = arith.constant 0 : index
    %c0_4 = arith.constant 0 : index
    %3 = vector.load %arg2[%c0_3, %c0_4] : memref<40x64xbf16, #tpu.memory_space<vmem>>, vector<40x64xbf16>
    %c0_5 = arith.constant 0 : index
    %c0_6 = arith.constant 0 : index
    %4 = vector.load %arg4[%c0_5, %c0_6] : memref<64x128xbf16, #tpu.memory_space<vmem>>, vector<64x128xbf16>
    %cst_7 = arith.constant dense<0.000000e+00> : vector<40x128xf32>
    %5 = tpu.matmul %3, %4, %cst_7 {dimension_numbers = #tpu.dot_dimension_numbers<[1], [0], [0], [1], [0, 0, 1, 1], [], []>} : vector<40x64xbf16>, vector<64x128xbf16>, vector<40x128xf32> -> vector<40x128xf32>
    %6 = arith.addf %2, %5 : vector<40x128xf32>
    %c0_8 = arith.constant 0 : index
    %c0_9 = arith.constant 0 : index
    %7 = vector.load %arg5[%c0_8, %c0_9] : memref<1x128xf32, #tpu.memory_space<vmem>>, vector<1x128xf32>
    %8 = vector.broadcast %7 : vector<1x128xf32> to vector<40x128xf32>
    %9 = arith.addf %6, %8 : vector<40x128xf32>
    %cst_10 = arith.constant 0.000000e+00 : f32
    %10 = vector.broadcast %cst_10 : f32 to vector<40x128xf32>
    %11 = arith.maximumf %9, %10 : vector<40x128xf32>
    %12 = arith.truncf %11 : vector<40x128xf32> to vector<40x128xbf16>
    %c0_11 = arith.constant 0 : index
    %c0_12 = arith.constant 0 : index
    %13 = vector.load %arg6[%c0_11, %c0_12] : memref<40x128xbf16, #tpu.memory_space<vmem>>, vector<40x128xbf16>
    tpu.vector_store %arg6[%c0_11, %c0_12], %12 {strides = array<i32>} : memref<40x128xbf16, #tpu.memory_space<vmem>>, vector<40x128xbf16>,
    return
  }
  func.func @transform_0(%arg0: i32) -> (i32, i32) {
    %c0_i32 = arith.constant 0 : i32
    %c0_i32_0 = arith.constant 0 : i32
    return %arg0, %c0_i32 : i32, i32
  }
  func.func @transform_1(%arg0: i32) -> (i32, i32) {
    %c0_i32 = arith.constant 0 : i32
    %c0_i32_0 = arith.constant 0 : i32
    return %arg0, %c0_i32 : i32, i32
  }
  func.func @transform_2(%arg0: i32) -> (i32, i32) {
    %c0_i32 = arith.constant 0 : i32
    %c0_i32_0 = arith.constant 0 : i32
    %c0_i32_1 = arith.constant 0 : i32
    return %c0_i32, %c0_i32_0 : i32, i32
  }
  func.func @transform_3(%arg0: i32) -> (i32, i32) {
    %c0_i32 = arith.constant 0 : i32
    %c0_i32_0 = arith.constant 0 : i32
    %c0_i32_1 = arith.constant 0 : i32
    return %c0_i32, %c0_i32_0 : i32, i32
  }
  func.func @transform_4(%arg0: i32) -> (i32, i32) {
    %c0_i32 = arith.constant 0 : i32
    %c0_i32_0 = arith.constant 0 : i32
    %c0_i32_1 = arith.constant 0 : i32
    return %c0_i32, %c0_i32_0 : i32, i32
  }
  func.func @transform_5(%arg0: i32) -> (i32, i32) {
    %c0_i32 = arith.constant 0 : i32
    %c0_i32_0 = arith.constant 0 : i32
    return %arg0, %c0_i32 : i32, i32
  }
}

module attributes {stable_mosaic.version = 11 : i64} {
  func.func @_conv_kernel(%arg0: i32, %arg1: memref<40x448xbf16, #tpu.memory_space<vmem>>, %arg2: memref<448x64xbf16, #tpu.memory_space<vmem>>, %arg3: memref<1x64xf32, #tpu.memory_space<vmem>>, %arg4: memref<40x64xbf16, #tpu.memory_space<vmem>>) attributes {dimension_semantics = [#tpu.dimension_semantics<parallel>], iteration_bounds = array<i64: 2>, scalar_prefetch = 0 : i64, scratch_operands = 0 : i64, tpu.core_type = #tpu.core_type<tc>, window_params = [{transform_indices = @transform_0, window_bounds = array<i64: 40, 448>}, {pipeline_mode = #tpu.pipeline_mode<synchronous>, transform_indices = @transform_1, window_bounds = array<i64: 448, 64>}, {pipeline_mode = #tpu.pipeline_mode<synchronous>, transform_indices = @transform_2, window_bounds = array<i64: 1, 64>}, {transform_indices = @transform_3, window_bounds = array<i64: 40, 64>}]} {
    %c0 = arith.constant 0 : index
    %c0_0 = arith.constant 0 : index
    %0 = vector.load %arg1[%c0, %c0_0] : memref<40x448xbf16, #tpu.memory_space<vmem>>, vector<40x448xbf16>
    %c0_1 = arith.constant 0 : index
    %c0_2 = arith.constant 0 : index
    %1 = vector.load %arg2[%c0_1, %c0_2] : memref<448x64xbf16, #tpu.memory_space<vmem>>, vector<448x64xbf16>
    %cst = arith.constant dense<0.000000e+00> : vector<40x64xf32>
    %2 = tpu.matmul %0, %1, %cst {dimension_numbers = #tpu.dot_dimension_numbers<[1], [0], [0], [1], [0, 0, 1, 1], [], []>} : vector<40x448xbf16>, vector<448x64xbf16>, vector<40x64xf32> -> vector<40x64xf32>
    %c0_3 = arith.constant 0 : index
    %c0_4 = arith.constant 0 : index
    %3 = vector.load %arg3[%c0_3, %c0_4] : memref<1x64xf32, #tpu.memory_space<vmem>>, vector<1x64xf32>
    %4 = vector.broadcast %3 : vector<1x64xf32> to vector<40x64xf32>
    %5 = arith.addf %2, %4 : vector<40x64xf32>
    %cst_5 = arith.constant 0.000000e+00 : f32
    %6 = vector.broadcast %cst_5 : f32 to vector<40x64xf32>
    %7 = arith.maximumf %5, %6 : vector<40x64xf32>
    %8 = arith.truncf %7 : vector<40x64xf32> to vector<40x64xbf16>
    %c0_6 = arith.constant 0 : index
    %c0_7 = arith.constant 0 : index
    %9 = vector.load %arg4[%c0_6, %c0_7] : memref<40x64xbf16, #tpu.memory_space<vmem>>, vector<40x64xbf16>
    tpu.vector_store %arg4[%c0_6, %c0_7], %8 {strides = array<i32>} : memref<40x64xbf16, #tpu.memory_space<vmem>>, vector<40x64xbf16>,
    return
  }
  func.func @transform_0(%arg0: i32) -> (i32, i32) {
    %c0_i32 = arith.constant 0 : i32
    %c0_i32_0 = arith.constant 0 : i32
    return %arg0, %c0_i32 : i32, i32
  }
  func.func @transform_1(%arg0: i32) -> (i32, i32) {
    %c0_i32 = arith.constant 0 : i32
    %c0_i32_0 = arith.constant 0 : i32
    %c0_i32_1 = arith.constant 0 : i32
    return %c0_i32, %c0_i32_0 : i32, i32
  }
  func.func @transform_2(%arg0: i32) -> (i32, i32) {
    %c0_i32 = arith.constant 0 : i32
    %c0_i32_0 = arith.constant 0 : i32
    %c0_i32_1 = arith.constant 0 : i32
    return %c0_i32, %c0_i32_0 : i32, i32
  }
  func.func @transform_3(%arg0: i32) -> (i32, i32) {
    %c0_i32 = arith.constant 0 : i32
    %c0_i32_0 = arith.constant 0 : i32
    return %arg0, %c0_i32 : i32, i32
  }
}

module attributes {stable_mosaic.version = 11 : i64} {
  func.func @_dual_branch_kernel(%arg0: i32, %arg1: memref<16x576xbf16, #tpu.memory_space<vmem>>, %arg2: memref<16x576xbf16, #tpu.memory_space<vmem>>, %arg3: memref<576x96xbf16, #tpu.memory_space<vmem>>, %arg4: memref<576x96xbf16, #tpu.memory_space<vmem>>, %arg5: memref<1x96xf32, #tpu.memory_space<vmem>>, %arg6: memref<1x96xf32, #tpu.memory_space<vmem>>, %arg7: memref<16x192xbf16, #tpu.memory_space<vmem>>) attributes {dimension_semantics = [#tpu.dimension_semantics<parallel>], iteration_bounds = array<i64: 2>, scalar_prefetch = 0 : i64, scratch_operands = 0 : i64, tpu.core_type = #tpu.core_type<tc>, window_params = [{transform_indices = @transform_0, window_bounds = array<i64: 16, 576>}, {transform_indices = @transform_1, window_bounds = array<i64: 16, 576>}, {pipeline_mode = #tpu.pipeline_mode<synchronous>, transform_indices = @transform_2, window_bounds = array<i64: 576, 96>}, {pipeline_mode = #tpu.pipeline_mode<synchronous>, transform_indices = @transform_3, window_bounds = array<i64: 576, 96>}, {pipeline_mode = #tpu.pipeline_mode<synchronous>, transform_indices = @transform_4, window_bounds = array<i64: 1, 96>}, {pipeline_mode = #tpu.pipeline_mode<synchronous>, transform_indices = @transform_5, window_bounds = array<i64: 1, 96>}, {transform_indices = @transform_6, window_bounds = array<i64: 16, 192>}]} {
    %c0 = arith.constant 0 : index
    %c0_0 = arith.constant 0 : index
    %0 = vector.load %arg1[%c0, %c0_0] : memref<16x576xbf16, #tpu.memory_space<vmem>>, vector<16x576xbf16>
    %c0_1 = arith.constant 0 : index
    %c0_2 = arith.constant 0 : index
    %1 = vector.load %arg3[%c0_1, %c0_2] : memref<576x96xbf16, #tpu.memory_space<vmem>>, vector<576x96xbf16>
    %cst = arith.constant dense<0.000000e+00> : vector<16x96xf32>
    %2 = tpu.matmul %0, %1, %cst {dimension_numbers = #tpu.dot_dimension_numbers<[1], [0], [0], [1], [0, 0, 1, 1], [], []>} : vector<16x576xbf16>, vector<576x96xbf16>, vector<16x96xf32> -> vector<16x96xf32>
    %c0_3 = arith.constant 0 : index
    %c0_4 = arith.constant 0 : index
    %3 = vector.load %arg5[%c0_3, %c0_4] : memref<1x96xf32, #tpu.memory_space<vmem>>, vector<1x96xf32>
    %4 = vector.broadcast %3 : vector<1x96xf32> to vector<16x96xf32>
    %5 = arith.addf %2, %4 : vector<16x96xf32>
    %cst_5 = arith.constant 0.000000e+00 : f32
    %6 = vector.broadcast %cst_5 : f32 to vector<16x96xf32>
    %7 = arith.maximumf %5, %6 : vector<16x96xf32>
    %c0_6 = arith.constant 0 : index
    %c0_7 = arith.constant 0 : index
    %8 = vector.load %arg2[%c0_6, %c0_7] : memref<16x576xbf16, #tpu.memory_space<vmem>>, vector<16x576xbf16>
    %c0_8 = arith.constant 0 : index
    %c0_9 = arith.constant 0 : index
    %9 = vector.load %arg4[%c0_8, %c0_9] : memref<576x96xbf16, #tpu.memory_space<vmem>>, vector<576x96xbf16>
    %cst_10 = arith.constant dense<0.000000e+00> : vector<16x96xf32>
    %10 = tpu.matmul %8, %9, %cst_10 {dimension_numbers = #tpu.dot_dimension_numbers<[1], [0], [0], [1], [0, 0, 1, 1], [], []>} : vector<16x576xbf16>, vector<576x96xbf16>, vector<16x96xf32> -> vector<16x96xf32>
    %c0_11 = arith.constant 0 : index
    %c0_12 = arith.constant 0 : index
    %11 = vector.load %arg6[%c0_11, %c0_12] : memref<1x96xf32, #tpu.memory_space<vmem>>, vector<1x96xf32>
    %12 = vector.broadcast %11 : vector<1x96xf32> to vector<16x96xf32>
    %13 = arith.addf %10, %12 : vector<16x96xf32>
    %cst_13 = arith.constant 0.000000e+00 : f32
    %14 = vector.broadcast %cst_13 : f32 to vector<16x96xf32>
    %15 = arith.maximumf %13, %14 : vector<16x96xf32>
    %16 = tpu.concatenate %7, %15 in 1 : vector<16x96xf32>, vector<16x96xf32> -> vector<16x192xf32>
    %17 = arith.truncf %16 : vector<16x192xf32> to vector<16x192xbf16>
    %c0_14 = arith.constant 0 : index
    %c0_15 = arith.constant 0 : index
    %18 = vector.load %arg7[%c0_14, %c0_15] : memref<16x192xbf16, #tpu.memory_space<vmem>>, vector<16x192xbf16>
    tpu.vector_store %arg7[%c0_14, %c0_15], %17 {strides = array<i32>} : memref<16x192xbf16, #tpu.memory_space<vmem>>, vector<16x192xbf16>,
    return
  }
  func.func @transform_0(%arg0: i32) -> (i32, i32) {
    %c0_i32 = arith.constant 0 : i32
    %c0_i32_0 = arith.constant 0 : i32
    return %arg0, %c0_i32 : i32, i32
  }
  func.func @transform_1(%arg0: i32) -> (i32, i32) {
    %c0_i32 = arith.constant 0 : i32
    %c0_i32_0 = arith.constant 0 : i32
    return %arg0, %c0_i32 : i32, i32
  }
  func.func @transform_2(%arg0: i32) -> (i32, i32) {
    %c0_i32 = arith.constant 0 : i32
    %c0_i32_0 = arith.constant 0 : i32
    %c0_i32_1 = arith.constant 0 : i32
    return %c0_i32, %c0_i32_0 : i32, i32
  }
  func.func @transform_3(%arg0: i32) -> (i32, i32) {
    %c0_i32 = arith.constant 0 : i32
    %c0_i32_0 = arith.constant 0 : i32
    %c0_i32_1 = arith.constant 0 : i32
    return %c0_i32, %c0_i32_0 : i32, i32
  }
  func.func @transform_4(%arg0: i32) -> (i32, i32) {
    %c0_i32 = arith.constant 0 : i32
    %c0_i32_0 = arith.constant 0 : i32
    %c0_i32_1 = arith.constant 0 : i32
    return %c0_i32, %c0_i32_0 : i32, i32
  }
  func.func @transform_5(%arg0: i32) -> (i32, i32) {
    %c0_i32 = arith.constant 0 : i32
    %c0_i32_0 = arith.constant 0 : i32
    %c0_i32_1 = arith.constant 0 : i32
    return %c0_i32, %c0_i32_0 : i32, i32
  }
  func.func @transform_6(%arg0: i32) -> (i32, i32) {
    %c0_i32 = arith.constant 0 : i32
    %c0_i32_0 = arith.constant 0 : i32
    return %arg0, %c0_i32 : i32, i32
  }
}

module attributes {stable_mosaic.version = 11 : i64} {
  func.func @_conv_kernel(%arg0: i32, %arg1: memref<8x1728xbf16, #tpu.memory_space<vmem>>, %arg2: memref<1728x192xbf16, #tpu.memory_space<vmem>>, %arg3: memref<1x192xf32, #tpu.memory_space<vmem>>, %arg4: memref<8x192xbf16, #tpu.memory_space<vmem>>) attributes {dimension_semantics = [#tpu.dimension_semantics<parallel>], iteration_bounds = array<i64: 1>, scalar_prefetch = 0 : i64, scratch_operands = 0 : i64, tpu.core_type = #tpu.core_type<tc>, window_params = [{transform_indices = @transform_0, window_bounds = array<i64: 8, 1728>}, {pipeline_mode = #tpu.pipeline_mode<synchronous>, transform_indices = @transform_1, window_bounds = array<i64: 1728, 192>}, {pipeline_mode = #tpu.pipeline_mode<synchronous>, transform_indices = @transform_2, window_bounds = array<i64: 1, 192>}, {transform_indices = @transform_3, window_bounds = array<i64: 8, 192>}]} {
    %c0 = arith.constant 0 : index
    %c0_0 = arith.constant 0 : index
    %0 = vector.load %arg1[%c0, %c0_0] : memref<8x1728xbf16, #tpu.memory_space<vmem>>, vector<8x1728xbf16>
    %c0_1 = arith.constant 0 : index
    %c0_2 = arith.constant 0 : index
    %1 = vector.load %arg2[%c0_1, %c0_2] : memref<1728x192xbf16, #tpu.memory_space<vmem>>, vector<1728x192xbf16>
    %cst = arith.constant dense<0.000000e+00> : vector<8x192xf32>
    %2 = tpu.matmul %0, %1, %cst {dimension_numbers = #tpu.dot_dimension_numbers<[1], [0], [0], [1], [0, 0, 1, 1], [], []>} : vector<8x1728xbf16>, vector<1728x192xbf16>, vector<8x192xf32> -> vector<8x192xf32>
    %c0_3 = arith.constant 0 : index
    %c0_4 = arith.constant 0 : index
    %3 = vector.load %arg3[%c0_3, %c0_4] : memref<1x192xf32, #tpu.memory_space<vmem>>, vector<1x192xf32>
    %4 = vector.broadcast %3 : vector<1x192xf32> to vector<8x192xf32>
    %5 = arith.addf %2, %4 : vector<8x192xf32>
    %cst_5 = arith.constant 0.000000e+00 : f32
    %6 = vector.broadcast %cst_5 : f32 to vector<8x192xf32>
    %7 = arith.maximumf %5, %6 : vector<8x192xf32>
    %8 = arith.truncf %7 : vector<8x192xf32> to vector<8x192xbf16>
    %c0_6 = arith.constant 0 : index
    %c0_7 = arith.constant 0 : index
    %9 = vector.load %arg4[%c0_6, %c0_7] : memref<8x192xbf16, #tpu.memory_space<vmem>>, vector<8x192xbf16>
    tpu.vector_store %arg4[%c0_6, %c0_7], %8 {strides = array<i32>} : memref<8x192xbf16, #tpu.memory_space<vmem>>, vector<8x192xbf16>,
    return
  }
  func.func @transform_0(%arg0: i32) -> (i32, i32) {
    %c0_i32 = arith.constant 0 : i32
    %c0_i32_0 = arith.constant 0 : i32
    return %arg0, %c0_i32 : i32, i32
  }
  func.func @transform_1(%arg0: i32) -> (i32, i32) {
    %c0_i32 = arith.constant 0 : i32
    %c0_i32_0 = arith.constant 0 : i32
    %c0_i32_1 = arith.constant 0 : i32
    return %c0_i32, %c0_i32_0 : i32, i32
  }
  func.func @transform_2(%arg0: i32) -> (i32, i32) {
    %c0_i32 = arith.constant 0 : i32
    %c0_i32_0 = arith.constant 0 : i32
    %c0_i32_1 = arith.constant 0 : i32
    return %c0_i32, %c0_i32_0 : i32, i32
  }
  func.func @transform_3(%arg0: i32) -> (i32, i32) {
    %c0_i32 = arith.constant 0 : i32
    %c0_i32_0 = arith.constant 0 : i32
    return %arg0, %c0_i32 : i32, i32
  }
}

</mosaic_0001>

<llo_original>
// kernel: _lambda_.9
$region0: #{_lambda_.9}
  #allocation0 [shape = 'u32[]', space=smem, size = 0x4, offset = 0x4, fixed_abs, tag = 'smem constant byte address 0x4 - core index']
  #allocation1 [shape = 'u32[144,128]{1,0:T(1,128)}', space=vmem, size = 0x12000, scoped, tag = 'internal scratch']
  %s0 = inlined_call_operand.vmem [shape: bf16[450,36], index: 0, kind: input, shape index: {}]
  %s1 = inlined_call_operand.vmem [shape: bf16[36,32], index: 1, kind: input, shape index: {}]
  %s2 = inlined_call_operand.vmem [shape: f32[1,32], index: 2, kind: input, shape index: {}]
  %s3 = inlined_call_operand.vmem [shape: bf16[450,32], index: 3, kind: output, shape index: {}]
  %s4 = sld [smem:[#allocation0]]
  $region89: #{_lambda_.9} parent=0
    _
  %s6 = ssub.s32 1, %s4
  %s7 = scalar_select 0, %s6, %s4
  $region1: #{_lambda_.9} parent=0
    #allocation2 [shape = 'u8[118784]{0}', space=vmem, size = 0x1d000, scoped, tag = 'output window, operand 0']
    loop: start=0, step=1, limit=4
    $region2: #{_lambda_.9} parent=1 // loop_pre_header
      _
    $region3: #{_lambda_.9} parent=1 // loop_header
      %s9 = sphi 0, %s13
      %p10 = scmp.ge.s32.totalorder %s9, 4
      %s19 = sphi 0, %s21
      %s22 = sphi 0, %s19
      %s23 = sphi 0, %s22
      %s39 = sphi 0, %s23
      %s43 = sphi 0, %s43
      %s45 = sphi 0, %s43
      %s46 = sphi 0, %s45
      %s60 = sphi 0, %s46
      %s64 = sphi 0, %s64
      %s66 = sphi 0, %s64
      %s67 = sphi 0, %s66
      %s81 = sphi 0, %s67
      %s87 = sphi 0, %s89
      %s90 = sphi 0, %s87
      %s91 = sphi 0, %s90
      %s107 = sphi 0, %s91
    $region4: #{_lambda_.9} parent=1 // loop_header_branch
      %12 = sbr.rel (%p10) target = $region8
    $region5: #{_lambda_.9} parent=1 // loop_body
      %s14 = ssub.s32 %s9, 1
      %s15 = ssub.s32 %s9, 2
      %s16 = sadd.s32 %s9, 1
      %s17 = ssub.s32 %s9, %s16
      %p18 = scmp.eq.s32.totalorder %s17, 0
      %s20 = sadd.s32 %s19, 1
      %s21 = scalar_select %p18, %s19, %s20
      %p24 = pneg %p18
      %p25 = scmp.eq.s32.totalorder %s9, 1
      %p26 = por %p24, %p25
      %p27 = scmp.ne.s32.totalorder %s19, %s22
      %p28 = scmp.eq.s32.totalorder %s9, 0
      %p29 = por %p27, %p28
      %p30 = scmp.ne.s32.totalorder %s19, %s22
      %p31 = scmp.eq.s32.totalorder %s14, 1
      %p32 = por %p30, %p31
      %p33 = scmp.ne.s32.totalorder %s22, %s23
      %p34 = scmp.eq.s32.totalorder %s14, 0
      %p35 = por %p33, %p34
      %p36 = scmp.ne.s32.totalorder %s22, %s23
      %p37 = scmp.eq.s32.totalorder %s15, 1
      %p38 = por %p36, %p37
      %p40 = scmp.ne.s32.totalorder %s23, %s39
      %p41 = scmp.eq.s32.totalorder %s15, 0
      %p42 = por %p40, %p41
      %s44 = sadd.s32 %s43, 1
      %p47 = scmp.eq.s32.totalorder %s9, 1
      %p48 = scmp.ne.s32.totalorder %s43, %s45
      %p49 = scmp.eq.s32.totalorder %s9, 0
      %p50 = por %p48, %p49
      %p51 = scmp.ne.s32.totalorder %s43, %s45
      %p52 = scmp.eq.s32.totalorder %s14, 1
      %p53 = por %p51, %p52
      %p54 = scmp.ne.s32.totalorder %s45, %s46
      %p55 = scmp.eq.s32.totalorder %s14, 0
      %p56 = por %p54, %p55
      %p57 = scmp.ne.s32.totalorder %s45, %s46
      %p58 = scmp.eq.s32.totalorder %s15, 1
      %p59 = por %p57, %p58
      %p61 = scmp.ne.s32.totalorder %s46, %s60
      %p62 = scmp.eq.s32.totalorder %s15, 0
      %p63 = por %p61, %p62
      %s65 = sadd.s32 %s64, 1
      %p68 = scmp.eq.s32.totalorder %s9, 1
      %p69 = scmp.ne.s32.totalorder %s64, %s66
      %p70 = scmp.eq.s32.totalorder %s9, 0
      %p71 = por %p69, %p70
      %p72 = scmp.ne.s32.totalorder %s64, %s66
      %p73 = scmp.eq.s32.totalorder %s14, 1
      %p74 = por %p72, %p73
      %p75 = scmp.ne.s32.totalorder %s66, %s67
      %p76 = scmp.eq.s32.totalorder %s14, 0
      %p77 = por %p75, %p76
      %p78 = scmp.ne.s32.totalorder %s66, %s67
      %p79 = scmp.eq.s32.totalorder %s15, 1
      %p80 = por %p78, %p79
      %p82 = scmp.ne.s32.totalorder %s67, %s81
      %p83 = scmp.eq.s32.totalorder %s15, 0
      %p84 = por %p82, %p83
      %s85 = ssub.s32 %s9, %s16
      %p86 = scmp.eq.s32.totalorder %s85, 0
      %s88 = sadd.s32 %s87, 1
      %s89 = scalar_select %p86, %s87, %s88
      %p92 = pneg %p86
      %p93 = scmp.eq.s32.totalorder %s9, 1
      %p94 = por %p92, %p93
      %p95 = scmp.ne.s32.totalorder %s87, %s90
      %p96 = scmp.eq.s32.totalorder %s9, 0
      %p97 = por %p95, %p96
      %p98 = scmp.ne.s32.totalorder %s87, %s90
      %p99 = scmp.eq.s32.totalorder %s14, 1
      %p100 = por %p98, %p99
      %p101 = scmp.ne.s32.totalorder %s90, %s91
      %p102 = scmp.eq.s32.totalorder %s14, 0
      %p103 = por %p101, %p102
      %p104 = scmp.ne.s32.totalorder %s90, %s91
      %p105 = scmp.eq.s32.totalorder %s15, 1
      %p106 = por %p104, %p105
      %p108 = scmp.ne.s32.totalorder %s91, %s107
      %p109 = scmp.eq.s32.totalorder %s15, 0
      %p110 = por %p108, %p109
      %p111 = scmp.le.s32.totalorder 1, %s9
      %p112 = scmp.lt.s32.totalorder %s9, 3
      %p113 = pnand %p111, %p112
      %p114 = pneg %p113
      // Predicated region
      $region9: #{_lambda_.9} parent=5 // pred_check
        _
      $region10: #{_lambda_.9} parent=5 // pred_check_branch
        %116 = sbr.rel (%p113) target = $region12
      $region11: #{_lambda_.9} parent=5 // pred_region
        %s117 = ssub.s32 %s9, 1
        // Predicated region
        $region13: #{_lambda_.9} parent=11 // pred_check
          %p118 = pneg %p56
        $region14: #{_lambda_.9} parent=11 // pred_check_branch
          %120 = sbr.rel (%p118) target = $region16
        $region15: #{_lambda_.9} parent=11 // pred_region
          _
        $region16: #{_lambda_.9} parent=11 // pred_fallthru
          _
        // Predicated region
        $region17: #{_lambda_.9} parent=11 // pred_check
          %p121 = pneg %p77
        $region18: #{_lambda_.9} parent=11 // pred_check_branch
          %123 = sbr.rel (%p121) target = $region20
        $region19: #{_lambda_.9} parent=11 // pred_region
          _
        $region20: #{_lambda_.9} parent=11 // pred_fallthru
          _
      $region12: #{_lambda_.9} parent=5 // pred_fallthru
        _
      %p124 = scmp.lt.s32.totalorder %s9, 2
      // Predicated region
      $region21: #{_lambda_.9} parent=5 // pred_check
        %p125 = pneg %p124
      $region22: #{_lambda_.9} parent=5 // pred_check_branch
        %127 = sbr.rel (%p125) target = $region24
      $region23: #{_lambda_.9} parent=5 // pred_region
        // Predicated region
        $region25: #{_lambda_.9} parent=23 // pred_check
          %p128 = pneg %p29
        $region26: #{_lambda_.9} parent=23 // pred_check_branch
          %130 = sbr.rel (%p128) target = $region28
        $region27: #{_lambda_.9} parent=23 // pred_region
          %s131 = smul.u32 29, %s9
          %s132 = ssub.s32 57, %s131
          %p133 = scmp.lt.s32.totalorder %s132, 29
          %s134 = scalar_select %p133, %s132, 29
          %s135 = smul.u32 64, %s134
          %p136 = scmp.lt.s32.totalorder %s131, 56
          %s137 = scalar_select %p136, %s131, 56
          %s138 = smul.addr %s137, 4
          %s139 = scalar_lea.vmem %s0, %s138
          %s140 = smul.u32 29, %s9
          %s141 = ssub.s32 57, %s140
          %p142 = scmp.lt.s32.totalorder %s141, 29
          %s143 = scalar_select %p142, %s141, 29
          %s144 = smul.u32 64, %s143
        $region28: #{_lambda_.9} parent=23 // pred_fallthru
          _
      $region24: #{_lambda_.9} parent=5 // pred_fallthru
        _
      %p145 = scmp.le.s32.totalorder 1, %s9
      %p146 = scmp.lt.s32.totalorder %s9, 3
      %p147 = pnand %p145, %p146
      %p148 = pneg %p147
      // Predicated region
      $region29: #{_lambda_.9} parent=5 // pred_check
        _
      $region30: #{_lambda_.9} parent=5 // pred_check_branch
        %150 = sbr.rel (%p147) target = $region32
      $region31: #{_lambda_.9} parent=5 // pred_region
        %s151 = ssub.s32 %s9, 1
        %s152 = smul.u32 29, %s14
        %s153 = ssub.s32 57, %s152
        %p154 = scmp.lt.s32.totalorder %s153, 29
        %s155 = scalar_select %p154, %s153, 29
        %s156 = smul.u32 64, %s155
        %p157 = scmp.lt.s32.totalorder %s152, 56
        %s158 = scalar_select %p157, %s152, 56
        %s159 = smul.addr %s158, 4
        %s160 = scalar_lea.vmem %s0, %s159
        %p161 = pneg %p35
        %p162 = pneg %p32
        %p163 = pneg %p56
        %p164 = pneg %p53
        %p165 = pneg %p77
        %p166 = pneg %p74
        %p167 = pneg %p103
        %p168 = pneg %p100
        %s169 = sand.u32 %s90, 1
        %s170 = sand.u32 %s90, 1
        %s171 = smul.addr %s170, 116
        %s172 = scalar_lea.vmem [#allocation2], %s171
        %s173 = smul.u32 29, %s14
        %s174 = ssub.s32 57, %s173
        %p175 = scmp.lt.s32.totalorder %s174, 29
        %s176 = scalar_select %p175, %s174, 29
        %s177 = smul.u32 64, %s176
        %p178 = scmp.lt.s32.totalorder %s173, 56
        %s179 = scalar_select %p178, %s173, 56
        %s180 = smul.addr %s179, 4
        %s181 = scalar_lea.vmem %s0, %s180
        %s182 = smul.u32 29, %s14
        %s183 = ssub.s32 57, %s182
        %p184 = scmp.lt.s32.totalorder %s183, 29
        %s185 = scalar_select %p184, %s183, 29
        %s186 = smul.u32 64, %s185
        %s187 = smul.u32 29, %s14
        %s188 = ssub.s32 57, %s187
        %p189 = scmp.lt.s32.totalorder %s188, 29
        %s190 = scalar_select %p189, %s188, 29
        %s191 = smul.u32 64, %s190
        %v193 = vld [vmem:[%s181] sm:$0xf]
        %v194 = vld [vmem:[%s181 + $0x4] sm:$0xf]
        %v195 = vld [vmem:[%s181 + $0x8] sm:$0xf]
        %v196 = vld [vmem:[%s181 + $0xc] sm:$0xf]
        %v197 = vld [vmem:[%s181 + $0x10] sm:$0xf]
        %v198 = vld [vmem:[%s181 + $0x14] sm:$0xf]
        %v199 = vld [vmem:[%s181 + $0x18] sm:$0xf]
        %v200 = vld [vmem:[%s181 + $0x1c] sm:$0xf]
        %v201 = vld [vmem:[%s181 + $0x20] sm:$0xf]
        %v202 = vld [vmem:[%s181 + $0x24] sm:$0xf]
        %v203 = vld [vmem:[%s181 + $0x28] sm:$0xf]
        %v204 = vld [vmem:[%s181 + $0x2c] sm:$0xf]
        %v205 = vld [vmem:[%s181 + $0x30] sm:$0xf]
        %v206 = vld [vmem:[%s181 + $0x34] sm:$0xf]
        %v207 = vld [vmem:[%s181 + $0x38] sm:$0xf]
        %v208 = vld [vmem:[%s181 + $0x3c] sm:$0xf]
        %v209 = vld [vmem:[%s181 + $0x40] sm:$0xf]
        %v210 = vld [vmem:[%s181 + $0x44] sm:$0xf]
        %v211 = vld [vmem:[%s181 + $0x48] sm:$0xf]
        %v212 = vld [vmem:[%s181 + $0x4c] sm:$0xf]
        %v213 = vld [vmem:[%s181 + $0x50] sm:$0xf]
        %v214 = vld [vmem:[%s181 + $0x54] sm:$0xf]
        %v215 = vld [vmem:[%s181 + $0x58] sm:$0xf]
        %v216 = vld [vmem:[%s181 + $0x5c] sm:$0xf]
        %v217 = vld [vmem:[%s181 + $0x60] sm:$0xf]
        %v218 = vld [vmem:[%s181 + $0x64] sm:$0xf]
        %v219 = vld [vmem:[%s181 + $0x68] sm:$0xf]
        %v220 = vld [vmem:[%s181 + $0x6c] sm:$0xf]
        %v221 = vld [vmem:[%s181 + $0x70] sm:$0xf]
        %v222 = vld [vmem:[%s1] sm:$0xf]
        %v223 = vld [vmem:[%s1 + $0x4] sm:$0xf]
        %v224 = vld [vmem:[%s1 + $0x8] sm:$0xf]
        %v225 = vld [vmem:[%s1 + $0xc] sm:$0xf]
        %v226 = vld [vmem:[%s1 + $0x10] sm:$0x3]
        %v227 = vld [vmem:[%s2] sm:$0x1]
        %v229 = vlaneseq
        %v230 = vshrl.u32 %v229, 7
        %v231 = vsub.s32 0, %v230
        %v232 = vrot.slane %v227, %v231
        %v263 = vunpack.c.l.b16 %v193
        %v264 = vunpack.c.l.b16 %v194
        %v265 = vunpack.c.l.b16 %v195
        %v266 = vunpack.c.l.b16 %v196
        %v267 = vunpack.c.l.b16 %v197
        %v268 = vunpack.c.l.b16 %v198
        %v269 = vunpack.c.l.b16 %v199
        %v270 = vunpack.c.l.b16 %v200
        %v271 = vunpack.c.l.b16 %v201
        %v272 = vunpack.c.l.b16 %v202
        %v273 = vunpack.c.l.b16 %v203
        %v274 = vunpack.c.l.b16 %v204
        %v275 = vunpack.c.l.b16 %v205
        %v276 = vunpack.c.l.b16 %v206
        %v277 = vunpack.c.l.b16 %v207
        %v278 = vunpack.c.l.b16 %v208
        %v279 = vunpack.c.l.b16 %v209
        %v280 = vunpack.c.l.b16 %v210
        %v281 = vunpack.c.l.b16 %v211
        %v282 = vunpack.c.l.b16 %v212
        %v283 = vunpack.c.l.b16 %v213
        %v284 = vunpack.c.l.b16 %v214
        %v285 = vunpack.c.l.b16 %v215
        %v286 = vunpack.c.l.b16 %v216
        %v287 = vunpack.c.l.b16 %v217
        %v288 = vunpack.c.l.b16 %v218
        %v289 = vunpack.c.l.b16 %v219
        %v290 = vunpack.c.l.b16 %v220
        %v291 = vunpack.c.l.b16 %v221
        %v292 = vpack.c.b16 %v264, %v263
        %v293 = vpack.c.b16 %v266, %v265
        %v294 = vpack.c.b16 %v268, %v267
        %v295 = vpack.c.b16 %v270, %v269
        %v296 = vpack.c.b16 %v272, %v271
        %v297 = vpack.c.b16 %v274, %v273
        %v298 = vpack.c.b16 %v276, %v275
        %v299 = vpack.c.b16 %v278, %v277
        %v300 = vpack.c.b16 %v280, %v279
        %v301 = vpack.c.b16 %v282, %v281
        %v302 = vpack.c.b16 %v284, %v283
        %v303 = vpack.c.b16 %v286, %v285
        %v304 = vpack.c.b16 %v288, %v287
        %v305 = vpack.c.b16 %v290, %v289
        %v306 = vpack.c.b16 %v291, %v291
        %v312 = vunpack.c.l.b16 %v222
        %v313 = vunpack.c.l.b16 %v223
        %v314 = vunpack.c.l.b16 %v224
        %v315 = vunpack.c.l.b16 %v225
        %v316 = vunpack.c.l.b16 %v226
        %v317 = vpack.c.b16 %v313, %v312
        %v318 = vpack.c.b16 %v315, %v314
        %v319 = vpack.c.b16 %v316, %v316
        %vm322 = vcmask 293888
        %v324 = vsel %vm322, %v292, 0
        %v327 = vsel %vm322, %v293, 0
        %v330 = vsel %vm322, %v294, 0
        %v333 = vsel %vm322, %v295, 0
        %v336 = vsel %vm322, %v296, 0
        %v339 = vsel %vm322, %v297, 0
        %v342 = vsel %vm322, %v298, 0
        %v345 = vsel %vm322, %v299, 0
        %v348 = vsel %vm322, %v300, 0
        %v351 = vsel %vm322, %v301, 0
        %v354 = vsel %vm322, %v302, 0
        %v357 = vsel %vm322, %v303, 0
        %v360 = vsel %vm322, %v304, 0
        %v363 = vsel %vm322, %v305, 0
        %v366 = vsel %vm322, %v306, 0
        %vm368 = vcmask 1041408
        %v370 = vsel %vm368, %v319, 0
        %372 = vmatprep.subr.bf16.mxu0 0
        %373 = vmatpush1.bf16.msra.mxu0 %v317
        %374 = vmatprep.subr.bf16.mxu0 0
        %375 = vmatpush1.bf16.msra.mxu0 %v318
        %376 = vmatprep.subr.bf16.mxu0 0
        %377 = vmatpush1.bf16.msra.mxu0 %v370
        %378 = vmatprep.subr.bf16.mxu0 0
        %379 = vmatpush1.bf16.msra.mxu0 0
        %380 = vmatprep.subr.bf16.mxu0 0
        %381 = vmatpush1.bf16.msra.mxu0 0
        %382 = vmatprep.subr.bf16.mxu0 0
        %383 = vmatpush1.bf16.msra.mxu0 0
        %384 = vmatprep.subr.bf16.mxu0 0
        %385 = vmatpush1.bf16.msra.mxu0 0
        %386 = vmatprep.subr.bf16.mxu0 0
        %387 = vmatpush1.bf16.msra.mxu0 0
        %388 = vmatprep.subr.bf16.mxu0 0
        %389 = vmatpush1.bf16.msra.mxu0 0
        %390 = vmatprep.subr.bf16.mxu0 0
        %391 = vmatpush1.bf16.msra.mxu0 0
        %392 = vmatprep.subr.bf16.mxu0 0
        %393 = vmatpush1.bf16.msra.mxu0 0
        %394 = vmatprep.subr.bf16.mxu0 0
        %395 = vmatpush1.bf16.msra.mxu0 0
        %396 = vmatprep.subr.bf16.mxu0 0
        %397 = vmatpush1.bf16.msra.mxu0 0
        %398 = vmatprep.subr.bf16.mxu0 0
        %399 = vmatpush1.bf16.msra.mxu0 0
        %400 = vmatprep.subr.bf16.mxu0 0
        %401 = vmatpush1.bf16.msra.mxu0 0
        %402 = vmatprep.subr.bf16.mxu0 0
        %403 = vmatpush1.bf16.msra.mxu0 0
        %404 = vmatprep.mubr.bf16.mxu0 0
        %405 = vmatmul.mubr.bf16.gmra.mrb[0].mxu0 %v324
        %v406 = vpop.f32.mrb[0].mxu0
        %v407 = vadd.f32 %v232, %v406
        %v408 = vpop.f32.mrb[0].mxu0
        %v409 = vpop.f32.mrb[0].mxu0
        %v410 = vadd.f32 %v232, %v409
        %v411 = vpop.f32.mrb[0].mxu0
        %412 = vmatprep.mubr.bf16.mxu0 0
        %413 = vmatmul.mubr.bf16.gmra.mrb[0].mxu0 %v327
        %v414 = vpop.f32.mrb[0].mxu0
        %v415 = vadd.f32 %v232, %v414
        %v416 = vpop.f32.mrb[0].mxu0
        %v417 = vpop.f32.mrb[0].mxu0
        %v418 = vadd.f32 %v232, %v417
        %v419 = vpop.f32.mrb[0].mxu0
        %420 = vmatprep.mubr.bf16.mxu0 0
        %421 = vmatmul.mubr.bf16.gmra.mrb[0].mxu0 %v330
        %v422 = vpop.f32.mrb[0].mxu0
        %v423 = vadd.f32 %v232, %v422
        %v424 = vpop.f32.mrb[0].mxu0
        %v425 = vpop.f32.mrb[0].mxu0
        %v426 = vadd.f32 %v232, %v425
        %v427 = vpop.f32.mrb[0].mxu0
        %428 = vmatprep.mubr.bf16.mxu0 0
        %429 = vmatmul.mubr.bf16.gmra.mrb[0].mxu0 %v333
        %v430 = vpop.f32.mrb[0].mxu0
        %v431 = vadd.f32 %v232, %v430
        %v432 = vpop.f32.mrb[0].mxu0
        %v433 = vpop.f32.mrb[0].mxu0
        %v434 = vadd.f32 %v232, %v433
        %v435 = vpop.f32.mrb[0].mxu0
        %436 = vmatprep.mubr.bf16.mxu0 0
        %437 = vmatmul.mubr.bf16.gmra.mrb[0].mxu0 %v336
        %v438 = vpop.f32.mrb[0].mxu0
        %v439 = vadd.f32 %v232, %v438
        %v440 = vpop.f32.mrb[0].mxu0
        %v441 = vpop.f32.mrb[0].mxu0
        %v442 = vadd.f32 %v232, %v441
        %v443 = vpop.f32.mrb[0].mxu0
        %444 = vmatprep.mubr.bf16.mxu0 0
        %445 = vmatmul.mubr.bf16.gmra.mrb[0].mxu0 %v339
        %v446 = vpop.f32.mrb[0].mxu0
        %v447 = vadd.f32 %v232, %v446
        %v448 = vpop.f32.mrb[0].mxu0
        %v449 = vpop.f32.mrb[0].mxu0
        %v450 = vadd.f32 %v232, %v449
        %v451 = vpop.f32.mrb[0].mxu0
        %452 = vmatprep.mubr.bf16.mxu0 0
        %453 = vmatmul.mubr.bf16.gmra.mrb[0].mxu0 %v342
        %v454 = vpop.f32.mrb[0].mxu0
        %v455 = vadd.f32 %v232, %v454
        %v456 = vpop.f32.mrb[0].mxu0
        %v457 = vpop.f32.mrb[0].mxu0
        %v458 = vadd.f32 %v232, %v457
        %v459 = vpop.f32.mrb[0].mxu0
        %460 = vmatprep.mubr.bf16.mxu0 0
        %461 = vmatmul.mubr.bf16.gmra.mrb[0].mxu0 %v345
        %v462 = vpop.f32.mrb[0].mxu0
        %v463 = vadd.f32 %v232, %v462
        %v464 = vpop.f32.mrb[0].mxu0
        %v465 = vpop.f32.mrb[0].mxu0
        %v466 = vadd.f32 %v232, %v465
        %v467 = vpop.f32.mrb[0].mxu0
        %468 = vmatprep.mubr.bf16.mxu0 0
        %469 = vmatmul.mubr.bf16.gmra.mrb[0].mxu0 %v348
        %v470 = vpop.f32.mrb[0].mxu0
        %v471 = vadd.f32 %v232, %v470
        %v472 = vpop.f32.mrb[0].mxu0
        %v473 = vpop.f32.mrb[0].mxu0
        %v474 = vadd.f32 %v232, %v473
        %v475 = vpop.f32.mrb[0].mxu0
        %476 = vmatprep.mubr.bf16.mxu0 0
        %477 = vmatmul.mubr.bf16.gmra.mrb[0].mxu0 %v351
        %v478 = vpop.f32.mrb[0].mxu0
        %v479 = vadd.f32 %v232, %v478
        %v480 = vpop.f32.mrb[0].mxu0
        %v481 = vpop.f32.mrb[0].mxu0
        %v482 = vadd.f32 %v232, %v481
        %v483 = vpop.f32.mrb[0].mxu0
        %484 = vmatprep.mubr.bf16.mxu0 0
        %485 = vmatmul.mubr.bf16.gmra.mrb[0].mxu0 %v354
        %v486 = vpop.f32.mrb[0].mxu0
        %v487 = vadd.f32 %v232, %v486
        %v488 = vpop.f32.mrb[0].mxu0
        %v489 = vpop.f32.mrb[0].mxu0
        %v490 = vadd.f32 %v232, %v489
        %v491 = vpop.f32.mrb[0].mxu0
        %492 = vmatprep.mubr.bf16.mxu0 0
        %493 = vmatmul.mubr.bf16.gmra.mrb[0].mxu0 %v357
        %v494 = vpop.f32.mrb[0].mxu0
        %v495 = vadd.f32 %v232, %v494
        %v496 = vpop.f32.mrb[0].mxu0
        %v497 = vpop.f32.mrb[0].mxu0
        %v498 = vadd.f32 %v232, %v497
        %v499 = vpop.f32.mrb[0].mxu0
        %500 = vmatprep.mubr.bf16.mxu0 0
        %501 = vmatmul.mubr.bf16.gmra.mrb[0].mxu0 %v360
        %v502 = vpop.f32.mrb[0].mxu0
        %v503 = vadd.f32 %v232, %v502
        %v504 = vpop.f32.mrb[0].mxu0
        %v505 = vpop.f32.mrb[0].mxu0
        %v506 = vadd.f32 %v232, %v505
        %v507 = vpop.f32.mrb[0].mxu0
        %508 = vmatprep.mubr.bf16.mxu0 0
        %509 = vmatmul.mubr.bf16.gmra.mrb[0].mxu0 %v363
        %v510 = vpop.f32.mrb[0].mxu0
        %v511 = vadd.f32 %v232, %v510
        %v512 = vpop.f32.mrb[0].mxu0
        %v513 = vpop.f32.mrb[0].mxu0
        %v514 = vadd.f32 %v232, %v513
        %v515 = vpop.f32.mrb[0].mxu0
        %516 = vmatprep.mubr.bf16.mxu0 0
        %517 = vmatmul.mubr.bf16.gmra.mrb[0].mxu0 %v366
        %v518 = vpop.f32.mrb[0].mxu0
        %v519 = vadd.f32 %v232, %v518
        %v520 = vpop.f32.mrb[0].mxu0
        %v521 = vpop.f32.mrb[0].mxu0
        %v522 = vpop.f32.mrb[0].mxu0
        %523 = vdwg.mxu0
        %v524 = vmax.f32 %v407, 0.0
        %v525 = vmax.f32 %v410, 0.0
        %v526 = vmax.f32 %v415, 0.0
        %v527 = vmax.f32 %v418, 0.0
        %v528 = vmax.f32 %v423, 0.0
        %v529 = vmax.f32 %v426, 0.0
        %v530 = vmax.f32 %v431, 0.0
        %v531 = vmax.f32 %v434, 0.0
        %v532 = vmax.f32 %v439, 0.0
        %v533 = vmax.f32 %v442, 0.0
        %v534 = vmax.f32 %v447, 0.0
        %v535 = vmax.f32 %v450, 0.0
        %v536 = vmax.f32 %v455, 0.0
        %v537 = vmax.f32 %v458, 0.0
        %v538 = vmax.f32 %v463, 0.0
        %v539 = vmax.f32 %v466, 0.0
        %v540 = vmax.f32 %v471, 0.0
        %v541 = vmax.f32 %v474, 0.0
        %v542 = vmax.f32 %v479, 0.0
        %v543 = vmax.f32 %v482, 0.0
        %v544 = vmax.f32 %v487, 0.0
        %v545 = vmax.f32 %v490, 0.0
        %v546 = vmax.f32 %v495, 0.0
        %v547 = vmax.f32 %v498, 0.0
        %v548 = vmax.f32 %v503, 0.0
        %v549 = vmax.f32 %v506, 0.0
        %v550 = vmax.f32 %v511, 0.0
        %v551 = vmax.f32 %v514, 0.0
        %v552 = vmax.f32 %v519, 0.0
        %v553 = vpack.c.bf16 %v525, %v524
        %v554 = vpack.c.bf16 %v527, %v526
        %v555 = vpack.c.bf16 %v529, %v528
        %v556 = vpack.c.bf16 %v531, %v530
        %v557 = vpack.c.bf16 %v533, %v532
        %v558 = vpack.c.bf16 %v535, %v534
        %v559 = vpack.c.bf16 %v537, %v536
        %v560 = vpack.c.bf16 %v539, %v538
        %v561 = vpack.c.bf16 %v541, %v540
        %v562 = vpack.c.bf16 %v543, %v542
        %v563 = vpack.c.bf16 %v545, %v544
        %v564 = vpack.c.bf16 %v547, %v546
        %v565 = vpack.c.bf16 %v549, %v548
        %v566 = vpack.c.bf16 %v551, %v550
        %v567 = vpack.c.bf16 %v552, %v552
        %v583 = vunpack.c.l.b16 %v553
        %v584 = vunpack.c.h.b16 %v553
        %v585 = vunpack.c.l.b16 %v554
        %v586 = vunpack.c.h.b16 %v554
        %v587 = vunpack.c.l.b16 %v555
        %v588 = vunpack.c.h.b16 %v555
        %v589 = vunpack.c.l.b16 %v556
        %v590 = vunpack.c.h.b16 %v556
        %v591 = vunpack.c.l.b16 %v557
        %v592 = vunpack.c.h.b16 %v557
        %v593 = vunpack.c.l.b16 %v558
        %v594 = vunpack.c.h.b16 %v558
        %v595 = vunpack.c.l.b16 %v559
        %v596 = vunpack.c.h.b16 %v559
        %v597 = vunpack.c.l.b16 %v560
        %v598 = vunpack.c.h.b16 %v560
        %v599 = vunpack.c.l.b16 %v561
        %v600 = vunpack.c.h.b16 %v561
        %v601 = vunpack.c.l.b16 %v562
        %v602 = vunpack.c.h.b16 %v562
        %v603 = vunpack.c.l.b16 %v563
        %v604 = vunpack.c.h.b16 %v563
        %v605 = vunpack.c.l.b16 %v564
        %v606 = vunpack.c.h.b16 %v564
        %v607 = vunpack.c.l.b16 %v565
        %v608 = vunpack.c.h.b16 %v565
        %v609 = vunpack.c.l.b16 %v566
        %v610 = vunpack.c.h.b16 %v566
        %v611 = vunpack.c.l.b16 %v567
        %v612 = vpack.c.b16 %v583, %v583
        %v613 = vpack.c.b16 %v584, %v584
        %v614 = vpack.c.b16 %v585, %v585
        %v615 = vpack.c.b16 %v586, %v586
        %v616 = vpack.c.b16 %v587, %v587
        %v617 = vpack.c.b16 %v588, %v588
        %v618 = vpack.c.b16 %v589, %v589
        %v619 = vpack.c.b16 %v590, %v590
        %v620 = vpack.c.b16 %v591, %v591
        %v621 = vpack.c.b16 %v592, %v592
        %v622 = vpack.c.b16 %v593, %v593
        %v623 = vpack.c.b16 %v594, %v594
        %v624 = vpack.c.b16 %v595, %v595
        %v625 = vpack.c.b16 %v596, %v596
        %v626 = vpack.c.b16 %v597, %v597
        %v627 = vpack.c.b16 %v598, %v598
        %v628 = vpack.c.b16 %v599, %v599
        %v629 = vpack.c.b16 %v600, %v600
        %v630 = vpack.c.b16 %v601, %v601
        %v631 = vpack.c.b16 %v602, %v602
        %v632 = vpack.c.b16 %v603, %v603
        %v633 = vpack.c.b16 %v604, %v604
        %v634 = vpack.c.b16 %v605, %v605
        %v635 = vpack.c.b16 %v606, %v606
        %v636 = vpack.c.b16 %v607, %v607
        %v637 = vpack.c.b16 %v608, %v608
        %v638 = vpack.c.b16 %v609, %v609
        %v639 = vpack.c.b16 %v610, %v610
        %v640 = vpack.c.b16 %v611, %v611
        %vm670 = vcmask 257024
        %671 = vst.msk [vmem:[%s172] sm:$0xf] %vm670, %v612
        %672 = vst.msk [vmem:[%s172 + $0x4] sm:$0xf] %vm670, %v613
        %673 = vst.msk [vmem:[%s172 + $0x8] sm:$0xf] %vm670, %v614
        %674 = vst.msk [vmem:[%s172 + $0xc] sm:$0xf] %vm670, %v615
        %675 = vst.msk [vmem:[%s172 + $0x10] sm:$0xf] %vm670, %v616
        %676 = vst.msk [vmem:[%s172 + $0x14] sm:$0xf] %vm670, %v617
        %677 = vst.msk [vmem:[%s172 + $0x18] sm:$0xf] %vm670, %v618
        %678 = vst.msk [vmem:[%s172 + $0x1c] sm:$0xf] %vm670, %v619
        %679 = vst.msk [vmem:[%s172 + $0x20] sm:$0xf] %vm670, %v620
        %680 = vst.msk [vmem:[%s172 + $0x24] sm:$0xf] %vm670, %v621
        %681 = vst.msk [vmem:[%s172 + $0x28] sm:$0xf] %vm670, %v622
        %682 = vst.msk [vmem:[%s172 + $0x2c] sm:$0xf] %vm670, %v623
        %683 = vst.msk [vmem:[%s172 + $0x30] sm:$0xf] %vm670, %v624
        %684 = vst.msk [vmem:[%s172 + $0x34] sm:$0xf] %vm670, %v625
        %685 = vst.msk [vmem:[%s172 + $0x38] sm:$0xf] %vm670, %v626
        %686 = vst.msk [vmem:[%s172 + $0x3c] sm:$0xf] %vm670, %v627
        %687 = vst.msk [vmem:[%s172 + $0x40] sm:$0xf] %vm670, %v628
        %688 = vst.msk [vmem:[%s172 + $0x44] sm:$0xf] %vm670, %v629
        %689 = vst.msk [vmem:[%s172 + $0x48] sm:$0xf] %vm670, %v630
        %690 = vst.msk [vmem:[%s172 + $0x4c] sm:$0xf] %vm670, %v631
        %691 = vst.msk [vmem:[%s172 + $0x50] sm:$0xf] %vm670, %v632
        %692 = vst.msk [vmem:[%s172 + $0x54] sm:$0xf] %vm670, %v633
        %693 = vst.msk [vmem:[%s172 + $0x58] sm:$0xf] %vm670, %v634
        %694 = vst.msk [vmem:[%s172 + $0x5c] sm:$0xf] %vm670, %v635
        %695 = vst.msk [vmem:[%s172 + $0x60] sm:$0xf] %vm670, %v636
        %696 = vst.msk [vmem:[%s172 + $0x64] sm:$0xf] %vm670, %v637
        %697 = vst.msk [vmem:[%s172 + $0x68] sm:$0xf] %vm670, %v638
        %698 = vst.msk [vmem:[%s172 + $0x6c] sm:$0xf] %vm670, %v639
        %699 = vst.msk [vmem:[%s172 + $0x70] sm:$0xf] %vm670, %v640
        %s700 = sand.u32 %s90, 1
        %s701 = sand.u32 %s90, 1
        %s702 = smul.addr %s701, 116
        %s703 = scalar_lea.vmem [#allocation2], %s702
        // Predicated region
        $region33: #{_lambda_.9} parent=31 // pred_check
          %p704 = pneg %p100
        $region34: #{_lambda_.9} parent=31 // pred_check_branch
          %706 = sbr.rel (%p704) target = $region36
        $region35: #{_lambda_.9} parent=31 // pred_region
          %s707 = smul.u32 29, %s14
          %s708 = ssub.s32 57, %s707
          %p709 = scmp.lt.s32.totalorder %s708, 29
          %s710 = scalar_select %p709, %s708, 29
          %s711 = smul.u32 64, %s710
          %p712 = scmp.ne.s32.totalorder 0, %s711
          %s713 = smul.addr %s707, 4
          %s714 = scalar_lea.vmem %s3, %s713
          // Predicated region
          $region37: #{_lambda_.9} parent=35 // pred_check
            %p715 = pneg %p712
          $region38: #{_lambda_.9} parent=35 // pred_check_branch
            %717 = sbr.rel (%p715) target = $region40
          $region39: #{_lambda_.9} parent=35 // pred_region
            // Predicated region
            $region41: #{_lambda_.9} parent=39 // pred_check
              _
            $region42: #{_lambda_.9} parent=39 // pred_check_branch
              %719 = sbr.rel target = $region44
            $region43: #{_lambda_.9} parent=39 // pred_region
              // Predicated region
              $region63: #{_lambda_.9} parent=43 // pred_check
                _
              $region64: #{_lambda_.9} parent=43 // pred_check_branch
                %825 = sbr.rel (0) target = $region66
              $region65: #{_lambda_.9} parent=43 // pred_region
                %s827 = sdiv.u32.pop %s710, 29
                %s828 = srem.u32.pop %s710, 29
                // While loop
                $region67: #{_lambda_.9} parent=65 // loop_pre_header
                  _
                $region68: #{_lambda_.9} parent=65 // loop_header
                  %s830 = sphi 0, %s832
                  %p831 = scmp.ge.s32.totalorder %s830, %s827
                  %s835 = sphi 0, %s898
                  %s836 = sphi %s703, %s901
                  %s837 = sphi %s714, %s902
                $region69: #{_lambda_.9} parent=65 // loop_header_branch
                  %834 = sbr.rel (%p831) target = $region73
                $region70: #{_lambda_.9} parent=65 // loop_body
                  %v838 = vld [vmem:[%s836] sm:$0xf]
                  %839 = vst [vmem:[%s837] sm:$0xf] %v838
                  %v840 = vld [vmem:[%s836 + $0x4] sm:$0xf]
                  %841 = vst [vmem:[%s837 + $0x4] sm:$0xf] %v840
                  %v842 = vld [vmem:[%s836 + $0x8] sm:$0xf]
                  %843 = vst [vmem:[%s837 + $0x8] sm:$0xf] %v842
                  %v844 = vld [vmem:[%s836 + $0xc] sm:$0xf]
                  %845 = vst [vmem:[%s837 + $0xc] sm:$0xf] %v844
                  %v846 = vld [vmem:[%s836 + $0x10] sm:$0xf]
                  %847 = vst [vmem:[%s837 + $0x10] sm:$0xf] %v846
                  %v848 = vld [vmem:[%s836 + $0x14] sm:$0xf]
                  %849 = vst [vmem:[%s837 + $0x14] sm:$0xf] %v848
                  %v850 = vld [vmem:[%s836 + $0x18] sm:$0xf]
                  %851 = vst [vmem:[%s837 + $0x18] sm:$0xf] %v850
                  %v852 = vld [vmem:[%s836 + $0x1c] sm:$0xf]
                  %853 = vst [vmem:[%s837 + $0x1c] sm:$0xf] %v852
                  %v854 = vld [vmem:[%s836 + $0x20] sm:$0xf]
                  %855 = vst [vmem:[%s837 + $0x20] sm:$0xf] %v854
                  %v856 = vld [vmem:[%s836 + $0x24] sm:$0xf]
                  %857 = vst [vmem:[%s837 + $0x24] sm:$0xf] %v856
                  %v858 = vld [vmem:[%s836 + $0x28] sm:$0xf]
                  %859 = vst [vmem:[%s837 + $0x28] sm:$0xf] %v858
                  %v860 = vld [vmem:[%s836 + $0x2c] sm:$0xf]
                  %861 = vst [vmem:[%s837 + $0x2c] sm:$0xf] %v860
                  %v862 = vld [vmem:[%s836 + $0x30] sm:$0xf]
                  %863 = vst [vmem:[%s837 + $0x30] sm:$0xf] %v862
                  %v864 = vld [vmem:[%s836 + $0x34] sm:$0xf]
                  %865 = vst [vmem:[%s837 + $0x34] sm:$0xf] %v864
                  %v866 = vld [vmem:[%s836 + $0x38] sm:$0xf]
                  %867 = vst [vmem:[%s837 + $0x38] sm:$0xf] %v866
                  %v868 = vld [vmem:[%s836 + $0x3c] sm:$0xf]
                  %869 = vst [vmem:[%s837 + $0x3c] sm:$0xf] %v868
                  %v870 = vld [vmem:[%s836 + $0x40] sm:$0xf]
                  %871 = vst [vmem:[%s837 + $0x40] sm:$0xf] %v870
                  %v872 = vld [vmem:[%s836 + $0x44] sm:$0xf]
                  %873 = vst [vmem:[%s837 + $0x44] sm:$0xf] %v872
                  %v874 = vld [vmem:[%s836 + $0x48] sm:$0xf]
                  %875 = vst [vmem:[%s837 + $0x48] sm:$0xf] %v874
                  %v876 = vld [vmem:[%s836 + $0x4c] sm:$0xf]
                  %877 = vst [vmem:[%s837 + $0x4c] sm:$0xf] %v876
                  %v878 = vld [vmem:[%s836 + $0x50] sm:$0xf]
                  %879 = vst [vmem:[%s837 + $0x50] sm:$0xf] %v878
                  %v880 = vld [vmem:[%s836 + $0x54] sm:$0xf]
                  %881 = vst [vmem:[%s837 + $0x54] sm:$0xf] %v880
                  %v882 = vld [vmem:[%s836 + $0x58] sm:$0xf]
                  %883 = vst [vmem:[%s837 + $0x58] sm:$0xf] %v882
                  %v884 = vld [vmem:[%s836 + $0x5c] sm:$0xf]
                  %885 = vst [vmem:[%s837 + $0x5c] sm:$0xf] %v884
                  %v886 = vld [vmem:[%s836 + $0x60] sm:$0xf]
                  %887 = vst [vmem:[%s837 + $0x60] sm:$0xf] %v886
                  %v888 = vld [vmem:[%s836 + $0x64] sm:$0xf]
                  %889 = vst [vmem:[%s837 + $0x64] sm:$0xf] %v888
                  %v890 = vld [vmem:[%s836 + $0x68] sm:$0xf]
                  %891 = vst [vmem:[%s837 + $0x68] sm:$0xf] %v890
                  %v892 = vld [vmem:[%s836 + $0x6c] sm:$0xf]
                  %893 = vst [vmem:[%s837 + $0x6c] sm:$0xf] %v892
                  %v894 = vld [vmem:[%s836 + $0x70] sm:$0xf]
                  %895 = vst [vmem:[%s837 + $0x70] sm:$0xf] %v894
                  %s896 = sadd.s32 1, %s835
                  %p897 = scmp.ge.s32.totalorder %s896, %s827
                  %s898 = scalar_select %p897, 0, %s896
                  %s899 = smul.u32 %s898, 116
                  %s900 = smul.u32 %s898, 116
                  %s901 = scalar_lea.vmem %s703, %s899 [#allocation2]
                  %s902 = scalar_lea.vmem %s714, %s900
                $region71: #{_lambda_.9} parent=65 // loop_footer
                  %s832 = sadd.s32 %s830, 1
                $region72: #{_lambda_.9} parent=65 // loop_footer_branch
                  %829 = sbr.rel target = $region68
                $region73: #{_lambda_.9} parent=65 // loop_exit
                  _
                %s903 = sdiv.u32.pop %s710, 29
                %s904 = srem.u32.pop %s710, 29
                %s905 = smul.u32 %s903, 29
                %s906 = smul.u32 4, %s905
                %s907 = scalar_lea.vmem %s703, %s906 [#allocation2]
                %s908 = smul.u32 4, %s905
                %s909 = scalar_lea.vmem %s714, %s908
                // While loop
                $region74: #{_lambda_.9} parent=65 // loop_pre_header
                  _
                $region75: #{_lambda_.9} parent=65 // loop_header
                  %s911 = sphi 0, %s913
                  %p912 = scmp.ge.s32.totalorder %s911, %s904
                  %s916 = sphi 0, %s923
                  %s917 = sphi %s907, %s926
                  %s918 = sphi %s909, %s927
                $region76: #{_lambda_.9} parent=65 // loop_header_branch
                  %915 = sbr.rel (%p912) target = $region80
                $region77: #{_lambda_.9} parent=65 // loop_body
                  %v919 = vld [vmem:[%s917] sm:$0xf]
                  %920 = vst [vmem:[%s918] sm:$0xf] %v919
                  %s921 = sadd.s32 1, %s916
                  %p922 = scmp.ge.s32.totalorder %s921, %s904
                  %s923 = scalar_select %p922, 0, %s921
                  %s924 = smul.u32 %s923, 4
                  %s925 = smul.u32 %s923, 4
                  %s926 = scalar_lea.vmem %s907, %s924 [#allocation2]
                  %s927 = scalar_lea.vmem %s909, %s925
                $region78: #{_lambda_.9} parent=65 // loop_footer
                  %s913 = sadd.s32 %s911, 1
                $region79: #{_lambda_.9} parent=65 // loop_footer_branch
                  %910 = sbr.rel target = $region75
                $region80: #{_lambda_.9} parent=65 // loop_exit
                  _
              $region66: #{_lambda_.9} parent=43 // pred_fallthru
                _
            $region44: #{_lambda_.9} parent=39 // pred_fallthru
              _
            // Predicated region
            $region45: #{_lambda_.9} parent=39 // pred_check
              _
            $region46: #{_lambda_.9} parent=39 // pred_check_branch
              %721 = sbr.rel (0) target = $region48
            $region47: #{_lambda_.9} parent=39 // pred_region
              %s723 = sdiv.u32.pop %s710, 29
              %s724 = srem.u32.pop %s710, 29
              // While loop
              $region49: #{_lambda_.9} parent=47 // loop_pre_header
                _
              $region50: #{_lambda_.9} parent=47 // loop_header
                %s726 = sphi 0, %s728
                %p727 = scmp.ge.s32.totalorder %s726, %s723
                %s731 = sphi 0, %s794
                %s732 = sphi %s703, %s797
                %s733 = sphi %s714, %s798
              $region51: #{_lambda_.9} parent=47 // loop_header_branch
                %730 = sbr.rel (%p727) target = $region55
              $region52: #{_lambda_.9} parent=47 // loop_body
                %v734 = vld [vmem:[%s732] sm:$0xf]
                %735 = vst [vmem:[%s733] sm:$0xf] %v734
                %v736 = vld [vmem:[%s732 + $0x4] sm:$0xf]
                %737 = vst [vmem:[%s733 + $0x4] sm:$0xf] %v736
                %v738 = vld [vmem:[%s732 + $0x8] sm:$0xf]
                %739 = vst [vmem:[%s733 + $0x8] sm:$0xf] %v738
                %v740 = vld [vmem:[%s732 + $0xc] sm:$0xf]
                %741 = vst [vmem:[%s733 + $0xc] sm:$0xf] %v740
                %v742 = vld [vmem:[%s732 + $0x10] sm:$0xf]
                %743 = vst [vmem:[%s733 + $0x10] sm:$0xf] %v742
                %v744 = vld [vmem:[%s732 + $0x14] sm:$0xf]
                %745 = vst [vmem:[%s733 + $0x14] sm:$0xf] %v744
                %v746 = vld [vmem:[%s732 + $0x18] sm:$0xf]
                %747 = vst [vmem:[%s733 + $0x18] sm:$0xf] %v746
                %v748 = vld [vmem:[%s732 + $0x1c] sm:$0xf]
                %749 = vst [vmem:[%s733 + $0x1c] sm:$0xf] %v748
                %v750 = vld [vmem:[%s732 + $0x20] sm:$0xf]
                %751 = vst [vmem:[%s733 + $0x20] sm:$0xf] %v750
                %v752 = vld [vmem:[%s732 + $0x24] sm:$0xf]
                %753 = vst [vmem:[%s733 + $0x24] sm:$0xf] %v752
                %v754 = vld [vmem:[%s732 + $0x28] sm:$0xf]
                %755 = vst [vmem:[%s733 + $0x28] sm:$0xf] %v754
                %v756 = vld [vmem:[%s732 + $0x2c] sm:$0xf]
                %757 = vst [vmem:[%s733 + $0x2c] sm:$0xf] %v756
                %v758 = vld [vmem:[%s732 + $0x30] sm:$0xf]
                %759 = vst [vmem:[%s733 + $0x30] sm:$0xf] %v758
                %v760 = vld [vmem:[%s732 + $0x34] sm:$0xf]
                %761 = vst [vmem:[%s733 + $0x34] sm:$0xf] %v760
                %v762 = vld [vmem:[%s732 + $0x38] sm:$0xf]
                %763 = vst [vmem:[%s733 + $0x38] sm:$0xf] %v762
                %v764 = vld [vmem:[%s732 + $0x3c] sm:$0xf]
                %765 = vst [vmem:[%s733 + $0x3c] sm:$0xf] %v764
                %v766 = vld [vmem:[%s732 + $0x40] sm:$0xf]
                %767 = vst [vmem:[%s733 + $0x40] sm:$0xf] %v766
                %v768 = vld [vmem:[%s732 + $0x44] sm:$0xf]
                %769 = vst [vmem:[%s733 + $0x44] sm:$0xf] %v768
                %v770 = vld [vmem:[%s732 + $0x48] sm:$0xf]
                %771 = vst [vmem:[%s733 + $0x48] sm:$0xf] %v770
                %v772 = vld [vmem:[%s732 + $0x4c] sm:$0xf]
                %773 = vst [vmem:[%s733 + $0x4c] sm:$0xf] %v772
                %v774 = vld [vmem:[%s732 + $0x50] sm:$0xf]
                %775 = vst [vmem:[%s733 + $0x50] sm:$0xf] %v774
                %v776 = vld [vmem:[%s732 + $0x54] sm:$0xf]
                %777 = vst [vmem:[%s733 + $0x54] sm:$0xf] %v776
                %v778 = vld [vmem:[%s732 + $0x58] sm:$0xf]
                %779 = vst [vmem:[%s733 + $0x58] sm:$0xf] %v778
                %v780 = vld [vmem:[%s732 + $0x5c] sm:$0xf]
                %781 = vst [vmem:[%s733 + $0x5c] sm:$0xf] %v780
                %v782 = vld [vmem:[%s732 + $0x60] sm:$0xf]
                %783 = vst [vmem:[%s733 + $0x60] sm:$0xf] %v782
                %v784 = vld [vmem:[%s732 + $0x64] sm:$0xf]
                %785 = vst [vmem:[%s733 + $0x64] sm:$0xf] %v784
                %v786 = vld [vmem:[%s732 + $0x68] sm:$0xf]
                %787 = vst [vmem:[%s733 + $0x68] sm:$0xf] %v786
                %v788 = vld [vmem:[%s732 + $0x6c] sm:$0xf]
                %789 = vst [vmem:[%s733 + $0x6c] sm:$0xf] %v788
                %v790 = vld [vmem:[%s732 + $0x70] sm:$0xf]
                %791 = vst [vmem:[%s733 + $0x70] sm:$0xf] %v790
                %s792 = sadd.s32 1, %s731
                %p793 = scmp.ge.s32.totalorder %s792, %s723
                %s794 = scalar_select %p793, 0, %s792
                %s795 = smul.u32 %s794, 116
                %s796 = smul.u32 %s794, 116
                %s797 = scalar_lea.vmem %s703, %s795 [#allocation2]
                %s798 = scalar_lea.vmem %s714, %s796
              $region53: #{_lambda_.9} parent=47 // loop_footer
                %s728 = sadd.s32 %s726, 1
              $region54: #{_lambda_.9} parent=47 // loop_footer_branch
                %725 = sbr.rel target = $region50
              $region55: #{_lambda_.9} parent=47 // loop_exit
                _
              %s799 = sdiv.u32.pop %s710, 29
              %s800 = srem.u32.pop %s710, 29
              %s801 = smul.u32 %s799, 29
              %s802 = smul.u32 4, %s801
              %s803 = scalar_lea.vmem %s703, %s802 [#allocation2]
              %s804 = smul.u32 4, %s801
              %s805 = scalar_lea.vmem %s714, %s804
              // While loop
              $region56: #{_lambda_.9} parent=47 // loop_pre_header
                _
              $region57: #{_lambda_.9} parent=47 // loop_header
                %s807 = sphi 0, %s809
                %p808 = scmp.ge.s32.totalorder %s807, %s800
                %s812 = sphi 0, %s819
                %s813 = sphi %s803, %s822
                %s814 = sphi %s805, %s823
              $region58: #{_lambda_.9} parent=47 // loop_header_branch
                %811 = sbr.rel (%p808) target = $region62
              $region59: #{_lambda_.9} parent=47 // loop_body
                %v815 = vld [vmem:[%s813] sm:$0xf]
                %816 = vst [vmem:[%s814] sm:$0xf] %v815
                %s817 = sadd.s32 1, %s812
                %p818 = scmp.ge.s32.totalorder %s817, %s800
                %s819 = scalar_select %p818, 0, %s817
                %s820 = smul.u32 %s819, 4
                %s821 = smul.u32 %s819, 4
                %s822 = scalar_lea.vmem %s803, %s820 [#allocation2]
                %s823 = scalar_lea.vmem %s805, %s821
              $region60: #{_lambda_.9} parent=47 // loop_footer
                %s809 = sadd.s32 %s807, 1
              $region61: #{_lambda_.9} parent=47 // loop_footer_branch
                %806 = sbr.rel target = $region57
              $region62: #{_lambda_.9} parent=47 // loop_exit
                _
            $region48: #{_lambda_.9} parent=39 // pred_fallthru
              _
          $region40: #{_lambda_.9} parent=35 // pred_fallthru
            _
          %928 = vnop
        $region36: #{_lambda_.9} parent=31 // pred_fallthru
          _
      $region32: #{_lambda_.9} parent=5 // pred_fallthru
        _
      %p929 = scmp.le.s32.totalorder 2, %s9
      // Predicated region
      $region81: #{_lambda_.9} parent=5 // pred_check
        %p930 = pneg %p929
      $region82: #{_lambda_.9} parent=5 // pred_check_branch
        %932 = sbr.rel (%p930) target = $region84
      $region83: #{_lambda_.9} parent=5 // pred_region
        %s933 = ssub.s32 %s9, 2
        // Predicated region
        $region85: #{_lambda_.9} parent=83 // pred_check
          %p934 = pneg %p106
        $region86: #{_lambda_.9} parent=83 // pred_check_branch
          %936 = sbr.rel (%p934) target = $region88
        $region87: #{_lambda_.9} parent=83 // pred_region
          %s937 = sand.u32 %s91, 1
          %s938 = sand.u32 %s91, 1
          %s939 = smul.addr %s938, 116
          %s940 = scalar_lea.vmem [#allocation2], %s939
        $region88: #{_lambda_.9} parent=83 // pred_fallthru
          _
      $region84: #{_lambda_.9} parent=5 // pred_fallthru
        _
    $region6: #{_lambda_.9} parent=1 // loop_footer
      %s13 = sadd.s32 1, %s9
    $region7: #{_lambda_.9} parent=1 // loop_footer_branch
      %8 = sbr.rel target = $region3
    $region8: #{_lambda_.9} parent=1 // loop_exit
      _

// kernel: _lambda_.10
$region0: #{_lambda_.10}
  #allocation0 [shape = 'u32[]', space=smem, size = 0x4, offset = 0x4, fixed_abs, tag = 'smem constant byte address 0x4 - core index']
  #allocation1 [shape = 'u32[144,128]{1,0:T(1,128)}', space=vmem, size = 0x12000, scoped, tag = 'internal scratch']
  %s0 = inlined_call_operand.vmem [shape: bf16[450,288], index: 0, kind: input, shape index: {}]
  %s1 = inlined_call_operand.vmem [shape: bf16[288,32], index: 1, kind: input, shape index: {}]
  %s2 = inlined_call_operand.vmem [shape: f32[1,32], index: 2, kind: input, shape index: {}]
  %s3 = inlined_call_operand.vmem [shape: bf16[450,32], index: 3, kind: output, shape index: {}]
  %s4 = sld [smem:[#allocation0]]
  $region89: #{_lambda_.10} parent=0
    _
  %s6 = ssub.s32 1, %s4
  %s7 = scalar_select 0, %s6, %s4
  $region1: #{_lambda_.10} parent=0
    #allocation2 [shape = 'u8[118784]{0}', space=vmem, size = 0x1d000, scoped, tag = 'output window, operand 0']
    loop: start=0, step=1, limit=4
    $region2: #{_lambda_.10} parent=1 // loop_pre_header
      _
    $region3: #{_lambda_.10} parent=1 // loop_header
      %s9 = sphi 0, %s13
      %p10 = scmp.ge.s32.totalorder %s9, 4
      %s19 = sphi 0, %s21
      %s22 = sphi 0, %s19
      %s23 = sphi 0, %s22
      %s39 = sphi 0, %s23
      %s43 = sphi 0, %s43
      %s45 = sphi 0, %s43
      %s46 = sphi 0, %s45
      %s60 = sphi 0, %s46
      %s64 = sphi 0, %s64
      %s66 = sphi 0, %s64
      %s67 = sphi 0, %s66
      %s81 = sphi 0, %s67
      %s87 = sphi 0, %s89
      %s90 = sphi 0, %s87
      %s91 = sphi 0, %s90
      %s107 = sphi 0, %s91
    $region4: #{_lambda_.10} parent=1 // loop_header_branch
      %12 = sbr.rel (%p10) target = $region8
    $region5: #{_lambda_.10} parent=1 // loop_body
      %s14 = ssub.s32 %s9, 1
      %s15 = ssub.s32 %s9, 2
      %s16 = sadd.s32 %s9, 1
      %s17 = ssub.s32 %s9, %s16
      %p18 = scmp.eq.s32.totalorder %s17, 0
      %s20 = sadd.s32 %s19, 1
      %s21 = scalar_select %p18, %s19, %s20
      %p24 = pneg %p18
      %p25 = scmp.eq.s32.totalorder %s9, 1
      %p26 = por %p24, %p25
      %p27 = scmp.ne.s32.totalorder %s19, %s22
      %p28 = scmp.eq.s32.totalorder %s9, 0
      %p29 = por %p27, %p28
      %p30 = scmp.ne.s32.totalorder %s19, %s22
      %p31 = scmp.eq.s32.totalorder %s14, 1
      %p32 = por %p30, %p31
      %p33 = scmp.ne.s32.totalorder %s22, %s23
      %p34 = scmp.eq.s32.totalorder %s14, 0
      %p35 = por %p33, %p34
      %p36 = scmp.ne.s32.totalorder %s22, %s23
      %p37 = scmp.eq.s32.totalorder %s15, 1
      %p38 = por %p36, %p37
      %p40 = scmp.ne.s32.totalorder %s23, %s39
      %p41 = scmp.eq.s32.totalorder %s15, 0
      %p42 = por %p40, %p41
      %s44 = sadd.s32 %s43, 1
      %p47 = scmp.eq.s32.totalorder %s9, 1
      %p48 = scmp.ne.s32.totalorder %s43, %s45
      %p49 = scmp.eq.s32.totalorder %s9, 0
      %p50 = por %p48, %p49
      %p51 = scmp.ne.s32.totalorder %s43, %s45
      %p52 = scmp.eq.s32.totalorder %s14, 1
      %p53 = por %p51, %p52
      %p54 = scmp.ne.s32.totalorder %s45, %s46
      %p55 = scmp.eq.s32.totalorder %s14, 0
      %p56 = por %p54, %p55
      %p57 = scmp.ne.s32.totalorder %s45, %s46
      %p58 = scmp.eq.s32.totalorder %s15, 1
      %p59 = por %p57, %p58
      %p61 = scmp.ne.s32.totalorder %s46, %s60
      %p62 = scmp.eq.s32.totalorder %s15, 0
      %p63 = por %p61, %p62
      %s65 = sadd.s32 %s64, 1
      %p68 = scmp.eq.s32.totalorder %s9, 1
      %p69 = scmp.ne.s32.totalorder %s64, %s66
      %p70 = scmp.eq.s32.totalorder %s9, 0
      %p71 = por %p69, %p70
      %p72 = scmp.ne.s32.totalorder %s64, %s66
      %p73 = scmp.eq.s32.totalorder %s14, 1
      %p74 = por %p72, %p73
      %p75 = scmp.ne.s32.totalorder %s66, %s67
      %p76 = scmp.eq.s32.totalorder %s14, 0
      %p77 = por %p75, %p76
      %p78 = scmp.ne.s32.totalorder %s66, %s67
      %p79 = scmp.eq.s32.totalorder %s15, 1
      %p80 = por %p78, %p79
      %p82 = scmp.ne.s32.totalorder %s67, %s81
      %p83 = scmp.eq.s32.totalorder %s15, 0
      %p84 = por %p82, %p83
      %s85 = ssub.s32 %s9, %s16
      %p86 = scmp.eq.s32.totalorder %s85, 0
      %s88 = sadd.s32 %s87, 1
      %s89 = scalar_select %p86, %s87, %s88
      %p92 = pneg %p86
      %p93 = scmp.eq.s32.totalorder %s9, 1
      %p94 = por %p92, %p93
      %p95 = scmp.ne.s32.totalorder %s87, %s90
      %p96 = scmp.eq.s32.totalorder %s9, 0
      %p97 = por %p95, %p96
      %p98 = scmp.ne.s32.totalorder %s87, %s90
      %p99 = scmp.eq.s32.totalorder %s14, 1
      %p100 = por %p98, %p99
      %p101 = scmp.ne.s32.totalorder %s90, %s91
      %p102 = scmp.eq.s32.totalorder %s14, 0
      %p103 = por %p101, %p102
      %p104 = scmp.ne.s32.totalorder %s90, %s91
      %p105 = scmp.eq.s32.totalorder %s15, 1
      %p106 = por %p104, %p105
      %p108 = scmp.ne.s32.totalorder %s91, %s107
      %p109 = scmp.eq.s32.totalorder %s15, 0
      %p110 = por %p108, %p109
      %p111 = scmp.le.s32.totalorder 1, %s9
      %p112 = scmp.lt.s32.totalorder %s9, 3
      %p113 = pnand %p111, %p112
      %p114 = pneg %p113
      // Predicated region
      $region9: #{_lambda_.10} parent=5 // pred_check
        _
      $region10: #{_lambda_.10} parent=5 // pred_check_branch
        %116 = sbr.rel (%p113) target = $region12
      $region11: #{_lambda_.10} parent=5 // pred_region
        %s117 = ssub.s32 %s9, 1
        // Predicated region
        $region13: #{_lambda_.10} parent=11 // pred_check
          %p118 = pneg %p56
        $region14: #{_lambda_.10} parent=11 // pred_check_branch
          %120 = sbr.rel (%p118) target = $region16
        $region15: #{_lambda_.10} parent=11 // pred_region
          _
        $region16: #{_lambda_.10} parent=11 // pred_fallthru
          _
        // Predicated region
        $region17: #{_lambda_.10} parent=11 // pred_check
          %p121 = pneg %p77
        $region18: #{_lambda_.10} parent=11 // pred_check_branch
          %123 = sbr.rel (%p121) target = $region20
        $region19: #{_lambda_.10} parent=11 // pred_region
          _
        $region20: #{_lambda_.10} parent=11 // pred_fallthru
          _
      $region12: #{_lambda_.10} parent=5 // pred_fallthru
        _
      %p124 = scmp.lt.s32.totalorder %s9, 2
      // Predicated region
      $region21: #{_lambda_.10} parent=5 // pred_check
        %p125 = pneg %p124
      $region22: #{_lambda_.10} parent=5 // pred_check_branch
        %127 = sbr.rel (%p125) target = $region24
      $region23: #{_lambda_.10} parent=5 // pred_region
        // Predicated region
        $region25: #{_lambda_.10} parent=23 // pred_check
          %p128 = pneg %p29
        $region26: #{_lambda_.10} parent=23 // pred_check_branch
          %130 = sbr.rel (%p128) target = $region28
        $region27: #{_lambda_.10} parent=23 // pred_region
          %s131 = smul.u32 29, %s9
          %s132 = ssub.s32 57, %s131
          %p133 = scmp.lt.s32.totalorder %s132, 29
          %s134 = scalar_select %p133, %s132, 29
          %s135 = smul.u32 64, %s134
          %s136 = smul.u32 %s135, 3
          %p137 = scmp.lt.s32.totalorder %s131, 56
          %s138 = scalar_select %p137, %s131, 56
          %s139 = smul.addr %s138, 3
          %s140 = smul.addr %s139, 4
          %s141 = scalar_lea.vmem %s0, %s140
          %s142 = smul.u32 29, %s9
          %s143 = ssub.s32 57, %s142
          %p144 = scmp.lt.s32.totalorder %s143, 29
          %s145 = scalar_select %p144, %s143, 29
          %s146 = smul.u32 64, %s145
          %s147 = smul.u32 %s146, 3
        $region28: #{_lambda_.10} parent=23 // pred_fallthru
          _
      $region24: #{_lambda_.10} parent=5 // pred_fallthru
        _
      %p148 = scmp.le.s32.totalorder 1, %s9
      %p149 = scmp.lt.s32.totalorder %s9, 3
      %p150 = pnand %p148, %p149
      %p151 = pneg %p150
      // Predicated region
      $region29: #{_lambda_.10} parent=5 // pred_check
        _
      $region30: #{_lambda_.10} parent=5 // pred_check_branch
        %153 = sbr.rel (%p150) target = $region32
      $region31: #{_lambda_.10} parent=5 // pred_region
        %s154 = ssub.s32 %s9, 1
        %s155 = smul.u32 29, %s14
        %s156 = ssub.s32 57, %s155
        %p157 = scmp.lt.s32.totalorder %s156, 29
        %s158 = scalar_select %p157, %s156, 29
        %s159 = smul.u32 64, %s158
        %s160 = smul.u32 %s159, 3
        %p161 = scmp.lt.s32.totalorder %s155, 56
        %s162 = scalar_select %p161, %s155, 56
        %s163 = smul.addr %s162, 3
        %s164 = smul.addr %s163, 4
        %s165 = scalar_lea.vmem %s0, %s164
        %p166 = pneg %p35
        %p167 = pneg %p32
        %p168 = pneg %p56
        %p169 = pneg %p53
        %p170 = pneg %p77
        %p171 = pneg %p74
        %p172 = pneg %p103
        %p173 = pneg %p100
        %s174 = sand.u32 %s90, 1
        %s175 = sand.u32 %s90, 1
        %s176 = smul.addr %s175, 116
        %s177 = scalar_lea.vmem [#allocation2], %s176
        %s178 = smul.u32 29, %s14
        %s179 = ssub.s32 57, %s178
        %p180 = scmp.lt.s32.totalorder %s179, 29
        %s181 = scalar_select %p180, %s179, 29
        %s182 = smul.u32 64, %s181
        %s183 = smul.u32 %s182, 3
        %p184 = scmp.lt.s32.totalorder %s178, 56
        %s185 = scalar_select %p184, %s178, 56
        %s186 = smul.addr %s185, 3
        %s187 = smul.addr %s186, 4
        %s188 = scalar_lea.vmem %s0, %s187
        %s189 = smul.u32 29, %s14
        %s190 = ssub.s32 57, %s189
        %p191 = scmp.lt.s32.totalorder %s190, 29
        %s192 = scalar_select %p191, %s190, 29
        %s193 = smul.u32 64, %s192
        %s194 = smul.u32 %s193, 3
        %s195 = smul.u32 29, %s14
        %s196 = ssub.s32 57, %s195
        %p197 = scmp.lt.s32.totalorder %s196, 29
        %s198 = scalar_select %p197, %s196, 29
        %s199 = smul.u32 64, %s198
        %v201 = vld [vmem:[%s188] sm:$0xff]
        %v202 = vld [vmem:[%s188 + $0x8] sm:$0xf]
        %v203 = vld [vmem:[%s188 + $0xc] sm:$0xff]
        %v204 = vld [vmem:[%s188 + $0x14] sm:$0xf]
        %v205 = vld [vmem:[%s188 + $0x18] sm:$0xff]
        %v206 = vld [vmem:[%s188 + $0x20] sm:$0xf]
        %v207 = vld [vmem:[%s188 + $0x24] sm:$0xff]
        %v208 = vld [vmem:[%s188 + $0x2c] sm:$0xf]
        %v209 = vld [vmem:[%s188 + $0x30] sm:$0xff]
        %v210 = vld [vmem:[%s188 + $0x38] sm:$0xf]
        %v211 = vld [vmem:[%s188 + $0x3c] sm:$0xff]
        %v212 = vld [vmem:[%s188 + $0x44] sm:$0xf]
        %v213 = vld [vmem:[%s188 + $0x48] sm:$0xff]
        %v214 = vld [vmem:[%s188 + $0x50] sm:$0xf]
        %v215 = vld [vmem:[%s188 + $0x54] sm:$0xff]
        %v216 = vld [vmem:[%s188 + $0x5c] sm:$0xf]
        %v217 = vld [vmem:[%s188 + $0x60] sm:$0xff]
        %v218 = vld [vmem:[%s188 + $0x68] sm:$0xf]
        %v219 = vld [vmem:[%s188 + $0x6c] sm:$0xff]
        %v220 = vld [vmem:[%s188 + $0x74] sm:$0xf]
        %v221 = vld [vmem:[%s188 + $0x78] sm:$0xff]
        %v222 = vld [vmem:[%s188 + $0x80] sm:$0xf]
        %v223 = vld [vmem:[%s188 + $0x84] sm:$0xff]
        %v224 = vld [vmem:[%s188 + $0x8c] sm:$0xf]
        %v225 = vld [vmem:[%s188 + $0x90] sm:$0xff]
        %v226 = vld [vmem:[%s188 + $0x98] sm:$0xf]
        %v227 = vld [vmem:[%s188 + $0x9c] sm:$0xff]
        %v228 = vld [vmem:[%s188 + $0xa4] sm:$0xf]
        %v229 = vld [vmem:[%s188 + $0xa8] sm:$0xff]
        %v230 = vld [vmem:[%s188 + $0xb0] sm:$0xf]
        %v231 = vld [vmem:[%s188 + $0xb4] sm:$0xff]
        %v232 = vld [vmem:[%s188 + $0xbc] sm:$0xf]
        %v233 = vld [vmem:[%s188 + $0xc0] sm:$0xff]
        %v234 = vld [vmem:[%s188 + $0xc8] sm:$0xf]
        %v235 = vld [vmem:[%s188 + $0xcc] sm:$0xff]
        %v236 = vld [vmem:[%s188 + $0xd4] sm:$0xf]
        %v237 = vld [vmem:[%s188 + $0xd8] sm:$0xff]
        %v238 = vld [vmem:[%s188 + $0xe0] sm:$0xf]
        %v239 = vld [vmem:[%s188 + $0xe4] sm:$0xff]
        %v240 = vld [vmem:[%s188 + $0xec] sm:$0xf]
        %v241 = vld [vmem:[%s188 + $0xf0] sm:$0xff]
        %v242 = vld [vmem:[%s188 + $0xf8] sm:$0xf]
        %v243 = vld [vmem:[%s188 + $0xfc] sm:$0xff]
        %v244 = vld [vmem:[%s188 + $0x104] sm:$0xf]
        %v245 = vld [vmem:[%s188 + $0x108] sm:$0xff]
        %v246 = vld [vmem:[%s188 + $0x110] sm:$0xf]
        %v247 = vld [vmem:[%s188 + $0x114] sm:$0xff]
        %v248 = vld [vmem:[%s188 + $0x11c] sm:$0xf]
        %v249 = vld [vmem:[%s188 + $0x120] sm:$0xff]
        %v250 = vld [vmem:[%s188 + $0x128] sm:$0xf]
        %v251 = vld [vmem:[%s188 + $0x12c] sm:$0xff]
        %v252 = vld [vmem:[%s188 + $0x134] sm:$0xf]
        %v253 = vld [vmem:[%s188 + $0x138] sm:$0xff]
        %v254 = vld [vmem:[%s188 + $0x140] sm:$0xf]
        %v255 = vld [vmem:[%s188 + $0x144] sm:$0xff]
        %v256 = vld [vmem:[%s188 + $0x14c] sm:$0xf]
        %v257 = vld [vmem:[%s188 + $0x150] sm:$0xff]
        %v258 = vld [vmem:[%s188 + $0x158] sm:$0xf]
        %v259 = vld [vmem:[%s1] sm:$0xf]
        %v260 = vld [vmem:[%s1 + $0x4] sm:$0xf]
        %v261 = vld [vmem:[%s1 + $0x8] sm:$0xf]
        %v262 = vld [vmem:[%s1 + $0xc] sm:$0xf]
        %v263 = vld [vmem:[%s1 + $0x10] sm:$0xf]
        %v264 = vld [vmem:[%s1 + $0x14] sm:$0xf]
        %v265 = vld [vmem:[%s1 + $0x18] sm:$0xf]
        %v266 = vld [vmem:[%s1 + $0x1c] sm:$0xf]
        %v267 = vld [vmem:[%s1 + $0x20] sm:$0xf]
        %v268 = vld [vmem:[%s1 + $0x24] sm:$0xf]
        %v269 = vld [vmem:[%s1 + $0x28] sm:$0xf]
        %v270 = vld [vmem:[%s1 + $0x2c] sm:$0xf]
        %v271 = vld [vmem:[%s1 + $0x30] sm:$0xf]
        %v272 = vld [vmem:[%s1 + $0x34] sm:$0xf]
        %v273 = vld [vmem:[%s1 + $0x38] sm:$0xf]
        %v274 = vld [vmem:[%s1 + $0x3c] sm:$0xf]
        %v275 = vld [vmem:[%s1 + $0x40] sm:$0xf]
        %v276 = vld [vmem:[%s1 + $0x44] sm:$0xf]
        %v277 = vld [vmem:[%s1 + $0x48] sm:$0xf]
        %v278 = vld [vmem:[%s1 + $0x4c] sm:$0xf]
        %v279 = vld [vmem:[%s1 + $0x50] sm:$0xf]
        %v280 = vld [vmem:[%s1 + $0x54] sm:$0xf]
        %v281 = vld [vmem:[%s1 + $0x58] sm:$0xf]
        %v282 = vld [vmem:[%s1 + $0x5c] sm:$0xf]
        %v283 = vld [vmem:[%s1 + $0x60] sm:$0xf]
        %v284 = vld [vmem:[%s1 + $0x64] sm:$0xf]
        %v285 = vld [vmem:[%s1 + $0x68] sm:$0xf]
        %v286 = vld [vmem:[%s1 + $0x6c] sm:$0xf]
        %v287 = vld [vmem:[%s1 + $0x70] sm:$0xf]
        %v288 = vld [vmem:[%s1 + $0x74] sm:$0xf]
        %v289 = vld [vmem:[%s1 + $0x78] sm:$0xf]
        %v290 = vld [vmem:[%s1 + $0x7c] sm:$0xf]
        %v291 = vld [vmem:[%s1 + $0x80] sm:$0xf]
        %v292 = vld [vmem:[%s1 + $0x84] sm:$0xf]
        %v293 = vld [vmem:[%s1 + $0x88] sm:$0xf]
        %v294 = vld [vmem:[%s1 + $0x8c] sm:$0xf]
        %v295 = vld [vmem:[%s2] sm:$0x1]
        %v297 = vlaneseq
        %v298 = vshrl.u32 %v297, 7
        %v299 = vsub.s32 0, %v298
        %v300 = vrot.slane %v295, %v299
        %v360 = vunpack.c.l.b16 %v201
        %v361 = vunpack.c.h.b16 %v201
        %v362 = vunpack.c.l.b16 %v202
        %v363 = vunpack.c.l.b16 %v203
        %v364 = vunpack.c.h.b16 %v203
        %v365 = vunpack.c.l.b16 %v204
        %v366 = vunpack.c.l.b16 %v205
        %v367 = vunpack.c.h.b16 %v205
        %v368 = vunpack.c.l.b16 %v206
        %v369 = vunpack.c.l.b16 %v207
        %v370 = vunpack.c.h.b16 %v207
        %v371 = vunpack.c.l.b16 %v208
        %v372 = vunpack.c.l.b16 %v209
        %v373 = vunpack.c.h.b16 %v209
        %v374 = vunpack.c.l.b16 %v210
        %v375 = vunpack.c.l.b16 %v211
        %v376 = vunpack.c.h.b16 %v211
        %v377 = vunpack.c.l.b16 %v212
        %v378 = vunpack.c.l.b16 %v213
        %v379 = vunpack.c.h.b16 %v213
        %v380 = vunpack.c.l.b16 %v214
        %v381 = vunpack.c.l.b16 %v215
        %v382 = vunpack.c.h.b16 %v215
        %v383 = vunpack.c.l.b16 %v216
        %v384 = vunpack.c.l.b16 %v217
        %v385 = vunpack.c.h.b16 %v217
        %v386 = vunpack.c.l.b16 %v218
        %v387 = vunpack.c.l.b16 %v219
        %v388 = vunpack.c.h.b16 %v219
        %v389 = vunpack.c.l.b16 %v220
        %v390 = vunpack.c.l.b16 %v221
        %v391 = vunpack.c.h.b16 %v221
        %v392 = vunpack.c.l.b16 %v222
        %v393 = vunpack.c.l.b16 %v223
        %v394 = vunpack.c.h.b16 %v223
        %v395 = vunpack.c.l.b16 %v224
        %v396 = vunpack.c.l.b16 %v225
        %v397 = vunpack.c.h.b16 %v225
        %v398 = vunpack.c.l.b16 %v226
        %v399 = vunpack.c.l.b16 %v227
        %v400 = vunpack.c.h.b16 %v227
        %v401 = vunpack.c.l.b16 %v228
        %v402 = vunpack.c.l.b16 %v229
        %v403 = vunpack.c.h.b16 %v229
        %v404 = vunpack.c.l.b16 %v230
        %v405 = vunpack.c.l.b16 %v231
        %v406 = vunpack.c.h.b16 %v231
        %v407 = vunpack.c.l.b16 %v232
        %v408 = vunpack.c.l.b16 %v233
        %v409 = vunpack.c.h.b16 %v233
        %v410 = vunpack.c.l.b16 %v234
        %v411 = vunpack.c.l.b16 %v235
        %v412 = vunpack.c.h.b16 %v235
        %v413 = vunpack.c.l.b16 %v236
        %v414 = vunpack.c.l.b16 %v237
        %v415 = vunpack.c.h.b16 %v237
        %v416 = vunpack.c.l.b16 %v238
        %v417 = vunpack.c.l.b16 %v239
        %v418 = vunpack.c.h.b16 %v239
        %v419 = vunpack.c.l.b16 %v240
        %v420 = vunpack.c.l.b16 %v241
        %v421 = vunpack.c.h.b16 %v241
        %v422 = vunpack.c.l.b16 %v242
        %v423 = vunpack.c.l.b16 %v243
        %v424 = vunpack.c.h.b16 %v243
        %v425 = vunpack.c.l.b16 %v244
        %v426 = vunpack.c.l.b16 %v245
        %v427 = vunpack.c.h.b16 %v245
        %v428 = vunpack.c.l.b16 %v246
        %v429 = vunpack.c.l.b16 %v247
        %v430 = vunpack.c.h.b16 %v247
        %v431 = vunpack.c.l.b16 %v248
        %v432 = vunpack.c.l.b16 %v249
        %v433 = vunpack.c.h.b16 %v249
        %v434 = vunpack.c.l.b16 %v250
        %v435 = vunpack.c.l.b16 %v251
        %v436 = vunpack.c.h.b16 %v251
        %v437 = vunpack.c.l.b16 %v252
        %v438 = vunpack.c.l.b16 %v253
        %v439 = vunpack.c.h.b16 %v253
        %v440 = vunpack.c.l.b16 %v254
        %v441 = vunpack.c.l.b16 %v255
        %v442 = vunpack.c.h.b16 %v255
        %v443 = vunpack.c.l.b16 %v256
        %v444 = vunpack.c.l.b16 %v257
        %v445 = vunpack.c.h.b16 %v257
        %v446 = vunpack.c.l.b16 %v258
        %v447 = vpack.c.b16 %v363, %v360
        %v448 = vpack.c.b16 %v364, %v361
        %v449 = vpack.c.b16 %v365, %v362
        %v450 = vpack.c.b16 %v369, %v366
        %v451 = vpack.c.b16 %v370, %v367
        %v452 = vpack.c.b16 %v371, %v368
        %v453 = vpack.c.b16 %v375, %v372
        %v454 = vpack.c.b16 %v376, %v373
        %v455 = vpack.c.b16 %v377, %v374
        %v456 = vpack.c.b16 %v381, %v378
        %v457 = vpack.c.b16 %v382, %v379
        %v458 = vpack.c.b16 %v383, %v380
        %v459 = vpack.c.b16 %v387, %v384
        %v460 = vpack.c.b16 %v388, %v385
        %v461 = vpack.c.b16 %v389, %v386
        %v462 = vpack.c.b16 %v393, %v390
        %v463 = vpack.c.b16 %v394, %v391
        %v464 = vpack.c.b16 %v395, %v392
        %v465 = vpack.c.b16 %v399, %v396
        %v466 = vpack.c.b16 %v400, %v397
        %v467 = vpack.c.b16 %v401, %v398
        %v468 = vpack.c.b16 %v405, %v402
        %v469 = vpack.c.b16 %v406, %v403
        %v470 = vpack.c.b16 %v407, %v404
        %v471 = vpack.c.b16 %v411, %v408
        %v472 = vpack.c.b16 %v412, %v409
        %v473 = vpack.c.b16 %v413, %v410
        %v474 = vpack.c.b16 %v417, %v414
        %v475 = vpack.c.b16 %v418, %v415
        %v476 = vpack.c.b16 %v419, %v416
        %v477 = vpack.c.b16 %v423, %v420
        %v478 = vpack.c.b16 %v424, %v421
        %v479 = vpack.c.b16 %v425, %v422
        %v480 = vpack.c.b16 %v429, %v426
        %v481 = vpack.c.b16 %v430, %v427
        %v482 = vpack.c.b16 %v431, %v428
        %v483 = vpack.c.b16 %v435, %v432
        %v484 = vpack.c.b16 %v436, %v433
        %v485 = vpack.c.b16 %v437, %v434
        %v486 = vpack.c.b16 %v441, %v438
        %v487 = vpack.c.b16 %v442, %v439
        %v488 = vpack.c.b16 %v443, %v440
        %v489 = vpack.c.b16 %v444, %v444
        %v490 = vpack.c.b16 %v445, %v445
        %v491 = vpack.c.b16 %v446, %v446
        %v558 = vunpack.c.l.b16 %v259
        %v559 = vunpack.c.l.b16 %v260
        %v560 = vunpack.c.l.b16 %v261
        %v561 = vunpack.c.l.b16 %v262
        %v562 = vunpack.c.l.b16 %v263
        %v563 = vunpack.c.l.b16 %v264
        %v564 = vunpack.c.l.b16 %v265
        %v565 = vunpack.c.l.b16 %v266
        %v566 = vunpack.c.l.b16 %v267
        %v567 = vunpack.c.l.b16 %v268
        %v568 = vunpack.c.l.b16 %v269
        %v569 = vunpack.c.l.b16 %v270
        %v570 = vunpack.c.l.b16 %v271
        %v571 = vunpack.c.l.b16 %v272
        %v572 = vunpack.c.l.b16 %v273
        %v573 = vunpack.c.l.b16 %v274
        %v574 = vunpack.c.l.b16 %v275
        %v575 = vunpack.c.l.b16 %v276
        %v576 = vunpack.c.l.b16 %v277
        %v577 = vunpack.c.l.b16 %v278
        %v578 = vunpack.c.l.b16 %v279
        %v579 = vunpack.c.l.b16 %v280
        %v580 = vunpack.c.l.b16 %v281
        %v581 = vunpack.c.l.b16 %v282
        %v582 = vunpack.c.l.b16 %v283
        %v583 = vunpack.c.l.b16 %v284
        %v584 = vunpack.c.l.b16 %v285
        %v585 = vunpack.c.l.b16 %v286
        %v586 = vunpack.c.l.b16 %v287
        %v587 = vunpack.c.l.b16 %v288
        %v588 = vunpack.c.l.b16 %v289
        %v589 = vunpack.c.l.b16 %v290
        %v590 = vunpack.c.l.b16 %v291
        %v591 = vunpack.c.l.b16 %v292
        %v592 = vunpack.c.l.b16 %v293
        %v593 = vunpack.c.l.b16 %v294
        %v594 = vpack.c.b16 %v559, %v558
        %v595 = vpack.c.b16 %v561, %v560
        %v596 = vpack.c.b16 %v563, %v562
        %v597 = vpack.c.b16 %v565, %v564
        %v598 = vpack.c.b16 %v567, %v566
        %v599 = vpack.c.b16 %v569, %v568
        %v600 = vpack.c.b16 %v571, %v570
        %v601 = vpack.c.b16 %v573, %v572
        %v602 = vpack.c.b16 %v575, %v574
        %v603 = vpack.c.b16 %v577, %v576
        %v604 = vpack.c.b16 %v579, %v578
        %v605 = vpack.c.b16 %v581, %v580
        %v606 = vpack.c.b16 %v583, %v582
        %v607 = vpack.c.b16 %v585, %v584
        %v608 = vpack.c.b16 %v587, %v586
        %v609 = vpack.c.b16 %v589, %v588
        %v610 = vpack.c.b16 %v591, %v590
        %v611 = vpack.c.b16 %v593, %v592
        %vm630 = vcmask 261120
        %v632 = vsel %vm630, %v449, 0
        %v635 = vsel %vm630, %v452, 0
        %v638 = vsel %vm630, %v455, 0
        %v641 = vsel %vm630, %v458, 0
        %v644 = vsel %vm630, %v461, 0
        %v647 = vsel %vm630, %v464, 0
        %v650 = vsel %vm630, %v467, 0
        %v653 = vsel %vm630, %v470, 0
        %v656 = vsel %vm630, %v473, 0
        %v659 = vsel %vm630, %v476, 0
        %v662 = vsel %vm630, %v479, 0
        %v665 = vsel %vm630, %v482, 0
        %v668 = vsel %vm630, %v485, 0
        %v671 = vsel %vm630, %v488, 0
        %v674 = vsel %vm630, %v491, 0
        %676 = vmatprep.subr.bf16.mxu0 0
        %677 = vmatpush1.bf16.msra.mxu0 %v594
        %678 = vmatprep.subr.bf16.mxu0 0
        %679 = vmatpush1.bf16.msra.mxu0 %v595
        %680 = vmatprep.subr.bf16.mxu0 0
        %681 = vmatpush1.bf16.msra.mxu0 %v596
        %682 = vmatprep.subr.bf16.mxu0 0
        %683 = vmatpush1.bf16.msra.mxu0 %v597
        %684 = vmatprep.subr.bf16.mxu0 0
        %685 = vmatpush1.bf16.msra.mxu0 %v598
        %686 = vmatprep.subr.bf16.mxu0 0
        %687 = vmatpush1.bf16.msra.mxu0 %v599
        %688 = vmatprep.subr.bf16.mxu0 0
        %689 = vmatpush1.bf16.msra.mxu0 %v600
        %690 = vmatprep.subr.bf16.mxu0 0
        %691 = vmatpush1.bf16.msra.mxu0 %v601
        %692 = vmatprep.subr.bf16.mxu0 0
        %693 = vmatpush1.bf16.msra.mxu0 %v602
        %694 = vmatprep.subr.bf16.mxu0 0
        %695 = vmatpush1.bf16.msra.mxu0 %v603
        %696 = vmatprep.subr.bf16.mxu0 0
        %697 = vmatpush1.bf16.msra.mxu0 %v604
        %698 = vmatprep.subr.bf16.mxu0 0
        %699 = vmatpush1.bf16.msra.mxu0 %v605
        %700 = vmatprep.subr.bf16.mxu0 0
        %701 = vmatpush1.bf16.msra.mxu0 %v606
        %702 = vmatprep.subr.bf16.mxu0 0
        %703 = vmatpush1.bf16.msra.mxu0 %v607
        %704 = vmatprep.subr.bf16.mxu0 0
        %705 = vmatpush1.bf16.msra.mxu0 %v608
        %706 = vmatprep.subr.bf16.mxu0 0
        %707 = vmatpush1.bf16.msra.mxu0 %v609
        %708 = vmatprep.mubr.bf16.mxu0 %v448
        %709 = vmatmul.mubr.bf16.gmra.mrb[0].mxu0 %v447
        %v710 = vpop.f32.mrb[0].mxu0
        %v711 = vadd.f32 %v300, %v710
        %v712 = vpop.f32.mrb[0].mxu0
        %v713 = vpop.f32.mrb[0].mxu0
        %v714 = vadd.f32 %v300, %v713
        %v715 = vpop.f32.mrb[0].mxu0
        %716 = vmatprep.mubr.bf16.mxu0 %v451
        %717 = vmatmul.mubr.bf16.gmra.mrb[0].mxu0 %v450
        %v718 = vpop.f32.mrb[0].mxu0
        %v719 = vadd.f32 %v300, %v718
        %v720 = vpop.f32.mrb[0].mxu0
        %v721 = vpop.f32.mrb[0].mxu0
        %v722 = vadd.f32 %v300, %v721
        %v723 = vpop.f32.mrb[0].mxu0
        %724 = vmatprep.mubr.bf16.mxu0 %v454
        %725 = vmatmul.mubr.bf16.gmra.mrb[0].mxu0 %v453
        %v726 = vpop.f32.mrb[0].mxu0
        %v727 = vadd.f32 %v300, %v726
        %v728 = vpop.f32.mrb[0].mxu0
        %v729 = vpop.f32.mrb[0].mxu0
        %v730 = vadd.f32 %v300, %v729
        %v731 = vpop.f32.mrb[0].mxu0
        %732 = vmatprep.mubr.bf16.mxu0 %v457
        %733 = vmatmul.mubr.bf16.gmra.mrb[0].mxu0 %v456
        %v734 = vpop.f32.mrb[0].mxu0
        %v735 = vadd.f32 %v300, %v734
        %v736 = vpop.f32.mrb[0].mxu0
        %v737 = vpop.f32.mrb[0].mxu0
        %v738 = vadd.f32 %v300, %v737
        %v739 = vpop.f32.mrb[0].mxu0
        %740 = vmatprep.mubr.bf16.mxu0 %v460
        %741 = vmatmul.mubr.bf16.gmra.mrb[0].mxu0 %v459
        %v742 = vpop.f32.mrb[0].mxu0
        %v743 = vadd.f32 %v300, %v742
        %v744 = vpop.f32.mrb[0].mxu0
        %v745 = vpop.f32.mrb[0].mxu0
        %v746 = vadd.f32 %v300, %v745
        %v747 = vpop.f32.mrb[0].mxu0
        %748 = vmatprep.mubr.bf16.mxu0 %v463
        %749 = vmatmul.mubr.bf16.gmra.mrb[0].mxu0 %v462
        %v750 = vpop.f32.mrb[0].mxu0
        %v751 = vadd.f32 %v300, %v750
        %v752 = vpop.f32.mrb[0].mxu0
        %v753 = vpop.f32.mrb[0].mxu0
        %v754 = vadd.f32 %v300, %v753
        %v755 = vpop.f32.mrb[0].mxu0
        %756 = vmatprep.mubr.bf16.mxu0 %v466
        %757 = vmatmul.mubr.bf16.gmra.mrb[0].mxu0 %v465
        %v758 = vpop.f32.mrb[0].mxu0
        %v759 = vadd.f32 %v300, %v758
        %v760 = vpop.f32.mrb[0].mxu0
        %v761 = vpop.f32.mrb[0].mxu0
        %v762 = vadd.f32 %v300, %v761
        %v763 = vpop.f32.mrb[0].mxu0
        %764 = vmatprep.mubr.bf16.mxu0 %v469
        %765 = vmatmul.mubr.bf16.gmra.mrb[0].mxu0 %v468
        %v766 = vpop.f32.mrb[0].mxu0
        %v767 = vadd.f32 %v300, %v766
        %v768 = vpop.f32.mrb[0].mxu0
        %v769 = vpop.f32.mrb[0].mxu0
        %v770 = vadd.f32 %v300, %v769
        %v771 = vpop.f32.mrb[0].mxu0
        %772 = vmatprep.mubr.bf16.mxu0 %v472
        %773 = vmatmul.mubr.bf16.gmra.mrb[0].mxu0 %v471
        %v774 = vpop.f32.mrb[0].mxu0
        %v775 = vadd.f32 %v300, %v774
        %v776 = vpop.f32.mrb[0].mxu0
        %v777 = vpop.f32.mrb[0].mxu0
        %v778 = vadd.f32 %v300, %v777
        %v779 = vpop.f32.mrb[0].mxu0
        %780 = vmatprep.mubr.bf16.mxu0 %v475
        %781 = vmatmul.mubr.bf16.gmra.mrb[0].mxu0 %v474
        %v782 = vpop.f32.mrb[0].mxu0
        %v783 = vadd.f32 %v300, %v782
        %v784 = vpop.f32.mrb[0].mxu0
        %v785 = vpop.f32.mrb[0].mxu0
        %v786 = vadd.f32 %v300, %v785
        %v787 = vpop.f32.mrb[0].mxu0
        %788 = vmatprep.mubr.bf16.mxu0 %v478
        %789 = vmatmul.mubr.bf16.gmra.mrb[0].mxu0 %v477
        %v790 = vpop.f32.mrb[0].mxu0
        %v791 = vadd.f32 %v300, %v790
        %v792 = vpop.f32.mrb[0].mxu0
        %v793 = vpop.f32.mrb[0].mxu0
        %v794 = vadd.f32 %v300, %v793
        %v795 = vpop.f32.mrb[0].mxu0
        %796 = vmatprep.mubr.bf16.mxu0 %v481
        %797 = vmatmul.mubr.bf16.gmra.mrb[0].mxu0 %v480
        %v798 = vpop.f32.mrb[0].mxu0
        %v799 = vadd.f32 %v300, %v798
        %v800 = vpop.f32.mrb[0].mxu0
        %v801 = vpop.f32.mrb[0].mxu0
        %v802 = vadd.f32 %v300, %v801
        %v803 = vpop.f32.mrb[0].mxu0
        %804 = vmatprep.mubr.bf16.mxu0 %v484
        %805 = vmatmul.mubr.bf16.gmra.mrb[0].mxu0 %v483
        %v806 = vpop.f32.mrb[0].mxu0
        %v807 = vadd.f32 %v300, %v806
        %v808 = vpop.f32.mrb[0].mxu0
        %v809 = vpop.f32.mrb[0].mxu0
        %v810 = vadd.f32 %v300, %v809
        %v811 = vpop.f32.mrb[0].mxu0
        %812 = vmatprep.mubr.bf16.mxu0 %v487
        %813 = vmatmul.mubr.bf16.gmra.mrb[0].mxu0 %v486
        %v814 = vpop.f32.mrb[0].mxu0
        %v815 = vadd.f32 %v300, %v814
        %v816 = vpop.f32.mrb[0].mxu0
        %v817 = vpop.f32.mrb[0].mxu0
        %v818 = vadd.f32 %v300, %v817
        %v819 = vpop.f32.mrb[0].mxu0
        %820 = vmatprep.mubr.bf16.mxu0 %v490
        %821 = vmatmul.mubr.bf16.gmra.mrb[0].mxu0 %v489
        %v822 = vpop.f32.mrb[0].mxu0
        %v823 = vadd.f32 %v300, %v822
        %v824 = vpop.f32.mrb[0].mxu0
        %v825 = vpop.f32.mrb[0].mxu0
        %v826 = vpop.f32.mrb[0].mxu0
        %827 = vdwg.mxu0
        %828 = vmatprep.subr.bf16.mxu0 0
        %829 = vmatpush1.bf16.msra.mxu0 %v610
        %830 = vmatprep.subr.bf16.mxu0 0
        %831 = vmatpush1.bf16.msra.mxu0 %v611
        %832 = vmatprep.subr.bf16.mxu0 0
        %833 = vmatpush1.bf16.msra.mxu0 0
        %834 = vmatprep.subr.bf16.mxu0 0
        %835 = vmatpush1.bf16.msra.mxu0 0
        %836 = vmatprep.subr.bf16.mxu0 0
        %837 = vmatpush1.bf16.msra.mxu0 0
        %838 = vmatprep.subr.bf16.mxu0 0
        %839 = vmatpush1.bf16.msra.mxu0 0
        %840 = vmatprep.subr.bf16.mxu0 0
        %841 = vmatpush1.bf16.msra.mxu0 0
        %842 = vmatprep.subr.bf16.mxu0 0
        %843 = vmatpush1.bf16.msra.mxu0 0
        %844 = vmatprep.subr.bf16.mxu0 0
        %845 = vmatpush1.bf16.msra.mxu0 0
        %846 = vmatprep.subr.bf16.mxu0 0
        %847 = vmatpush1.bf16.msra.mxu0 0
        %848 = vmatprep.subr.bf16.mxu0 0
        %849 = vmatpush1.bf16.msra.mxu0 0
        %850 = vmatprep.subr.bf16.mxu0 0
        %851 = vmatpush1.bf16.msra.mxu0 0
        %852 = vmatprep.subr.bf16.mxu0 0
        %853 = vmatpush1.bf16.msra.mxu0 0
        %854 = vmatprep.subr.bf16.mxu0 0
        %855 = vmatpush1.bf16.msra.mxu0 0
        %856 = vmatprep.subr.bf16.mxu0 0
        %857 = vmatpush1.bf16.msra.mxu0 0
        %858 = vmatprep.subr.bf16.mxu0 0
        %859 = vmatpush1.bf16.msra.mxu0 0
        %860 = vmatprep.mubr.bf16.mxu0 0
        %861 = vmatmul.mubr.bf16.gmra.mrb[0].mxu0 %v632
        %v862 = vpop.f32.mrb[0].mxu0
        %v863 = vadd.f32 %v711, %v862
        %v864 = vpop.f32.mrb[0].mxu0
        %v865 = vpop.f32.mrb[0].mxu0
        %v866 = vadd.f32 %v714, %v865
        %v867 = vpop.f32.mrb[0].mxu0
        %868 = vmatprep.mubr.bf16.mxu0 0
        %869 = vmatmul.mubr.bf16.gmra.mrb[0].mxu0 %v635
        %v870 = vpop.f32.mrb[0].mxu0
        %v871 = vadd.f32 %v719, %v870
        %v872 = vpop.f32.mrb[0].mxu0
        %v873 = vpop.f32.mrb[0].mxu0
        %v874 = vadd.f32 %v722, %v873
        %v875 = vpop.f32.mrb[0].mxu0
        %876 = vmatprep.mubr.bf16.mxu0 0
        %877 = vmatmul.mubr.bf16.gmra.mrb[0].mxu0 %v638
        %v878 = vpop.f32.mrb[0].mxu0
        %v879 = vadd.f32 %v727, %v878
        %v880 = vpop.f32.mrb[0].mxu0
        %v881 = vpop.f32.mrb[0].mxu0
        %v882 = vadd.f32 %v730, %v881
        %v883 = vpop.f32.mrb[0].mxu0
        %884 = vmatprep.mubr.bf16.mxu0 0
        %885 = vmatmul.mubr.bf16.gmra.mrb[0].mxu0 %v641
        %v886 = vpop.f32.mrb[0].mxu0
        %v887 = vadd.f32 %v735, %v886
        %v888 = vpop.f32.mrb[0].mxu0
        %v889 = vpop.f32.mrb[0].mxu0
        %v890 = vadd.f32 %v738, %v889
        %v891 = vpop.f32.mrb[0].mxu0
        %892 = vmatprep.mubr.bf16.mxu0 0
        %893 = vmatmul.mubr.bf16.gmra.mrb[0].mxu0 %v644
        %v894 = vpop.f32.mrb[0].mxu0
        %v895 = vadd.f32 %v743, %v894
        %v896 = vpop.f32.mrb[0].mxu0
        %v897 = vpop.f32.mrb[0].mxu0
        %v898 = vadd.f32 %v746, %v897
        %v899 = vpop.f32.mrb[0].mxu0
        %900 = vmatprep.mubr.bf16.mxu0 0
        %901 = vmatmul.mubr.bf16.gmra.mrb[0].mxu0 %v647
        %v902 = vpop.f32.mrb[0].mxu0
        %v903 = vadd.f32 %v751, %v902
        %v904 = vpop.f32.mrb[0].mxu0
        %v905 = vpop.f32.mrb[0].mxu0
        %v906 = vadd.f32 %v754, %v905
        %v907 = vpop.f32.mrb[0].mxu0
        %908 = vmatprep.mubr.bf16.mxu0 0
        %909 = vmatmul.mubr.bf16.gmra.mrb[0].mxu0 %v650
        %v910 = vpop.f32.mrb[0].mxu0
        %v911 = vadd.f32 %v759, %v910
        %v912 = vpop.f32.mrb[0].mxu0
        %v913 = vpop.f32.mrb[0].mxu0
        %v914 = vadd.f32 %v762, %v913
        %v915 = vpop.f32.mrb[0].mxu0
        %916 = vmatprep.mubr.bf16.mxu0 0
        %917 = vmatmul.mubr.bf16.gmra.mrb[0].mxu0 %v653
        %v918 = vpop.f32.mrb[0].mxu0
        %v919 = vadd.f32 %v767, %v918
        %v920 = vpop.f32.mrb[0].mxu0
        %v921 = vpop.f32.mrb[0].mxu0
        %v922 = vadd.f32 %v770, %v921
        %v923 = vpop.f32.mrb[0].mxu0
        %924 = vmatprep.mubr.bf16.mxu0 0
        %925 = vmatmul.mubr.bf16.gmra.mrb[0].mxu0 %v656
        %v926 = vpop.f32.mrb[0].mxu0
        %v927 = vadd.f32 %v775, %v926
        %v928 = vpop.f32.mrb[0].mxu0
        %v929 = vpop.f32.mrb[0].mxu0
        %v930 = vadd.f32 %v778, %v929
        %v931 = vpop.f32.mrb[0].mxu0
        %932 = vmatprep.mubr.bf16.mxu0 0
        %933 = vmatmul.mubr.bf16.gmra.mrb[0].mxu0 %v659
        %v934 = vpop.f32.mrb[0].mxu0
        %v935 = vadd.f32 %v783, %v934
        %v936 = vpop.f32.mrb[0].mxu0
        %v937 = vpop.f32.mrb[0].mxu0
        %v938 = vadd.f32 %v786, %v937
        %v939 = vpop.f32.mrb[0].mxu0
        %940 = vmatprep.mubr.bf16.mxu0 0
        %941 = vmatmul.mubr.bf16.gmra.mrb[0].mxu0 %v662
        %v942 = vpop.f32.mrb[0].mxu0
        %v943 = vadd.f32 %v791, %v942
        %v944 = vpop.f32.mrb[0].mxu0
        %v945 = vpop.f32.mrb[0].mxu0
        %v946 = vadd.f32 %v794, %v945
        %v947 = vpop.f32.mrb[0].mxu0
        %948 = vmatprep.mubr.bf16.mxu0 0
        %949 = vmatmul.mubr.bf16.gmra.mrb[0].mxu0 %v665
        %v950 = vpop.f32.mrb[0].mxu0
        %v951 = vadd.f32 %v799, %v950
        %v952 = vpop.f32.mrb[0].mxu0
        %v953 = vpop.f32.mrb[0].mxu0
        %v954 = vadd.f32 %v802, %v953
        %v955 = vpop.f32.mrb[0].mxu0
        %956 = vmatprep.mubr.bf16.mxu0 0
        %957 = vmatmul.mubr.bf16.gmra.mrb[0].mxu0 %v668
        %v958 = vpop.f32.mrb[0].mxu0
        %v959 = vadd.f32 %v807, %v958
        %v960 = vpop.f32.mrb[0].mxu0
        %v961 = vpop.f32.mrb[0].mxu0
        %v962 = vadd.f32 %v810, %v961
        %v963 = vpop.f32.mrb[0].mxu0
        %964 = vmatprep.mubr.bf16.mxu0 0
        %965 = vmatmul.mubr.bf16.gmra.mrb[0].mxu0 %v671
        %v966 = vpop.f32.mrb[0].mxu0
        %v967 = vadd.f32 %v815, %v966
        %v968 = vpop.f32.mrb[0].mxu0
        %v969 = vpop.f32.mrb[0].mxu0
        %v970 = vadd.f32 %v818, %v969
        %v971 = vpop.f32.mrb[0].mxu0
        %972 = vmatprep.mubr.bf16.mxu0 0
        %973 = vmatmul.mubr.bf16.gmra.mrb[0].mxu0 %v674
        %v974 = vpop.f32.mrb[0].mxu0
        %v975 = vadd.f32 %v823, %v974
        %v976 = vpop.f32.mrb[0].mxu0
        %v977 = vpop.f32.mrb[0].mxu0
        %v978 = vpop.f32.mrb[0].mxu0
        %979 = vdwg.mxu0
        %v980 = vmax.f32 %v863, 0.0
        %v981 = vmax.f32 %v866, 0.0
        %v982 = vmax.f32 %v871, 0.0
        %v983 = vmax.f32 %v874, 0.0
        %v984 = vmax.f32 %v879, 0.0
        %v985 = vmax.f32 %v882, 0.0
        %v986 = vmax.f32 %v887, 0.0
        %v987 = vmax.f32 %v890, 0.0
        %v988 = vmax.f32 %v895, 0.0
        %v989 = vmax.f32 %v898, 0.0
        %v990 = vmax.f32 %v903, 0.0
        %v991 = vmax.f32 %v906, 0.0
        %v992 = vmax.f32 %v911, 0.0
        %v993 = vmax.f32 %v914, 0.0
        %v994 = vmax.f32 %v919, 0.0
        %v995 = vmax.f32 %v922, 0.0
        %v996 = vmax.f32 %v927, 0.0
        %v997 = vmax.f32 %v930, 0.0
        %v998 = vmax.f32 %v935, 0.0
        %v999 = vmax.f32 %v938, 0.0
        %v1000 = vmax.f32 %v943, 0.0
        %v1001 = vmax.f32 %v946, 0.0
        %v1002 = vmax.f32 %v951, 0.0
        %v1003 = vmax.f32 %v954, 0.0
        %v1004 = vmax.f32 %v959, 0.0
        %v1005 = vmax.f32 %v962, 0.0
        %v1006 = vmax.f32 %v967, 0.0
        %v1007 = vmax.f32 %v970, 0.0
        %v1008 = vmax.f32 %v975, 0.0
        %v1009 = vpack.c.bf16 %v981, %v980
        %v1010 = vpack.c.bf16 %v983, %v982
        %v1011 = vpack.c.bf16 %v985, %v984
        %v1012 = vpack.c.bf16 %v987, %v986
        %v1013 = vpack.c.bf16 %v989, %v988
        %v1014 = vpack.c.bf16 %v991, %v990
        %v1015 = vpack.c.bf16 %v993, %v992
        %v1016 = vpack.c.bf16 %v995, %v994
        %v1017 = vpack.c.bf16 %v997, %v996
        %v1018 = vpack.c.bf16 %v999, %v998
        %v1019 = vpack.c.bf16 %v1001, %v1000
        %v1020 = vpack.c.bf16 %v1003, %v1002
        %v1021 = vpack.c.bf16 %v1005, %v1004
        %v1022 = vpack.c.bf16 %v1007, %v1006
        %v1023 = vpack.c.bf16 %v1008, %v1008
        %v1039 = vunpack.c.l.b16 %v1009
        %v1040 = vunpack.c.h.b16 %v1009
        %v1041 = vunpack.c.l.b16 %v1010
        %v1042 = vunpack.c.h.b16 %v1010
        %v1043 = vunpack.c.l.b16 %v1011
        %v1044 = vunpack.c.h.b16 %v1011
        %v1045 = vunpack.c.l.b16 %v1012
        %v1046 = vunpack.c.h.b16 %v1012
        %v1047 = vunpack.c.l.b16 %v1013
        %v1048 = vunpack.c.h.b16 %v1013
        %v1049 = vunpack.c.l.b16 %v1014
        %v1050 = vunpack.c.h.b16 %v1014
        %v1051 = vunpack.c.l.b16 %v1015
        %v1052 = vunpack.c.h.b16 %v1015
        %v1053 = vunpack.c.l.b16 %v1016
        %v1054 = vunpack.c.h.b16 %v1016
        %v1055 = vunpack.c.l.b16 %v1017
        %v1056 = vunpack.c.h.b16 %v1017
        %v1057 = vunpack.c.l.b16 %v1018
        %v1058 = vunpack.c.h.b16 %v1018
        %v1059 = vunpack.c.l.b16 %v1019
        %v1060 = vunpack.c.h.b16 %v1019
        %v1061 = vunpack.c.l.b16 %v1020
        %v1062 = vunpack.c.h.b16 %v1020
        %v1063 = vunpack.c.l.b16 %v1021
        %v1064 = vunpack.c.h.b16 %v1021
        %v1065 = vunpack.c.l.b16 %v1022
        %v1066 = vunpack.c.h.b16 %v1022
        %v1067 = vunpack.c.l.b16 %v1023
        %v1068 = vpack.c.b16 %v1039, %v1039
        %v1069 = vpack.c.b16 %v1040, %v1040
        %v1070 = vpack.c.b16 %v1041, %v1041
        %v1071 = vpack.c.b16 %v1042, %v1042
        %v1072 = vpack.c.b16 %v1043, %v1043
        %v1073 = vpack.c.b16 %v1044, %v1044
        %v1074 = vpack.c.b16 %v1045, %v1045
        %v1075 = vpack.c.b16 %v1046, %v1046
        %v1076 = vpack.c.b16 %v1047, %v1047
        %v1077 = vpack.c.b16 %v1048, %v1048
        %v1078 = vpack.c.b16 %v1049, %v1049
        %v1079 = vpack.c.b16 %v1050, %v1050
        %v1080 = vpack.c.b16 %v1051, %v1051
        %v1081 = vpack.c.b16 %v1052, %v1052
        %v1082 = vpack.c.b16 %v1053, %v1053
        %v1083 = vpack.c.b16 %v1054, %v1054
        %v1084 = vpack.c.b16 %v1055, %v1055
        %v1085 = vpack.c.b16 %v1056, %v1056
        %v1086 = vpack.c.b16 %v1057, %v1057
        %v1087 = vpack.c.b16 %v1058, %v1058
        %v1088 = vpack.c.b16 %v1059, %v1059
        %v1089 = vpack.c.b16 %v1060, %v1060
        %v1090 = vpack.c.b16 %v1061, %v1061
        %v1091 = vpack.c.b16 %v1062, %v1062
        %v1092 = vpack.c.b16 %v1063, %v1063
        %v1093 = vpack.c.b16 %v1064, %v1064
        %v1094 = vpack.c.b16 %v1065, %v1065
        %v1095 = vpack.c.b16 %v1066, %v1066
        %v1096 = vpack.c.b16 %v1067, %v1067
        %vm1126 = vcmask 257024
        %1127 = vst.msk [vmem:[%s177] sm:$0xf] %vm1126, %v1068
        %1128 = vst.msk [vmem:[%s177 + $0x4] sm:$0xf] %vm1126, %v1069
        %1129 = vst.msk [vmem:[%s177 + $0x8] sm:$0xf] %vm1126, %v1070
        %1130 = vst.msk [vmem:[%s177 + $0xc] sm:$0xf] %vm1126, %v1071
        %1131 = vst.msk [vmem:[%s177 + $0x10] sm:$0xf] %vm1126, %v1072
        %1132 = vst.msk [vmem:[%s177 + $0x14] sm:$0xf] %vm1126, %v1073
        %1133 = vst.msk [vmem:[%s177 + $0x18] sm:$0xf] %vm1126, %v1074
        %1134 = vst.msk [vmem:[%s177 + $0x1c] sm:$0xf] %vm1126, %v1075
        %1135 = vst.msk [vmem:[%s177 + $0x20] sm:$0xf] %vm1126, %v1076
        %1136 = vst.msk [vmem:[%s177 + $0x24] sm:$0xf] %vm1126, %v1077
        %1137 = vst.msk [vmem:[%s177 + $0x28] sm:$0xf] %vm1126, %v1078
        %1138 = vst.msk [vmem:[%s177 + $0x2c] sm:$0xf] %vm1126, %v1079
        %1139 = vst.msk [vmem:[%s177 + $0x30] sm:$0xf] %vm1126, %v1080
        %1140 = vst.msk [vmem:[%s177 + $0x34] sm:$0xf] %vm1126, %v1081
        %1141 = vst.msk [vmem:[%s177 + $0x38] sm:$0xf] %vm1126, %v1082
        %1142 = vst.msk [vmem:[%s177 + $0x3c] sm:$0xf] %vm1126, %v1083
        %1143 = vst.msk [vmem:[%s177 + $0x40] sm:$0xf] %vm1126, %v1084
        %1144 = vst.msk [vmem:[%s177 + $0x44] sm:$0xf] %vm1126, %v1085
        %1145 = vst.msk [vmem:[%s177 + $0x48] sm:$0xf] %vm1126, %v1086
        %1146 = vst.msk [vmem:[%s177 + $0x4c] sm:$0xf] %vm1126, %v1087
        %1147 = vst.msk [vmem:[%s177 + $0x50] sm:$0xf] %vm1126, %v1088
        %1148 = vst.msk [vmem:[%s177 + $0x54] sm:$0xf] %vm1126, %v1089
        %1149 = vst.msk [vmem:[%s177 + $0x58] sm:$0xf] %vm1126, %v1090
        %1150 = vst.msk [vmem:[%s177 + $0x5c] sm:$0xf] %vm1126, %v1091
        %1151 = vst.msk [vmem:[%s177 + $0x60] sm:$0xf] %vm1126, %v1092
        %1152 = vst.msk [vmem:[%s177 + $0x64] sm:$0xf] %vm1126, %v1093
        %1153 = vst.msk [vmem:[%s177 + $0x68] sm:$0xf] %vm1126, %v1094
        %1154 = vst.msk [vmem:[%s177 + $0x6c] sm:$0xf] %vm1126, %v1095
        %1155 = vst.msk [vmem:[%s177 + $0x70] sm:$0xf] %vm1126, %v1096
        %s1156 = sand.u32 %s90, 1
        %s1157 = sand.u32 %s90, 1
        %s1158 = smul.addr %s1157, 116
        %s1159 = scalar_lea.vmem [#allocation2], %s1158
        // Predicated region
        $region33: #{_lambda_.10} parent=31 // pred_check
          %p1160 = pneg %p100
        $region34: #{_lambda_.10} parent=31 // pred_check_branch
          %1162 = sbr.rel (%p1160) target = $region36
        $region35: #{_lambda_.10} parent=31 // pred_region
          %s1163 = smul.u32 29, %s14
          %s1164 = ssub.s32 57, %s1163
          %p1165 = scmp.lt.s32.totalorder %s1164, 29
          %s1166 = scalar_select %p1165, %s1164, 29
          %s1167 = smul.u32 64, %s1166
          %p1168 = scmp.ne.s32.totalorder 0, %s1167
          %s1169 = smul.addr %s1163, 4
          %s1170 = scalar_lea.vmem %s3, %s1169
          // Predicated region
          $region37: #{_lambda_.10} parent=35 // pred_check
            %p1171 = pneg %p1168
          $region38: #{_lambda_.10} parent=35 // pred_check_branch
            %1173 = sbr.rel (%p1171) target = $region40
          $region39: #{_lambda_.10} parent=35 // pred_region
            // Predicated region
            $region41: #{_lambda_.10} parent=39 // pred_check
              _
            $region42: #{_lambda_.10} parent=39 // pred_check_branch
              %1175 = sbr.rel target = $region44
            $region43: #{_lambda_.10} parent=39 // pred_region
              // Predicated region
              $region63: #{_lambda_.10} parent=43 // pred_check
                _
              $region64: #{_lambda_.10} parent=43 // pred_check_branch
                %1281 = sbr.rel (0) target = $region66
              $region65: #{_lambda_.10} parent=43 // pred_region
                %s1283 = sdiv.u32.pop %s1166, 29
                %s1284 = srem.u32.pop %s1166, 29
                // While loop
                $region67: #{_lambda_.10} parent=65 // loop_pre_header
                  _
                $region68: #{_lambda_.10} parent=65 // loop_header
                  %s1286 = sphi 0, %s1288
                  %p1287 = scmp.ge.s32.totalorder %s1286, %s1283
                  %s1291 = sphi 0, %s1354
                  %s1292 = sphi %s1159, %s1357
                  %s1293 = sphi %s1170, %s1358
                $region69: #{_lambda_.10} parent=65 // loop_header_branch
                  %1290 = sbr.rel (%p1287) target = $region73
                $region70: #{_lambda_.10} parent=65 // loop_body
                  %v1294 = vld [vmem:[%s1292] sm:$0xf]
                  %1295 = vst [vmem:[%s1293] sm:$0xf] %v1294
                  %v1296 = vld [vmem:[%s1292 + $0x4] sm:$0xf]
                  %1297 = vst [vmem:[%s1293 + $0x4] sm:$0xf] %v1296
                  %v1298 = vld [vmem:[%s1292 + $0x8] sm:$0xf]
                  %1299 = vst [vmem:[%s1293 + $0x8] sm:$0xf] %v1298
                  %v1300 = vld [vmem:[%s1292 + $0xc] sm:$0xf]
                  %1301 = vst [vmem:[%s1293 + $0xc] sm:$0xf] %v1300
                  %v1302 = vld [vmem:[%s1292 + $0x10] sm:$0xf]
                  %1303 = vst [vmem:[%s1293 + $0x10] sm:$0xf] %v1302
                  %v1304 = vld [vmem:[%s1292 + $0x14] sm:$0xf]
                  %1305 = vst [vmem:[%s1293 + $0x14] sm:$0xf] %v1304
                  %v1306 = vld [vmem:[%s1292 + $0x18] sm:$0xf]
                  %1307 = vst [vmem:[%s1293 + $0x18] sm:$0xf] %v1306
                  %v1308 = vld [vmem:[%s1292 + $0x1c] sm:$0xf]
                  %1309 = vst [vmem:[%s1293 + $0x1c] sm:$0xf] %v1308
                  %v1310 = vld [vmem:[%s1292 + $0x20] sm:$0xf]
                  %1311 = vst [vmem:[%s1293 + $0x20] sm:$0xf] %v1310
                  %v1312 = vld [vmem:[%s1292 + $0x24] sm:$0xf]
                  %1313 = vst [vmem:[%s1293 + $0x24] sm:$0xf] %v1312
                  %v1314 = vld [vmem:[%s1292 + $0x28] sm:$0xf]
                  %1315 = vst [vmem:[%s1293 + $0x28] sm:$0xf] %v1314
                  %v1316 = vld [vmem:[%s1292 + $0x2c] sm:$0xf]
                  %1317 = vst [vmem:[%s1293 + $0x2c] sm:$0xf] %v1316
                  %v1318 = vld [vmem:[%s1292 + $0x30] sm:$0xf]
                  %1319 = vst [vmem:[%s1293 + $0x30] sm:$0xf] %v1318
                  %v1320 = vld [vmem:[%s1292 + $0x34] sm:$0xf]
                  %1321 = vst [vmem:[%s1293 + $0x34] sm:$0xf] %v1320
                  %v1322 = vld [vmem:[%s1292 + $0x38] sm:$0xf]
                  %1323 = vst [vmem:[%s1293 + $0x38] sm:$0xf] %v1322
                  %v1324 = vld [vmem:[%s1292 + $0x3c] sm:$0xf]
                  %1325 = vst [vmem:[%s1293 + $0x3c] sm:$0xf] %v1324
                  %v1326 = vld [vmem:[%s1292 + $0x40] sm:$0xf]
                  %1327 = vst [vmem:[%s1293 + $0x40] sm:$0xf] %v1326
                  %v1328 = vld [vmem:[%s1292 + $0x44] sm:$0xf]
                  %1329 = vst [vmem:[%s1293 + $0x44] sm:$0xf] %v1328
                  %v1330 = vld [vmem:[%s1292 + $0x48] sm:$0xf]
                  %1331 = vst [vmem:[%s1293 + $0x48] sm:$0xf] %v1330
                  %v1332 = vld [vmem:[%s1292 + $0x4c] sm:$0xf]
                  %1333 = vst [vmem:[%s1293 + $0x4c] sm:$0xf] %v1332
                  %v1334 = vld [vmem:[%s1292 + $0x50] sm:$0xf]
                  %1335 = vst [vmem:[%s1293 + $0x50] sm:$0xf] %v1334
                  %v1336 = vld [vmem:[%s1292 + $0x54] sm:$0xf]
                  %1337 = vst [vmem:[%s1293 + $0x54] sm:$0xf] %v1336
                  %v1338 = vld [vmem:[%s1292 + $0x58] sm:$0xf]
                  %1339 = vst [vmem:[%s1293 + $0x58] sm:$0xf] %v1338
                  %v1340 = vld [vmem:[%s1292 + $0x5c] sm:$0xf]
                  %1341 = vst [vmem:[%s1293 + $0x5c] sm:$0xf] %v1340
                  %v1342 = vld [vmem:[%s1292 + $0x60] sm:$0xf]
                  %1343 = vst [vmem:[%s1293 + $0x60] sm:$0xf] %v1342
                  %v1344 = vld [vmem:[%s1292 + $0x64] sm:$0xf]
                  %1345 = vst [vmem:[%s1293 + $0x64] sm:$0xf] %v1344
                  %v1346 = vld [vmem:[%s1292 + $0x68] sm:$0xf]
                  %1347 = vst [vmem:[%s1293 + $0x68] sm:$0xf] %v1346
                  %v1348 = vld [vmem:[%s1292 + $0x6c] sm:$0xf]
                  %1349 = vst [vmem:[%s1293 + $0x6c] sm:$0xf] %v1348
                  %v1350 = vld [vmem:[%s1292 + $0x70] sm:$0xf]
                  %1351 = vst [vmem:[%s1293 + $0x70] sm:$0xf] %v1350
                  %s1352 = sadd.s32 1, %s1291
                  %p1353 = scmp.ge.s32.totalorder %s1352, %s1283
                  %s1354 = scalar_select %p1353, 0, %s1352
                  %s1355 = smul.u32 %s1354, 116
                  %s1356 = smul.u32 %s1354, 116
                  %s1357 = scalar_lea.vmem %s1159, %s1355 [#allocation2]
                  %s1358 = scalar_lea.vmem %s1170, %s1356
                $region71: #{_lambda_.10} parent=65 // loop_footer
                  %s1288 = sadd.s32 %s1286, 1
                $region72: #{_lambda_.10} parent=65 // loop_footer_branch
                  %1285 = sbr.rel target = $region68
                $region73: #{_lambda_.10} parent=65 // loop_exit
                  _
                %s1359 = sdiv.u32.pop %s1166, 29
                %s1360 = srem.u32.pop %s1166, 29
                %s1361 = smul.u32 %s1359, 29
                %s1362 = smul.u32 4, %s1361
                %s1363 = scalar_lea.vmem %s1159, %s1362 [#allocation2]
                %s1364 = smul.u32 4, %s1361
                %s1365 = scalar_lea.vmem %s1170, %s1364
                // While loop
                $region74: #{_lambda_.10} parent=65 // loop_pre_header
                  _
                $region75: #{_lambda_.10} parent=65 // loop_header
                  %s1367 = sphi 0, %s1369
                  %p1368 = scmp.ge.s32.totalorder %s1367, %s1360
                  %s1372 = sphi 0, %s1379
                  %s1373 = sphi %s1363, %s1382
                  %s1374 = sphi %s1365, %s1383
                $region76: #{_lambda_.10} parent=65 // loop_header_branch
                  %1371 = sbr.rel (%p1368) target = $region80
                $region77: #{_lambda_.10} parent=65 // loop_body
                  %v1375 = vld [vmem:[%s1373] sm:$0xf]
                  %1376 = vst [vmem:[%s1374] sm:$0xf] %v1375
                  %s1377 = sadd.s32 1, %s1372
                  %p1378 = scmp.ge.s32.totalorder %s1377, %s1360
                  %s1379 = scalar_select %p1378, 0, %s1377
                  %s1380 = smul.u32 %s1379, 4
                  %s1381 = smul.u32 %s1379, 4
                  %s1382 = scalar_lea.vmem %s1363, %s1380 [#allocation2]
                  %s1383 = scalar_lea.vmem %s1365, %s1381
                $region78: #{_lambda_.10} parent=65 // loop_footer
                  %s1369 = sadd.s32 %s1367, 1
                $region79: #{_lambda_.10} parent=65 // loop_footer_branch
                  %1366 = sbr.rel target = $region75
                $region80: #{_lambda_.10} parent=65 // loop_exit
                  _
              $region66: #{_lambda_.10} parent=43 // pred_fallthru
                _
            $region44: #{_lambda_.10} parent=39 // pred_fallthru
              _
            // Predicated region
            $region45: #{_lambda_.10} parent=39 // pred_check
              _
            $region46: #{_lambda_.10} parent=39 // pred_check_branch
              %1177 = sbr.rel (0) target = $region48
            $region47: #{_lambda_.10} parent=39 // pred_region
              %s1179 = sdiv.u32.pop %s1166, 29
              %s1180 = srem.u32.pop %s1166, 29
              // While loop
              $region49: #{_lambda_.10} parent=47 // loop_pre_header
                _
              $region50: #{_lambda_.10} parent=47 // loop_header
                %s1182 = sphi 0, %s1184
                %p1183 = scmp.ge.s32.totalorder %s1182, %s1179
                %s1187 = sphi 0, %s1250
                %s1188 = sphi %s1159, %s1253
                %s1189 = sphi %s1170, %s1254
              $region51: #{_lambda_.10} parent=47 // loop_header_branch
                %1186 = sbr.rel (%p1183) target = $region55
              $region52: #{_lambda_.10} parent=47 // loop_body
                %v1190 = vld [vmem:[%s1188] sm:$0xf]
                %1191 = vst [vmem:[%s1189] sm:$0xf] %v1190
                %v1192 = vld [vmem:[%s1188 + $0x4] sm:$0xf]
                %1193 = vst [vmem:[%s1189 + $0x4] sm:$0xf] %v1192
                %v1194 = vld [vmem:[%s1188 + $0x8] sm:$0xf]
                %1195 = vst [vmem:[%s1189 + $0x8] sm:$0xf] %v1194
                %v1196 = vld [vmem:[%s1188 + $0xc] sm:$0xf]
                %1197 = vst [vmem:[%s1189 + $0xc] sm:$0xf] %v1196
                %v1198 = vld [vmem:[%s1188 + $0x10] sm:$0xf]
                %1199 = vst [vmem:[%s1189 + $0x10] sm:$0xf] %v1198
                %v1200 = vld [vmem:[%s1188 + $0x14] sm:$0xf]
                %1201 = vst [vmem:[%s1189 + $0x14] sm:$0xf] %v1200
                %v1202 = vld [vmem:[%s1188 + $0x18] sm:$0xf]
                %1203 = vst [vmem:[%s1189 + $0x18] sm:$0xf] %v1202
                %v1204 = vld [vmem:[%s1188 + $0x1c] sm:$0xf]
                %1205 = vst [vmem:[%s1189 + $0x1c] sm:$0xf] %v1204
                %v1206 = vld [vmem:[%s1188 + $0x20] sm:$0xf]
                %1207 = vst [vmem:[%s1189 + $0x20] sm:$0xf] %v1206
                %v1208 = vld [vmem:[%s1188 + $0x24] sm:$0xf]
                %1209 = vst [vmem:[%s1189 + $0x24] sm:$0xf] %v1208
                %v1210 = vld [vmem:[%s1188 + $0x28] sm:$0xf]
                %1211 = vst [vmem:[%s1189 + $0x28] sm:$0xf] %v1210
                %v1212 = vld [vmem:[%s1188 + $0x2c] sm:$0xf]
                %1213 = vst [vmem:[%s1189 + $0x2c] sm:$0xf] %v1212
                %v1214 = vld [vmem:[%s1188 + $0x30] sm:$0xf]
                %1215 = vst [vmem:[%s1189 + $0x30] sm:$0xf] %v1214
                %v1216 = vld [vmem:[%s1188 + $0x34] sm:$0xf]
                %1217 = vst [vmem:[%s1189 + $0x34] sm:$0xf] %v1216
                %v1218 = vld [vmem:[%s1188 + $0x38] sm:$0xf]
                %1219 = vst [vmem:[%s1189 + $0x38] sm:$0xf] %v1218
                %v1220 = vld [vmem:[%s1188 + $0x3c] sm:$0xf]
                %1221 = vst [vmem:[%s1189 + $0x3c] sm:$0xf] %v1220
                %v1222 = vld [vmem:[%s1188 + $0x40] sm:$0xf]
                %1223 = vst [vmem:[%s1189 + $0x40] sm:$0xf] %v1222
                %v1224 = vld [vmem:[%s1188 + $0x44] sm:$0xf]
                %1225 = vst [vmem:[%s1189 + $0x44] sm:$0xf] %v1224
                %v1226 = vld [vmem:[%s1188 + $0x48] sm:$0xf]
                %1227 = vst [vmem:[%s1189 + $0x48] sm:$0xf] %v1226
                %v1228 = vld [vmem:[%s1188 + $0x4c] sm:$0xf]
                %1229 = vst [vmem:[%s1189 + $0x4c] sm:$0xf] %v1228
                %v1230 = vld [vmem:[%s1188 + $0x50] sm:$0xf]
                %1231 = vst [vmem:[%s1189 + $0x50] sm:$0xf] %v1230
                %v1232 = vld [vmem:[%s1188 + $0x54] sm:$0xf]
                %1233 = vst [vmem:[%s1189 + $0x54] sm:$0xf] %v1232
                %v1234 = vld [vmem:[%s1188 + $0x58] sm:$0xf]
                %1235 = vst [vmem:[%s1189 + $0x58] sm:$0xf] %v1234
                %v1236 = vld [vmem:[%s1188 + $0x5c] sm:$0xf]
                %1237 = vst [vmem:[%s1189 + $0x5c] sm:$0xf] %v1236
                %v1238 = vld [vmem:[%s1188 + $0x60] sm:$0xf]
                %1239 = vst [vmem:[%s1189 + $0x60] sm:$0xf] %v1238
                %v1240 = vld [vmem:[%s1188 + $0x64] sm:$0xf]
                %1241 = vst [vmem:[%s1189 + $0x64] sm:$0xf] %v1240
                %v1242 = vld [vmem:[%s1188 + $0x68] sm:$0xf]
                %1243 = vst [vmem:[%s1189 + $0x68] sm:$0xf] %v1242
                %v1244 = vld [vmem:[%s1188 + $0x6c] sm:$0xf]
                %1245 = vst [vmem:[%s1189 + $0x6c] sm:$0xf] %v1244
                %v1246 = vld [vmem:[%s1188 + $0x70] sm:$0xf]
                %1247 = vst [vmem:[%s1189 + $0x70] sm:$0xf] %v1246
                %s1248 = sadd.s32 1, %s1187
                %p1249 = scmp.ge.s32.totalorder %s1248, %s1179
                %s1250 = scalar_select %p1249, 0, %s1248
                %s1251 = smul.u32 %s1250, 116
                %s1252 = smul.u32 %s1250, 116
                %s1253 = scalar_lea.vmem %s1159, %s1251 [#allocation2]
                %s1254 = scalar_lea.vmem %s1170, %s1252
              $region53: #{_lambda_.10} parent=47 // loop_footer
                %s1184 = sadd.s32 %s1182, 1
              $region54: #{_lambda_.10} parent=47 // loop_footer_branch
                %1181 = sbr.rel target = $region50
              $region55: #{_lambda_.10} parent=47 // loop_exit
                _
              %s1255 = sdiv.u32.pop %s1166, 29
              %s1256 = srem.u32.pop %s1166, 29
              %s1257 = smul.u32 %s1255, 29
              %s1258 = smul.u32 4, %s1257
              %s1259 = scalar_lea.vmem %s1159, %s1258 [#allocation2]
              %s1260 = smul.u32 4, %s1257
              %s1261 = scalar_lea.vmem %s1170, %s1260
              // While loop
              $region56: #{_lambda_.10} parent=47 // loop_pre_header
                _
              $region57: #{_lambda_.10} parent=47 // loop_header
                %s1263 = sphi 0, %s1265
                %p1264 = scmp.ge.s32.totalorder %s1263, %s1256
                %s1268 = sphi 0, %s1275
                %s1269 = sphi %s1259, %s1278
                %s1270 = sphi %s1261, %s1279
              $region58: #{_lambda_.10} parent=47 // loop_header_branch
                %1267 = sbr.rel (%p1264) target = $region62
              $region59: #{_lambda_.10} parent=47 // loop_body
                %v1271 = vld [vmem:[%s1269] sm:$0xf]
                %1272 = vst [vmem:[%s1270] sm:$0xf] %v1271
                %s1273 = sadd.s32 1, %s1268
                %p1274 = scmp.ge.s32.totalorder %s1273, %s1256
                %s1275 = scalar_select %p1274, 0, %s1273
                %s1276 = smul.u32 %s1275, 4
                %s1277 = smul.u32 %s1275, 4
                %s1278 = scalar_lea.vmem %s1259, %s1276 [#allocation2]
                %s1279 = scalar_lea.vmem %s1261, %s1277
              $region60: #{_lambda_.10} parent=47 // loop_footer
                %s1265 = sadd.s32 %s1263, 1
              $region61: #{_lambda_.10} parent=47 // loop_footer_branch
                %1262 = sbr.rel target = $region57
              $region62: #{_lambda_.10} parent=47 // loop_exit
                _
            $region48: #{_lambda_.10} parent=39 // pred_fallthru
              _
          $region40: #{_lambda_.10} parent=35 // pred_fallthru
            _
          %1384 = vnop
        $region36: #{_lambda_.10} parent=31 // pred_fallthru
          _
      $region32: #{_lambda_.10} parent=5 // pred_fallthru
        _
      %p1385 = scmp.le.s32.totalorder 2, %s9
      // Predicated region
      $region81: #{_lambda_.10} parent=5 // pred_check
        %p1386 = pneg %p1385
      $region82: #{_lambda_.10} parent=5 // pred_check_branch
        %1388 = sbr.rel (%p1386) target = $region84
      $region83: #{_lambda_.10} parent=5 // pred_region
        %s1389 = ssub.s32 %s9, 2
        // Predicated region
        $region85: #{_lambda_.10} parent=83 // pred_check
          %p1390 = pneg %p106
        $region86: #{_lambda_.10} parent=83 // pred_check_branch
          %1392 = sbr.rel (%p1390) target = $region88
        $region87: #{_lambda_.10} parent=83 // pred_region
          %s1393 = sand.u32 %s91, 1
          %s1394 = sand.u32 %s91, 1
          %s1395 = smul.addr %s1394, 116
          %s1396 = scalar_lea.vmem [#allocation2], %s1395
        $region88: #{_lambda_.10} parent=83 // pred_fallthru
          _
      $region84: #{_lambda_.10} parent=5 // pred_fallthru
        _
    $region6: #{_lambda_.10} parent=1 // loop_footer
      %s13 = sadd.s32 1, %s9
    $region7: #{_lambda_.10} parent=1 // loop_footer_branch
      %8 = sbr.rel target = $region3
    $region8: #{_lambda_.10} parent=1 // loop_exit
      _

// kernel: _lambda_.11
$region0: #{_lambda_.11}
  #allocation0 [shape = 'u32[]', space=smem, size = 0x4, offset = 0x4, fixed_abs, tag = 'smem constant byte address 0x4 - core index']
  #allocation1 [shape = 'u32[144,128]{1,0:T(1,128)}', space=vmem, size = 0x12000, scoped, tag = 'internal scratch']
  %s0 = inlined_call_operand.vmem [shape: bf16[338,288], index: 0, kind: input, shape index: {}]
  %s1 = inlined_call_operand.vmem [shape: bf16[288,64], index: 1, kind: input, shape index: {}]
  %s2 = inlined_call_operand.vmem [shape: f32[1,64], index: 2, kind: input, shape index: {}]
  %s3 = inlined_call_operand.vmem [shape: bf16[338,64], index: 3, kind: output, shape index: {}]
  %s4 = sld [smem:[#allocation0]]
  $region89: #{_lambda_.11} parent=0
    _
  %s6 = ssub.s32 1, %s4
  %s7 = scalar_select 0, %s6, %s4
  $region1: #{_lambda_.11} parent=0
    #allocation2 [shape = 'u8[90112]{0}', space=vmem, size = 0x16000, scoped, tag = 'output window, operand 0']
    loop: start=0, step=1, limit=4
    $region2: #{_lambda_.11} parent=1 // loop_pre_header
      _
    $region3: #{_lambda_.11} parent=1 // loop_header
      %s9 = sphi 0, %s13
      %p10 = scmp.ge.s32.totalorder %s9, 4
      %s19 = sphi 0, %s21
      %s22 = sphi 0, %s19
      %s23 = sphi 0, %s22
      %s39 = sphi 0, %s23
      %s43 = sphi 0, %s43
      %s45 = sphi 0, %s43
      %s46 = sphi 0, %s45
      %s60 = sphi 0, %s46
      %s64 = sphi 0, %s64
      %s66 = sphi 0, %s64
      %s67 = sphi 0, %s66
      %s81 = sphi 0, %s67
      %s87 = sphi 0, %s89
      %s90 = sphi 0, %s87
      %s91 = sphi 0, %s90
      %s107 = sphi 0, %s91
    $region4: #{_lambda_.11} parent=1 // loop_header_branch
      %12 = sbr.rel (%p10) target = $region8
    $region5: #{_lambda_.11} parent=1 // loop_body
      %s14 = ssub.s32 %s9, 1
      %s15 = ssub.s32 %s9, 2
      %s16 = sadd.s32 %s9, 1
      %s17 = ssub.s32 %s9, %s16
      %p18 = scmp.eq.s32.totalorder %s17, 0
      %s20 = sadd.s32 %s19, 1
      %s21 = scalar_select %p18, %s19, %s20
      %p24 = pneg %p18
      %p25 = scmp.eq.s32.totalorder %s9, 1
      %p26 = por %p24, %p25
      %p27 = scmp.ne.s32.totalorder %s19, %s22
      %p28 = scmp.eq.s32.totalorder %s9, 0
      %p29 = por %p27, %p28
      %p30 = scmp.ne.s32.totalorder %s19, %s22
      %p31 = scmp.eq.s32.totalorder %s14, 1
      %p32 = por %p30, %p31
      %p33 = scmp.ne.s32.totalorder %s22, %s23
      %p34 = scmp.eq.s32.totalorder %s14, 0
      %p35 = por %p33, %p34
      %p36 = scmp.ne.s32.totalorder %s22, %s23
      %p37 = scmp.eq.s32.totalorder %s15, 1
      %p38 = por %p36, %p37
      %p40 = scmp.ne.s32.totalorder %s23, %s39
      %p41 = scmp.eq.s32.totalorder %s15, 0
      %p42 = por %p40, %p41
      %s44 = sadd.s32 %s43, 1
      %p47 = scmp.eq.s32.totalorder %s9, 1
      %p48 = scmp.ne.s32.totalorder %s43, %s45
      %p49 = scmp.eq.s32.totalorder %s9, 0
      %p50 = por %p48, %p49
      %p51 = scmp.ne.s32.totalorder %s43, %s45
      %p52 = scmp.eq.s32.totalorder %s14, 1
      %p53 = por %p51, %p52
      %p54 = scmp.ne.s32.totalorder %s45, %s46
      %p55 = scmp.eq.s32.totalorder %s14, 0
      %p56 = por %p54, %p55
      %p57 = scmp.ne.s32.totalorder %s45, %s46
      %p58 = scmp.eq.s32.totalorder %s15, 1
      %p59 = por %p57, %p58
      %p61 = scmp.ne.s32.totalorder %s46, %s60
      %p62 = scmp.eq.s32.totalorder %s15, 0
      %p63 = por %p61, %p62
      %s65 = sadd.s32 %s64, 1
      %p68 = scmp.eq.s32.totalorder %s9, 1
      %p69 = scmp.ne.s32.totalorder %s64, %s66
      %p70 = scmp.eq.s32.totalorder %s9, 0
      %p71 = por %p69, %p70
      %p72 = scmp.ne.s32.totalorder %s64, %s66
      %p73 = scmp.eq.s32.totalorder %s14, 1
      %p74 = por %p72, %p73
      %p75 = scmp.ne.s32.totalorder %s66, %s67
      %p76 = scmp.eq.s32.totalorder %s14, 0
      %p77 = por %p75, %p76
      %p78 = scmp.ne.s32.totalorder %s66, %s67
      %p79 = scmp.eq.s32.totalorder %s15, 1
      %p80 = por %p78, %p79
      %p82 = scmp.ne.s32.totalorder %s67, %s81
      %p83 = scmp.eq.s32.totalorder %s15, 0
      %p84 = por %p82, %p83
      %s85 = ssub.s32 %s9, %s16
      %p86 = scmp.eq.s32.totalorder %s85, 0
      %s88 = sadd.s32 %s87, 1
      %s89 = scalar_select %p86, %s87, %s88
      %p92 = pneg %p86
      %p93 = scmp.eq.s32.totalorder %s9, 1
      %p94 = por %p92, %p93
      %p95 = scmp.ne.s32.totalorder %s87, %s90
      %p96 = scmp.eq.s32.totalorder %s9, 0
      %p97 = por %p95, %p96
      %p98 = scmp.ne.s32.totalorder %s87, %s90
      %p99 = scmp.eq.s32.totalorder %s14, 1
      %p100 = por %p98, %p99
      %p101 = scmp.ne.s32.totalorder %s90, %s91
      %p102 = scmp.eq.s32.totalorder %s14, 0
      %p103 = por %p101, %p102
      %p104 = scmp.ne.s32.totalorder %s90, %s91
      %p105 = scmp.eq.s32.totalorder %s15, 1
      %p106 = por %p104, %p105
      %p108 = scmp.ne.s32.totalorder %s91, %s107
      %p109 = scmp.eq.s32.totalorder %s15, 0
      %p110 = por %p108, %p109
      %p111 = scmp.le.s32.totalorder 1, %s9
      %p112 = scmp.lt.s32.totalorder %s9, 3
      %p113 = pnand %p111, %p112
      %p114 = pneg %p113
      // Predicated region
      $region9: #{_lambda_.11} parent=5 // pred_check
        _
      $region10: #{_lambda_.11} parent=5 // pred_check_branch
        %116 = sbr.rel (%p113) target = $region12
      $region11: #{_lambda_.11} parent=5 // pred_region
        %s117 = ssub.s32 %s9, 1
        // Predicated region
        $region13: #{_lambda_.11} parent=11 // pred_check
          %p118 = pneg %p56
        $region14: #{_lambda_.11} parent=11 // pred_check_branch
          %120 = sbr.rel (%p118) target = $region16
        $region15: #{_lambda_.11} parent=11 // pred_region
          _
        $region16: #{_lambda_.11} parent=11 // pred_fallthru
          _
        // Predicated region
        $region17: #{_lambda_.11} parent=11 // pred_check
          %p121 = pneg %p77
        $region18: #{_lambda_.11} parent=11 // pred_check_branch
          %123 = sbr.rel (%p121) target = $region20
        $region19: #{_lambda_.11} parent=11 // pred_region
          _
        $region20: #{_lambda_.11} parent=11 // pred_fallthru
          _
      $region12: #{_lambda_.11} parent=5 // pred_fallthru
        _
      %p124 = scmp.lt.s32.totalorder %s9, 2
      // Predicated region
      $region21: #{_lambda_.11} parent=5 // pred_check
        %p125 = pneg %p124
      $region22: #{_lambda_.11} parent=5 // pred_check_branch
        %127 = sbr.rel (%p125) target = $region24
      $region23: #{_lambda_.11} parent=5 // pred_region
        // Predicated region
        $region25: #{_lambda_.11} parent=23 // pred_check
          %p128 = pneg %p29
        $region26: #{_lambda_.11} parent=23 // pred_check_branch
          %130 = sbr.rel (%p128) target = $region28
        $region27: #{_lambda_.11} parent=23 // pred_region
          %s131 = smul.u32 22, %s9
          %s132 = ssub.s32 43, %s131
          %p133 = scmp.lt.s32.totalorder %s132, 22
          %s134 = scalar_select %p133, %s132, 22
          %s135 = smul.u32 64, %s134
          %s136 = smul.u32 %s135, 3
          %p137 = scmp.lt.s32.totalorder %s131, 42
          %s138 = scalar_select %p137, %s131, 42
          %s139 = smul.addr %s138, 3
          %s140 = smul.addr %s139, 4
          %s141 = scalar_lea.vmem %s0, %s140
          %s142 = smul.u32 22, %s9
          %s143 = ssub.s32 43, %s142
          %p144 = scmp.lt.s32.totalorder %s143, 22
          %s145 = scalar_select %p144, %s143, 22
          %s146 = smul.u32 64, %s145
          %s147 = smul.u32 %s146, 3
        $region28: #{_lambda_.11} parent=23 // pred_fallthru
          _
      $region24: #{_lambda_.11} parent=5 // pred_fallthru
        _
      %p148 = scmp.le.s32.totalorder 1, %s9
      %p149 = scmp.lt.s32.totalorder %s9, 3
      %p150 = pnand %p148, %p149
      %p151 = pneg %p150
      // Predicated region
      $region29: #{_lambda_.11} parent=5 // pred_check
        _
      $region30: #{_lambda_.11} parent=5 // pred_check_branch
        %153 = sbr.rel (%p150) target = $region32
      $region31: #{_lambda_.11} parent=5 // pred_region
        %s154 = ssub.s32 %s9, 1
        %s155 = smul.u32 22, %s14
        %s156 = ssub.s32 43, %s155
        %p157 = scmp.lt.s32.totalorder %s156, 22
        %s158 = scalar_select %p157, %s156, 22
        %s159 = smul.u32 64, %s158
        %s160 = smul.u32 %s159, 3
        %p161 = scmp.lt.s32.totalorder %s155, 42
        %s162 = scalar_select %p161, %s155, 42
        %s163 = smul.addr %s162, 3
        %s164 = smul.addr %s163, 4
        %s165 = scalar_lea.vmem %s0, %s164
        %p166 = pneg %p35
        %p167 = pneg %p32
        %p168 = pneg %p56
        %p169 = pneg %p53
        %p170 = pneg %p77
        %p171 = pneg %p74
        %p172 = pneg %p103
        %p173 = pneg %p100
        %s174 = sand.u32 %s90, 1
        %s175 = sand.u32 %s90, 1
        %s176 = smul.addr %s175, 88
        %s177 = scalar_lea.vmem [#allocation2], %s176
        %s178 = smul.u32 22, %s14
        %s179 = ssub.s32 43, %s178
        %p180 = scmp.lt.s32.totalorder %s179, 22
        %s181 = scalar_select %p180, %s179, 22
        %s182 = smul.u32 64, %s181
        %s183 = smul.u32 %s182, 3
        %p184 = scmp.lt.s32.totalorder %s178, 42
        %s185 = scalar_select %p184, %s178, 42
        %s186 = smul.addr %s185, 3
        %s187 = smul.addr %s186, 4
        %s188 = scalar_lea.vmem %s0, %s187
        %s189 = smul.u32 22, %s14
        %s190 = ssub.s32 43, %s189
        %p191 = scmp.lt.s32.totalorder %s190, 22
        %s192 = scalar_select %p191, %s190, 22
        %s193 = smul.u32 64, %s192
        %s194 = smul.u32 %s193, 3
        %s195 = smul.u32 22, %s14
        %s196 = ssub.s32 43, %s195
        %p197 = scmp.lt.s32.totalorder %s196, 22
        %s198 = scalar_select %p197, %s196, 22
        %s199 = smul.u32 64, %s198
        %v201 = vld [vmem:[%s188] sm:$0xff]
        %v202 = vld [vmem:[%s188 + $0x8] sm:$0xf]
        %v203 = vld [vmem:[%s188 + $0xc] sm:$0xff]
        %v204 = vld [vmem:[%s188 + $0x14] sm:$0xf]
        %v205 = vld [vmem:[%s188 + $0x18] sm:$0xff]
        %v206 = vld [vmem:[%s188 + $0x20] sm:$0xf]
        %v207 = vld [vmem:[%s188 + $0x24] sm:$0xff]
        %v208 = vld [vmem:[%s188 + $0x2c] sm:$0xf]
        %v209 = vld [vmem:[%s188 + $0x30] sm:$0xff]
        %v210 = vld [vmem:[%s188 + $0x38] sm:$0xf]
        %v211 = vld [vmem:[%s188 + $0x3c] sm:$0xff]
        %v212 = vld [vmem:[%s188 + $0x44] sm:$0xf]
        %v213 = vld [vmem:[%s188 + $0x48] sm:$0xff]
        %v214 = vld [vmem:[%s188 + $0x50] sm:$0xf]
        %v215 = vld [vmem:[%s188 + $0x54] sm:$0xff]
        %v216 = vld [vmem:[%s188 + $0x5c] sm:$0xf]
        %v217 = vld [vmem:[%s188 + $0x60] sm:$0xff]
        %v218 = vld [vmem:[%s188 + $0x68] sm:$0xf]
        %v219 = vld [vmem:[%s188 + $0x6c] sm:$0xff]
        %v220 = vld [vmem:[%s188 + $0x74] sm:$0xf]
        %v221 = vld [vmem:[%s188 + $0x78] sm:$0xff]
        %v222 = vld [vmem:[%s188 + $0x80] sm:$0xf]
        %v223 = vld [vmem:[%s188 + $0x84] sm:$0xff]
        %v224 = vld [vmem:[%s188 + $0x8c] sm:$0xf]
        %v225 = vld [vmem:[%s188 + $0x90] sm:$0xff]
        %v226 = vld [vmem:[%s188 + $0x98] sm:$0xf]
        %v227 = vld [vmem:[%s188 + $0x9c] sm:$0xff]
        %v228 = vld [vmem:[%s188 + $0xa4] sm:$0xf]
        %v229 = vld [vmem:[%s188 + $0xa8] sm:$0xff]
        %v230 = vld [vmem:[%s188 + $0xb0] sm:$0xf]
        %v231 = vld [vmem:[%s188 + $0xb4] sm:$0xff]
        %v232 = vld [vmem:[%s188 + $0xbc] sm:$0xf]
        %v233 = vld [vmem:[%s188 + $0xc0] sm:$0xff]
        %v234 = vld [vmem:[%s188 + $0xc8] sm:$0xf]
        %v235 = vld [vmem:[%s188 + $0xcc] sm:$0xff]
        %v236 = vld [vmem:[%s188 + $0xd4] sm:$0xf]
        %v237 = vld [vmem:[%s188 + $0xd8] sm:$0xff]
        %v238 = vld [vmem:[%s188 + $0xe0] sm:$0xf]
        %v239 = vld [vmem:[%s188 + $0xe4] sm:$0xff]
        %v240 = vld [vmem:[%s188 + $0xec] sm:$0xf]
        %v241 = vld [vmem:[%s188 + $0xf0] sm:$0xff]
        %v242 = vld [vmem:[%s188 + $0xf8] sm:$0xf]
        %v243 = vld [vmem:[%s188 + $0xfc] sm:$0xff]
        %v244 = vld [vmem:[%s188 + $0x104] sm:$0xf]
        %v245 = vld [vmem:[%s1] sm:$0xf]
        %v246 = vld [vmem:[%s1 + $0x4] sm:$0xf]
        %v247 = vld [vmem:[%s1 + $0x8] sm:$0xf]
        %v248 = vld [vmem:[%s1 + $0xc] sm:$0xf]
        %v249 = vld [vmem:[%s1 + $0x10] sm:$0xf]
        %v250 = vld [vmem:[%s1 + $0x14] sm:$0xf]
        %v251 = vld [vmem:[%s1 + $0x18] sm:$0xf]
        %v252 = vld [vmem:[%s1 + $0x1c] sm:$0xf]
        %v253 = vld [vmem:[%s1 + $0x20] sm:$0xf]
        %v254 = vld [vmem:[%s1 + $0x24] sm:$0xf]
        %v255 = vld [vmem:[%s1 + $0x28] sm:$0xf]
        %v256 = vld [vmem:[%s1 + $0x2c] sm:$0xf]
        %v257 = vld [vmem:[%s1 + $0x30] sm:$0xf]
        %v258 = vld [vmem:[%s1 + $0x34] sm:$0xf]
        %v259 = vld [vmem:[%s1 + $0x38] sm:$0xf]
        %v260 = vld [vmem:[%s1 + $0x3c] sm:$0xf]
        %v261 = vld [vmem:[%s1 + $0x40] sm:$0xf]
        %v262 = vld [vmem:[%s1 + $0x44] sm:$0xf]
        %v263 = vld [vmem:[%s1 + $0x48] sm:$0xf]
        %v264 = vld [vmem:[%s1 + $0x4c] sm:$0xf]
        %v265 = vld [vmem:[%s1 + $0x50] sm:$0xf]
        %v266 = vld [vmem:[%s1 + $0x54] sm:$0xf]
        %v267 = vld [vmem:[%s1 + $0x58] sm:$0xf]
        %v268 = vld [vmem:[%s1 + $0x5c] sm:$0xf]
        %v269 = vld [vmem:[%s1 + $0x60] sm:$0xf]
        %v270 = vld [vmem:[%s1 + $0x64] sm:$0xf]
        %v271 = vld [vmem:[%s1 + $0x68] sm:$0xf]
        %v272 = vld [vmem:[%s1 + $0x6c] sm:$0xf]
        %v273 = vld [vmem:[%s1 + $0x70] sm:$0xf]
        %v274 = vld [vmem:[%s1 + $0x74] sm:$0xf]
        %v275 = vld [vmem:[%s1 + $0x78] sm:$0xf]
        %v276 = vld [vmem:[%s1 + $0x7c] sm:$0xf]
        %v277 = vld [vmem:[%s1 + $0x80] sm:$0xf]
        %v278 = vld [vmem:[%s1 + $0x84] sm:$0xf]
        %v279 = vld [vmem:[%s1 + $0x88] sm:$0xf]
        %v280 = vld [vmem:[%s1 + $0x8c] sm:$0xf]
        %v281 = vld [vmem:[%s2] sm:$0x1]
        %v283 = vlaneseq
        %v284 = vshrl.u32 %v283, 7
        %v285 = vsub.s32 0, %v284
        %v286 = vrot.slane %v281, %v285
        %v332 = vunpack.c.l.b16 %v201
        %v333 = vunpack.c.h.b16 %v201
        %v334 = vunpack.c.l.b16 %v202
        %v335 = vunpack.c.l.b16 %v203
        %v336 = vunpack.c.h.b16 %v203
        %v337 = vunpack.c.l.b16 %v204
        %v338 = vunpack.c.l.b16 %v205
        %v339 = vunpack.c.h.b16 %v205
        %v340 = vunpack.c.l.b16 %v206
        %v341 = vunpack.c.l.b16 %v207
        %v342 = vunpack.c.h.b16 %v207
        %v343 = vunpack.c.l.b16 %v208
        %v344 = vunpack.c.l.b16 %v209
        %v345 = vunpack.c.h.b16 %v209
        %v346 = vunpack.c.l.b16 %v210
        %v347 = vunpack.c.l.b16 %v211
        %v348 = vunpack.c.h.b16 %v211
        %v349 = vunpack.c.l.b16 %v212
        %v350 = vunpack.c.l.b16 %v213
        %v351 = vunpack.c.h.b16 %v213
        %v352 = vunpack.c.l.b16 %v214
        %v353 = vunpack.c.l.b16 %v215
        %v354 = vunpack.c.h.b16 %v215
        %v355 = vunpack.c.l.b16 %v216
        %v356 = vunpack.c.l.b16 %v217
        %v357 = vunpack.c.h.b16 %v217
        %v358 = vunpack.c.l.b16 %v218
        %v359 = vunpack.c.l.b16 %v219
        %v360 = vunpack.c.h.b16 %v219
        %v361 = vunpack.c.l.b16 %v220
        %v362 = vunpack.c.l.b16 %v221
        %v363 = vunpack.c.h.b16 %v221
        %v364 = vunpack.c.l.b16 %v222
        %v365 = vunpack.c.l.b16 %v223
        %v366 = vunpack.c.h.b16 %v223
        %v367 = vunpack.c.l.b16 %v224
        %v368 = vunpack.c.l.b16 %v225
        %v369 = vunpack.c.h.b16 %v225
        %v370 = vunpack.c.l.b16 %v226
        %v371 = vunpack.c.l.b16 %v227
        %v372 = vunpack.c.h.b16 %v227
        %v373 = vunpack.c.l.b16 %v228
        %v374 = vunpack.c.l.b16 %v229
        %v375 = vunpack.c.h.b16 %v229
        %v376 = vunpack.c.l.b16 %v230
        %v377 = vunpack.c.l.b16 %v231
        %v378 = vunpack.c.h.b16 %v231
        %v379 = vunpack.c.l.b16 %v232
        %v380 = vunpack.c.l.b16 %v233
        %v381 = vunpack.c.h.b16 %v233
        %v382 = vunpack.c.l.b16 %v234
        %v383 = vunpack.c.l.b16 %v235
        %v384 = vunpack.c.h.b16 %v235
        %v385 = vunpack.c.l.b16 %v236
        %v386 = vunpack.c.l.b16 %v237
        %v387 = vunpack.c.h.b16 %v237
        %v388 = vunpack.c.l.b16 %v238
        %v389 = vunpack.c.l.b16 %v239
        %v390 = vunpack.c.h.b16 %v239
        %v391 = vunpack.c.l.b16 %v240
        %v392 = vunpack.c.l.b16 %v241
        %v393 = vunpack.c.h.b16 %v241
        %v394 = vunpack.c.l.b16 %v242
        %v395 = vunpack.c.l.b16 %v243
        %v396 = vunpack.c.h.b16 %v243
        %v397 = vunpack.c.l.b16 %v244
        %v398 = vpack.c.b16 %v335, %v332
        %v399 = vpack.c.b16 %v336, %v333
        %v400 = vpack.c.b16 %v337, %v334
        %v401 = vpack.c.b16 %v341, %v338
        %v402 = vpack.c.b16 %v342, %v339
        %v403 = vpack.c.b16 %v343, %v340
        %v404 = vpack.c.b16 %v347, %v344
        %v405 = vpack.c.b16 %v348, %v345
        %v406 = vpack.c.b16 %v349, %v346
        %v407 = vpack.c.b16 %v353, %v350
        %v408 = vpack.c.b16 %v354, %v351
        %v409 = vpack.c.b16 %v355, %v352
        %v410 = vpack.c.b16 %v359, %v356
        %v411 = vpack.c.b16 %v360, %v357
        %v412 = vpack.c.b16 %v361, %v358
        %v413 = vpack.c.b16 %v365, %v362
        %v414 = vpack.c.b16 %v366, %v363
        %v415 = vpack.c.b16 %v367, %v364
        %v416 = vpack.c.b16 %v371, %v368
        %v417 = vpack.c.b16 %v372, %v369
        %v418 = vpack.c.b16 %v373, %v370
        %v419 = vpack.c.b16 %v377, %v374
        %v420 = vpack.c.b16 %v378, %v375
        %v421 = vpack.c.b16 %v379, %v376
        %v422 = vpack.c.b16 %v383, %v380
        %v423 = vpack.c.b16 %v384, %v381
        %v424 = vpack.c.b16 %v385, %v382
        %v425 = vpack.c.b16 %v389, %v386
        %v426 = vpack.c.b16 %v390, %v387
        %v427 = vpack.c.b16 %v391, %v388
        %v428 = vpack.c.b16 %v395, %v392
        %v429 = vpack.c.b16 %v396, %v393
        %v430 = vpack.c.b16 %v397, %v394
        %v489 = vunpack.c.l.b16 %v245
        %v490 = vunpack.c.l.b16 %v246
        %v491 = vunpack.c.l.b16 %v247
        %v492 = vunpack.c.l.b16 %v248
        %v493 = vunpack.c.l.b16 %v249
        %v494 = vunpack.c.l.b16 %v250
        %v495 = vunpack.c.l.b16 %v251
        %v496 = vunpack.c.l.b16 %v252
        %v497 = vunpack.c.l.b16 %v253
        %v498 = vunpack.c.l.b16 %v254
        %v499 = vunpack.c.l.b16 %v255
        %v500 = vunpack.c.l.b16 %v256
        %v501 = vunpack.c.l.b16 %v257
        %v502 = vunpack.c.l.b16 %v258
        %v503 = vunpack.c.l.b16 %v259
        %v504 = vunpack.c.l.b16 %v260
        %v505 = vunpack.c.l.b16 %v261
        %v506 = vunpack.c.l.b16 %v262
        %v507 = vunpack.c.l.b16 %v263
        %v508 = vunpack.c.l.b16 %v264
        %v509 = vunpack.c.l.b16 %v265
        %v510 = vunpack.c.l.b16 %v266
        %v511 = vunpack.c.l.b16 %v267
        %v512 = vunpack.c.l.b16 %v268
        %v513 = vunpack.c.l.b16 %v269
        %v514 = vunpack.c.l.b16 %v270
        %v515 = vunpack.c.l.b16 %v271
        %v516 = vunpack.c.l.b16 %v272
        %v517 = vunpack.c.l.b16 %v273
        %v518 = vunpack.c.l.b16 %v274
        %v519 = vunpack.c.l.b16 %v275
        %v520 = vunpack.c.l.b16 %v276
        %v521 = vunpack.c.l.b16 %v277
        %v522 = vunpack.c.l.b16 %v278
        %v523 = vunpack.c.l.b16 %v279
        %v524 = vunpack.c.l.b16 %v280
        %v525 = vpack.c.b16 %v490, %v489
        %v526 = vpack.c.b16 %v492, %v491
        %v527 = vpack.c.b16 %v494, %v493
        %v528 = vpack.c.b16 %v496, %v495
        %v529 = vpack.c.b16 %v498, %v497
        %v530 = vpack.c.b16 %v500, %v499
        %v531 = vpack.c.b16 %v502, %v501
        %v532 = vpack.c.b16 %v504, %v503
        %v533 = vpack.c.b16 %v506, %v505
        %v534 = vpack.c.b16 %v508, %v507
        %v535 = vpack.c.b16 %v510, %v509
        %v536 = vpack.c.b16 %v512, %v511
        %v537 = vpack.c.b16 %v514, %v513
        %v538 = vpack.c.b16 %v516, %v515
        %v539 = vpack.c.b16 %v518, %v517
        %v540 = vpack.c.b16 %v520, %v519
        %v541 = vpack.c.b16 %v522, %v521
        %v542 = vpack.c.b16 %v524, %v523
        %vm561 = vcmask 261120
        %v563 = vsel %vm561, %v400, 0
        %v566 = vsel %vm561, %v403, 0
        %v569 = vsel %vm561, %v406, 0
        %v572 = vsel %vm561, %v409, 0
        %v575 = vsel %vm561, %v412, 0
        %v578 = vsel %vm561, %v415, 0
        %v581 = vsel %vm561, %v418, 0
        %v584 = vsel %vm561, %v421, 0
        %v587 = vsel %vm561, %v424, 0
        %v590 = vsel %vm561, %v427, 0
        %v593 = vsel %vm561, %v430, 0
        %595 = vmatprep.subr.bf16.mxu0 0
        %596 = vmatpush1.bf16.msra.mxu0 %v525
        %597 = vmatprep.subr.bf16.mxu0 0
        %598 = vmatpush1.bf16.msra.mxu0 %v526
        %599 = vmatprep.subr.bf16.mxu0 0
        %600 = vmatpush1.bf16.msra.mxu0 %v527
        %601 = vmatprep.subr.bf16.mxu0 0
        %602 = vmatpush1.bf16.msra.mxu0 %v528
        %603 = vmatprep.subr.bf16.mxu0 0
        %604 = vmatpush1.bf16.msra.mxu0 %v529
        %605 = vmatprep.subr.bf16.mxu0 0
        %606 = vmatpush1.bf16.msra.mxu0 %v530
        %607 = vmatprep.subr.bf16.mxu0 0
        %608 = vmatpush1.bf16.msra.mxu0 %v531
        %609 = vmatprep.subr.bf16.mxu0 0
        %610 = vmatpush1.bf16.msra.mxu0 %v532
        %611 = vmatprep.subr.bf16.mxu0 0
        %612 = vmatpush1.bf16.msra.mxu0 %v533
        %613 = vmatprep.subr.bf16.mxu0 0
        %614 = vmatpush1.bf16.msra.mxu0 %v534
        %615 = vmatprep.subr.bf16.mxu0 0
        %616 = vmatpush1.bf16.msra.mxu0 %v535
        %617 = vmatprep.subr.bf16.mxu0 0
        %618 = vmatpush1.bf16.msra.mxu0 %v536
        %619 = vmatprep.subr.bf16.mxu0 0
        %620 = vmatpush1.bf16.msra.mxu0 %v537
        %621 = vmatprep.subr.bf16.mxu0 0
        %622 = vmatpush1.bf16.msra.mxu0 %v538
        %623 = vmatprep.subr.bf16.mxu0 0
        %624 = vmatpush1.bf16.msra.mxu0 %v539
        %625 = vmatprep.subr.bf16.mxu0 0
        %626 = vmatpush1.bf16.msra.mxu0 %v540
        %627 = vmatprep.mubr.bf16.mxu0 %v399
        %628 = vmatmul.mubr.bf16.gmra.mrb[0].mxu0 %v398
        %v629 = vpop.f32.mrb[0].mxu0
        %v630 = vadd.f32 %v286, %v629
        %v631 = vpop.f32.mrb[0].mxu0
        %v632 = vpop.f32.mrb[0].mxu0
        %v633 = vadd.f32 %v286, %v632
        %v634 = vpop.f32.mrb[0].mxu0
        %635 = vmatprep.mubr.bf16.mxu0 %v402
        %636 = vmatmul.mubr.bf16.gmra.mrb[0].mxu0 %v401
        %v637 = vpop.f32.mrb[0].mxu0
        %v638 = vadd.f32 %v286, %v637
        %v639 = vpop.f32.mrb[0].mxu0
        %v640 = vpop.f32.mrb[0].mxu0
        %v641 = vadd.f32 %v286, %v640
        %v642 = vpop.f32.mrb[0].mxu0
        %643 = vmatprep.mubr.bf16.mxu0 %v405
        %644 = vmatmul.mubr.bf16.gmra.mrb[0].mxu0 %v404
        %v645 = vpop.f32.mrb[0].mxu0
        %v646 = vadd.f32 %v286, %v645
        %v647 = vpop.f32.mrb[0].mxu0
        %v648 = vpop.f32.mrb[0].mxu0
        %v649 = vadd.f32 %v286, %v648
        %v650 = vpop.f32.mrb[0].mxu0
        %651 = vmatprep.mubr.bf16.mxu0 %v408
        %652 = vmatmul.mubr.bf16.gmra.mrb[0].mxu0 %v407
        %v653 = vpop.f32.mrb[0].mxu0
        %v654 = vadd.f32 %v286, %v653
        %v655 = vpop.f32.mrb[0].mxu0
        %v656 = vpop.f32.mrb[0].mxu0
        %v657 = vadd.f32 %v286, %v656
        %v658 = vpop.f32.mrb[0].mxu0
        %659 = vmatprep.mubr.bf16.mxu0 %v411
        %660 = vmatmul.mubr.bf16.gmra.mrb[0].mxu0 %v410
        %v661 = vpop.f32.mrb[0].mxu0
        %v662 = vadd.f32 %v286, %v661
        %v663 = vpop.f32.mrb[0].mxu0
        %v664 = vpop.f32.mrb[0].mxu0
        %v665 = vadd.f32 %v286, %v664
        %v666 = vpop.f32.mrb[0].mxu0
        %667 = vmatprep.mubr.bf16.mxu0 %v414
        %668 = vmatmul.mubr.bf16.gmra.mrb[0].mxu0 %v413
        %v669 = vpop.f32.mrb[0].mxu0
        %v670 = vadd.f32 %v286, %v669
        %v671 = vpop.f32.mrb[0].mxu0
        %v672 = vpop.f32.mrb[0].mxu0
        %v673 = vadd.f32 %v286, %v672
        %v674 = vpop.f32.mrb[0].mxu0
        %675 = vmatprep.mubr.bf16.mxu0 %v417
        %676 = vmatmul.mubr.bf16.gmra.mrb[0].mxu0 %v416
        %v677 = vpop.f32.mrb[0].mxu0
        %v678 = vadd.f32 %v286, %v677
        %v679 = vpop.f32.mrb[0].mxu0
        %v680 = vpop.f32.mrb[0].mxu0
        %v681 = vadd.f32 %v286, %v680
        %v682 = vpop.f32.mrb[0].mxu0
        %683 = vmatprep.mubr.bf16.mxu0 %v420
        %684 = vmatmul.mubr.bf16.gmra.mrb[0].mxu0 %v419
        %v685 = vpop.f32.mrb[0].mxu0
        %v686 = vadd.f32 %v286, %v685
        %v687 = vpop.f32.mrb[0].mxu0
        %v688 = vpop.f32.mrb[0].mxu0
        %v689 = vadd.f32 %v286, %v688
        %v690 = vpop.f32.mrb[0].mxu0
        %691 = vmatprep.mubr.bf16.mxu0 %v423
        %692 = vmatmul.mubr.bf16.gmra.mrb[0].mxu0 %v422
        %v693 = vpop.f32.mrb[0].mxu0
        %v694 = vadd.f32 %v286, %v693
        %v695 = vpop.f32.mrb[0].mxu0
        %v696 = vpop.f32.mrb[0].mxu0
        %v697 = vadd.f32 %v286, %v696
        %v698 = vpop.f32.mrb[0].mxu0
        %699 = vmatprep.mubr.bf16.mxu0 %v426
        %700 = vmatmul.mubr.bf16.gmra.mrb[0].mxu0 %v425
        %v701 = vpop.f32.mrb[0].mxu0
        %v702 = vadd.f32 %v286, %v701
        %v703 = vpop.f32.mrb[0].mxu0
        %v704 = vpop.f32.mrb[0].mxu0
        %v705 = vadd.f32 %v286, %v704
        %v706 = vpop.f32.mrb[0].mxu0
        %707 = vmatprep.mubr.bf16.mxu0 %v429
        %708 = vmatmul.mubr.bf16.gmra.mrb[0].mxu0 %v428
        %v709 = vpop.f32.mrb[0].mxu0
        %v710 = vadd.f32 %v286, %v709
        %v711 = vpop.f32.mrb[0].mxu0
        %v712 = vpop.f32.mrb[0].mxu0
        %v713 = vadd.f32 %v286, %v712
        %v714 = vpop.f32.mrb[0].mxu0
        %715 = vdwg.mxu0
        %716 = vmatprep.subr.bf16.mxu0 0
        %717 = vmatpush1.bf16.msra.mxu0 %v541
        %718 = vmatprep.subr.bf16.mxu0 0
        %719 = vmatpush1.bf16.msra.mxu0 %v542
        %720 = vmatprep.subr.bf16.mxu0 0
        %721 = vmatpush1.bf16.msra.mxu0 0
        %722 = vmatprep.subr.bf16.mxu0 0
        %723 = vmatpush1.bf16.msra.mxu0 0
        %724 = vmatprep.subr.bf16.mxu0 0
        %725 = vmatpush1.bf16.msra.mxu0 0
        %726 = vmatprep.subr.bf16.mxu0 0
        %727 = vmatpush1.bf16.msra.mxu0 0
        %728 = vmatprep.subr.bf16.mxu0 0
        %729 = vmatpush1.bf16.msra.mxu0 0
        %730 = vmatprep.subr.bf16.mxu0 0
        %731 = vmatpush1.bf16.msra.mxu0 0
        %732 = vmatprep.subr.bf16.mxu0 0
        %733 = vmatpush1.bf16.msra.mxu0 0
        %734 = vmatprep.subr.bf16.mxu0 0
        %735 = vmatpush1.bf16.msra.mxu0 0
        %736 = vmatprep.subr.bf16.mxu0 0
        %737 = vmatpush1.bf16.msra.mxu0 0
        %738 = vmatprep.subr.bf16.mxu0 0
        %739 = vmatpush1.bf16.msra.mxu0 0
        %740 = vmatprep.subr.bf16.mxu0 0
        %741 = vmatpush1.bf16.msra.mxu0 0
        %742 = vmatprep.subr.bf16.mxu0 0
        %743 = vmatpush1.bf16.msra.mxu0 0
        %744 = vmatprep.subr.bf16.mxu0 0
        %745 = vmatpush1.bf16.msra.mxu0 0
        %746 = vmatprep.subr.bf16.mxu0 0
        %747 = vmatpush1.bf16.msra.mxu0 0
        %748 = vmatprep.mubr.bf16.mxu0 0
        %749 = vmatmul.mubr.bf16.gmra.mrb[0].mxu0 %v563
        %v750 = vpop.f32.mrb[0].mxu0
        %v751 = vadd.f32 %v630, %v750
        %v752 = vpop.f32.mrb[0].mxu0
        %v753 = vpop.f32.mrb[0].mxu0
        %v754 = vadd.f32 %v633, %v753
        %v755 = vpop.f32.mrb[0].mxu0
        %756 = vmatprep.mubr.bf16.mxu0 0
        %757 = vmatmul.mubr.bf16.gmra.mrb[0].mxu0 %v566
        %v758 = vpop.f32.mrb[0].mxu0
        %v759 = vadd.f32 %v638, %v758
        %v760 = vpop.f32.mrb[0].mxu0
        %v761 = vpop.f32.mrb[0].mxu0
        %v762 = vadd.f32 %v641, %v761
        %v763 = vpop.f32.mrb[0].mxu0
        %764 = vmatprep.mubr.bf16.mxu0 0
        %765 = vmatmul.mubr.bf16.gmra.mrb[0].mxu0 %v569
        %v766 = vpop.f32.mrb[0].mxu0
        %v767 = vadd.f32 %v646, %v766
        %v768 = vpop.f32.mrb[0].mxu0
        %v769 = vpop.f32.mrb[0].mxu0
        %v770 = vadd.f32 %v649, %v769
        %v771 = vpop.f32.mrb[0].mxu0
        %772 = vmatprep.mubr.bf16.mxu0 0
        %773 = vmatmul.mubr.bf16.gmra.mrb[0].mxu0 %v572
        %v774 = vpop.f32.mrb[0].mxu0
        %v775 = vadd.f32 %v654, %v774
        %v776 = vpop.f32.mrb[0].mxu0
        %v777 = vpop.f32.mrb[0].mxu0
        %v778 = vadd.f32 %v657, %v777
        %v779 = vpop.f32.mrb[0].mxu0
        %780 = vmatprep.mubr.bf16.mxu0 0
        %781 = vmatmul.mubr.bf16.gmra.mrb[0].mxu0 %v575
        %v782 = vpop.f32.mrb[0].mxu0
        %v783 = vadd.f32 %v662, %v782
        %v784 = vpop.f32.mrb[0].mxu0
        %v785 = vpop.f32.mrb[0].mxu0
        %v786 = vadd.f32 %v665, %v785
        %v787 = vpop.f32.mrb[0].mxu0
        %788 = vmatprep.mubr.bf16.mxu0 0
        %789 = vmatmul.mubr.bf16.gmra.mrb[0].mxu0 %v578
        %v790 = vpop.f32.mrb[0].mxu0
        %v791 = vadd.f32 %v670, %v790
        %v792 = vpop.f32.mrb[0].mxu0
        %v793 = vpop.f32.mrb[0].mxu0
        %v794 = vadd.f32 %v673, %v793
        %v795 = vpop.f32.mrb[0].mxu0
        %796 = vmatprep.mubr.bf16.mxu0 0
        %797 = vmatmul.mubr.bf16.gmra.mrb[0].mxu0 %v581
        %v798 = vpop.f32.mrb[0].mxu0
        %v799 = vadd.f32 %v678, %v798
        %v800 = vpop.f32.mrb[0].mxu0
        %v801 = vpop.f32.mrb[0].mxu0
        %v802 = vadd.f32 %v681, %v801
        %v803 = vpop.f32.mrb[0].mxu0
        %804 = vmatprep.mubr.bf16.mxu0 0
        %805 = vmatmul.mubr.bf16.gmra.mrb[0].mxu0 %v584
        %v806 = vpop.f32.mrb[0].mxu0
        %v807 = vadd.f32 %v686, %v806
        %v808 = vpop.f32.mrb[0].mxu0
        %v809 = vpop.f32.mrb[0].mxu0
        %v810 = vadd.f32 %v689, %v809
        %v811 = vpop.f32.mrb[0].mxu0
        %812 = vmatprep.mubr.bf16.mxu0 0
        %813 = vmatmul.mubr.bf16.gmra.mrb[0].mxu0 %v587
        %v814 = vpop.f32.mrb[0].mxu0
        %v815 = vadd.f32 %v694, %v814
        %v816 = vpop.f32.mrb[0].mxu0
        %v817 = vpop.f32.mrb[0].mxu0
        %v818 = vadd.f32 %v697, %v817
        %v819 = vpop.f32.mrb[0].mxu0
        %820 = vmatprep.mubr.bf16.mxu0 0
        %821 = vmatmul.mubr.bf16.gmra.mrb[0].mxu0 %v590
        %v822 = vpop.f32.mrb[0].mxu0
        %v823 = vadd.f32 %v702, %v822
        %v824 = vpop.f32.mrb[0].mxu0
        %v825 = vpop.f32.mrb[0].mxu0
        %v826 = vadd.f32 %v705, %v825
        %v827 = vpop.f32.mrb[0].mxu0
        %828 = vmatprep.mubr.bf16.mxu0 0
        %829 = vmatmul.mubr.bf16.gmra.mrb[0].mxu0 %v593
        %v830 = vpop.f32.mrb[0].mxu0
        %v831 = vadd.f32 %v710, %v830
        %v832 = vpop.f32.mrb[0].mxu0
        %v833 = vpop.f32.mrb[0].mxu0
        %v834 = vadd.f32 %v713, %v833
        %v835 = vpop.f32.mrb[0].mxu0
        %836 = vdwg.mxu0
        %v837 = vmax.f32 %v751, 0.0
        %v838 = vmax.f32 %v754, 0.0
        %v839 = vmax.f32 %v759, 0.0
        %v840 = vmax.f32 %v762, 0.0
        %v841 = vmax.f32 %v767, 0.0
        %v842 = vmax.f32 %v770, 0.0
        %v843 = vmax.f32 %v775, 0.0
        %v844 = vmax.f32 %v778, 0.0
        %v845 = vmax.f32 %v783, 0.0
        %v846 = vmax.f32 %v786, 0.0
        %v847 = vmax.f32 %v791, 0.0
        %v848 = vmax.f32 %v794, 0.0
        %v849 = vmax.f32 %v799, 0.0
        %v850 = vmax.f32 %v802, 0.0
        %v851 = vmax.f32 %v807, 0.0
        %v852 = vmax.f32 %v810, 0.0
        %v853 = vmax.f32 %v815, 0.0
        %v854 = vmax.f32 %v818, 0.0
        %v855 = vmax.f32 %v823, 0.0
        %v856 = vmax.f32 %v826, 0.0
        %v857 = vmax.f32 %v831, 0.0
        %v858 = vmax.f32 %v834, 0.0
        %v859 = vpack.c.bf16 %v838, %v837
        %v860 = vpack.c.bf16 %v840, %v839
        %v861 = vpack.c.bf16 %v842, %v841
        %v862 = vpack.c.bf16 %v844, %v843
        %v863 = vpack.c.bf16 %v846, %v845
        %v864 = vpack.c.bf16 %v848, %v847
        %v865 = vpack.c.bf16 %v850, %v849
        %v866 = vpack.c.bf16 %v852, %v851
        %v867 = vpack.c.bf16 %v854, %v853
        %v868 = vpack.c.bf16 %v856, %v855
        %v869 = vpack.c.bf16 %v858, %v857
        %v881 = vunpack.c.l.b16 %v859
        %v882 = vunpack.c.h.b16 %v859
        %v883 = vunpack.c.l.b16 %v860
        %v884 = vunpack.c.h.b16 %v860
        %v885 = vunpack.c.l.b16 %v861
        %v886 = vunpack.c.h.b16 %v861
        %v887 = vunpack.c.l.b16 %v862
        %v888 = vunpack.c.h.b16 %v862
        %v889 = vunpack.c.l.b16 %v863
        %v890 = vunpack.c.h.b16 %v863
        %v891 = vunpack.c.l.b16 %v864
        %v892 = vunpack.c.h.b16 %v864
        %v893 = vunpack.c.l.b16 %v865
        %v894 = vunpack.c.h.b16 %v865
        %v895 = vunpack.c.l.b16 %v866
        %v896 = vunpack.c.h.b16 %v866
        %v897 = vunpack.c.l.b16 %v867
        %v898 = vunpack.c.h.b16 %v867
        %v899 = vunpack.c.l.b16 %v868
        %v900 = vunpack.c.h.b16 %v868
        %v901 = vunpack.c.l.b16 %v869
        %v902 = vunpack.c.h.b16 %v869
        %v903 = vpack.c.b16 %v881, %v881
        %v904 = vpack.c.b16 %v882, %v882
        %v905 = vpack.c.b16 %v883, %v883
        %v906 = vpack.c.b16 %v884, %v884
        %v907 = vpack.c.b16 %v885, %v885
        %v908 = vpack.c.b16 %v886, %v886
        %v909 = vpack.c.b16 %v887, %v887
        %v910 = vpack.c.b16 %v888, %v888
        %v911 = vpack.c.b16 %v889, %v889
        %v912 = vpack.c.b16 %v890, %v890
        %v913 = vpack.c.b16 %v891, %v891
        %v914 = vpack.c.b16 %v892, %v892
        %v915 = vpack.c.b16 %v893, %v893
        %v916 = vpack.c.b16 %v894, %v894
        %v917 = vpack.c.b16 %v895, %v895
        %v918 = vpack.c.b16 %v896, %v896
        %v919 = vpack.c.b16 %v897, %v897
        %v920 = vpack.c.b16 %v898, %v898
        %v921 = vpack.c.b16 %v899, %v899
        %v922 = vpack.c.b16 %v900, %v900
        %v923 = vpack.c.b16 %v901, %v901
        %v924 = vpack.c.b16 %v902, %v902
        %vm947 = vcmask 519168
        %948 = vst.msk [vmem:[%s177] sm:$0xf] %vm947, %v903
        %949 = vst.msk [vmem:[%s177 + $0x4] sm:$0xf] %vm947, %v904
        %950 = vst.msk [vmem:[%s177 + $0x8] sm:$0xf] %vm947, %v905
        %951 = vst.msk [vmem:[%s177 + $0xc] sm:$0xf] %vm947, %v906
        %952 = vst.msk [vmem:[%s177 + $0x10] sm:$0xf] %vm947, %v907
        %953 = vst.msk [vmem:[%s177 + $0x14] sm:$0xf] %vm947, %v908
        %954 = vst.msk [vmem:[%s177 + $0x18] sm:$0xf] %vm947, %v909
        %955 = vst.msk [vmem:[%s177 + $0x1c] sm:$0xf] %vm947, %v910
        %956 = vst.msk [vmem:[%s177 + $0x20] sm:$0xf] %vm947, %v911
        %957 = vst.msk [vmem:[%s177 + $0x24] sm:$0xf] %vm947, %v912
        %958 = vst.msk [vmem:[%s177 + $0x28] sm:$0xf] %vm947, %v913
        %959 = vst.msk [vmem:[%s177 + $0x2c] sm:$0xf] %vm947, %v914
        %960 = vst.msk [vmem:[%s177 + $0x30] sm:$0xf] %vm947, %v915
        %961 = vst.msk [vmem:[%s177 + $0x34] sm:$0xf] %vm947, %v916
        %962 = vst.msk [vmem:[%s177 + $0x38] sm:$0xf] %vm947, %v917
        %963 = vst.msk [vmem:[%s177 + $0x3c] sm:$0xf] %vm947, %v918
        %964 = vst.msk [vmem:[%s177 + $0x40] sm:$0xf] %vm947, %v919
        %965 = vst.msk [vmem:[%s177 + $0x44] sm:$0xf] %vm947, %v920
        %966 = vst.msk [vmem:[%s177 + $0x48] sm:$0xf] %vm947, %v921
        %967 = vst.msk [vmem:[%s177 + $0x4c] sm:$0xf] %vm947, %v922
        %968 = vst.msk [vmem:[%s177 + $0x50] sm:$0xf] %vm947, %v923
        %969 = vst.msk [vmem:[%s177 + $0x54] sm:$0xf] %vm947, %v924
        %s970 = sand.u32 %s90, 1
        %s971 = sand.u32 %s90, 1
        %s972 = smul.addr %s971, 88
        %s973 = scalar_lea.vmem [#allocation2], %s972
        // Predicated region
        $region33: #{_lambda_.11} parent=31 // pred_check
          %p974 = pneg %p100
        $region34: #{_lambda_.11} parent=31 // pred_check_branch
          %976 = sbr.rel (%p974) target = $region36
        $region35: #{_lambda_.11} parent=31 // pred_region
          %s977 = smul.u32 22, %s14
          %s978 = ssub.s32 43, %s977
          %p979 = scmp.lt.s32.totalorder %s978, 22
          %s980 = scalar_select %p979, %s978, 22
          %s981 = smul.u32 64, %s980
          %p982 = scmp.ne.s32.totalorder 0, %s981
          %s983 = smul.addr %s977, 4
          %s984 = scalar_lea.vmem %s3, %s983
          // Predicated region
          $region37: #{_lambda_.11} parent=35 // pred_check
            %p985 = pneg %p982
          $region38: #{_lambda_.11} parent=35 // pred_check_branch
            %987 = sbr.rel (%p985) target = $region40
          $region39: #{_lambda_.11} parent=35 // pred_region
            // Predicated region
            $region41: #{_lambda_.11} parent=39 // pred_check
              _
            $region42: #{_lambda_.11} parent=39 // pred_check_branch
              %989 = sbr.rel target = $region44
            $region43: #{_lambda_.11} parent=39 // pred_region
              // Predicated region
              $region63: #{_lambda_.11} parent=43 // pred_check
                _
              $region64: #{_lambda_.11} parent=43 // pred_check_branch
                %1081 = sbr.rel (0) target = $region66
              $region65: #{_lambda_.11} parent=43 // pred_region
                %s1083 = sdiv.u32.pop %s980, 22
                %s1084 = srem.u32.pop %s980, 22
                // While loop
                $region67: #{_lambda_.11} parent=65 // loop_pre_header
                  _
                $region68: #{_lambda_.11} parent=65 // loop_header
                  %s1086 = sphi 0, %s1088
                  %p1087 = scmp.ge.s32.totalorder %s1086, %s1083
                  %s1091 = sphi 0, %s1140
                  %s1092 = sphi %s973, %s1143
                  %s1093 = sphi %s984, %s1144
                $region69: #{_lambda_.11} parent=65 // loop_header_branch
                  %1090 = sbr.rel (%p1087) target = $region73
                $region70: #{_lambda_.11} parent=65 // loop_body
                  %v1094 = vld [vmem:[%s1092] sm:$0xf]
                  %1095 = vst [vmem:[%s1093] sm:$0xf] %v1094
                  %v1096 = vld [vmem:[%s1092 + $0x4] sm:$0xf]
                  %1097 = vst [vmem:[%s1093 + $0x4] sm:$0xf] %v1096
                  %v1098 = vld [vmem:[%s1092 + $0x8] sm:$0xf]
                  %1099 = vst [vmem:[%s1093 + $0x8] sm:$0xf] %v1098
                  %v1100 = vld [vmem:[%s1092 + $0xc] sm:$0xf]
                  %1101 = vst [vmem:[%s1093 + $0xc] sm:$0xf] %v1100
                  %v1102 = vld [vmem:[%s1092 + $0x10] sm:$0xf]
                  %1103 = vst [vmem:[%s1093 + $0x10] sm:$0xf] %v1102
                  %v1104 = vld [vmem:[%s1092 + $0x14] sm:$0xf]
                  %1105 = vst [vmem:[%s1093 + $0x14] sm:$0xf] %v1104
                  %v1106 = vld [vmem:[%s1092 + $0x18] sm:$0xf]
                  %1107 = vst [vmem:[%s1093 + $0x18] sm:$0xf] %v1106
                  %v1108 = vld [vmem:[%s1092 + $0x1c] sm:$0xf]
                  %1109 = vst [vmem:[%s1093 + $0x1c] sm:$0xf] %v1108
                  %v1110 = vld [vmem:[%s1092 + $0x20] sm:$0xf]
                  %1111 = vst [vmem:[%s1093 + $0x20] sm:$0xf] %v1110
                  %v1112 = vld [vmem:[%s1092 + $0x24] sm:$0xf]
                  %1113 = vst [vmem:[%s1093 + $0x24] sm:$0xf] %v1112
                  %v1114 = vld [vmem:[%s1092 + $0x28] sm:$0xf]
                  %1115 = vst [vmem:[%s1093 + $0x28] sm:$0xf] %v1114
                  %v1116 = vld [vmem:[%s1092 + $0x2c] sm:$0xf]
                  %1117 = vst [vmem:[%s1093 + $0x2c] sm:$0xf] %v1116
                  %v1118 = vld [vmem:[%s1092 + $0x30] sm:$0xf]
                  %1119 = vst [vmem:[%s1093 + $0x30] sm:$0xf] %v1118
                  %v1120 = vld [vmem:[%s1092 + $0x34] sm:$0xf]
                  %1121 = vst [vmem:[%s1093 + $0x34] sm:$0xf] %v1120
                  %v1122 = vld [vmem:[%s1092 + $0x38] sm:$0xf]
                  %1123 = vst [vmem:[%s1093 + $0x38] sm:$0xf] %v1122
                  %v1124 = vld [vmem:[%s1092 + $0x3c] sm:$0xf]
                  %1125 = vst [vmem:[%s1093 + $0x3c] sm:$0xf] %v1124
                  %v1126 = vld [vmem:[%s1092 + $0x40] sm:$0xf]
                  %1127 = vst [vmem:[%s1093 + $0x40] sm:$0xf] %v1126
                  %v1128 = vld [vmem:[%s1092 + $0x44] sm:$0xf]
                  %1129 = vst [vmem:[%s1093 + $0x44] sm:$0xf] %v1128
                  %v1130 = vld [vmem:[%s1092 + $0x48] sm:$0xf]
                  %1131 = vst [vmem:[%s1093 + $0x48] sm:$0xf] %v1130
                  %v1132 = vld [vmem:[%s1092 + $0x4c] sm:$0xf]
                  %1133 = vst [vmem:[%s1093 + $0x4c] sm:$0xf] %v1132
                  %v1134 = vld [vmem:[%s1092 + $0x50] sm:$0xf]
                  %1135 = vst [vmem:[%s1093 + $0x50] sm:$0xf] %v1134
                  %v1136 = vld [vmem:[%s1092 + $0x54] sm:$0xf]
                  %1137 = vst [vmem:[%s1093 + $0x54] sm:$0xf] %v1136
                  %s1138 = sadd.s32 1, %s1091
                  %p1139 = scmp.ge.s32.totalorder %s1138, %s1083
                  %s1140 = scalar_select %p1139, 0, %s1138
                  %s1141 = smul.u32 %s1140, 88
                  %s1142 = smul.u32 %s1140, 88
                  %s1143 = scalar_lea.vmem %s973, %s1141 [#allocation2]
                  %s1144 = scalar_lea.vmem %s984, %s1142
                $region71: #{_lambda_.11} parent=65 // loop_footer
                  %s1088 = sadd.s32 %s1086, 1
                $region72: #{_lambda_.11} parent=65 // loop_footer_branch
                  %1085 = sbr.rel target = $region68
                $region73: #{_lambda_.11} parent=65 // loop_exit
                  _
                %s1145 = sdiv.u32.pop %s980, 22
                %s1146 = srem.u32.pop %s980, 22
                %s1147 = smul.u32 %s1145, 22
                %s1148 = smul.u32 4, %s1147
                %s1149 = scalar_lea.vmem %s973, %s1148 [#allocation2]
                %s1150 = smul.u32 4, %s1147
                %s1151 = scalar_lea.vmem %s984, %s1150
                // While loop
                $region74: #{_lambda_.11} parent=65 // loop_pre_header
                  _
                $region75: #{_lambda_.11} parent=65 // loop_header
                  %s1153 = sphi 0, %s1155
                  %p1154 = scmp.ge.s32.totalorder %s1153, %s1146
                  %s1158 = sphi 0, %s1165
                  %s1159 = sphi %s1149, %s1168
                  %s1160 = sphi %s1151, %s1169
                $region76: #{_lambda_.11} parent=65 // loop_header_branch
                  %1157 = sbr.rel (%p1154) target = $region80
                $region77: #{_lambda_.11} parent=65 // loop_body
                  %v1161 = vld [vmem:[%s1159] sm:$0xf]
                  %1162 = vst [vmem:[%s1160] sm:$0xf] %v1161
                  %s1163 = sadd.s32 1, %s1158
                  %p1164 = scmp.ge.s32.totalorder %s1163, %s1146
                  %s1165 = scalar_select %p1164, 0, %s1163
                  %s1166 = smul.u32 %s1165, 4
                  %s1167 = smul.u32 %s1165, 4
                  %s1168 = scalar_lea.vmem %s1149, %s1166 [#allocation2]
                  %s1169 = scalar_lea.vmem %s1151, %s1167
                $region78: #{_lambda_.11} parent=65 // loop_footer
                  %s1155 = sadd.s32 %s1153, 1
                $region79: #{_lambda_.11} parent=65 // loop_footer_branch
                  %1152 = sbr.rel target = $region75
                $region80: #{_lambda_.11} parent=65 // loop_exit
                  _
              $region66: #{_lambda_.11} parent=43 // pred_fallthru
                _
            $region44: #{_lambda_.11} parent=39 // pred_fallthru
              _
            // Predicated region
            $region45: #{_lambda_.11} parent=39 // pred_check
              _
            $region46: #{_lambda_.11} parent=39 // pred_check_branch
              %991 = sbr.rel (0) target = $region48
            $region47: #{_lambda_.11} parent=39 // pred_region
              %s993 = sdiv.u32.pop %s980, 22
              %s994 = srem.u32.pop %s980, 22
              // While loop
              $region49: #{_lambda_.11} parent=47 // loop_pre_header
                _
              $region50: #{_lambda_.11} parent=47 // loop_header
                %s996 = sphi 0, %s998
                %p997 = scmp.ge.s32.totalorder %s996, %s993
                %s1001 = sphi 0, %s1050
                %s1002 = sphi %s973, %s1053
                %s1003 = sphi %s984, %s1054
              $region51: #{_lambda_.11} parent=47 // loop_header_branch
                %1000 = sbr.rel (%p997) target = $region55
              $region52: #{_lambda_.11} parent=47 // loop_body
                %v1004 = vld [vmem:[%s1002] sm:$0xf]
                %1005 = vst [vmem:[%s1003] sm:$0xf] %v1004
                %v1006 = vld [vmem:[%s1002 + $0x4] sm:$0xf]
                %1007 = vst [vmem:[%s1003 + $0x4] sm:$0xf] %v1006
                %v1008 = vld [vmem:[%s1002 + $0x8] sm:$0xf]
                %1009 = vst [vmem:[%s1003 + $0x8] sm:$0xf] %v1008
                %v1010 = vld [vmem:[%s1002 + $0xc] sm:$0xf]
                %1011 = vst [vmem:[%s1003 + $0xc] sm:$0xf] %v1010
                %v1012 = vld [vmem:[%s1002 + $0x10] sm:$0xf]
                %1013 = vst [vmem:[%s1003 + $0x10] sm:$0xf] %v1012
                %v1014 = vld [vmem:[%s1002 + $0x14] sm:$0xf]
                %1015 = vst [vmem:[%s1003 + $0x14] sm:$0xf] %v1014
                %v1016 = vld [vmem:[%s1002 + $0x18] sm:$0xf]
                %1017 = vst [vmem:[%s1003 + $0x18] sm:$0xf] %v1016
                %v1018 = vld [vmem:[%s1002 + $0x1c] sm:$0xf]
                %1019 = vst [vmem:[%s1003 + $0x1c] sm:$0xf] %v1018
                %v1020 = vld [vmem:[%s1002 + $0x20] sm:$0xf]
                %1021 = vst [vmem:[%s1003 + $0x20] sm:$0xf] %v1020
                %v1022 = vld [vmem:[%s1002 + $0x24] sm:$0xf]
                %1023 = vst [vmem:[%s1003 + $0x24] sm:$0xf] %v1022
                %v1024 = vld [vmem:[%s1002 + $0x28] sm:$0xf]
                %1025 = vst [vmem:[%s1003 + $0x28] sm:$0xf] %v1024
                %v1026 = vld [vmem:[%s1002 + $0x2c] sm:$0xf]
                %1027 = vst [vmem:[%s1003 + $0x2c] sm:$0xf] %v1026
                %v1028 = vld [vmem:[%s1002 + $0x30] sm:$0xf]
                %1029 = vst [vmem:[%s1003 + $0x30] sm:$0xf] %v1028
                %v1030 = vld [vmem:[%s1002 + $0x34] sm:$0xf]
                %1031 = vst [vmem:[%s1003 + $0x34] sm:$0xf] %v1030
                %v1032 = vld [vmem:[%s1002 + $0x38] sm:$0xf]
                %1033 = vst [vmem:[%s1003 + $0x38] sm:$0xf] %v1032
                %v1034 = vld [vmem:[%s1002 + $0x3c] sm:$0xf]
                %1035 = vst [vmem:[%s1003 + $0x3c] sm:$0xf] %v1034
                %v1036 = vld [vmem:[%s1002 + $0x40] sm:$0xf]
                %1037 = vst [vmem:[%s1003 + $0x40] sm:$0xf] %v1036
                %v1038 = vld [vmem:[%s1002 + $0x44] sm:$0xf]
                %1039 = vst [vmem:[%s1003 + $0x44] sm:$0xf] %v1038
                %v1040 = vld [vmem:[%s1002 + $0x48] sm:$0xf]
                %1041 = vst [vmem:[%s1003 + $0x48] sm:$0xf] %v1040
                %v1042 = vld [vmem:[%s1002 + $0x4c] sm:$0xf]
                %1043 = vst [vmem:[%s1003 + $0x4c] sm:$0xf] %v1042
                %v1044 = vld [vmem:[%s1002 + $0x50] sm:$0xf]
                %1045 = vst [vmem:[%s1003 + $0x50] sm:$0xf] %v1044
                %v1046 = vld [vmem:[%s1002 + $0x54] sm:$0xf]
                %1047 = vst [vmem:[%s1003 + $0x54] sm:$0xf] %v1046
                %s1048 = sadd.s32 1, %s1001
                %p1049 = scmp.ge.s32.totalorder %s1048, %s993
                %s1050 = scalar_select %p1049, 0, %s1048
                %s1051 = smul.u32 %s1050, 88
                %s1052 = smul.u32 %s1050, 88
                %s1053 = scalar_lea.vmem %s973, %s1051 [#allocation2]
                %s1054 = scalar_lea.vmem %s984, %s1052
              $region53: #{_lambda_.11} parent=47 // loop_footer
                %s998 = sadd.s32 %s996, 1
              $region54: #{_lambda_.11} parent=47 // loop_footer_branch
                %995 = sbr.rel target = $region50
              $region55: #{_lambda_.11} parent=47 // loop_exit
                _
              %s1055 = sdiv.u32.pop %s980, 22
              %s1056 = srem.u32.pop %s980, 22
              %s1057 = smul.u32 %s1055, 22
              %s1058 = smul.u32 4, %s1057
              %s1059 = scalar_lea.vmem %s973, %s1058 [#allocation2]
              %s1060 = smul.u32 4, %s1057
              %s1061 = scalar_lea.vmem %s984, %s1060
              // While loop
              $region56: #{_lambda_.11} parent=47 // loop_pre_header
                _
              $region57: #{_lambda_.11} parent=47 // loop_header
                %s1063 = sphi 0, %s1065
                %p1064 = scmp.ge.s32.totalorder %s1063, %s1056
                %s1068 = sphi 0, %s1075
                %s1069 = sphi %s1059, %s1078
                %s1070 = sphi %s1061, %s1079
              $region58: #{_lambda_.11} parent=47 // loop_header_branch
                %1067 = sbr.rel (%p1064) target = $region62
              $region59: #{_lambda_.11} parent=47 // loop_body
                %v1071 = vld [vmem:[%s1069] sm:$0xf]
                %1072 = vst [vmem:[%s1070] sm:$0xf] %v1071
                %s1073 = sadd.s32 1, %s1068
                %p1074 = scmp.ge.s32.totalorder %s1073, %s1056
                %s1075 = scalar_select %p1074, 0, %s1073
                %s1076 = smul.u32 %s1075, 4
                %s1077 = smul.u32 %s1075, 4
                %s1078 = scalar_lea.vmem %s1059, %s1076 [#allocation2]
                %s1079 = scalar_lea.vmem %s1061, %s1077
              $region60: #{_lambda_.11} parent=47 // loop_footer
                %s1065 = sadd.s32 %s1063, 1
              $region61: #{_lambda_.11} parent=47 // loop_footer_branch
                %1062 = sbr.rel target = $region57
              $region62: #{_lambda_.11} parent=47 // loop_exit
                _
            $region48: #{_lambda_.11} parent=39 // pred_fallthru
              _
          $region40: #{_lambda_.11} parent=35 // pred_fallthru
            _
          %1170 = vnop
        $region36: #{_lambda_.11} parent=31 // pred_fallthru
          _
      $region32: #{_lambda_.11} parent=5 // pred_fallthru
        _
      %p1171 = scmp.le.s32.totalorder 2, %s9
      // Predicated region
      $region81: #{_lambda_.11} parent=5 // pred_check
        %p1172 = pneg %p1171
      $region82: #{_lambda_.11} parent=5 // pred_check_branch
        %1174 = sbr.rel (%p1172) target = $region84
      $region83: #{_lambda_.11} parent=5 // pred_region
        %s1175 = ssub.s32 %s9, 2
        // Predicated region
        $region85: #{_lambda_.11} parent=83 // pred_check
          %p1176 = pneg %p106
        $region86: #{_lambda_.11} parent=83 // pred_check_branch
          %1178 = sbr.rel (%p1176) target = $region88
        $region87: #{_lambda_.11} parent=83 // pred_region
          %s1179 = sand.u32 %s91, 1
          %s1180 = sand.u32 %s91, 1
          %s1181 = smul.addr %s1180, 88
          %s1182 = scalar_lea.vmem [#allocation2], %s1181
        $region88: #{_lambda_.11} parent=83 // pred_fallthru
          _
      $region84: #{_lambda_.11} parent=5 // pred_fallthru
        _
    $region6: #{_lambda_.11} parent=1 // loop_footer
      %s13 = sadd.s32 1, %s9
    $region7: #{_lambda_.11} parent=1 // loop_footer_branch
      %8 = sbr.rel target = $region3
    $region8: #{_lambda_.11} parent=1 // loop_exit
      _

// kernel: _lambda_.13
$region0: #{_lambda_.13}
  #allocation0 [shape = 'u32[]', space=smem, size = 0x4, offset = 0x4, fixed_abs, tag = 'smem constant byte address 0x4 - core index']
  #allocation1 [shape = 'u32[144,128]{1,0:T(1,128)}', space=vmem, size = 0x12000, scoped, tag = 'internal scratch']
  %s0 = inlined_call_operand.vmem [shape: bf16[72,96], index: 0, kind: input, shape index: {}]
  %s1 = inlined_call_operand.vmem [shape: bf16[72,64], index: 1, kind: input, shape index: {}]
  %s2 = inlined_call_operand.vmem [shape: bf16[96,128], index: 2, kind: input, shape index: {}]
  %s3 = inlined_call_operand.vmem [shape: bf16[64,128], index: 3, kind: input, shape index: {}]
  %s4 = inlined_call_operand.vmem [shape: f32[1,128], index: 4, kind: input, shape index: {}]
  %s5 = inlined_call_operand.vmem [shape: bf16[72,128], index: 5, kind: output, shape index: {}]
  %s6 = sld [smem:[#allocation0]]
  $region97: #{_lambda_.13} parent=0
    _
  %s8 = ssub.s32 1, %s6
  %s9 = scalar_select 0, %s8, %s6
  $region1: #{_lambda_.13} parent=0
    #allocation2 [shape = 'u8[20480]{0}', space=vmem, size = 0x5000, scoped, tag = 'output window, operand 0']
    loop: start=0, step=1, limit=4
    $region2: #{_lambda_.13} parent=1 // loop_pre_header
      _
    $region3: #{_lambda_.13} parent=1 // loop_header
      %s11 = sphi 0, %s15
      %p12 = scmp.ge.s32.totalorder %s11, 4
      %s21 = sphi 0, %s23
      %s24 = sphi 0, %s21
      %s25 = sphi 0, %s24
      %s41 = sphi 0, %s25
      %s47 = sphi 0, %s49
      %s50 = sphi 0, %s47
      %s51 = sphi 0, %s50
      %s67 = sphi 0, %s51
      %s71 = sphi 0, %s71
      %s73 = sphi 0, %s71
      %s74 = sphi 0, %s73
      %s88 = sphi 0, %s74
      %s92 = sphi 0, %s92
      %s94 = sphi 0, %s92
      %s95 = sphi 0, %s94
      %s109 = sphi 0, %s95
      %s113 = sphi 0, %s113
      %s115 = sphi 0, %s113
      %s116 = sphi 0, %s115
      %s130 = sphi 0, %s116
      %s136 = sphi 0, %s138
      %s139 = sphi 0, %s136
      %s140 = sphi 0, %s139
      %s156 = sphi 0, %s140
    $region4: #{_lambda_.13} parent=1 // loop_header_branch
      %14 = sbr.rel (%p12) target = $region8
    $region5: #{_lambda_.13} parent=1 // loop_body
      %s16 = ssub.s32 %s11, 1
      %s17 = ssub.s32 %s11, 2
      %s18 = sadd.s32 %s11, 1
      %s19 = ssub.s32 %s11, %s18
      %p20 = scmp.eq.s32.totalorder %s19, 0
      %s22 = sadd.s32 %s21, 1
      %s23 = scalar_select %p20, %s21, %s22
      %p26 = pneg %p20
      %p27 = scmp.eq.s32.totalorder %s11, 1
      %p28 = por %p26, %p27
      %p29 = scmp.ne.s32.totalorder %s21, %s24
      %p30 = scmp.eq.s32.totalorder %s11, 0
      %p31 = por %p29, %p30
      %p32 = scmp.ne.s32.totalorder %s21, %s24
      %p33 = scmp.eq.s32.totalorder %s16, 1
      %p34 = por %p32, %p33
      %p35 = scmp.ne.s32.totalorder %s24, %s25
      %p36 = scmp.eq.s32.totalorder %s16, 0
      %p37 = por %p35, %p36
      %p38 = scmp.ne.s32.totalorder %s24, %s25
      %p39 = scmp.eq.s32.totalorder %s17, 1
      %p40 = por %p38, %p39
      %p42 = scmp.ne.s32.totalorder %s25, %s41
      %p43 = scmp.eq.s32.totalorder %s17, 0
      %p44 = por %p42, %p43
      %s45 = ssub.s32 %s11, %s18
      %p46 = scmp.eq.s32.totalorder %s45, 0
      %s48 = sadd.s32 %s47, 1
      %s49 = scalar_select %p46, %s47, %s48
      %p52 = pneg %p46
      %p53 = scmp.eq.s32.totalorder %s11, 1
      %p54 = por %p52, %p53
      %p55 = scmp.ne.s32.totalorder %s47, %s50
      %p56 = scmp.eq.s32.totalorder %s11, 0
      %p57 = por %p55, %p56
      %p58 = scmp.ne.s32.totalorder %s47, %s50
      %p59 = scmp.eq.s32.totalorder %s16, 1
      %p60 = por %p58, %p59
      %p61 = scmp.ne.s32.totalorder %s50, %s51
      %p62 = scmp.eq.s32.totalorder %s16, 0
      %p63 = por %p61, %p62
      %p64 = scmp.ne.s32.totalorder %s50, %s51
      %p65 = scmp.eq.s32.totalorder %s17, 1
      %p66 = por %p64, %p65
      %p68 = scmp.ne.s32.totalorder %s51, %s67
      %p69 = scmp.eq.s32.totalorder %s17, 0
      %p70 = por %p68, %p69
      %s72 = sadd.s32 %s71, 1
      %p75 = scmp.eq.s32.totalorder %s11, 1
      %p76 = scmp.ne.s32.totalorder %s71, %s73
      %p77 = scmp.eq.s32.totalorder %s11, 0
      %p78 = por %p76, %p77
      %p79 = scmp.ne.s32.totalorder %s71, %s73
      %p80 = scmp.eq.s32.totalorder %s16, 1
      %p81 = por %p79, %p80
      %p82 = scmp.ne.s32.totalorder %s73, %s74
      %p83 = scmp.eq.s32.totalorder %s16, 0
      %p84 = por %p82, %p83
      %p85 = scmp.ne.s32.totalorder %s73, %s74
      %p86 = scmp.eq.s32.totalorder %s17, 1
      %p87 = por %p85, %p86
      %p89 = scmp.ne.s32.totalorder %s74, %s88
      %p90 = scmp.eq.s32.totalorder %s17, 0
      %p91 = por %p89, %p90
      %s93 = sadd.s32 %s92, 1
      %p96 = scmp.eq.s32.totalorder %s11, 1
      %p97 = scmp.ne.s32.totalorder %s92, %s94
      %p98 = scmp.eq.s32.totalorder %s11, 0
      %p99 = por %p97, %p98
      %p100 = scmp.ne.s32.totalorder %s92, %s94
      %p101 = scmp.eq.s32.totalorder %s16, 1
      %p102 = por %p100, %p101
      %p103 = scmp.ne.s32.totalorder %s94, %s95
      %p104 = scmp.eq.s32.totalorder %s16, 0
      %p105 = por %p103, %p104
      %p106 = scmp.ne.s32.totalorder %s94, %s95
      %p107 = scmp.eq.s32.totalorder %s17, 1
      %p108 = por %p106, %p107
      %p110 = scmp.ne.s32.totalorder %s95, %s109
      %p111 = scmp.eq.s32.totalorder %s17, 0
      %p112 = por %p110, %p111
      %s114 = sadd.s32 %s113, 1
      %p117 = scmp.eq.s32.totalorder %s11, 1
      %p118 = scmp.ne.s32.totalorder %s113, %s115
      %p119 = scmp.eq.s32.totalorder %s11, 0
      %p120 = por %p118, %p119
      %p121 = scmp.ne.s32.totalorder %s113, %s115
      %p122 = scmp.eq.s32.totalorder %s16, 1
      %p123 = por %p121, %p122
      %p124 = scmp.ne.s32.totalorder %s115, %s116
      %p125 = scmp.eq.s32.totalorder %s16, 0
      %p126 = por %p124, %p125
      %p127 = scmp.ne.s32.totalorder %s115, %s116
      %p128 = scmp.eq.s32.totalorder %s17, 1
      %p129 = por %p127, %p128
      %p131 = scmp.ne.s32.totalorder %s116, %s130
      %p132 = scmp.eq.s32.totalorder %s17, 0
      %p133 = por %p131, %p132
      %s134 = ssub.s32 %s11, %s18
      %p135 = scmp.eq.s32.totalorder %s134, 0
      %s137 = sadd.s32 %s136, 1
      %s138 = scalar_select %p135, %s136, %s137
      %p141 = pneg %p135
      %p142 = scmp.eq.s32.totalorder %s11, 1
      %p143 = por %p141, %p142
      %p144 = scmp.ne.s32.totalorder %s136, %s139
      %p145 = scmp.eq.s32.totalorder %s11, 0
      %p146 = por %p144, %p145
      %p147 = scmp.ne.s32.totalorder %s136, %s139
      %p148 = scmp.eq.s32.totalorder %s16, 1
      %p149 = por %p147, %p148
      %p150 = scmp.ne.s32.totalorder %s139, %s140
      %p151 = scmp.eq.s32.totalorder %s16, 0
      %p152 = por %p150, %p151
      %p153 = scmp.ne.s32.totalorder %s139, %s140
      %p154 = scmp.eq.s32.totalorder %s17, 1
      %p155 = por %p153, %p154
      %p157 = scmp.ne.s32.totalorder %s140, %s156
      %p158 = scmp.eq.s32.totalorder %s17, 0
      %p159 = por %p157, %p158
      %p160 = scmp.le.s32.totalorder 1, %s11
      %p161 = scmp.lt.s32.totalorder %s11, 3
      %p162 = pnand %p160, %p161
      %p163 = pneg %p162
      // Predicated region
      $region9: #{_lambda_.13} parent=5 // pred_check
        _
      $region10: #{_lambda_.13} parent=5 // pred_check_branch
        %165 = sbr.rel (%p162) target = $region12
      $region11: #{_lambda_.13} parent=5 // pred_region
        %s166 = ssub.s32 %s11, 1
        // Predicated region
        $region13: #{_lambda_.13} parent=11 // pred_check
          %p167 = pneg %p84
        $region14: #{_lambda_.13} parent=11 // pred_check_branch
          %169 = sbr.rel (%p167) target = $region16
        $region15: #{_lambda_.13} parent=11 // pred_region
          _
        $region16: #{_lambda_.13} parent=11 // pred_fallthru
          _
        // Predicated region
        $region17: #{_lambda_.13} parent=11 // pred_check
          %p170 = pneg %p105
        $region18: #{_lambda_.13} parent=11 // pred_check_branch
          %172 = sbr.rel (%p170) target = $region20
        $region19: #{_lambda_.13} parent=11 // pred_region
          _
        $region20: #{_lambda_.13} parent=11 // pred_fallthru
          _
        // Predicated region
        $region21: #{_lambda_.13} parent=11 // pred_check
          %p173 = pneg %p126
        $region22: #{_lambda_.13} parent=11 // pred_check_branch
          %175 = sbr.rel (%p173) target = $region24
        $region23: #{_lambda_.13} parent=11 // pred_region
          _
        $region24: #{_lambda_.13} parent=11 // pred_fallthru
          _
      $region12: #{_lambda_.13} parent=5 // pred_fallthru
        _
      %p176 = scmp.lt.s32.totalorder %s11, 2
      // Predicated region
      $region25: #{_lambda_.13} parent=5 // pred_check
        %p177 = pneg %p176
      $region26: #{_lambda_.13} parent=5 // pred_check_branch
        %179 = sbr.rel (%p177) target = $region28
      $region27: #{_lambda_.13} parent=5 // pred_region
        // Predicated region
        $region29: #{_lambda_.13} parent=27 // pred_check
          %p180 = pneg %p31
        $region30: #{_lambda_.13} parent=27 // pred_check_branch
          %182 = sbr.rel (%p180) target = $region32
        $region31: #{_lambda_.13} parent=27 // pred_region
          %s183 = smul.u32 5, %s11
          %s184 = ssub.s32 9, %s183
          %p185 = scmp.lt.s32.totalorder %s184, 5
          %s186 = scalar_select %p185, %s184, 5
          %s187 = smul.u32 64, %s186
          %p188 = scmp.lt.s32.totalorder %s183, 8
          %s189 = scalar_select %p188, %s183, 8
          %s190 = smul.addr %s189, 4
          %s191 = scalar_lea.vmem %s0, %s190
          %s192 = smul.u32 5, %s11
          %s193 = ssub.s32 9, %s192
          %p194 = scmp.lt.s32.totalorder %s193, 5
          %s195 = scalar_select %p194, %s193, 5
          %s196 = smul.u32 64, %s195
        $region32: #{_lambda_.13} parent=27 // pred_fallthru
          _
        // Predicated region
        $region33: #{_lambda_.13} parent=27 // pred_check
          %p197 = pneg %p57
        $region34: #{_lambda_.13} parent=27 // pred_check_branch
          %199 = sbr.rel (%p197) target = $region36
        $region35: #{_lambda_.13} parent=27 // pred_region
          %s200 = smul.u32 5, %s11
          %s201 = ssub.s32 9, %s200
          %p202 = scmp.lt.s32.totalorder %s201, 5
          %s203 = scalar_select %p202, %s201, 5
          %s204 = smul.u32 64, %s203
          %p205 = scmp.lt.s32.totalorder %s200, 8
          %s206 = scalar_select %p205, %s200, 8
          %s207 = smul.addr %s206, 4
          %s208 = scalar_lea.vmem %s1, %s207
          %s209 = smul.u32 5, %s11
          %s210 = ssub.s32 9, %s209
          %p211 = scmp.lt.s32.totalorder %s210, 5
          %s212 = scalar_select %p211, %s210, 5
          %s213 = smul.u32 64, %s212
        $region36: #{_lambda_.13} parent=27 // pred_fallthru
          _
      $region28: #{_lambda_.13} parent=5 // pred_fallthru
        _
      %p214 = scmp.le.s32.totalorder 1, %s11
      %p215 = scmp.lt.s32.totalorder %s11, 3
      %p216 = pnand %p214, %p215
      %p217 = pneg %p216
      // Predicated region
      $region37: #{_lambda_.13} parent=5 // pred_check
        _
      $region38: #{_lambda_.13} parent=5 // pred_check_branch
        %219 = sbr.rel (%p216) target = $region40
      $region39: #{_lambda_.13} parent=5 // pred_region
        %s220 = ssub.s32 %s11, 1
        %s221 = smul.u32 5, %s16
        %s222 = ssub.s32 9, %s221
        %p223 = scmp.lt.s32.totalorder %s222, 5
        %s224 = scalar_select %p223, %s222, 5
        %s225 = smul.u32 64, %s224
        %p226 = scmp.lt.s32.totalorder %s221, 8
        %s227 = scalar_select %p226, %s221, 8
        %s228 = smul.addr %s227, 4
        %s229 = scalar_lea.vmem %s0, %s228
        %p230 = pneg %p37
        %p231 = pneg %p34
        %s232 = smul.u32 5, %s16
        %s233 = ssub.s32 9, %s232
        %p234 = scmp.lt.s32.totalorder %s233, 5
        %s235 = scalar_select %p234, %s233, 5
        %s236 = smul.u32 64, %s235
        %p237 = scmp.lt.s32.totalorder %s232, 8
        %s238 = scalar_select %p237, %s232, 8
        %s239 = smul.addr %s238, 4
        %s240 = scalar_lea.vmem %s1, %s239
        %p241 = pneg %p63
        %p242 = pneg %p60
        %p243 = pneg %p84
        %p244 = pneg %p81
        %p245 = pneg %p105
        %p246 = pneg %p102
        %p247 = pneg %p126
        %p248 = pneg %p123
        %p249 = pneg %p152
        %p250 = pneg %p149
        %s251 = sand.u32 %s139, 1
        %s252 = sand.u32 %s139, 1
        %s253 = smul.addr %s252, 20
        %s254 = scalar_lea.vmem [#allocation2], %s253
        %s255 = smul.u32 5, %s16
        %s256 = ssub.s32 9, %s255
        %p257 = scmp.lt.s32.totalorder %s256, 5
        %s258 = scalar_select %p257, %s256, 5
        %s259 = smul.u32 64, %s258
        %p260 = scmp.lt.s32.totalorder %s255, 8
        %s261 = scalar_select %p260, %s255, 8
        %s262 = smul.addr %s261, 4
        %s263 = scalar_lea.vmem %s0, %s262
        %s264 = smul.u32 5, %s16
        %s265 = ssub.s32 9, %s264
        %p266 = scmp.lt.s32.totalorder %s265, 5
        %s267 = scalar_select %p266, %s265, 5
        %s268 = smul.u32 64, %s267
        %s269 = smul.u32 5, %s16
        %s270 = ssub.s32 9, %s269
        %p271 = scmp.lt.s32.totalorder %s270, 5
        %s272 = scalar_select %p271, %s270, 5
        %s273 = smul.u32 64, %s272
        %p274 = scmp.lt.s32.totalorder %s269, 8
        %s275 = scalar_select %p274, %s269, 8
        %s276 = smul.addr %s275, 4
        %s277 = scalar_lea.vmem %s1, %s276
        %s278 = smul.u32 5, %s16
        %s279 = ssub.s32 9, %s278
        %p280 = scmp.lt.s32.totalorder %s279, 5
        %s281 = scalar_select %p280, %s279, 5
        %s282 = smul.u32 64, %s281
        %s283 = smul.u32 5, %s16
        %s284 = ssub.s32 9, %s283
        %p285 = scmp.lt.s32.totalorder %s284, 5
        %s286 = scalar_select %p285, %s284, 5
        %s287 = smul.u32 64, %s286
        %v289 = vld [vmem:[%s263] sm:$0xf]
        %v290 = vld [vmem:[%s263 + $0x4] sm:$0xf]
        %v291 = vld [vmem:[%s263 + $0x8] sm:$0xf]
        %v292 = vld [vmem:[%s263 + $0xc] sm:$0xf]
        %v293 = vld [vmem:[%s263 + $0x10] sm:$0xf]
        %v294 = vld [vmem:[%s2] sm:$0xf]
        %v295 = vld [vmem:[%s2 + $0x4] sm:$0xf]
        %v296 = vld [vmem:[%s2 + $0x8] sm:$0xf]
        %v297 = vld [vmem:[%s2 + $0xc] sm:$0xf]
        %v298 = vld [vmem:[%s2 + $0x10] sm:$0xf]
        %v299 = vld [vmem:[%s2 + $0x14] sm:$0xf]
        %v300 = vld [vmem:[%s2 + $0x18] sm:$0xf]
        %v301 = vld [vmem:[%s2 + $0x1c] sm:$0xf]
        %v302 = vld [vmem:[%s2 + $0x20] sm:$0xf]
        %v303 = vld [vmem:[%s2 + $0x24] sm:$0xf]
        %v304 = vld [vmem:[%s2 + $0x28] sm:$0xf]
        %v305 = vld [vmem:[%s2 + $0x2c] sm:$0xf]
        %v306 = vld [vmem:[%s277] sm:$0xf]
        %v307 = vld [vmem:[%s277 + $0x4] sm:$0xf]
        %v308 = vld [vmem:[%s277 + $0x8] sm:$0xf]
        %v309 = vld [vmem:[%s277 + $0xc] sm:$0xf]
        %v310 = vld [vmem:[%s277 + $0x10] sm:$0xf]
        %v311 = vld [vmem:[%s3] sm:$0xf]
        %v312 = vld [vmem:[%s3 + $0x4] sm:$0xf]
        %v313 = vld [vmem:[%s3 + $0x8] sm:$0xf]
        %v314 = vld [vmem:[%s3 + $0xc] sm:$0xf]
        %v315 = vld [vmem:[%s3 + $0x10] sm:$0xf]
        %v316 = vld [vmem:[%s3 + $0x14] sm:$0xf]
        %v317 = vld [vmem:[%s3 + $0x18] sm:$0xf]
        %v318 = vld [vmem:[%s3 + $0x1c] sm:$0xf]
        %v324 = vunpack.c.l.b16 %v306
        %v325 = vunpack.c.l.b16 %v307
        %v326 = vunpack.c.l.b16 %v308
        %v327 = vunpack.c.l.b16 %v309
        %v328 = vunpack.c.l.b16 %v310
        %v329 = vpack.c.b16 %v325, %v324
        %v330 = vpack.c.b16 %v327, %v326
        %v331 = vpack.c.b16 %v328, %v328
        %v340 = vunpack.c.l.b16 %v311
        %v341 = vunpack.c.l.b16 %v312
        %v342 = vunpack.c.l.b16 %v313
        %v343 = vunpack.c.l.b16 %v314
        %v344 = vunpack.c.l.b16 %v315
        %v345 = vunpack.c.l.b16 %v316
        %v346 = vunpack.c.l.b16 %v317
        %v347 = vunpack.c.l.b16 %v318
        %v348 = vpack.c.b16 %v341, %v340
        %v349 = vpack.c.b16 %v343, %v342
        %v350 = vpack.c.b16 %v345, %v344
        %v351 = vpack.c.b16 %v347, %v346
        %vm356 = vcmask 523264
        %v358 = vsel %vm356, %v329, 0
        %v361 = vsel %vm356, %v330, 0
        %v364 = vsel %vm356, %v331, 0
        %366 = vmatprep.subr.bf16.mxu0 0
        %367 = vmatpush1.bf16.msra.mxu0 %v348
        %368 = vmatprep.subr.bf16.mxu0 0
        %369 = vmatpush1.bf16.msra.mxu0 %v349
        %370 = vmatprep.subr.bf16.mxu0 0
        %371 = vmatpush1.bf16.msra.mxu0 %v350
        %372 = vmatprep.subr.bf16.mxu0 0
        %373 = vmatpush1.bf16.msra.mxu0 %v351
        %374 = vmatprep.subr.bf16.mxu0 0
        %375 = vmatpush1.bf16.msra.mxu0 0
        %376 = vmatprep.subr.bf16.mxu0 0
        %377 = vmatpush1.bf16.msra.mxu0 0
        %378 = vmatprep.subr.bf16.mxu0 0
        %379 = vmatpush1.bf16.msra.mxu0 0
        %380 = vmatprep.subr.bf16.mxu0 0
        %381 = vmatpush1.bf16.msra.mxu0 0
        %382 = vmatprep.subr.bf16.mxu0 0
        %383 = vmatpush1.bf16.msra.mxu0 0
        %384 = vmatprep.subr.bf16.mxu0 0
        %385 = vmatpush1.bf16.msra.mxu0 0
        %386 = vmatprep.subr.bf16.mxu0 0
        %387 = vmatpush1.bf16.msra.mxu0 0
        %388 = vmatprep.subr.bf16.mxu0 0
        %389 = vmatpush1.bf16.msra.mxu0 0
        %390 = vmatprep.subr.bf16.mxu0 0
        %391 = vmatpush1.bf16.msra.mxu0 0
        %392 = vmatprep.subr.bf16.mxu0 0
        %393 = vmatpush1.bf16.msra.mxu0 0
        %394 = vmatprep.subr.bf16.mxu0 0
        %395 = vmatpush1.bf16.msra.mxu0 0
        %396 = vmatprep.subr.bf16.mxu0 0
        %397 = vmatpush1.bf16.msra.mxu0 0
        %398 = vmatprep.mubr.bf16.mxu0 0
        %399 = vmatmul.mubr.bf16.gmra.mrb[0].mxu0 %v358
        %v400 = vpop.f32.mrb[0].mxu0
        %v401 = vadd.f32 0.0, %v400
        %v402 = vpop.f32.mrb[0].mxu0
        %v403 = vpop.f32.mrb[0].mxu0
        %v404 = vadd.f32 0.0, %v403
        %v405 = vpop.f32.mrb[0].mxu0
        %406 = vmatprep.mubr.bf16.mxu0 0
        %407 = vmatmul.mubr.bf16.gmra.mrb[0].mxu0 %v361
        %v408 = vpop.f32.mrb[0].mxu0
        %v409 = vadd.f32 0.0, %v408
        %v410 = vpop.f32.mrb[0].mxu0
        %v411 = vpop.f32.mrb[0].mxu0
        %v412 = vadd.f32 0.0, %v411
        %v413 = vpop.f32.mrb[0].mxu0
        %414 = vmatprep.mubr.bf16.mxu0 0
        %415 = vmatmul.mubr.bf16.gmra.mrb[0].mxu0 %v364
        %v416 = vpop.f32.mrb[0].mxu0
        %v417 = vadd.f32 0.0, %v416
        %v418 = vpop.f32.mrb[0].mxu0
        %v419 = vpop.f32.mrb[0].mxu0
        %v420 = vpop.f32.mrb[0].mxu0
        %421 = vdwg.mxu0
        %v427 = vunpack.c.l.b16 %v289
        %v428 = vunpack.c.l.b16 %v290
        %v429 = vunpack.c.l.b16 %v291
        %v430 = vunpack.c.l.b16 %v292
        %v431 = vunpack.c.l.b16 %v293
        %v432 = vpack.c.b16 %v428, %v427
        %v433 = vpack.c.b16 %v430, %v429
        %v434 = vpack.c.b16 %v431, %v431
        %v447 = vunpack.c.l.b16 %v294
        %v448 = vunpack.c.l.b16 %v295
        %v449 = vunpack.c.l.b16 %v296
        %v450 = vunpack.c.l.b16 %v297
        %v451 = vunpack.c.l.b16 %v298
        %v452 = vunpack.c.l.b16 %v299
        %v453 = vunpack.c.l.b16 %v300
        %v454 = vunpack.c.l.b16 %v301
        %v455 = vunpack.c.l.b16 %v302
        %v456 = vunpack.c.l.b16 %v303
        %v457 = vunpack.c.l.b16 %v304
        %v458 = vunpack.c.l.b16 %v305
        %v459 = vpack.c.b16 %v448, %v447
        %v460 = vpack.c.b16 %v450, %v449
        %v461 = vpack.c.b16 %v452, %v451
        %v462 = vpack.c.b16 %v454, %v453
        %v463 = vpack.c.b16 %v456, %v455
        %v464 = vpack.c.b16 %v458, %v457
        %vm471 = vcmask 785408
        %v473 = vsel %vm471, %v432, 0
        %v476 = vsel %vm471, %v433, 0
        %v479 = vsel %vm471, %v434, 0
        %481 = vmatprep.subr.bf16.mxu0 0
        %482 = vmatpush1.bf16.msra.mxu0 %v459
        %483 = vmatprep.subr.bf16.mxu0 0
        %484 = vmatpush1.bf16.msra.mxu0 %v460
        %485 = vmatprep.subr.bf16.mxu0 0
        %486 = vmatpush1.bf16.msra.mxu0 %v461
        %487 = vmatprep.subr.bf16.mxu0 0
        %488 = vmatpush1.bf16.msra.mxu0 %v462
        %489 = vmatprep.subr.bf16.mxu0 0
        %490 = vmatpush1.bf16.msra.mxu0 %v463
        %491 = vmatprep.subr.bf16.mxu0 0
        %492 = vmatpush1.bf16.msra.mxu0 %v464
        %493 = vmatprep.subr.bf16.mxu0 0
        %494 = vmatpush1.bf16.msra.mxu0 0
        %495 = vmatprep.subr.bf16.mxu0 0
        %496 = vmatpush1.bf16.msra.mxu0 0
        %497 = vmatprep.subr.bf16.mxu0 0
        %498 = vmatpush1.bf16.msra.mxu0 0
        %499 = vmatprep.subr.bf16.mxu0 0
        %500 = vmatpush1.bf16.msra.mxu0 0
        %501 = vmatprep.subr.bf16.mxu0 0
        %502 = vmatpush1.bf16.msra.mxu0 0
        %503 = vmatprep.subr.bf16.mxu0 0
        %504 = vmatpush1.bf16.msra.mxu0 0
        %505 = vmatprep.subr.bf16.mxu0 0
        %506 = vmatpush1.bf16.msra.mxu0 0
        %507 = vmatprep.subr.bf16.mxu0 0
        %508 = vmatpush1.bf16.msra.mxu0 0
        %509 = vmatprep.subr.bf16.mxu0 0
        %510 = vmatpush1.bf16.msra.mxu0 0
        %511 = vmatprep.subr.bf16.mxu0 0
        %512 = vmatpush1.bf16.msra.mxu0 0
        %513 = vmatprep.mubr.bf16.mxu0 0
        %514 = vmatmul.mubr.bf16.gmra.mrb[0].mxu0 %v473
        %v515 = vpop.f32.mrb[0].mxu0
        %v516 = vadd.f32 %v401, %v515
        %v517 = vpop.f32.mrb[0].mxu0
        %v518 = vpop.f32.mrb[0].mxu0
        %v519 = vadd.f32 %v404, %v518
        %v520 = vpop.f32.mrb[0].mxu0
        %521 = vmatprep.mubr.bf16.mxu0 0
        %522 = vmatmul.mubr.bf16.gmra.mrb[0].mxu0 %v476
        %v523 = vpop.f32.mrb[0].mxu0
        %v524 = vadd.f32 %v409, %v523
        %v525 = vpop.f32.mrb[0].mxu0
        %v526 = vpop.f32.mrb[0].mxu0
        %v527 = vadd.f32 %v412, %v526
        %v528 = vpop.f32.mrb[0].mxu0
        %529 = vmatprep.mubr.bf16.mxu0 0
        %530 = vmatmul.mubr.bf16.gmra.mrb[0].mxu0 %v479
        %v531 = vpop.f32.mrb[0].mxu0
        %v532 = vadd.f32 %v417, %v531
        %v533 = vpop.f32.mrb[0].mxu0
        %v534 = vpop.f32.mrb[0].mxu0
        %v535 = vpop.f32.mrb[0].mxu0
        %536 = vdwg.mxu0
        %v537 = vld [vmem:[%s4] sm:$0x1]
        %v539 = vlaneseq
        %v540 = vshrl.u32 %v539, 7
        %v541 = vsub.s32 0, %v540
        %v542 = vrot.slane %v537, %v541
        %v544 = vadd.f32 %v516, %v542
        %v545 = vadd.f32 %v519, %v542
        %v546 = vadd.f32 %v524, %v542
        %v547 = vadd.f32 %v527, %v542
        %v548 = vadd.f32 %v532, %v542
        %v549 = vmax.f32 %v544, 0.0
        %v550 = vmax.f32 %v545, 0.0
        %v551 = vmax.f32 %v546, 0.0
        %v552 = vmax.f32 %v547, 0.0
        %v553 = vmax.f32 %v548, 0.0
        %v554 = vpack.c.bf16 %v550, %v549
        %v555 = vpack.c.bf16 %v552, %v551
        %v556 = vpack.c.bf16 %v553, %v553
        %v560 = vunpack.c.l.b16 %v554
        %v561 = vunpack.c.h.b16 %v554
        %v562 = vunpack.c.l.b16 %v555
        %v563 = vunpack.c.h.b16 %v555
        %v564 = vunpack.c.l.b16 %v556
        %v565 = vpack.c.b16 %v560, %v560
        %v566 = vpack.c.b16 %v561, %v561
        %v567 = vpack.c.b16 %v562, %v562
        %v568 = vpack.c.b16 %v563, %v563
        %v569 = vpack.c.b16 %v564, %v564
        %575 = vst [vmem:[%s254] sm:$0xf] %v565
        %576 = vst [vmem:[%s254 + $0x4] sm:$0xf] %v566
        %577 = vst [vmem:[%s254 + $0x8] sm:$0xf] %v567
        %578 = vst [vmem:[%s254 + $0xc] sm:$0xf] %v568
        %579 = vst [vmem:[%s254 + $0x10] sm:$0xf] %v569
        %s580 = sand.u32 %s139, 1
        %s581 = sand.u32 %s139, 1
        %s582 = smul.addr %s581, 20
        %s583 = scalar_lea.vmem [#allocation2], %s582
        // Predicated region
        $region41: #{_lambda_.13} parent=39 // pred_check
          %p584 = pneg %p149
        $region42: #{_lambda_.13} parent=39 // pred_check_branch
          %586 = sbr.rel (%p584) target = $region44
        $region43: #{_lambda_.13} parent=39 // pred_region
          %s587 = smul.u32 5, %s16
          %s588 = ssub.s32 9, %s587
          %p589 = scmp.lt.s32.totalorder %s588, 5
          %s590 = scalar_select %p589, %s588, 5
          %s591 = smul.u32 64, %s590
          %p592 = scmp.ne.s32.totalorder 0, %s591
          %s593 = smul.addr %s587, 4
          %s594 = scalar_lea.vmem %s5, %s593
          // Predicated region
          $region45: #{_lambda_.13} parent=43 // pred_check
            %p595 = pneg %p592
          $region46: #{_lambda_.13} parent=43 // pred_check_branch
            %597 = sbr.rel (%p595) target = $region48
          $region47: #{_lambda_.13} parent=43 // pred_region
            // Predicated region
            $region49: #{_lambda_.13} parent=47 // pred_check
              _
            $region50: #{_lambda_.13} parent=47 // pred_check_branch
              %599 = sbr.rel target = $region52
            $region51: #{_lambda_.13} parent=47 // pred_region
              // Predicated region
              $region71: #{_lambda_.13} parent=51 // pred_check
                _
              $region72: #{_lambda_.13} parent=51 // pred_check_branch
                %657 = sbr.rel (0) target = $region74
              $region73: #{_lambda_.13} parent=51 // pred_region
                %s659 = sdiv.u32.pop %s590, 5
                %s660 = srem.u32.pop %s590, 5
                // While loop
                $region75: #{_lambda_.13} parent=73 // loop_pre_header
                  _
                $region76: #{_lambda_.13} parent=73 // loop_header
                  %s662 = sphi 0, %s664
                  %p663 = scmp.ge.s32.totalorder %s662, %s659
                  %s667 = sphi 0, %s682
                  %s668 = sphi %s583, %s685
                  %s669 = sphi %s594, %s686
                $region77: #{_lambda_.13} parent=73 // loop_header_branch
                  %666 = sbr.rel (%p663) target = $region81
                $region78: #{_lambda_.13} parent=73 // loop_body
                  %v670 = vld [vmem:[%s668] sm:$0xf]
                  %671 = vst [vmem:[%s669] sm:$0xf] %v670
                  %v672 = vld [vmem:[%s668 + $0x4] sm:$0xf]
                  %673 = vst [vmem:[%s669 + $0x4] sm:$0xf] %v672
                  %v674 = vld [vmem:[%s668 + $0x8] sm:$0xf]
                  %675 = vst [vmem:[%s669 + $0x8] sm:$0xf] %v674
                  %v676 = vld [vmem:[%s668 + $0xc] sm:$0xf]
                  %677 = vst [vmem:[%s669 + $0xc] sm:$0xf] %v676
                  %v678 = vld [vmem:[%s668 + $0x10] sm:$0xf]
                  %679 = vst [vmem:[%s669 + $0x10] sm:$0xf] %v678
                  %s680 = sadd.s32 1, %s667
                  %p681 = scmp.ge.s32.totalorder %s680, %s659
                  %s682 = scalar_select %p681, 0, %s680
                  %s683 = smul.u32 %s682, 20
                  %s684 = smul.u32 %s682, 20
                  %s685 = scalar_lea.vmem %s583, %s683 [#allocation2]
                  %s686 = scalar_lea.vmem %s594, %s684
                $region79: #{_lambda_.13} parent=73 // loop_footer
                  %s664 = sadd.s32 %s662, 1
                $region80: #{_lambda_.13} parent=73 // loop_footer_branch
                  %661 = sbr.rel target = $region76
                $region81: #{_lambda_.13} parent=73 // loop_exit
                  _
                %s687 = sdiv.u32.pop %s590, 5
                %s688 = srem.u32.pop %s590, 5
                %s689 = smul.u32 %s687, 5
                %s690 = smul.u32 4, %s689
                %s691 = scalar_lea.vmem %s583, %s690 [#allocation2]
                %s692 = smul.u32 4, %s689
                %s693 = scalar_lea.vmem %s594, %s692
                // While loop
                $region82: #{_lambda_.13} parent=73 // loop_pre_header
                  _
                $region83: #{_lambda_.13} parent=73 // loop_header
                  %s695 = sphi 0, %s697
                  %p696 = scmp.ge.s32.totalorder %s695, %s688
                  %s700 = sphi 0, %s707
                  %s701 = sphi %s691, %s710
                  %s702 = sphi %s693, %s711
                $region84: #{_lambda_.13} parent=73 // loop_header_branch
                  %699 = sbr.rel (%p696) target = $region88
                $region85: #{_lambda_.13} parent=73 // loop_body
                  %v703 = vld [vmem:[%s701] sm:$0xf]
                  %704 = vst [vmem:[%s702] sm:$0xf] %v703
                  %s705 = sadd.s32 1, %s700
                  %p706 = scmp.ge.s32.totalorder %s705, %s688
                  %s707 = scalar_select %p706, 0, %s705
                  %s708 = smul.u32 %s707, 4
                  %s709 = smul.u32 %s707, 4
                  %s710 = scalar_lea.vmem %s691, %s708 [#allocation2]
                  %s711 = scalar_lea.vmem %s693, %s709
                $region86: #{_lambda_.13} parent=73 // loop_footer
                  %s697 = sadd.s32 %s695, 1
                $region87: #{_lambda_.13} parent=73 // loop_footer_branch
                  %694 = sbr.rel target = $region83
                $region88: #{_lambda_.13} parent=73 // loop_exit
                  _
              $region74: #{_lambda_.13} parent=51 // pred_fallthru
                _
            $region52: #{_lambda_.13} parent=47 // pred_fallthru
              _
            // Predicated region
            $region53: #{_lambda_.13} parent=47 // pred_check
              _
            $region54: #{_lambda_.13} parent=47 // pred_check_branch
              %601 = sbr.rel (0) target = $region56
            $region55: #{_lambda_.13} parent=47 // pred_region
              %s603 = sdiv.u32.pop %s590, 5
              %s604 = srem.u32.pop %s590, 5
              // While loop
              $region57: #{_lambda_.13} parent=55 // loop_pre_header
                _
              $region58: #{_lambda_.13} parent=55 // loop_header
                %s606 = sphi 0, %s608
                %p607 = scmp.ge.s32.totalorder %s606, %s603
                %s611 = sphi 0, %s626
                %s612 = sphi %s583, %s629
                %s613 = sphi %s594, %s630
              $region59: #{_lambda_.13} parent=55 // loop_header_branch
                %610 = sbr.rel (%p607) target = $region63
              $region60: #{_lambda_.13} parent=55 // loop_body
                %v614 = vld [vmem:[%s612] sm:$0xf]
                %615 = vst [vmem:[%s613] sm:$0xf] %v614
                %v616 = vld [vmem:[%s612 + $0x4] sm:$0xf]
                %617 = vst [vmem:[%s613 + $0x4] sm:$0xf] %v616
                %v618 = vld [vmem:[%s612 + $0x8] sm:$0xf]
                %619 = vst [vmem:[%s613 + $0x8] sm:$0xf] %v618
                %v620 = vld [vmem:[%s612 + $0xc] sm:$0xf]
                %621 = vst [vmem:[%s613 + $0xc] sm:$0xf] %v620
                %v622 = vld [vmem:[%s612 + $0x10] sm:$0xf]
                %623 = vst [vmem:[%s613 + $0x10] sm:$0xf] %v622
                %s624 = sadd.s32 1, %s611
                %p625 = scmp.ge.s32.totalorder %s624, %s603
                %s626 = scalar_select %p625, 0, %s624
                %s627 = smul.u32 %s626, 20
                %s628 = smul.u32 %s626, 20
                %s629 = scalar_lea.vmem %s583, %s627 [#allocation2]
                %s630 = scalar_lea.vmem %s594, %s628
              $region61: #{_lambda_.13} parent=55 // loop_footer
                %s608 = sadd.s32 %s606, 1
              $region62: #{_lambda_.13} parent=55 // loop_footer_branch
                %605 = sbr.rel target = $region58
              $region63: #{_lambda_.13} parent=55 // loop_exit
                _
              %s631 = sdiv.u32.pop %s590, 5
              %s632 = srem.u32.pop %s590, 5
              %s633 = smul.u32 %s631, 5
              %s634 = smul.u32 4, %s633
              %s635 = scalar_lea.vmem %s583, %s634 [#allocation2]
              %s636 = smul.u32 4, %s633
              %s637 = scalar_lea.vmem %s594, %s636
              // While loop
              $region64: #{_lambda_.13} parent=55 // loop_pre_header
                _
              $region65: #{_lambda_.13} parent=55 // loop_header
                %s639 = sphi 0, %s641
                %p640 = scmp.ge.s32.totalorder %s639, %s632
                %s644 = sphi 0, %s651
                %s645 = sphi %s635, %s654
                %s646 = sphi %s637, %s655
              $region66: #{_lambda_.13} parent=55 // loop_header_branch
                %643 = sbr.rel (%p640) target = $region70
              $region67: #{_lambda_.13} parent=55 // loop_body
                %v647 = vld [vmem:[%s645] sm:$0xf]
                %648 = vst [vmem:[%s646] sm:$0xf] %v647
                %s649 = sadd.s32 1, %s644
                %p650 = scmp.ge.s32.totalorder %s649, %s632
                %s651 = scalar_select %p650, 0, %s649
                %s652 = smul.u32 %s651, 4
                %s653 = smul.u32 %s651, 4
                %s654 = scalar_lea.vmem %s635, %s652 [#allocation2]
                %s655 = scalar_lea.vmem %s637, %s653
              $region68: #{_lambda_.13} parent=55 // loop_footer
                %s641 = sadd.s32 %s639, 1
              $region69: #{_lambda_.13} parent=55 // loop_footer_branch
                %638 = sbr.rel target = $region65
              $region70: #{_lambda_.13} parent=55 // loop_exit
                _
            $region56: #{_lambda_.13} parent=47 // pred_fallthru
              _
          $region48: #{_lambda_.13} parent=43 // pred_fallthru
            _
          %712 = vnop
        $region44: #{_lambda_.13} parent=39 // pred_fallthru
          _
      $region40: #{_lambda_.13} parent=5 // pred_fallthru
        _
      %p713 = scmp.le.s32.totalorder 2, %s11
      // Predicated region
      $region89: #{_lambda_.13} parent=5 // pred_check
        %p714 = pneg %p713
      $region90: #{_lambda_.13} parent=5 // pred_check_branch
        %716 = sbr.rel (%p714) target = $region92
      $region91: #{_lambda_.13} parent=5 // pred_region
        %s717 = ssub.s32 %s11, 2
        // Predicated region
        $region93: #{_lambda_.13} parent=91 // pred_check
          %p718 = pneg %p155
        $region94: #{_lambda_.13} parent=91 // pred_check_branch
          %720 = sbr.rel (%p718) target = $region96
        $region95: #{_lambda_.13} parent=91 // pred_region
          %s721 = sand.u32 %s140, 1
          %s722 = sand.u32 %s140, 1
          %s723 = smul.addr %s722, 20
          %s724 = scalar_lea.vmem [#allocation2], %s723
        $region96: #{_lambda_.13} parent=91 // pred_fallthru
          _
      $region92: #{_lambda_.13} parent=5 // pred_fallthru
        _
    $region6: #{_lambda_.13} parent=1 // loop_footer
      %s15 = sadd.s32 1, %s11
    $region7: #{_lambda_.13} parent=1 // loop_footer_branch
      %10 = sbr.rel target = $region3
    $region8: #{_lambda_.13} parent=1 // loop_exit
      _

// kernel: _lambda_.12
$region0: #{_lambda_.12}
  #allocation0 [shape = 'u32[]', space=smem, size = 0x4, offset = 0x4, fixed_abs, tag = 'smem constant byte address 0x4 - core index']
  #allocation1 [shape = 'u32[144,128]{1,0:T(1,128)}', space=vmem, size = 0x12000, scoped, tag = 'internal scratch']
  %s0 = inlined_call_operand.vmem [shape: bf16[72,576], index: 0, kind: input, shape index: {}]
  %s1 = inlined_call_operand.vmem [shape: bf16[576,96], index: 1, kind: input, shape index: {}]
  %s2 = inlined_call_operand.vmem [shape: f32[1,96], index: 2, kind: input, shape index: {}]
  %s3 = inlined_call_operand.vmem [shape: bf16[72,96], index: 3, kind: output, shape index: {}]
  %s4 = sld [smem:[#allocation0]]
  $region89: #{_lambda_.12} parent=0
    _
  %s6 = ssub.s32 1, %s4
  %s7 = scalar_select 0, %s6, %s4
  $region1: #{_lambda_.12} parent=0
    #allocation2 [shape = 'u8[20480]{0}', space=vmem, size = 0x5000, scoped, tag = 'output window, operand 0']
    loop: start=0, step=1, limit=4
    $region2: #{_lambda_.12} parent=1 // loop_pre_header
      _
    $region3: #{_lambda_.12} parent=1 // loop_header
      %s9 = sphi 0, %s13
      %p10 = scmp.ge.s32.totalorder %s9, 4
      %s19 = sphi 0, %s21
      %s22 = sphi 0, %s19
      %s23 = sphi 0, %s22
      %s39 = sphi 0, %s23
      %s43 = sphi 0, %s43
      %s45 = sphi 0, %s43
      %s46 = sphi 0, %s45
      %s60 = sphi 0, %s46
      %s64 = sphi 0, %s64
      %s66 = sphi 0, %s64
      %s67 = sphi 0, %s66
      %s81 = sphi 0, %s67
      %s87 = sphi 0, %s89
      %s90 = sphi 0, %s87
      %s91 = sphi 0, %s90
      %s107 = sphi 0, %s91
    $region4: #{_lambda_.12} parent=1 // loop_header_branch
      %12 = sbr.rel (%p10) target = $region8
    $region5: #{_lambda_.12} parent=1 // loop_body
      %s14 = ssub.s32 %s9, 1
      %s15 = ssub.s32 %s9, 2
      %s16 = sadd.s32 %s9, 1
      %s17 = ssub.s32 %s9, %s16
      %p18 = scmp.eq.s32.totalorder %s17, 0
      %s20 = sadd.s32 %s19, 1
      %s21 = scalar_select %p18, %s19, %s20
      %p24 = pneg %p18
      %p25 = scmp.eq.s32.totalorder %s9, 1
      %p26 = por %p24, %p25
      %p27 = scmp.ne.s32.totalorder %s19, %s22
      %p28 = scmp.eq.s32.totalorder %s9, 0
      %p29 = por %p27, %p28
      %p30 = scmp.ne.s32.totalorder %s19, %s22
      %p31 = scmp.eq.s32.totalorder %s14, 1
      %p32 = por %p30, %p31
      %p33 = scmp.ne.s32.totalorder %s22, %s23
      %p34 = scmp.eq.s32.totalorder %s14, 0
      %p35 = por %p33, %p34
      %p36 = scmp.ne.s32.totalorder %s22, %s23
      %p37 = scmp.eq.s32.totalorder %s15, 1
      %p38 = por %p36, %p37
      %p40 = scmp.ne.s32.totalorder %s23, %s39
      %p41 = scmp.eq.s32.totalorder %s15, 0
      %p42 = por %p40, %p41
      %s44 = sadd.s32 %s43, 1
      %p47 = scmp.eq.s32.totalorder %s9, 1
      %p48 = scmp.ne.s32.totalorder %s43, %s45
      %p49 = scmp.eq.s32.totalorder %s9, 0
      %p50 = por %p48, %p49
      %p51 = scmp.ne.s32.totalorder %s43, %s45
      %p52 = scmp.eq.s32.totalorder %s14, 1
      %p53 = por %p51, %p52
      %p54 = scmp.ne.s32.totalorder %s45, %s46
      %p55 = scmp.eq.s32.totalorder %s14, 0
      %p56 = por %p54, %p55
      %p57 = scmp.ne.s32.totalorder %s45, %s46
      %p58 = scmp.eq.s32.totalorder %s15, 1
      %p59 = por %p57, %p58
      %p61 = scmp.ne.s32.totalorder %s46, %s60
      %p62 = scmp.eq.s32.totalorder %s15, 0
      %p63 = por %p61, %p62
      %s65 = sadd.s32 %s64, 1
      %p68 = scmp.eq.s32.totalorder %s9, 1
      %p69 = scmp.ne.s32.totalorder %s64, %s66
      %p70 = scmp.eq.s32.totalorder %s9, 0
      %p71 = por %p69, %p70
      %p72 = scmp.ne.s32.totalorder %s64, %s66
      %p73 = scmp.eq.s32.totalorder %s14, 1
      %p74 = por %p72, %p73
      %p75 = scmp.ne.s32.totalorder %s66, %s67
      %p76 = scmp.eq.s32.totalorder %s14, 0
      %p77 = por %p75, %p76
      %p78 = scmp.ne.s32.totalorder %s66, %s67
      %p79 = scmp.eq.s32.totalorder %s15, 1
      %p80 = por %p78, %p79
      %p82 = scmp.ne.s32.totalorder %s67, %s81
      %p83 = scmp.eq.s32.totalorder %s15, 0
      %p84 = por %p82, %p83
      %s85 = ssub.s32 %s9, %s16
      %p86 = scmp.eq.s32.totalorder %s85, 0
      %s88 = sadd.s32 %s87, 1
      %s89 = scalar_select %p86, %s87, %s88
      %p92 = pneg %p86
      %p93 = scmp.eq.s32.totalorder %s9, 1
      %p94 = por %p92, %p93
      %p95 = scmp.ne.s32.totalorder %s87, %s90
      %p96 = scmp.eq.s32.totalorder %s9, 0
      %p97 = por %p95, %p96
      %p98 = scmp.ne.s32.totalorder %s87, %s90
      %p99 = scmp.eq.s32.totalorder %s14, 1
      %p100 = por %p98, %p99
      %p101 = scmp.ne.s32.totalorder %s90, %s91
      %p102 = scmp.eq.s32.totalorder %s14, 0
      %p103 = por %p101, %p102
      %p104 = scmp.ne.s32.totalorder %s90, %s91
      %p105 = scmp.eq.s32.totalorder %s15, 1
      %p106 = por %p104, %p105
      %p108 = scmp.ne.s32.totalorder %s91, %s107
      %p109 = scmp.eq.s32.totalorder %s15, 0
      %p110 = por %p108, %p109
      %p111 = scmp.le.s32.totalorder 1, %s9
      %p112 = scmp.lt.s32.totalorder %s9, 3
      %p113 = pnand %p111, %p112
      %p114 = pneg %p113
      // Predicated region
      $region9: #{_lambda_.12} parent=5 // pred_check
        _
      $region10: #{_lambda_.12} parent=5 // pred_check_branch
        %116 = sbr.rel (%p113) target = $region12
      $region11: #{_lambda_.12} parent=5 // pred_region
        %s117 = ssub.s32 %s9, 1
        // Predicated region
        $region13: #{_lambda_.12} parent=11 // pred_check
          %p118 = pneg %p56
        $region14: #{_lambda_.12} parent=11 // pred_check_branch
          %120 = sbr.rel (%p118) target = $region16
        $region15: #{_lambda_.12} parent=11 // pred_region
          _
        $region16: #{_lambda_.12} parent=11 // pred_fallthru
          _
        // Predicated region
        $region17: #{_lambda_.12} parent=11 // pred_check
          %p121 = pneg %p77
        $region18: #{_lambda_.12} parent=11 // pred_check_branch
          %123 = sbr.rel (%p121) target = $region20
        $region19: #{_lambda_.12} parent=11 // pred_region
          _
        $region20: #{_lambda_.12} parent=11 // pred_fallthru
          _
      $region12: #{_lambda_.12} parent=5 // pred_fallthru
        _
      %p124 = scmp.lt.s32.totalorder %s9, 2
      // Predicated region
      $region21: #{_lambda_.12} parent=5 // pred_check
        %p125 = pneg %p124
      $region22: #{_lambda_.12} parent=5 // pred_check_branch
        %127 = sbr.rel (%p125) target = $region24
      $region23: #{_lambda_.12} parent=5 // pred_region
        // Predicated region
        $region25: #{_lambda_.12} parent=23 // pred_check
          %p128 = pneg %p29
        $region26: #{_lambda_.12} parent=23 // pred_check_branch
          %130 = sbr.rel (%p128) target = $region28
        $region27: #{_lambda_.12} parent=23 // pred_region
          %s131 = smul.u32 5, %s9
          %s132 = ssub.s32 9, %s131
          %p133 = scmp.lt.s32.totalorder %s132, 5
          %s134 = scalar_select %p133, %s132, 5
          %s135 = smul.u32 64, %s134
          %s136 = smul.u32 %s135, 5
          %p137 = scmp.lt.s32.totalorder %s131, 8
          %s138 = scalar_select %p137, %s131, 8
          %s139 = smul.addr %s138, 5
          %s140 = smul.addr %s139, 4
          %s141 = scalar_lea.vmem %s0, %s140
          %s142 = smul.u32 5, %s9
          %s143 = ssub.s32 9, %s142
          %p144 = scmp.lt.s32.totalorder %s143, 5
          %s145 = scalar_select %p144, %s143, 5
          %s146 = smul.u32 64, %s145
          %s147 = smul.u32 %s146, 5
        $region28: #{_lambda_.12} parent=23 // pred_fallthru
          _
      $region24: #{_lambda_.12} parent=5 // pred_fallthru
        _
      %p148 = scmp.le.s32.totalorder 1, %s9
      %p149 = scmp.lt.s32.totalorder %s9, 3
      %p150 = pnand %p148, %p149
      %p151 = pneg %p150
      // Predicated region
      $region29: #{_lambda_.12} parent=5 // pred_check
        _
      $region30: #{_lambda_.12} parent=5 // pred_check_branch
        %153 = sbr.rel (%p150) target = $region32
      $region31: #{_lambda_.12} parent=5 // pred_region
        %s154 = ssub.s32 %s9, 1
        %s155 = smul.u32 5, %s14
        %s156 = ssub.s32 9, %s155
        %p157 = scmp.lt.s32.totalorder %s156, 5
        %s158 = scalar_select %p157, %s156, 5
        %s159 = smul.u32 64, %s158
        %s160 = smul.u32 %s159, 5
        %p161 = scmp.lt.s32.totalorder %s155, 8
        %s162 = scalar_select %p161, %s155, 8
        %s163 = smul.addr %s162, 5
        %s164 = smul.addr %s163, 4
        %s165 = scalar_lea.vmem %s0, %s164
        %p166 = pneg %p35
        %p167 = pneg %p32
        %p168 = pneg %p56
        %p169 = pneg %p53
        %p170 = pneg %p77
        %p171 = pneg %p74
        %p172 = pneg %p103
        %p173 = pneg %p100
        %s174 = sand.u32 %s90, 1
        %s175 = sand.u32 %s90, 1
        %s176 = smul.addr %s175, 20
        %s177 = scalar_lea.vmem [#allocation2], %s176
        %s178 = smul.u32 5, %s14
        %s179 = ssub.s32 9, %s178
        %p180 = scmp.lt.s32.totalorder %s179, 5
        %s181 = scalar_select %p180, %s179, 5
        %s182 = smul.u32 64, %s181
        %s183 = smul.u32 %s182, 5
        %p184 = scmp.lt.s32.totalorder %s178, 8
        %s185 = scalar_select %p184, %s178, 8
        %s186 = smul.addr %s185, 5
        %s187 = smul.addr %s186, 4
        %s188 = scalar_lea.vmem %s0, %s187
        %s189 = smul.u32 5, %s14
        %s190 = ssub.s32 9, %s189
        %p191 = scmp.lt.s32.totalorder %s190, 5
        %s192 = scalar_select %p191, %s190, 5
        %s193 = smul.u32 64, %s192
        %s194 = smul.u32 %s193, 5
        %s195 = smul.u32 5, %s14
        %s196 = ssub.s32 9, %s195
        %p197 = scmp.lt.s32.totalorder %s196, 5
        %s198 = scalar_select %p197, %s196, 5
        %s199 = smul.u32 64, %s198
        %v201 = vld [vmem:[%s188] sm:$0xff]
        %v202 = vld [vmem:[%s188 + $0x8] sm:$0xff]
        %v203 = vld [vmem:[%s188 + $0x10] sm:$0xf]
        %v204 = vld [vmem:[%s188 + $0x14] sm:$0xff]
        %v205 = vld [vmem:[%s188 + $0x1c] sm:$0xff]
        %v206 = vld [vmem:[%s188 + $0x24] sm:$0xf]
        %v207 = vld [vmem:[%s188 + $0x28] sm:$0xff]
        %v208 = vld [vmem:[%s188 + $0x30] sm:$0xff]
        %v209 = vld [vmem:[%s188 + $0x38] sm:$0xf]
        %v210 = vld [vmem:[%s188 + $0x3c] sm:$0xff]
        %v211 = vld [vmem:[%s188 + $0x44] sm:$0xff]
        %v212 = vld [vmem:[%s188 + $0x4c] sm:$0xf]
        %v213 = vld [vmem:[%s188 + $0x50] sm:$0xff]
        %v214 = vld [vmem:[%s188 + $0x58] sm:$0xff]
        %v215 = vld [vmem:[%s188 + $0x60] sm:$0xf]
        %v216 = vld [vmem:[%s1] sm:$0xf]
        %v217 = vld [vmem:[%s1 + $0x4] sm:$0xf]
        %v218 = vld [vmem:[%s1 + $0x8] sm:$0xf]
        %v219 = vld [vmem:[%s1 + $0xc] sm:$0xf]
        %v220 = vld [vmem:[%s1 + $0x10] sm:$0xf]
        %v221 = vld [vmem:[%s1 + $0x14] sm:$0xf]
        %v222 = vld [vmem:[%s1 + $0x18] sm:$0xf]
        %v223 = vld [vmem:[%s1 + $0x1c] sm:$0xf]
        %v224 = vld [vmem:[%s1 + $0x20] sm:$0xf]
        %v225 = vld [vmem:[%s1 + $0x24] sm:$0xf]
        %v226 = vld [vmem:[%s1 + $0x28] sm:$0xf]
        %v227 = vld [vmem:[%s1 + $0x2c] sm:$0xf]
        %v228 = vld [vmem:[%s1 + $0x30] sm:$0xf]
        %v229 = vld [vmem:[%s1 + $0x34] sm:$0xf]
        %v230 = vld [vmem:[%s1 + $0x38] sm:$0xf]
        %v231 = vld [vmem:[%s1 + $0x3c] sm:$0xf]
        %v232 = vld [vmem:[%s1 + $0x40] sm:$0xf]
        %v233 = vld [vmem:[%s1 + $0x44] sm:$0xf]
        %v234 = vld [vmem:[%s1 + $0x48] sm:$0xf]
        %v235 = vld [vmem:[%s1 + $0x4c] sm:$0xf]
        %v236 = vld [vmem:[%s1 + $0x50] sm:$0xf]
        %v237 = vld [vmem:[%s1 + $0x54] sm:$0xf]
        %v238 = vld [vmem:[%s1 + $0x58] sm:$0xf]
        %v239 = vld [vmem:[%s1 + $0x5c] sm:$0xf]
        %v240 = vld [vmem:[%s1 + $0x60] sm:$0xf]
        %v241 = vld [vmem:[%s1 + $0x64] sm:$0xf]
        %v242 = vld [vmem:[%s1 + $0x68] sm:$0xf]
        %v243 = vld [vmem:[%s1 + $0x6c] sm:$0xf]
        %v244 = vld [vmem:[%s1 + $0x70] sm:$0xf]
        %v245 = vld [vmem:[%s1 + $0x74] sm:$0xf]
        %v246 = vld [vmem:[%s1 + $0x78] sm:$0xf]
        %v247 = vld [vmem:[%s1 + $0x7c] sm:$0xf]
        %v248 = vld [vmem:[%s1 + $0x80] sm:$0xf]
        %v249 = vld [vmem:[%s1 + $0x84] sm:$0xf]
        %v250 = vld [vmem:[%s1 + $0x88] sm:$0xf]
        %v251 = vld [vmem:[%s1 + $0x8c] sm:$0xf]
        %v252 = vld [vmem:[%s1 + $0x90] sm:$0xf]
        %v253 = vld [vmem:[%s1 + $0x94] sm:$0xf]
        %v254 = vld [vmem:[%s1 + $0x98] sm:$0xf]
        %v255 = vld [vmem:[%s1 + $0x9c] sm:$0xf]
        %v256 = vld [vmem:[%s1 + $0xa0] sm:$0xf]
        %v257 = vld [vmem:[%s1 + $0xa4] sm:$0xf]
        %v258 = vld [vmem:[%s1 + $0xa8] sm:$0xf]
        %v259 = vld [vmem:[%s1 + $0xac] sm:$0xf]
        %v260 = vld [vmem:[%s1 + $0xb0] sm:$0xf]
        %v261 = vld [vmem:[%s1 + $0xb4] sm:$0xf]
        %v262 = vld [vmem:[%s1 + $0xb8] sm:$0xf]
        %v263 = vld [vmem:[%s1 + $0xbc] sm:$0xf]
        %v264 = vld [vmem:[%s1 + $0xc0] sm:$0xf]
        %v265 = vld [vmem:[%s1 + $0xc4] sm:$0xf]
        %v266 = vld [vmem:[%s1 + $0xc8] sm:$0xf]
        %v267 = vld [vmem:[%s1 + $0xcc] sm:$0xf]
        %v268 = vld [vmem:[%s1 + $0xd0] sm:$0xf]
        %v269 = vld [vmem:[%s1 + $0xd4] sm:$0xf]
        %v270 = vld [vmem:[%s1 + $0xd8] sm:$0xf]
        %v271 = vld [vmem:[%s1 + $0xdc] sm:$0xf]
        %v272 = vld [vmem:[%s1 + $0xe0] sm:$0xf]
        %v273 = vld [vmem:[%s1 + $0xe4] sm:$0xf]
        %v274 = vld [vmem:[%s1 + $0xe8] sm:$0xf]
        %v275 = vld [vmem:[%s1 + $0xec] sm:$0xf]
        %v276 = vld [vmem:[%s1 + $0xf0] sm:$0xf]
        %v277 = vld [vmem:[%s1 + $0xf4] sm:$0xf]
        %v278 = vld [vmem:[%s1 + $0xf8] sm:$0xf]
        %v279 = vld [vmem:[%s1 + $0xfc] sm:$0xf]
        %v280 = vld [vmem:[%s1 + $0x100] sm:$0xf]
        %v281 = vld [vmem:[%s1 + $0x104] sm:$0xf]
        %v282 = vld [vmem:[%s1 + $0x108] sm:$0xf]
        %v283 = vld [vmem:[%s1 + $0x10c] sm:$0xf]
        %v284 = vld [vmem:[%s1 + $0x110] sm:$0xf]
        %v285 = vld [vmem:[%s1 + $0x114] sm:$0xf]
        %v286 = vld [vmem:[%s1 + $0x118] sm:$0xf]
        %v287 = vld [vmem:[%s1 + $0x11c] sm:$0xf]
        %v288 = vld [vmem:[%s2] sm:$0x1]
        %v290 = vlaneseq
        %v291 = vshrl.u32 %v290, 7
        %v292 = vsub.s32 0, %v291
        %v293 = vrot.slane %v288, %v292
        %v310 = vunpack.c.l.b16 %v201
        %v311 = vunpack.c.h.b16 %v201
        %v312 = vunpack.c.l.b16 %v202
        %v313 = vunpack.c.h.b16 %v202
        %v314 = vunpack.c.l.b16 %v203
        %v315 = vunpack.c.l.b16 %v204
        %v316 = vunpack.c.h.b16 %v204
        %v317 = vunpack.c.l.b16 %v205
        %v318 = vunpack.c.h.b16 %v205
        %v319 = vunpack.c.l.b16 %v206
        %v320 = vunpack.c.l.b16 %v207
        %v321 = vunpack.c.h.b16 %v207
        %v322 = vunpack.c.l.b16 %v208
        %v323 = vunpack.c.h.b16 %v208
        %v324 = vunpack.c.l.b16 %v209
        %v325 = vunpack.c.l.b16 %v210
        %v326 = vunpack.c.h.b16 %v210
        %v327 = vunpack.c.l.b16 %v211
        %v328 = vunpack.c.h.b16 %v211
        %v329 = vunpack.c.l.b16 %v212
        %v330 = vunpack.c.l.b16 %v213
        %v331 = vunpack.c.h.b16 %v213
        %v332 = vunpack.c.l.b16 %v214
        %v333 = vunpack.c.h.b16 %v214
        %v334 = vunpack.c.l.b16 %v215
        %v335 = vpack.c.b16 %v315, %v310
        %v336 = vpack.c.b16 %v316, %v311
        %v337 = vpack.c.b16 %v317, %v312
        %v338 = vpack.c.b16 %v318, %v313
        %v339 = vpack.c.b16 %v319, %v314
        %v340 = vpack.c.b16 %v325, %v320
        %v341 = vpack.c.b16 %v326, %v321
        %v342 = vpack.c.b16 %v327, %v322
        %v343 = vpack.c.b16 %v328, %v323
        %v344 = vpack.c.b16 %v329, %v324
        %v345 = vpack.c.b16 %v330, %v330
        %v346 = vpack.c.b16 %v331, %v331
        %v347 = vpack.c.b16 %v332, %v332
        %v348 = vpack.c.b16 %v333, %v333
        %v349 = vpack.c.b16 %v334, %v334
        %v434 = vunpack.c.l.b16 %v216
        %v435 = vunpack.c.l.b16 %v217
        %v436 = vunpack.c.l.b16 %v218
        %v437 = vunpack.c.l.b16 %v219
        %v438 = vunpack.c.l.b16 %v220
        %v439 = vunpack.c.l.b16 %v221
        %v440 = vunpack.c.l.b16 %v222
        %v441 = vunpack.c.l.b16 %v223
        %v442 = vunpack.c.l.b16 %v224
        %v443 = vunpack.c.l.b16 %v225
        %v444 = vunpack.c.l.b16 %v226
        %v445 = vunpack.c.l.b16 %v227
        %v446 = vunpack.c.l.b16 %v228
        %v447 = vunpack.c.l.b16 %v229
        %v448 = vunpack.c.l.b16 %v230
        %v449 = vunpack.c.l.b16 %v231
        %v450 = vunpack.c.l.b16 %v232
        %v451 = vunpack.c.l.b16 %v233
        %v452 = vunpack.c.l.b16 %v234
        %v453 = vunpack.c.l.b16 %v235
        %v454 = vunpack.c.l.b16 %v236
        %v455 = vunpack.c.l.b16 %v237
        %v456 = vunpack.c.l.b16 %v238
        %v457 = vunpack.c.l.b16 %v239
        %v458 = vunpack.c.l.b16 %v240
        %v459 = vunpack.c.l.b16 %v241
        %v460 = vunpack.c.l.b16 %v242
        %v461 = vunpack.c.l.b16 %v243
        %v462 = vunpack.c.l.b16 %v244
        %v463 = vunpack.c.l.b16 %v245
        %v464 = vunpack.c.l.b16 %v246
        %v465 = vunpack.c.l.b16 %v247
        %v466 = vunpack.c.l.b16 %v248
        %v467 = vunpack.c.l.b16 %v249
        %v468 = vunpack.c.l.b16 %v250
        %v469 = vunpack.c.l.b16 %v251
        %v470 = vunpack.c.l.b16 %v252
        %v471 = vunpack.c.l.b16 %v253
        %v472 = vunpack.c.l.b16 %v254
        %v473 = vunpack.c.l.b16 %v255
        %v474 = vunpack.c.l.b16 %v256
        %v475 = vunpack.c.l.b16 %v257
        %v476 = vunpack.c.l.b16 %v258
        %v477 = vunpack.c.l.b16 %v259
        %v478 = vunpack.c.l.b16 %v260
        %v479 = vunpack.c.l.b16 %v261
        %v480 = vunpack.c.l.b16 %v262
        %v481 = vunpack.c.l.b16 %v263
        %v482 = vunpack.c.l.b16 %v264
        %v483 = vunpack.c.l.b16 %v265
        %v484 = vunpack.c.l.b16 %v266
        %v485 = vunpack.c.l.b16 %v267
        %v486 = vunpack.c.l.b16 %v268
        %v487 = vunpack.c.l.b16 %v269
        %v488 = vunpack.c.l.b16 %v270
        %v489 = vunpack.c.l.b16 %v271
        %v490 = vunpack.c.l.b16 %v272
        %v491 = vunpack.c.l.b16 %v273
        %v492 = vunpack.c.l.b16 %v274
        %v493 = vunpack.c.l.b16 %v275
        %v494 = vunpack.c.l.b16 %v276
        %v495 = vunpack.c.l.b16 %v277
        %v496 = vunpack.c.l.b16 %v278
        %v497 = vunpack.c.l.b16 %v279
        %v498 = vunpack.c.l.b16 %v280
        %v499 = vunpack.c.l.b16 %v281
        %v500 = vunpack.c.l.b16 %v282
        %v501 = vunpack.c.l.b16 %v283
        %v502 = vunpack.c.l.b16 %v284
        %v503 = vunpack.c.l.b16 %v285
        %v504 = vunpack.c.l.b16 %v286
        %v505 = vunpack.c.l.b16 %v287
        %v506 = vpack.c.b16 %v435, %v434
        %v507 = vpack.c.b16 %v437, %v436
        %v508 = vpack.c.b16 %v439, %v438
        %v509 = vpack.c.b16 %v441, %v440
        %v510 = vpack.c.b16 %v443, %v442
        %v511 = vpack.c.b16 %v445, %v444
        %v512 = vpack.c.b16 %v447, %v446
        %v513 = vpack.c.b16 %v449, %v448
        %v514 = vpack.c.b16 %v451, %v450
        %v515 = vpack.c.b16 %v453, %v452
        %v516 = vpack.c.b16 %v455, %v454
        %v517 = vpack.c.b16 %v457, %v456
        %v518 = vpack.c.b16 %v459, %v458
        %v519 = vpack.c.b16 %v461, %v460
        %v520 = vpack.c.b16 %v463, %v462
        %v521 = vpack.c.b16 %v465, %v464
        %v522 = vpack.c.b16 %v467, %v466
        %v523 = vpack.c.b16 %v469, %v468
        %v524 = vpack.c.b16 %v471, %v470
        %v525 = vpack.c.b16 %v473, %v472
        %v526 = vpack.c.b16 %v475, %v474
        %v527 = vpack.c.b16 %v477, %v476
        %v528 = vpack.c.b16 %v479, %v478
        %v529 = vpack.c.b16 %v481, %v480
        %v530 = vpack.c.b16 %v483, %v482
        %v531 = vpack.c.b16 %v485, %v484
        %v532 = vpack.c.b16 %v487, %v486
        %v533 = vpack.c.b16 %v489, %v488
        %v534 = vpack.c.b16 %v491, %v490
        %v535 = vpack.c.b16 %v493, %v492
        %v536 = vpack.c.b16 %v495, %v494
        %v537 = vpack.c.b16 %v497, %v496
        %v538 = vpack.c.b16 %v499, %v498
        %v539 = vpack.c.b16 %v501, %v500
        %v540 = vpack.c.b16 %v503, %v502
        %v541 = vpack.c.b16 %v505, %v504
        %vm578 = vcmask 523264
        %v580 = vsel %vm578, %v339, 0
        %v583 = vsel %vm578, %v344, 0
        %v586 = vsel %vm578, %v349, 0
        %588 = vmatprep.subr.bf16.mxu0 0
        %589 = vmatpush1.bf16.msra.mxu0 %v506
        %590 = vmatprep.subr.bf16.mxu0 0
        %591 = vmatpush1.bf16.msra.mxu0 %v507
        %592 = vmatprep.subr.bf16.mxu0 0
        %593 = vmatpush1.bf16.msra.mxu0 %v508
        %594 = vmatprep.subr.bf16.mxu0 0
        %595 = vmatpush1.bf16.msra.mxu0 %v509
        %596 = vmatprep.subr.bf16.mxu0 0
        %597 = vmatpush1.bf16.msra.mxu0 %v510
        %598 = vmatprep.subr.bf16.mxu0 0
        %599 = vmatpush1.bf16.msra.mxu0 %v511
        %600 = vmatprep.subr.bf16.mxu0 0
        %601 = vmatpush1.bf16.msra.mxu0 %v512
        %602 = vmatprep.subr.bf16.mxu0 0
        %603 = vmatpush1.bf16.msra.mxu0 %v513
        %604 = vmatprep.subr.bf16.mxu0 0
        %605 = vmatpush1.bf16.msra.mxu0 %v514
        %606 = vmatprep.subr.bf16.mxu0 0
        %607 = vmatpush1.bf16.msra.mxu0 %v515
        %608 = vmatprep.subr.bf16.mxu0 0
        %609 = vmatpush1.bf16.msra.mxu0 %v516
        %610 = vmatprep.subr.bf16.mxu0 0
        %611 = vmatpush1.bf16.msra.mxu0 %v517
        %612 = vmatprep.subr.bf16.mxu0 0
        %613 = vmatpush1.bf16.msra.mxu0 %v518
        %614 = vmatprep.subr.bf16.mxu0 0
        %615 = vmatpush1.bf16.msra.mxu0 %v519
        %616 = vmatprep.subr.bf16.mxu0 0
        %617 = vmatpush1.bf16.msra.mxu0 %v520
        %618 = vmatprep.subr.bf16.mxu0 0
        %619 = vmatpush1.bf16.msra.mxu0 %v521
        %620 = vmatprep.mubr.bf16.mxu0 %v336
        %621 = vmatmul.mubr.bf16.gmra.mrb[0].mxu0 %v335
        %v622 = vpop.f32.mrb[0].mxu0
        %v623 = vadd.f32 %v293, %v622
        %v624 = vpop.f32.mrb[0].mxu0
        %v625 = vpop.f32.mrb[0].mxu0
        %v626 = vadd.f32 %v293, %v625
        %v627 = vpop.f32.mrb[0].mxu0
        %628 = vmatprep.mubr.bf16.mxu0 %v341
        %629 = vmatmul.mubr.bf16.gmra.mrb[0].mxu0 %v340
        %v630 = vpop.f32.mrb[0].mxu0
        %v631 = vadd.f32 %v293, %v630
        %v632 = vpop.f32.mrb[0].mxu0
        %v633 = vpop.f32.mrb[0].mxu0
        %v634 = vadd.f32 %v293, %v633
        %v635 = vpop.f32.mrb[0].mxu0
        %636 = vmatprep.mubr.bf16.mxu0 %v346
        %637 = vmatmul.mubr.bf16.gmra.mrb[0].mxu0 %v345
        %v638 = vpop.f32.mrb[0].mxu0
        %v639 = vadd.f32 %v293, %v638
        %v640 = vpop.f32.mrb[0].mxu0
        %v641 = vpop.f32.mrb[0].mxu0
        %v642 = vpop.f32.mrb[0].mxu0
        %643 = vdwg.mxu0
        %644 = vmatprep.subr.bf16.mxu0 0
        %645 = vmatpush1.bf16.msra.mxu0 %v522
        %646 = vmatprep.subr.bf16.mxu0 0
        %647 = vmatpush1.bf16.msra.mxu0 %v523
        %648 = vmatprep.subr.bf16.mxu0 0
        %649 = vmatpush1.bf16.msra.mxu0 %v524
        %650 = vmatprep.subr.bf16.mxu0 0
        %651 = vmatpush1.bf16.msra.mxu0 %v525
        %652 = vmatprep.subr.bf16.mxu0 0
        %653 = vmatpush1.bf16.msra.mxu0 %v526
        %654 = vmatprep.subr.bf16.mxu0 0
        %655 = vmatpush1.bf16.msra.mxu0 %v527
        %656 = vmatprep.subr.bf16.mxu0 0
        %657 = vmatpush1.bf16.msra.mxu0 %v528
        %658 = vmatprep.subr.bf16.mxu0 0
        %659 = vmatpush1.bf16.msra.mxu0 %v529
        %660 = vmatprep.subr.bf16.mxu0 0
        %661 = vmatpush1.bf16.msra.mxu0 %v530
        %662 = vmatprep.subr.bf16.mxu0 0
        %663 = vmatpush1.bf16.msra.mxu0 %v531
        %664 = vmatprep.subr.bf16.mxu0 0
        %665 = vmatpush1.bf16.msra.mxu0 %v532
        %666 = vmatprep.subr.bf16.mxu0 0
        %667 = vmatpush1.bf16.msra.mxu0 %v533
        %668 = vmatprep.subr.bf16.mxu0 0
        %669 = vmatpush1.bf16.msra.mxu0 %v534
        %670 = vmatprep.subr.bf16.mxu0 0
        %671 = vmatpush1.bf16.msra.mxu0 %v535
        %672 = vmatprep.subr.bf16.mxu0 0
        %673 = vmatpush1.bf16.msra.mxu0 %v536
        %674 = vmatprep.subr.bf16.mxu0 0
        %675 = vmatpush1.bf16.msra.mxu0 %v537
        %676 = vmatprep.mubr.bf16.mxu0 %v338
        %677 = vmatmul.mubr.bf16.gmra.mrb[0].mxu0 %v337
        %v678 = vpop.f32.mrb[0].mxu0
        %v679 = vadd.f32 %v623, %v678
        %v680 = vpop.f32.mrb[0].mxu0
        %v681 = vpop.f32.mrb[0].mxu0
        %v682 = vadd.f32 %v626, %v681
        %v683 = vpop.f32.mrb[0].mxu0
        %684 = vmatprep.mubr.bf16.mxu0 %v343
        %685 = vmatmul.mubr.bf16.gmra.mrb[0].mxu0 %v342
        %v686 = vpop.f32.mrb[0].mxu0
        %v687 = vadd.f32 %v631, %v686
        %v688 = vpop.f32.mrb[0].mxu0
        %v689 = vpop.f32.mrb[0].mxu0
        %v690 = vadd.f32 %v634, %v689
        %v691 = vpop.f32.mrb[0].mxu0
        %692 = vmatprep.mubr.bf16.mxu0 %v348
        %693 = vmatmul.mubr.bf16.gmra.mrb[0].mxu0 %v347
        %v694 = vpop.f32.mrb[0].mxu0
        %v695 = vadd.f32 %v639, %v694
        %v696 = vpop.f32.mrb[0].mxu0
        %v697 = vpop.f32.mrb[0].mxu0
        %v698 = vpop.f32.mrb[0].mxu0
        %699 = vdwg.mxu0
        %700 = vmatprep.subr.bf16.mxu0 0
        %701 = vmatpush1.bf16.msra.mxu0 %v538
        %702 = vmatprep.subr.bf16.mxu0 0
        %703 = vmatpush1.bf16.msra.mxu0 %v539
        %704 = vmatprep.subr.bf16.mxu0 0
        %705 = vmatpush1.bf16.msra.mxu0 %v540
        %706 = vmatprep.subr.bf16.mxu0 0
        %707 = vmatpush1.bf16.msra.mxu0 %v541
        %708 = vmatprep.subr.bf16.mxu0 0
        %709 = vmatpush1.bf16.msra.mxu0 0
        %710 = vmatprep.subr.bf16.mxu0 0
        %711 = vmatpush1.bf16.msra.mxu0 0
        %712 = vmatprep.subr.bf16.mxu0 0
        %713 = vmatpush1.bf16.msra.mxu0 0
        %714 = vmatprep.subr.bf16.mxu0 0
        %715 = vmatpush1.bf16.msra.mxu0 0
        %716 = vmatprep.subr.bf16.mxu0 0
        %717 = vmatpush1.bf16.msra.mxu0 0
        %718 = vmatprep.subr.bf16.mxu0 0
        %719 = vmatpush1.bf16.msra.mxu0 0
        %720 = vmatprep.subr.bf16.mxu0 0
        %721 = vmatpush1.bf16.msra.mxu0 0
        %722 = vmatprep.subr.bf16.mxu0 0
        %723 = vmatpush1.bf16.msra.mxu0 0
        %724 = vmatprep.subr.bf16.mxu0 0
        %725 = vmatpush1.bf16.msra.mxu0 0
        %726 = vmatprep.subr.bf16.mxu0 0
        %727 = vmatpush1.bf16.msra.mxu0 0
        %728 = vmatprep.subr.bf16.mxu0 0
        %729 = vmatpush1.bf16.msra.mxu0 0
        %730 = vmatprep.subr.bf16.mxu0 0
        %731 = vmatpush1.bf16.msra.mxu0 0
        %732 = vmatprep.mubr.bf16.mxu0 0
        %733 = vmatmul.mubr.bf16.gmra.mrb[0].mxu0 %v580
        %v734 = vpop.f32.mrb[0].mxu0
        %v735 = vadd.f32 %v679, %v734
        %v736 = vpop.f32.mrb[0].mxu0
        %v737 = vpop.f32.mrb[0].mxu0
        %v738 = vadd.f32 %v682, %v737
        %v739 = vpop.f32.mrb[0].mxu0
        %740 = vmatprep.mubr.bf16.mxu0 0
        %741 = vmatmul.mubr.bf16.gmra.mrb[0].mxu0 %v583
        %v742 = vpop.f32.mrb[0].mxu0
        %v743 = vadd.f32 %v687, %v742
        %v744 = vpop.f32.mrb[0].mxu0
        %v745 = vpop.f32.mrb[0].mxu0
        %v746 = vadd.f32 %v690, %v745
        %v747 = vpop.f32.mrb[0].mxu0
        %748 = vmatprep.mubr.bf16.mxu0 0
        %749 = vmatmul.mubr.bf16.gmra.mrb[0].mxu0 %v586
        %v750 = vpop.f32.mrb[0].mxu0
        %v751 = vadd.f32 %v695, %v750
        %v752 = vpop.f32.mrb[0].mxu0
        %v753 = vpop.f32.mrb[0].mxu0
        %v754 = vpop.f32.mrb[0].mxu0
        %755 = vdwg.mxu0
        %v756 = vmax.f32 %v735, 0.0
        %v757 = vmax.f32 %v738, 0.0
        %v758 = vmax.f32 %v743, 0.0
        %v759 = vmax.f32 %v746, 0.0
        %v760 = vmax.f32 %v751, 0.0
        %v761 = vpack.c.bf16 %v757, %v756
        %v762 = vpack.c.bf16 %v759, %v758
        %v763 = vpack.c.bf16 %v760, %v760
        %v767 = vunpack.c.l.b16 %v761
        %v768 = vunpack.c.h.b16 %v761
        %v769 = vunpack.c.l.b16 %v762
        %v770 = vunpack.c.h.b16 %v762
        %v771 = vunpack.c.l.b16 %v763
        %v772 = vpack.c.b16 %v767, %v767
        %v773 = vpack.c.b16 %v768, %v768
        %v774 = vpack.c.b16 %v769, %v769
        %v775 = vpack.c.b16 %v770, %v770
        %v776 = vpack.c.b16 %v771, %v771
        %vm782 = vcmask 781312
        %783 = vst.msk [vmem:[%s177] sm:$0xf] %vm782, %v772
        %784 = vst.msk [vmem:[%s177 + $0x4] sm:$0xf] %vm782, %v773
        %785 = vst.msk [vmem:[%s177 + $0x8] sm:$0xf] %vm782, %v774
        %786 = vst.msk [vmem:[%s177 + $0xc] sm:$0xf] %vm782, %v775
        %787 = vst.msk [vmem:[%s177 + $0x10] sm:$0xf] %vm782, %v776
        %s788 = sand.u32 %s90, 1
        %s789 = sand.u32 %s90, 1
        %s790 = smul.addr %s789, 20
        %s791 = scalar_lea.vmem [#allocation2], %s790
        // Predicated region
        $region33: #{_lambda_.12} parent=31 // pred_check
          %p792 = pneg %p100
        $region34: #{_lambda_.12} parent=31 // pred_check_branch
          %794 = sbr.rel (%p792) target = $region36
        $region35: #{_lambda_.12} parent=31 // pred_region
          %s795 = smul.u32 5, %s14
          %s796 = ssub.s32 9, %s795
          %p797 = scmp.lt.s32.totalorder %s796, 5
          %s798 = scalar_select %p797, %s796, 5
          %s799 = smul.u32 64, %s798
          %p800 = scmp.ne.s32.totalorder 0, %s799
          %s801 = smul.addr %s795, 4
          %s802 = scalar_lea.vmem %s3, %s801
          // Predicated region
          $region37: #{_lambda_.12} parent=35 // pred_check
            %p803 = pneg %p800
          $region38: #{_lambda_.12} parent=35 // pred_check_branch
            %805 = sbr.rel (%p803) target = $region40
          $region39: #{_lambda_.12} parent=35 // pred_region
            // Predicated region
            $region41: #{_lambda_.12} parent=39 // pred_check
              _
            $region42: #{_lambda_.12} parent=39 // pred_check_branch
              %807 = sbr.rel target = $region44
            $region43: #{_lambda_.12} parent=39 // pred_region
              // Predicated region
              $region63: #{_lambda_.12} parent=43 // pred_check
                _
              $region64: #{_lambda_.12} parent=43 // pred_check_branch
                %865 = sbr.rel (0) target = $region66
              $region65: #{_lambda_.12} parent=43 // pred_region
                %s867 = sdiv.u32.pop %s798, 5
                %s868 = srem.u32.pop %s798, 5
                // While loop
                $region67: #{_lambda_.12} parent=65 // loop_pre_header
                  _
                $region68: #{_lambda_.12} parent=65 // loop_header
                  %s870 = sphi 0, %s872
                  %p871 = scmp.ge.s32.totalorder %s870, %s867
                  %s875 = sphi 0, %s890
                  %s876 = sphi %s791, %s893
                  %s877 = sphi %s802, %s894
                $region69: #{_lambda_.12} parent=65 // loop_header_branch
                  %874 = sbr.rel (%p871) target = $region73
                $region70: #{_lambda_.12} parent=65 // loop_body
                  %v878 = vld [vmem:[%s876] sm:$0xf]
                  %879 = vst [vmem:[%s877] sm:$0xf] %v878
                  %v880 = vld [vmem:[%s876 + $0x4] sm:$0xf]
                  %881 = vst [vmem:[%s877 + $0x4] sm:$0xf] %v880
                  %v882 = vld [vmem:[%s876 + $0x8] sm:$0xf]
                  %883 = vst [vmem:[%s877 + $0x8] sm:$0xf] %v882
                  %v884 = vld [vmem:[%s876 + $0xc] sm:$0xf]
                  %885 = vst [vmem:[%s877 + $0xc] sm:$0xf] %v884
                  %v886 = vld [vmem:[%s876 + $0x10] sm:$0xf]
                  %887 = vst [vmem:[%s877 + $0x10] sm:$0xf] %v886
                  %s888 = sadd.s32 1, %s875
                  %p889 = scmp.ge.s32.totalorder %s888, %s867
                  %s890 = scalar_select %p889, 0, %s888
                  %s891 = smul.u32 %s890, 20
                  %s892 = smul.u32 %s890, 20
                  %s893 = scalar_lea.vmem %s791, %s891 [#allocation2]
                  %s894 = scalar_lea.vmem %s802, %s892
                $region71: #{_lambda_.12} parent=65 // loop_footer
                  %s872 = sadd.s32 %s870, 1
                $region72: #{_lambda_.12} parent=65 // loop_footer_branch
                  %869 = sbr.rel target = $region68
                $region73: #{_lambda_.12} parent=65 // loop_exit
                  _
                %s895 = sdiv.u32.pop %s798, 5
                %s896 = srem.u32.pop %s798, 5
                %s897 = smul.u32 %s895, 5
                %s898 = smul.u32 4, %s897
                %s899 = scalar_lea.vmem %s791, %s898 [#allocation2]
                %s900 = smul.u32 4, %s897
                %s901 = scalar_lea.vmem %s802, %s900
                // While loop
                $region74: #{_lambda_.12} parent=65 // loop_pre_header
                  _
                $region75: #{_lambda_.12} parent=65 // loop_header
                  %s903 = sphi 0, %s905
                  %p904 = scmp.ge.s32.totalorder %s903, %s896
                  %s908 = sphi 0, %s915
                  %s909 = sphi %s899, %s918
                  %s910 = sphi %s901, %s919
                $region76: #{_lambda_.12} parent=65 // loop_header_branch
                  %907 = sbr.rel (%p904) target = $region80
                $region77: #{_lambda_.12} parent=65 // loop_body
                  %v911 = vld [vmem:[%s909] sm:$0xf]
                  %912 = vst [vmem:[%s910] sm:$0xf] %v911
                  %s913 = sadd.s32 1, %s908
                  %p914 = scmp.ge.s32.totalorder %s913, %s896
                  %s915 = scalar_select %p914, 0, %s913
                  %s916 = smul.u32 %s915, 4
                  %s917 = smul.u32 %s915, 4
                  %s918 = scalar_lea.vmem %s899, %s916 [#allocation2]
                  %s919 = scalar_lea.vmem %s901, %s917
                $region78: #{_lambda_.12} parent=65 // loop_footer
                  %s905 = sadd.s32 %s903, 1
                $region79: #{_lambda_.12} parent=65 // loop_footer_branch
                  %902 = sbr.rel target = $region75
                $region80: #{_lambda_.12} parent=65 // loop_exit
                  _
              $region66: #{_lambda_.12} parent=43 // pred_fallthru
                _
            $region44: #{_lambda_.12} parent=39 // pred_fallthru
              _
            // Predicated region
            $region45: #{_lambda_.12} parent=39 // pred_check
              _
            $region46: #{_lambda_.12} parent=39 // pred_check_branch
              %809 = sbr.rel (0) target = $region48
            $region47: #{_lambda_.12} parent=39 // pred_region
              %s811 = sdiv.u32.pop %s798, 5
              %s812 = srem.u32.pop %s798, 5
              // While loop
              $region49: #{_lambda_.12} parent=47 // loop_pre_header
                _
              $region50: #{_lambda_.12} parent=47 // loop_header
                %s814 = sphi 0, %s816
                %p815 = scmp.ge.s32.totalorder %s814, %s811
                %s819 = sphi 0, %s834
                %s820 = sphi %s791, %s837
                %s821 = sphi %s802, %s838
              $region51: #{_lambda_.12} parent=47 // loop_header_branch
                %818 = sbr.rel (%p815) target = $region55
              $region52: #{_lambda_.12} parent=47 // loop_body
                %v822 = vld [vmem:[%s820] sm:$0xf]
                %823 = vst [vmem:[%s821] sm:$0xf] %v822
                %v824 = vld [vmem:[%s820 + $0x4] sm:$0xf]
                %825 = vst [vmem:[%s821 + $0x4] sm:$0xf] %v824
                %v826 = vld [vmem:[%s820 + $0x8] sm:$0xf]
                %827 = vst [vmem:[%s821 + $0x8] sm:$0xf] %v826
                %v828 = vld [vmem:[%s820 + $0xc] sm:$0xf]
                %829 = vst [vmem:[%s821 + $0xc] sm:$0xf] %v828
                %v830 = vld [vmem:[%s820 + $0x10] sm:$0xf]
                %831 = vst [vmem:[%s821 + $0x10] sm:$0xf] %v830
                %s832 = sadd.s32 1, %s819
                %p833 = scmp.ge.s32.totalorder %s832, %s811
                %s834 = scalar_select %p833, 0, %s832
                %s835 = smul.u32 %s834, 20
                %s836 = smul.u32 %s834, 20
                %s837 = scalar_lea.vmem %s791, %s835 [#allocation2]
                %s838 = scalar_lea.vmem %s802, %s836
              $region53: #{_lambda_.12} parent=47 // loop_footer
                %s816 = sadd.s32 %s814, 1
              $region54: #{_lambda_.12} parent=47 // loop_footer_branch
                %813 = sbr.rel target = $region50
              $region55: #{_lambda_.12} parent=47 // loop_exit
                _
              %s839 = sdiv.u32.pop %s798, 5
              %s840 = srem.u32.pop %s798, 5
              %s841 = smul.u32 %s839, 5
              %s842 = smul.u32 4, %s841
              %s843 = scalar_lea.vmem %s791, %s842 [#allocation2]
              %s844 = smul.u32 4, %s841
              %s845 = scalar_lea.vmem %s802, %s844
              // While loop
              $region56: #{_lambda_.12} parent=47 // loop_pre_header
                _
              $region57: #{_lambda_.12} parent=47 // loop_header
                %s847 = sphi 0, %s849
                %p848 = scmp.ge.s32.totalorder %s847, %s840
                %s852 = sphi 0, %s859
                %s853 = sphi %s843, %s862
                %s854 = sphi %s845, %s863
              $region58: #{_lambda_.12} parent=47 // loop_header_branch
                %851 = sbr.rel (%p848) target = $region62
              $region59: #{_lambda_.12} parent=47 // loop_body
                %v855 = vld [vmem:[%s853] sm:$0xf]
                %856 = vst [vmem:[%s854] sm:$0xf] %v855
                %s857 = sadd.s32 1, %s852
                %p858 = scmp.ge.s32.totalorder %s857, %s840
                %s859 = scalar_select %p858, 0, %s857
                %s860 = smul.u32 %s859, 4
                %s861 = smul.u32 %s859, 4
                %s862 = scalar_lea.vmem %s843, %s860 [#allocation2]
                %s863 = scalar_lea.vmem %s845, %s861
              $region60: #{_lambda_.12} parent=47 // loop_footer
                %s849 = sadd.s32 %s847, 1
              $region61: #{_lambda_.12} parent=47 // loop_footer_branch
                %846 = sbr.rel target = $region57
              $region62: #{_lambda_.12} parent=47 // loop_exit
                _
            $region48: #{_lambda_.12} parent=39 // pred_fallthru
              _
          $region40: #{_lambda_.12} parent=35 // pred_fallthru
            _
          %920 = vnop
        $region36: #{_lambda_.12} parent=31 // pred_fallthru
          _
      $region32: #{_lambda_.12} parent=5 // pred_fallthru
        _
      %p921 = scmp.le.s32.totalorder 2, %s9
      // Predicated region
      $region81: #{_lambda_.12} parent=5 // pred_check
        %p922 = pneg %p921
      $region82: #{_lambda_.12} parent=5 // pred_check_branch
        %924 = sbr.rel (%p922) target = $region84
      $region83: #{_lambda_.12} parent=5 // pred_region
        %s925 = ssub.s32 %s9, 2
        // Predicated region
        $region85: #{_lambda_.12} parent=83 // pred_check
          %p926 = pneg %p106
        $region86: #{_lambda_.12} parent=83 // pred_check_branch
          %928 = sbr.rel (%p926) target = $region88
        $region87: #{_lambda_.12} parent=83 // pred_region
          %s929 = sand.u32 %s91, 1
          %s930 = sand.u32 %s91, 1
          %s931 = smul.addr %s930, 20
          %s932 = scalar_lea.vmem [#allocation2], %s931
        $region88: #{_lambda_.12} parent=83 // pred_fallthru
          _
      $region84: #{_lambda_.12} parent=5 // pred_fallthru
        _
    $region6: #{_lambda_.12} parent=1 // loop_footer
      %s13 = sadd.s32 1, %s9
    $region7: #{_lambda_.12} parent=1 // loop_footer_branch
      %8 = sbr.rel target = $region3
    $region8: #{_lambda_.12} parent=1 // loop_exit
      _

// kernel: _lambda_.14
$region0: #{_lambda_.14}
  #allocation0 [shape = 'u32[]', space=smem, size = 0x4, offset = 0x4, fixed_abs, tag = 'smem constant byte address 0x4 - core index']
  #allocation1 [shape = 'u32[144,128]{1,0:T(1,128)}', space=vmem, size = 0x12000, scoped, tag = 'internal scratch']
  %s0 = inlined_call_operand.vmem [shape: bf16[72,448], index: 0, kind: input, shape index: {}]
  %s1 = inlined_call_operand.vmem [shape: bf16[448,64], index: 1, kind: input, shape index: {}]
  %s2 = inlined_call_operand.vmem [shape: f32[1,64], index: 2, kind: input, shape index: {}]
  %s3 = inlined_call_operand.vmem [shape: bf16[72,64], index: 3, kind: output, shape index: {}]
  %s4 = sld [smem:[#allocation0]]
  $region89: #{_lambda_.14} parent=0
    _
  %s6 = ssub.s32 1, %s4
  %s7 = scalar_select 0, %s6, %s4
  $region1: #{_lambda_.14} parent=0
    #allocation2 [shape = 'u8[20480]{0}', space=vmem, size = 0x5000, scoped, tag = 'output window, operand 0']
    loop: start=0, step=1, limit=4
    $region2: #{_lambda_.14} parent=1 // loop_pre_header
      _
    $region3: #{_lambda_.14} parent=1 // loop_header
      %s9 = sphi 0, %s13
      %p10 = scmp.ge.s32.totalorder %s9, 4
      %s19 = sphi 0, %s21
      %s22 = sphi 0, %s19
      %s23 = sphi 0, %s22
      %s39 = sphi 0, %s23
      %s43 = sphi 0, %s43
      %s45 = sphi 0, %s43
      %s46 = sphi 0, %s45
      %s60 = sphi 0, %s46
      %s64 = sphi 0, %s64
      %s66 = sphi 0, %s64
      %s67 = sphi 0, %s66
      %s81 = sphi 0, %s67
      %s87 = sphi 0, %s89
      %s90 = sphi 0, %s87
      %s91 = sphi 0, %s90
      %s107 = sphi 0, %s91
    $region4: #{_lambda_.14} parent=1 // loop_header_branch
      %12 = sbr.rel (%p10) target = $region8
    $region5: #{_lambda_.14} parent=1 // loop_body
      %s14 = ssub.s32 %s9, 1
      %s15 = ssub.s32 %s9, 2
      %s16 = sadd.s32 %s9, 1
      %s17 = ssub.s32 %s9, %s16
      %p18 = scmp.eq.s32.totalorder %s17, 0
      %s20 = sadd.s32 %s19, 1
      %s21 = scalar_select %p18, %s19, %s20
      %p24 = pneg %p18
      %p25 = scmp.eq.s32.totalorder %s9, 1
      %p26 = por %p24, %p25
      %p27 = scmp.ne.s32.totalorder %s19, %s22
      %p28 = scmp.eq.s32.totalorder %s9, 0
      %p29 = por %p27, %p28
      %p30 = scmp.ne.s32.totalorder %s19, %s22
      %p31 = scmp.eq.s32.totalorder %s14, 1
      %p32 = por %p30, %p31
      %p33 = scmp.ne.s32.totalorder %s22, %s23
      %p34 = scmp.eq.s32.totalorder %s14, 0
      %p35 = por %p33, %p34
      %p36 = scmp.ne.s32.totalorder %s22, %s23
      %p37 = scmp.eq.s32.totalorder %s15, 1
      %p38 = por %p36, %p37
      %p40 = scmp.ne.s32.totalorder %s23, %s39
      %p41 = scmp.eq.s32.totalorder %s15, 0
      %p42 = por %p40, %p41
      %s44 = sadd.s32 %s43, 1
      %p47 = scmp.eq.s32.totalorder %s9, 1
      %p48 = scmp.ne.s32.totalorder %s43, %s45
      %p49 = scmp.eq.s32.totalorder %s9, 0
      %p50 = por %p48, %p49
      %p51 = scmp.ne.s32.totalorder %s43, %s45
      %p52 = scmp.eq.s32.totalorder %s14, 1
      %p53 = por %p51, %p52
      %p54 = scmp.ne.s32.totalorder %s45, %s46
      %p55 = scmp.eq.s32.totalorder %s14, 0
      %p56 = por %p54, %p55
      %p57 = scmp.ne.s32.totalorder %s45, %s46
      %p58 = scmp.eq.s32.totalorder %s15, 1
      %p59 = por %p57, %p58
      %p61 = scmp.ne.s32.totalorder %s46, %s60
      %p62 = scmp.eq.s32.totalorder %s15, 0
      %p63 = por %p61, %p62
      %s65 = sadd.s32 %s64, 1
      %p68 = scmp.eq.s32.totalorder %s9, 1
      %p69 = scmp.ne.s32.totalorder %s64, %s66
      %p70 = scmp.eq.s32.totalorder %s9, 0
      %p71 = por %p69, %p70
      %p72 = scmp.ne.s32.totalorder %s64, %s66
      %p73 = scmp.eq.s32.totalorder %s14, 1
      %p74 = por %p72, %p73
      %p75 = scmp.ne.s32.totalorder %s66, %s67
      %p76 = scmp.eq.s32.totalorder %s14, 0
      %p77 = por %p75, %p76
      %p78 = scmp.ne.s32.totalorder %s66, %s67
      %p79 = scmp.eq.s32.totalorder %s15, 1
      %p80 = por %p78, %p79
      %p82 = scmp.ne.s32.totalorder %s67, %s81
      %p83 = scmp.eq.s32.totalorder %s15, 0
      %p84 = por %p82, %p83
      %s85 = ssub.s32 %s9, %s16
      %p86 = scmp.eq.s32.totalorder %s85, 0
      %s88 = sadd.s32 %s87, 1
      %s89 = scalar_select %p86, %s87, %s88
      %p92 = pneg %p86
      %p93 = scmp.eq.s32.totalorder %s9, 1
      %p94 = por %p92, %p93
      %p95 = scmp.ne.s32.totalorder %s87, %s90
      %p96 = scmp.eq.s32.totalorder %s9, 0
      %p97 = por %p95, %p96
      %p98 = scmp.ne.s32.totalorder %s87, %s90
      %p99 = scmp.eq.s32.totalorder %s14, 1
      %p100 = por %p98, %p99
      %p101 = scmp.ne.s32.totalorder %s90, %s91
      %p102 = scmp.eq.s32.totalorder %s14, 0
      %p103 = por %p101, %p102
      %p104 = scmp.ne.s32.totalorder %s90, %s91
      %p105 = scmp.eq.s32.totalorder %s15, 1
      %p106 = por %p104, %p105
      %p108 = scmp.ne.s32.totalorder %s91, %s107
      %p109 = scmp.eq.s32.totalorder %s15, 0
      %p110 = por %p108, %p109
      %p111 = scmp.le.s32.totalorder 1, %s9
      %p112 = scmp.lt.s32.totalorder %s9, 3
      %p113 = pnand %p111, %p112
      %p114 = pneg %p113
      // Predicated region
      $region9: #{_lambda_.14} parent=5 // pred_check
        _
      $region10: #{_lambda_.14} parent=5 // pred_check_branch
        %116 = sbr.rel (%p113) target = $region12
      $region11: #{_lambda_.14} parent=5 // pred_region
        %s117 = ssub.s32 %s9, 1
        // Predicated region
        $region13: #{_lambda_.14} parent=11 // pred_check
          %p118 = pneg %p56
        $region14: #{_lambda_.14} parent=11 // pred_check_branch
          %120 = sbr.rel (%p118) target = $region16
        $region15: #{_lambda_.14} parent=11 // pred_region
          _
        $region16: #{_lambda_.14} parent=11 // pred_fallthru
          _
        // Predicated region
        $region17: #{_lambda_.14} parent=11 // pred_check
          %p121 = pneg %p77
        $region18: #{_lambda_.14} parent=11 // pred_check_branch
          %123 = sbr.rel (%p121) target = $region20
        $region19: #{_lambda_.14} parent=11 // pred_region
          _
        $region20: #{_lambda_.14} parent=11 // pred_fallthru
          _
      $region12: #{_lambda_.14} parent=5 // pred_fallthru
        _
      %p124 = scmp.lt.s32.totalorder %s9, 2
      // Predicated region
      $region21: #{_lambda_.14} parent=5 // pred_check
        %p125 = pneg %p124
      $region22: #{_lambda_.14} parent=5 // pred_check_branch
        %127 = sbr.rel (%p125) target = $region24
      $region23: #{_lambda_.14} parent=5 // pred_region
        // Predicated region
        $region25: #{_lambda_.14} parent=23 // pred_check
          %p128 = pneg %p29
        $region26: #{_lambda_.14} parent=23 // pred_check_branch
          %130 = sbr.rel (%p128) target = $region28
        $region27: #{_lambda_.14} parent=23 // pred_region
          %s131 = smul.u32 5, %s9
          %s132 = ssub.s32 9, %s131
          %p133 = scmp.lt.s32.totalorder %s132, 5
          %s134 = scalar_select %p133, %s132, 5
          %s135 = smul.u32 64, %s134
          %s136 = smul.u32 %s135, 4
          %p137 = scmp.lt.s32.totalorder %s131, 8
          %s138 = scalar_select %p137, %s131, 8
          %s139 = smul.addr %s138, 4
          %s140 = smul.addr %s139, 4
          %s141 = scalar_lea.vmem %s0, %s140
          %s142 = smul.u32 5, %s9
          %s143 = ssub.s32 9, %s142
          %p144 = scmp.lt.s32.totalorder %s143, 5
          %s145 = scalar_select %p144, %s143, 5
          %s146 = smul.u32 64, %s145
          %s147 = smul.u32 %s146, 4
        $region28: #{_lambda_.14} parent=23 // pred_fallthru
          _
      $region24: #{_lambda_.14} parent=5 // pred_fallthru
        _
      %p148 = scmp.le.s32.totalorder 1, %s9
      %p149 = scmp.lt.s32.totalorder %s9, 3
      %p150 = pnand %p148, %p149
      %p151 = pneg %p150
      // Predicated region
      $region29: #{_lambda_.14} parent=5 // pred_check
        _
      $region30: #{_lambda_.14} parent=5 // pred_check_branch
        %153 = sbr.rel (%p150) target = $region32
      $region31: #{_lambda_.14} parent=5 // pred_region
        %s154 = ssub.s32 %s9, 1
        %s155 = smul.u32 5, %s14
        %s156 = ssub.s32 9, %s155
        %p157 = scmp.lt.s32.totalorder %s156, 5
        %s158 = scalar_select %p157, %s156, 5
        %s159 = smul.u32 64, %s158
        %s160 = smul.u32 %s159, 4
        %p161 = scmp.lt.s32.totalorder %s155, 8
        %s162 = scalar_select %p161, %s155, 8
        %s163 = smul.addr %s162, 4
        %s164 = smul.addr %s163, 4
        %s165 = scalar_lea.vmem %s0, %s164
        %p166 = pneg %p35
        %p167 = pneg %p32
        %p168 = pneg %p56
        %p169 = pneg %p53
        %p170 = pneg %p77
        %p171 = pneg %p74
        %p172 = pneg %p103
        %p173 = pneg %p100
        %s174 = sand.u32 %s90, 1
        %s175 = sand.u32 %s90, 1
        %s176 = smul.addr %s175, 20
        %s177 = scalar_lea.vmem [#allocation2], %s176
        %s178 = smul.u32 5, %s14
        %s179 = ssub.s32 9, %s178
        %p180 = scmp.lt.s32.totalorder %s179, 5
        %s181 = scalar_select %p180, %s179, 5
        %s182 = smul.u32 64, %s181
        %s183 = smul.u32 %s182, 4
        %p184 = scmp.lt.s32.totalorder %s178, 8
        %s185 = scalar_select %p184, %s178, 8
        %s186 = smul.addr %s185, 4
        %s187 = smul.addr %s186, 4
        %s188 = scalar_lea.vmem %s0, %s187
        %s189 = smul.u32 5, %s14
        %s190 = ssub.s32 9, %s189
        %p191 = scmp.lt.s32.totalorder %s190, 5
        %s192 = scalar_select %p191, %s190, 5
        %s193 = smul.u32 64, %s192
        %s194 = smul.u32 %s193, 4
        %s195 = smul.u32 5, %s14
        %s196 = ssub.s32 9, %s195
        %p197 = scmp.lt.s32.totalorder %s196, 5
        %s198 = scalar_select %p197, %s196, 5
        %s199 = smul.u32 64, %s198
        %v201 = vld [vmem:[%s188] sm:$0xff]
        %v202 = vld [vmem:[%s188 + $0x8] sm:$0xff]
        %v203 = vld [vmem:[%s188 + $0x10] sm:$0xff]
        %v204 = vld [vmem:[%s188 + $0x18] sm:$0xff]
        %v205 = vld [vmem:[%s188 + $0x20] sm:$0xff]
        %v206 = vld [vmem:[%s188 + $0x28] sm:$0xff]
        %v207 = vld [vmem:[%s188 + $0x30] sm:$0xff]
        %v208 = vld [vmem:[%s188 + $0x38] sm:$0xff]
        %v209 = vld [vmem:[%s188 + $0x40] sm:$0xff]
        %v210 = vld [vmem:[%s188 + $0x48] sm:$0xff]
        %v211 = vld [vmem:[%s1] sm:$0xf]
        %v212 = vld [vmem:[%s1 + $0x4] sm:$0xf]
        %v213 = vld [vmem:[%s1 + $0x8] sm:$0xf]
        %v214 = vld [vmem:[%s1 + $0xc] sm:$0xf]
        %v215 = vld [vmem:[%s1 + $0x10] sm:$0xf]
        %v216 = vld [vmem:[%s1 + $0x14] sm:$0xf]
        %v217 = vld [vmem:[%s1 + $0x18] sm:$0xf]
        %v218 = vld [vmem:[%s1 + $0x1c] sm:$0xf]
        %v219 = vld [vmem:[%s1 + $0x20] sm:$0xf]
        %v220 = vld [vmem:[%s1 + $0x24] sm:$0xf]
        %v221 = vld [vmem:[%s1 + $0x28] sm:$0xf]
        %v222 = vld [vmem:[%s1 + $0x2c] sm:$0xf]
        %v223 = vld [vmem:[%s1 + $0x30] sm:$0xf]
        %v224 = vld [vmem:[%s1 + $0x34] sm:$0xf]
        %v225 = vld [vmem:[%s1 + $0x38] sm:$0xf]
        %v226 = vld [vmem:[%s1 + $0x3c] sm:$0xf]
        %v227 = vld [vmem:[%s1 + $0x40] sm:$0xf]
        %v228 = vld [vmem:[%s1 + $0x44] sm:$0xf]
        %v229 = vld [vmem:[%s1 + $0x48] sm:$0xf]
        %v230 = vld [vmem:[%s1 + $0x4c] sm:$0xf]
        %v231 = vld [vmem:[%s1 + $0x50] sm:$0xf]
        %v232 = vld [vmem:[%s1 + $0x54] sm:$0xf]
        %v233 = vld [vmem:[%s1 + $0x58] sm:$0xf]
        %v234 = vld [vmem:[%s1 + $0x5c] sm:$0xf]
        %v235 = vld [vmem:[%s1 + $0x60] sm:$0xf]
        %v236 = vld [vmem:[%s1 + $0x64] sm:$0xf]
        %v237 = vld [vmem:[%s1 + $0x68] sm:$0xf]
        %v238 = vld [vmem:[%s1 + $0x6c] sm:$0xf]
        %v239 = vld [vmem:[%s1 + $0x70] sm:$0xf]
        %v240 = vld [vmem:[%s1 + $0x74] sm:$0xf]
        %v241 = vld [vmem:[%s1 + $0x78] sm:$0xf]
        %v242 = vld [vmem:[%s1 + $0x7c] sm:$0xf]
        %v243 = vld [vmem:[%s1 + $0x80] sm:$0xf]
        %v244 = vld [vmem:[%s1 + $0x84] sm:$0xf]
        %v245 = vld [vmem:[%s1 + $0x88] sm:$0xf]
        %v246 = vld [vmem:[%s1 + $0x8c] sm:$0xf]
        %v247 = vld [vmem:[%s1 + $0x90] sm:$0xf]
        %v248 = vld [vmem:[%s1 + $0x94] sm:$0xf]
        %v249 = vld [vmem:[%s1 + $0x98] sm:$0xf]
        %v250 = vld [vmem:[%s1 + $0x9c] sm:$0xf]
        %v251 = vld [vmem:[%s1 + $0xa0] sm:$0xf]
        %v252 = vld [vmem:[%s1 + $0xa4] sm:$0xf]
        %v253 = vld [vmem:[%s1 + $0xa8] sm:$0xf]
        %v254 = vld [vmem:[%s1 + $0xac] sm:$0xf]
        %v255 = vld [vmem:[%s1 + $0xb0] sm:$0xf]
        %v256 = vld [vmem:[%s1 + $0xb4] sm:$0xf]
        %v257 = vld [vmem:[%s1 + $0xb8] sm:$0xf]
        %v258 = vld [vmem:[%s1 + $0xbc] sm:$0xf]
        %v259 = vld [vmem:[%s1 + $0xc0] sm:$0xf]
        %v260 = vld [vmem:[%s1 + $0xc4] sm:$0xf]
        %v261 = vld [vmem:[%s1 + $0xc8] sm:$0xf]
        %v262 = vld [vmem:[%s1 + $0xcc] sm:$0xf]
        %v263 = vld [vmem:[%s1 + $0xd0] sm:$0xf]
        %v264 = vld [vmem:[%s1 + $0xd4] sm:$0xf]
        %v265 = vld [vmem:[%s1 + $0xd8] sm:$0xf]
        %v266 = vld [vmem:[%s1 + $0xdc] sm:$0xf]
        %v267 = vld [vmem:[%s2] sm:$0x1]
        %v269 = vlaneseq
        %v270 = vshrl.u32 %v269, 7
        %v271 = vsub.s32 0, %v270
        %v272 = vrot.slane %v267, %v271
        %v284 = vunpack.c.l.b16 %v201
        %v285 = vunpack.c.h.b16 %v201
        %v286 = vunpack.c.l.b16 %v202
        %v287 = vunpack.c.h.b16 %v202
        %v288 = vunpack.c.l.b16 %v203
        %v289 = vunpack.c.h.b16 %v203
        %v290 = vunpack.c.l.b16 %v204
        %v291 = vunpack.c.h.b16 %v204
        %v292 = vunpack.c.l.b16 %v205
        %v293 = vunpack.c.h.b16 %v205
        %v294 = vunpack.c.l.b16 %v206
        %v295 = vunpack.c.h.b16 %v206
        %v296 = vunpack.c.l.b16 %v207
        %v297 = vunpack.c.h.b16 %v207
        %v298 = vunpack.c.l.b16 %v208
        %v299 = vunpack.c.h.b16 %v208
        %v300 = vunpack.c.l.b16 %v209
        %v301 = vunpack.c.h.b16 %v209
        %v302 = vunpack.c.l.b16 %v210
        %v303 = vunpack.c.h.b16 %v210
        %v304 = vpack.c.b16 %v288, %v284
        %v305 = vpack.c.b16 %v289, %v285
        %v306 = vpack.c.b16 %v290, %v286
        %v307 = vpack.c.b16 %v291, %v287
        %v308 = vpack.c.b16 %v296, %v292
        %v309 = vpack.c.b16 %v297, %v293
        %v310 = vpack.c.b16 %v298, %v294
        %v311 = vpack.c.b16 %v299, %v295
        %v312 = vpack.c.b16 %v300, %v300
        %v313 = vpack.c.b16 %v301, %v301
        %v314 = vpack.c.b16 %v302, %v302
        %v315 = vpack.c.b16 %v303, %v303
        %v381 = vunpack.c.l.b16 %v211
        %v382 = vunpack.c.l.b16 %v212
        %v383 = vunpack.c.l.b16 %v213
        %v384 = vunpack.c.l.b16 %v214
        %v385 = vunpack.c.l.b16 %v215
        %v386 = vunpack.c.l.b16 %v216
        %v387 = vunpack.c.l.b16 %v217
        %v388 = vunpack.c.l.b16 %v218
        %v389 = vunpack.c.l.b16 %v219
        %v390 = vunpack.c.l.b16 %v220
        %v391 = vunpack.c.l.b16 %v221
        %v392 = vunpack.c.l.b16 %v222
        %v393 = vunpack.c.l.b16 %v223
        %v394 = vunpack.c.l.b16 %v224
        %v395 = vunpack.c.l.b16 %v225
        %v396 = vunpack.c.l.b16 %v226
        %v397 = vunpack.c.l.b16 %v227
        %v398 = vunpack.c.l.b16 %v228
        %v399 = vunpack.c.l.b16 %v229
        %v400 = vunpack.c.l.b16 %v230
        %v401 = vunpack.c.l.b16 %v231
        %v402 = vunpack.c.l.b16 %v232
        %v403 = vunpack.c.l.b16 %v233
        %v404 = vunpack.c.l.b16 %v234
        %v405 = vunpack.c.l.b16 %v235
        %v406 = vunpack.c.l.b16 %v236
        %v407 = vunpack.c.l.b16 %v237
        %v408 = vunpack.c.l.b16 %v238
        %v409 = vunpack.c.l.b16 %v239
        %v410 = vunpack.c.l.b16 %v240
        %v411 = vunpack.c.l.b16 %v241
        %v412 = vunpack.c.l.b16 %v242
        %v413 = vunpack.c.l.b16 %v243
        %v414 = vunpack.c.l.b16 %v244
        %v415 = vunpack.c.l.b16 %v245
        %v416 = vunpack.c.l.b16 %v246
        %v417 = vunpack.c.l.b16 %v247
        %v418 = vunpack.c.l.b16 %v248
        %v419 = vunpack.c.l.b16 %v249
        %v420 = vunpack.c.l.b16 %v250
        %v421 = vunpack.c.l.b16 %v251
        %v422 = vunpack.c.l.b16 %v252
        %v423 = vunpack.c.l.b16 %v253
        %v424 = vunpack.c.l.b16 %v254
        %v425 = vunpack.c.l.b16 %v255
        %v426 = vunpack.c.l.b16 %v256
        %v427 = vunpack.c.l.b16 %v257
        %v428 = vunpack.c.l.b16 %v258
        %v429 = vunpack.c.l.b16 %v259
        %v430 = vunpack.c.l.b16 %v260
        %v431 = vunpack.c.l.b16 %v261
        %v432 = vunpack.c.l.b16 %v262
        %v433 = vunpack.c.l.b16 %v263
        %v434 = vunpack.c.l.b16 %v264
        %v435 = vunpack.c.l.b16 %v265
        %v436 = vunpack.c.l.b16 %v266
        %v437 = vpack.c.b16 %v382, %v381
        %v438 = vpack.c.b16 %v384, %v383
        %v439 = vpack.c.b16 %v386, %v385
        %v440 = vpack.c.b16 %v388, %v387
        %v441 = vpack.c.b16 %v390, %v389
        %v442 = vpack.c.b16 %v392, %v391
        %v443 = vpack.c.b16 %v394, %v393
        %v444 = vpack.c.b16 %v396, %v395
        %v445 = vpack.c.b16 %v398, %v397
        %v446 = vpack.c.b16 %v400, %v399
        %v447 = vpack.c.b16 %v402, %v401
        %v448 = vpack.c.b16 %v404, %v403
        %v449 = vpack.c.b16 %v406, %v405
        %v450 = vpack.c.b16 %v408, %v407
        %v451 = vpack.c.b16 %v410, %v409
        %v452 = vpack.c.b16 %v412, %v411
        %v453 = vpack.c.b16 %v414, %v413
        %v454 = vpack.c.b16 %v416, %v415
        %v455 = vpack.c.b16 %v418, %v417
        %v456 = vpack.c.b16 %v420, %v419
        %v457 = vpack.c.b16 %v422, %v421
        %v458 = vpack.c.b16 %v424, %v423
        %v459 = vpack.c.b16 %v426, %v425
        %v460 = vpack.c.b16 %v428, %v427
        %v461 = vpack.c.b16 %v430, %v429
        %v462 = vpack.c.b16 %v432, %v431
        %v463 = vpack.c.b16 %v434, %v433
        %v464 = vpack.c.b16 %v436, %v435
        %vm493 = vcmask 523264
        %v495 = vsel %vm493, %v307, 0
        %v498 = vsel %vm493, %v311, 0
        %v501 = vsel %vm493, %v315, 0
        %503 = vmatprep.subr.bf16.mxu0 0
        %504 = vmatpush1.bf16.msra.mxu0 %v437
        %505 = vmatprep.subr.bf16.mxu0 0
        %506 = vmatpush1.bf16.msra.mxu0 %v438
        %507 = vmatprep.subr.bf16.mxu0 0
        %508 = vmatpush1.bf16.msra.mxu0 %v439
        %509 = vmatprep.subr.bf16.mxu0 0
        %510 = vmatpush1.bf16.msra.mxu0 %v440
        %511 = vmatprep.subr.bf16.mxu0 0
        %512 = vmatpush1.bf16.msra.mxu0 %v441
        %513 = vmatprep.subr.bf16.mxu0 0
        %514 = vmatpush1.bf16.msra.mxu0 %v442
        %515 = vmatprep.subr.bf16.mxu0 0
        %516 = vmatpush1.bf16.msra.mxu0 %v443
        %517 = vmatprep.subr.bf16.mxu0 0
        %518 = vmatpush1.bf16.msra.mxu0 %v444
        %519 = vmatprep.subr.bf16.mxu0 0
        %520 = vmatpush1.bf16.msra.mxu0 %v445
        %521 = vmatprep.subr.bf16.mxu0 0
        %522 = vmatpush1.bf16.msra.mxu0 %v446
        %523 = vmatprep.subr.bf16.mxu0 0
        %524 = vmatpush1.bf16.msra.mxu0 %v447
        %525 = vmatprep.subr.bf16.mxu0 0
        %526 = vmatpush1.bf16.msra.mxu0 %v448
        %527 = vmatprep.subr.bf16.mxu0 0
        %528 = vmatpush1.bf16.msra.mxu0 %v449
        %529 = vmatprep.subr.bf16.mxu0 0
        %530 = vmatpush1.bf16.msra.mxu0 %v450
        %531 = vmatprep.subr.bf16.mxu0 0
        %532 = vmatpush1.bf16.msra.mxu0 %v451
        %533 = vmatprep.subr.bf16.mxu0 0
        %534 = vmatpush1.bf16.msra.mxu0 %v452
        %535 = vmatprep.mubr.bf16.mxu0 %v305
        %536 = vmatmul.mubr.bf16.gmra.mrb[0].mxu0 %v304
        %v537 = vpop.f32.mrb[0].mxu0
        %v538 = vadd.f32 %v272, %v537
        %v539 = vpop.f32.mrb[0].mxu0
        %v540 = vpop.f32.mrb[0].mxu0
        %v541 = vadd.f32 %v272, %v540
        %v542 = vpop.f32.mrb[0].mxu0
        %543 = vmatprep.mubr.bf16.mxu0 %v309
        %544 = vmatmul.mubr.bf16.gmra.mrb[0].mxu0 %v308
        %v545 = vpop.f32.mrb[0].mxu0
        %v546 = vadd.f32 %v272, %v545
        %v547 = vpop.f32.mrb[0].mxu0
        %v548 = vpop.f32.mrb[0].mxu0
        %v549 = vadd.f32 %v272, %v548
        %v550 = vpop.f32.mrb[0].mxu0
        %551 = vmatprep.mubr.bf16.mxu0 %v313
        %552 = vmatmul.mubr.bf16.gmra.mrb[0].mxu0 %v312
        %v553 = vpop.f32.mrb[0].mxu0
        %v554 = vadd.f32 %v272, %v553
        %v555 = vpop.f32.mrb[0].mxu0
        %v556 = vpop.f32.mrb[0].mxu0
        %v557 = vpop.f32.mrb[0].mxu0
        %558 = vdwg.mxu0
        %559 = vmatprep.subr.bf16.mxu0 0
        %560 = vmatpush1.bf16.msra.mxu0 %v453
        %561 = vmatprep.subr.bf16.mxu0 0
        %562 = vmatpush1.bf16.msra.mxu0 %v454
        %563 = vmatprep.subr.bf16.mxu0 0
        %564 = vmatpush1.bf16.msra.mxu0 %v455
        %565 = vmatprep.subr.bf16.mxu0 0
        %566 = vmatpush1.bf16.msra.mxu0 %v456
        %567 = vmatprep.subr.bf16.mxu0 0
        %568 = vmatpush1.bf16.msra.mxu0 %v457
        %569 = vmatprep.subr.bf16.mxu0 0
        %570 = vmatpush1.bf16.msra.mxu0 %v458
        %571 = vmatprep.subr.bf16.mxu0 0
        %572 = vmatpush1.bf16.msra.mxu0 %v459
        %573 = vmatprep.subr.bf16.mxu0 0
        %574 = vmatpush1.bf16.msra.mxu0 %v460
        %575 = vmatprep.subr.bf16.mxu0 0
        %576 = vmatpush1.bf16.msra.mxu0 %v461
        %577 = vmatprep.subr.bf16.mxu0 0
        %578 = vmatpush1.bf16.msra.mxu0 %v462
        %579 = vmatprep.subr.bf16.mxu0 0
        %580 = vmatpush1.bf16.msra.mxu0 %v463
        %581 = vmatprep.subr.bf16.mxu0 0
        %582 = vmatpush1.bf16.msra.mxu0 %v464
        %583 = vmatprep.subr.bf16.mxu0 0
        %584 = vmatpush1.bf16.msra.mxu0 0
        %585 = vmatprep.subr.bf16.mxu0 0
        %586 = vmatpush1.bf16.msra.mxu0 0
        %587 = vmatprep.subr.bf16.mxu0 0
        %588 = vmatpush1.bf16.msra.mxu0 0
        %589 = vmatprep.subr.bf16.mxu0 0
        %590 = vmatpush1.bf16.msra.mxu0 0
        %591 = vmatprep.mubr.bf16.mxu0 %v495
        %592 = vmatmul.mubr.bf16.gmra.mrb[0].mxu0 %v306
        %v593 = vpop.f32.mrb[0].mxu0
        %v594 = vadd.f32 %v538, %v593
        %v595 = vpop.f32.mrb[0].mxu0
        %v596 = vpop.f32.mrb[0].mxu0
        %v597 = vadd.f32 %v541, %v596
        %v598 = vpop.f32.mrb[0].mxu0
        %599 = vmatprep.mubr.bf16.mxu0 %v498
        %600 = vmatmul.mubr.bf16.gmra.mrb[0].mxu0 %v310
        %v601 = vpop.f32.mrb[0].mxu0
        %v602 = vadd.f32 %v546, %v601
        %v603 = vpop.f32.mrb[0].mxu0
        %v604 = vpop.f32.mrb[0].mxu0
        %v605 = vadd.f32 %v549, %v604
        %v606 = vpop.f32.mrb[0].mxu0
        %607 = vmatprep.mubr.bf16.mxu0 %v501
        %608 = vmatmul.mubr.bf16.gmra.mrb[0].mxu0 %v314
        %v609 = vpop.f32.mrb[0].mxu0
        %v610 = vadd.f32 %v554, %v609
        %v611 = vpop.f32.mrb[0].mxu0
        %v612 = vpop.f32.mrb[0].mxu0
        %v613 = vpop.f32.mrb[0].mxu0
        %614 = vdwg.mxu0
        %v615 = vmax.f32 %v594, 0.0
        %v616 = vmax.f32 %v597, 0.0
        %v617 = vmax.f32 %v602, 0.0
        %v618 = vmax.f32 %v605, 0.0
        %v619 = vmax.f32 %v610, 0.0
        %v620 = vpack.c.bf16 %v616, %v615
        %v621 = vpack.c.bf16 %v618, %v617
        %v622 = vpack.c.bf16 %v619, %v619
        %v626 = vunpack.c.l.b16 %v620
        %v627 = vunpack.c.h.b16 %v620
        %v628 = vunpack.c.l.b16 %v621
        %v629 = vunpack.c.h.b16 %v621
        %v630 = vunpack.c.l.b16 %v622
        %v631 = vpack.c.b16 %v626, %v626
        %v632 = vpack.c.b16 %v627, %v627
        %v633 = vpack.c.b16 %v628, %v628
        %v634 = vpack.c.b16 %v629, %v629
        %v635 = vpack.c.b16 %v630, %v630
        %vm641 = vcmask 519168
        %642 = vst.msk [vmem:[%s177] sm:$0xf] %vm641, %v631
        %643 = vst.msk [vmem:[%s177 + $0x4] sm:$0xf] %vm641, %v632
        %644 = vst.msk [vmem:[%s177 + $0x8] sm:$0xf] %vm641, %v633
        %645 = vst.msk [vmem:[%s177 + $0xc] sm:$0xf] %vm641, %v634
        %646 = vst.msk [vmem:[%s177 + $0x10] sm:$0xf] %vm641, %v635
        %s647 = sand.u32 %s90, 1
        %s648 = sand.u32 %s90, 1
        %s649 = smul.addr %s648, 20
        %s650 = scalar_lea.vmem [#allocation2], %s649
        // Predicated region
        $region33: #{_lambda_.14} parent=31 // pred_check
          %p651 = pneg %p100
        $region34: #{_lambda_.14} parent=31 // pred_check_branch
          %653 = sbr.rel (%p651) target = $region36
        $region35: #{_lambda_.14} parent=31 // pred_region
          %s654 = smul.u32 5, %s14
          %s655 = ssub.s32 9, %s654
          %p656 = scmp.lt.s32.totalorder %s655, 5
          %s657 = scalar_select %p656, %s655, 5
          %s658 = smul.u32 64, %s657
          %p659 = scmp.ne.s32.totalorder 0, %s658
          %s660 = smul.addr %s654, 4
          %s661 = scalar_lea.vmem %s3, %s660
          // Predicated region
          $region37: #{_lambda_.14} parent=35 // pred_check
            %p662 = pneg %p659
          $region38: #{_lambda_.14} parent=35 // pred_check_branch
            %664 = sbr.rel (%p662) target = $region40
          $region39: #{_lambda_.14} parent=35 // pred_region
            // Predicated region
            $region41: #{_lambda_.14} parent=39 // pred_check
              _
            $region42: #{_lambda_.14} parent=39 // pred_check_branch
              %666 = sbr.rel target = $region44
            $region43: #{_lambda_.14} parent=39 // pred_region
              // Predicated region
              $region63: #{_lambda_.14} parent=43 // pred_check
                _
              $region64: #{_lambda_.14} parent=43 // pred_check_branch
                %724 = sbr.rel (0) target = $region66
              $region65: #{_lambda_.14} parent=43 // pred_region
                %s726 = sdiv.u32.pop %s657, 5
                %s727 = srem.u32.pop %s657, 5
                // While loop
                $region67: #{_lambda_.14} parent=65 // loop_pre_header
                  _
                $region68: #{_lambda_.14} parent=65 // loop_header
                  %s729 = sphi 0, %s731
                  %p730 = scmp.ge.s32.totalorder %s729, %s726
                  %s734 = sphi 0, %s749
                  %s735 = sphi %s650, %s752
                  %s736 = sphi %s661, %s753
                $region69: #{_lambda_.14} parent=65 // loop_header_branch
                  %733 = sbr.rel (%p730) target = $region73
                $region70: #{_lambda_.14} parent=65 // loop_body
                  %v737 = vld [vmem:[%s735] sm:$0xf]
                  %738 = vst [vmem:[%s736] sm:$0xf] %v737
                  %v739 = vld [vmem:[%s735 + $0x4] sm:$0xf]
                  %740 = vst [vmem:[%s736 + $0x4] sm:$0xf] %v739
                  %v741 = vld [vmem:[%s735 + $0x8] sm:$0xf]
                  %742 = vst [vmem:[%s736 + $0x8] sm:$0xf] %v741
                  %v743 = vld [vmem:[%s735 + $0xc] sm:$0xf]
                  %744 = vst [vmem:[%s736 + $0xc] sm:$0xf] %v743
                  %v745 = vld [vmem:[%s735 + $0x10] sm:$0xf]
                  %746 = vst [vmem:[%s736 + $0x10] sm:$0xf] %v745
                  %s747 = sadd.s32 1, %s734
                  %p748 = scmp.ge.s32.totalorder %s747, %s726
                  %s749 = scalar_select %p748, 0, %s747
                  %s750 = smul.u32 %s749, 20
                  %s751 = smul.u32 %s749, 20
                  %s752 = scalar_lea.vmem %s650, %s750 [#allocation2]
                  %s753 = scalar_lea.vmem %s661, %s751
                $region71: #{_lambda_.14} parent=65 // loop_footer
                  %s731 = sadd.s32 %s729, 1
                $region72: #{_lambda_.14} parent=65 // loop_footer_branch
                  %728 = sbr.rel target = $region68
                $region73: #{_lambda_.14} parent=65 // loop_exit
                  _
                %s754 = sdiv.u32.pop %s657, 5
                %s755 = srem.u32.pop %s657, 5
                %s756 = smul.u32 %s754, 5
                %s757 = smul.u32 4, %s756
                %s758 = scalar_lea.vmem %s650, %s757 [#allocation2]
                %s759 = smul.u32 4, %s756
                %s760 = scalar_lea.vmem %s661, %s759
                // While loop
                $region74: #{_lambda_.14} parent=65 // loop_pre_header
                  _
                $region75: #{_lambda_.14} parent=65 // loop_header
                  %s762 = sphi 0, %s764
                  %p763 = scmp.ge.s32.totalorder %s762, %s755
                  %s767 = sphi 0, %s774
                  %s768 = sphi %s758, %s777
                  %s769 = sphi %s760, %s778
                $region76: #{_lambda_.14} parent=65 // loop_header_branch
                  %766 = sbr.rel (%p763) target = $region80
                $region77: #{_lambda_.14} parent=65 // loop_body
                  %v770 = vld [vmem:[%s768] sm:$0xf]
                  %771 = vst [vmem:[%s769] sm:$0xf] %v770
                  %s772 = sadd.s32 1, %s767
                  %p773 = scmp.ge.s32.totalorder %s772, %s755
                  %s774 = scalar_select %p773, 0, %s772
                  %s775 = smul.u32 %s774, 4
                  %s776 = smul.u32 %s774, 4
                  %s777 = scalar_lea.vmem %s758, %s775 [#allocation2]
                  %s778 = scalar_lea.vmem %s760, %s776
                $region78: #{_lambda_.14} parent=65 // loop_footer
                  %s764 = sadd.s32 %s762, 1
                $region79: #{_lambda_.14} parent=65 // loop_footer_branch
                  %761 = sbr.rel target = $region75
                $region80: #{_lambda_.14} parent=65 // loop_exit
                  _
              $region66: #{_lambda_.14} parent=43 // pred_fallthru
                _
            $region44: #{_lambda_.14} parent=39 // pred_fallthru
              _
            // Predicated region
            $region45: #{_lambda_.14} parent=39 // pred_check
              _
            $region46: #{_lambda_.14} parent=39 // pred_check_branch
              %668 = sbr.rel (0) target = $region48
            $region47: #{_lambda_.14} parent=39 // pred_region
              %s670 = sdiv.u32.pop %s657, 5
              %s671 = srem.u32.pop %s657, 5
              // While loop
              $region49: #{_lambda_.14} parent=47 // loop_pre_header
                _
              $region50: #{_lambda_.14} parent=47 // loop_header
                %s673 = sphi 0, %s675
                %p674 = scmp.ge.s32.totalorder %s673, %s670
                %s678 = sphi 0, %s693
                %s679 = sphi %s650, %s696
                %s680 = sphi %s661, %s697
              $region51: #{_lambda_.14} parent=47 // loop_header_branch
                %677 = sbr.rel (%p674) target = $region55
              $region52: #{_lambda_.14} parent=47 // loop_body
                %v681 = vld [vmem:[%s679] sm:$0xf]
                %682 = vst [vmem:[%s680] sm:$0xf] %v681
                %v683 = vld [vmem:[%s679 + $0x4] sm:$0xf]
                %684 = vst [vmem:[%s680 + $0x4] sm:$0xf] %v683
                %v685 = vld [vmem:[%s679 + $0x8] sm:$0xf]
                %686 = vst [vmem:[%s680 + $0x8] sm:$0xf] %v685
                %v687 = vld [vmem:[%s679 + $0xc] sm:$0xf]
                %688 = vst [vmem:[%s680 + $0xc] sm:$0xf] %v687
                %v689 = vld [vmem:[%s679 + $0x10] sm:$0xf]
                %690 = vst [vmem:[%s680 + $0x10] sm:$0xf] %v689
                %s691 = sadd.s32 1, %s678
                %p692 = scmp.ge.s32.totalorder %s691, %s670
                %s693 = scalar_select %p692, 0, %s691
                %s694 = smul.u32 %s693, 20
                %s695 = smul.u32 %s693, 20
                %s696 = scalar_lea.vmem %s650, %s694 [#allocation2]
                %s697 = scalar_lea.vmem %s661, %s695
              $region53: #{_lambda_.14} parent=47 // loop_footer
                %s675 = sadd.s32 %s673, 1
              $region54: #{_lambda_.14} parent=47 // loop_footer_branch
                %672 = sbr.rel target = $region50
              $region55: #{_lambda_.14} parent=47 // loop_exit
                _
              %s698 = sdiv.u32.pop %s657, 5
              %s699 = srem.u32.pop %s657, 5
              %s700 = smul.u32 %s698, 5
              %s701 = smul.u32 4, %s700
              %s702 = scalar_lea.vmem %s650, %s701 [#allocation2]
              %s703 = smul.u32 4, %s700
              %s704 = scalar_lea.vmem %s661, %s703
              // While loop
              $region56: #{_lambda_.14} parent=47 // loop_pre_header
                _
              $region57: #{_lambda_.14} parent=47 // loop_header
                %s706 = sphi 0, %s708
                %p707 = scmp.ge.s32.totalorder %s706, %s699
                %s711 = sphi 0, %s718
                %s712 = sphi %s702, %s721
                %s713 = sphi %s704, %s722
              $region58: #{_lambda_.14} parent=47 // loop_header_branch
                %710 = sbr.rel (%p707) target = $region62
              $region59: #{_lambda_.14} parent=47 // loop_body
                %v714 = vld [vmem:[%s712] sm:$0xf]
                %715 = vst [vmem:[%s713] sm:$0xf] %v714
                %s716 = sadd.s32 1, %s711
                %p717 = scmp.ge.s32.totalorder %s716, %s699
                %s718 = scalar_select %p717, 0, %s716
                %s719 = smul.u32 %s718, 4
                %s720 = smul.u32 %s718, 4
                %s721 = scalar_lea.vmem %s702, %s719 [#allocation2]
                %s722 = scalar_lea.vmem %s704, %s720
              $region60: #{_lambda_.14} parent=47 // loop_footer
                %s708 = sadd.s32 %s706, 1
              $region61: #{_lambda_.14} parent=47 // loop_footer_branch
                %705 = sbr.rel target = $region57
              $region62: #{_lambda_.14} parent=47 // loop_exit
                _
            $region48: #{_lambda_.14} parent=39 // pred_fallthru
              _
          $region40: #{_lambda_.14} parent=35 // pred_fallthru
            _
          %779 = vnop
        $region36: #{_lambda_.14} parent=31 // pred_fallthru
          _
      $region32: #{_lambda_.14} parent=5 // pred_fallthru
        _
      %p780 = scmp.le.s32.totalorder 2, %s9
      // Predicated region
      $region81: #{_lambda_.14} parent=5 // pred_check
        %p781 = pneg %p780
      $region82: #{_lambda_.14} parent=5 // pred_check_branch
        %783 = sbr.rel (%p781) target = $region84
      $region83: #{_lambda_.14} parent=5 // pred_region
        %s784 = ssub.s32 %s9, 2
        // Predicated region
        $region85: #{_lambda_.14} parent=83 // pred_check
          %p785 = pneg %p106
        $region86: #{_lambda_.14} parent=83 // pred_check_branch
          %787 = sbr.rel (%p785) target = $region88
        $region87: #{_lambda_.14} parent=83 // pred_region
          %s788 = sand.u32 %s91, 1
          %s789 = sand.u32 %s91, 1
          %s790 = smul.addr %s789, 20
          %s791 = scalar_lea.vmem [#allocation2], %s790
        $region88: #{_lambda_.14} parent=83 // pred_fallthru
          _
      $region84: #{_lambda_.14} parent=5 // pred_fallthru
        _
    $region6: #{_lambda_.14} parent=1 // loop_footer
      %s13 = sadd.s32 1, %s9
    $region7: #{_lambda_.14} parent=1 // loop_footer_branch
      %8 = sbr.rel target = $region3
    $region8: #{_lambda_.14} parent=1 // loop_exit
      _

// kernel: _lambda_.16
$region0: #{_lambda_.16}
  #allocation0 [shape = 'u32[]', space=smem, size = 0x4, offset = 0x4, fixed_abs, tag = 'smem constant byte address 0x4 - core index']
  #allocation1 [shape = 'u32[144,128]{1,0:T(1,128)}', space=vmem, size = 0x12000, scoped, tag = 'internal scratch']
  %s0 = inlined_call_operand.vmem [shape: bf16[32,576], index: 0, kind: input, shape index: {}]
  %s1 = inlined_call_operand.vmem [shape: bf16[32,576], index: 1, kind: input, shape index: {}]
  %s2 = inlined_call_operand.vmem [shape: bf16[576,96], index: 2, kind: input, shape index: {}]
  %s3 = inlined_call_operand.vmem [shape: bf16[576,96], index: 3, kind: input, shape index: {}]
  %s4 = inlined_call_operand.vmem [shape: f32[1,96], index: 4, kind: input, shape index: {}]
  %s5 = inlined_call_operand.vmem [shape: f32[1,96], index: 5, kind: input, shape index: {}]
  %s6 = inlined_call_operand.vmem [shape: bf16[32,192], index: 6, kind: output, shape index: {}]
  %s7 = sld [smem:[#allocation0]]
  $region57: #{_lambda_.16} parent=0
    _
  %s9 = ssub.s32 1, %s7
  %s10 = scalar_select 0, %s9, %s7
  loop: start=0, step=1, limit=4
  $region2: #{_lambda_.16} parent=0 // loop_pre_header
    _
  $region3: #{_lambda_.16} parent=0 // loop_header
    %s12 = sphi 0, %s16
    %p13 = scmp.ge.s32.totalorder %s12, 4
    %s22 = sphi 0, %s24
    %s25 = sphi 0, %s22
    %s26 = sphi 0, %s25
    %s42 = sphi 0, %s26
    %s48 = sphi 0, %s50
    %s51 = sphi 0, %s48
    %s52 = sphi 0, %s51
    %s68 = sphi 0, %s52
    %s72 = sphi 0, %s72
    %s74 = sphi 0, %s72
    %s75 = sphi 0, %s74
    %s89 = sphi 0, %s75
    %s93 = sphi 0, %s93
    %s95 = sphi 0, %s93
    %s96 = sphi 0, %s95
    %s110 = sphi 0, %s96
    %s114 = sphi 0, %s114
    %s116 = sphi 0, %s114
    %s117 = sphi 0, %s116
    %s131 = sphi 0, %s117
    %s135 = sphi 0, %s135
    %s137 = sphi 0, %s135
    %s138 = sphi 0, %s137
    %s152 = sphi 0, %s138
    %s158 = sphi 0, %s160
    %s161 = sphi 0, %s158
    %s162 = sphi 0, %s161
    %s178 = sphi 0, %s162
  $region4: #{_lambda_.16} parent=0 // loop_header_branch
    %15 = sbr.rel (%p13) target = $region8
  $region5: #{_lambda_.16} parent=0 // loop_body
    %s17 = ssub.s32 %s12, 1
    %s18 = ssub.s32 %s12, 2
    %s19 = sadd.s32 %s12, 1
    %s20 = ssub.s32 %s12, %s19
    %p21 = scmp.eq.s32.totalorder %s20, 0
    %s23 = sadd.s32 %s22, 1
    %s24 = scalar_select %p21, %s22, %s23
    %p27 = pneg %p21
    %p28 = scmp.eq.s32.totalorder %s12, 1
    %p29 = por %p27, %p28
    %p30 = scmp.ne.s32.totalorder %s22, %s25
    %p31 = scmp.eq.s32.totalorder %s12, 0
    %p32 = por %p30, %p31
    %p33 = scmp.ne.s32.totalorder %s22, %s25
    %p34 = scmp.eq.s32.totalorder %s17, 1
    %p35 = por %p33, %p34
    %p36 = scmp.ne.s32.totalorder %s25, %s26
    %p37 = scmp.eq.s32.totalorder %s17, 0
    %p38 = por %p36, %p37
    %p39 = scmp.ne.s32.totalorder %s25, %s26
    %p40 = scmp.eq.s32.totalorder %s18, 1
    %p41 = por %p39, %p40
    %p43 = scmp.ne.s32.totalorder %s26, %s42
    %p44 = scmp.eq.s32.totalorder %s18, 0
    %p45 = por %p43, %p44
    %s46 = ssub.s32 %s12, %s19
    %p47 = scmp.eq.s32.totalorder %s46, 0
    %s49 = sadd.s32 %s48, 1
    %s50 = scalar_select %p47, %s48, %s49
    %p53 = pneg %p47
    %p54 = scmp.eq.s32.totalorder %s12, 1
    %p55 = por %p53, %p54
    %p56 = scmp.ne.s32.totalorder %s48, %s51
    %p57 = scmp.eq.s32.totalorder %s12, 0
    %p58 = por %p56, %p57
    %p59 = scmp.ne.s32.totalorder %s48, %s51
    %p60 = scmp.eq.s32.totalorder %s17, 1
    %p61 = por %p59, %p60
    %p62 = scmp.ne.s32.totalorder %s51, %s52
    %p63 = scmp.eq.s32.totalorder %s17, 0
    %p64 = por %p62, %p63
    %p65 = scmp.ne.s32.totalorder %s51, %s52
    %p66 = scmp.eq.s32.totalorder %s18, 1
    %p67 = por %p65, %p66
    %p69 = scmp.ne.s32.totalorder %s52, %s68
    %p70 = scmp.eq.s32.totalorder %s18, 0
    %p71 = por %p69, %p70
    %s73 = sadd.s32 %s72, 1
    %p76 = scmp.eq.s32.totalorder %s12, 1
    %p77 = scmp.ne.s32.totalorder %s72, %s74
    %p78 = scmp.eq.s32.totalorder %s12, 0
    %p79 = por %p77, %p78
    %p80 = scmp.ne.s32.totalorder %s72, %s74
    %p81 = scmp.eq.s32.totalorder %s17, 1
    %p82 = por %p80, %p81
    %p83 = scmp.ne.s32.totalorder %s74, %s75
    %p84 = scmp.eq.s32.totalorder %s17, 0
    %p85 = por %p83, %p84
    %p86 = scmp.ne.s32.totalorder %s74, %s75
    %p87 = scmp.eq.s32.totalorder %s18, 1
    %p88 = por %p86, %p87
    %p90 = scmp.ne.s32.totalorder %s75, %s89
    %p91 = scmp.eq.s32.totalorder %s18, 0
    %p92 = por %p90, %p91
    %s94 = sadd.s32 %s93, 1
    %p97 = scmp.eq.s32.totalorder %s12, 1
    %p98 = scmp.ne.s32.totalorder %s93, %s95
    %p99 = scmp.eq.s32.totalorder %s12, 0
    %p100 = por %p98, %p99
    %p101 = scmp.ne.s32.totalorder %s93, %s95
    %p102 = scmp.eq.s32.totalorder %s17, 1
    %p103 = por %p101, %p102
    %p104 = scmp.ne.s32.totalorder %s95, %s96
    %p105 = scmp.eq.s32.totalorder %s17, 0
    %p106 = por %p104, %p105
    %p107 = scmp.ne.s32.totalorder %s95, %s96
    %p108 = scmp.eq.s32.totalorder %s18, 1
    %p109 = por %p107, %p108
    %p111 = scmp.ne.s32.totalorder %s96, %s110
    %p112 = scmp.eq.s32.totalorder %s18, 0
    %p113 = por %p111, %p112
    %s115 = sadd.s32 %s114, 1
    %p118 = scmp.eq.s32.totalorder %s12, 1
    %p119 = scmp.ne.s32.totalorder %s114, %s116
    %p120 = scmp.eq.s32.totalorder %s12, 0
    %p121 = por %p119, %p120
    %p122 = scmp.ne.s32.totalorder %s114, %s116
    %p123 = scmp.eq.s32.totalorder %s17, 1
    %p124 = por %p122, %p123
    %p125 = scmp.ne.s32.totalorder %s116, %s117
    %p126 = scmp.eq.s32.totalorder %s17, 0
    %p127 = por %p125, %p126
    %p128 = scmp.ne.s32.totalorder %s116, %s117
    %p129 = scmp.eq.s32.totalorder %s18, 1
    %p130 = por %p128, %p129
    %p132 = scmp.ne.s32.totalorder %s117, %s131
    %p133 = scmp.eq.s32.totalorder %s18, 0
    %p134 = por %p132, %p133
    %s136 = sadd.s32 %s135, 1
    %p139 = scmp.eq.s32.totalorder %s12, 1
    %p140 = scmp.ne.s32.totalorder %s135, %s137
    %p141 = scmp.eq.s32.totalorder %s12, 0
    %p142 = por %p140, %p141
    %p143 = scmp.ne.s32.totalorder %s135, %s137
    %p144 = scmp.eq.s32.totalorder %s17, 1
    %p145 = por %p143, %p144
    %p146 = scmp.ne.s32.totalorder %s137, %s138
    %p147 = scmp.eq.s32.totalorder %s17, 0
    %p148 = por %p146, %p147
    %p149 = scmp.ne.s32.totalorder %s137, %s138
    %p150 = scmp.eq.s32.totalorder %s18, 1
    %p151 = por %p149, %p150
    %p153 = scmp.ne.s32.totalorder %s138, %s152
    %p154 = scmp.eq.s32.totalorder %s18, 0
    %p155 = por %p153, %p154
    %s156 = ssub.s32 %s12, %s19
    %p157 = scmp.eq.s32.totalorder %s156, 0
    %s159 = sadd.s32 %s158, 1
    %s160 = scalar_select %p157, %s158, %s159
    %p163 = pneg %p157
    %p164 = scmp.eq.s32.totalorder %s12, 1
    %p165 = por %p163, %p164
    %p166 = scmp.ne.s32.totalorder %s158, %s161
    %p167 = scmp.eq.s32.totalorder %s12, 0
    %p168 = por %p166, %p167
    %p169 = scmp.ne.s32.totalorder %s158, %s161
    %p170 = scmp.eq.s32.totalorder %s17, 1
    %p171 = por %p169, %p170
    %p172 = scmp.ne.s32.totalorder %s161, %s162
    %p173 = scmp.eq.s32.totalorder %s17, 0
    %p174 = por %p172, %p173
    %p175 = scmp.ne.s32.totalorder %s161, %s162
    %p176 = scmp.eq.s32.totalorder %s18, 1
    %p177 = por %p175, %p176
    %p179 = scmp.ne.s32.totalorder %s162, %s178
    %p180 = scmp.eq.s32.totalorder %s18, 0
    %p181 = por %p179, %p180
    %p182 = scmp.le.s32.totalorder 1, %s12
    %p183 = scmp.lt.s32.totalorder %s12, 3
    %p184 = pnand %p182, %p183
    %p185 = pneg %p184
    // Predicated region
    $region9: #{_lambda_.16} parent=5 // pred_check
      _
    $region10: #{_lambda_.16} parent=5 // pred_check_branch
      %187 = sbr.rel (%p184) target = $region12
    $region11: #{_lambda_.16} parent=5 // pred_region
      %s188 = ssub.s32 %s12, 1
      // Predicated region
      $region13: #{_lambda_.16} parent=11 // pred_check
        %p189 = pneg %p85
      $region14: #{_lambda_.16} parent=11 // pred_check_branch
        %191 = sbr.rel (%p189) target = $region16
      $region15: #{_lambda_.16} parent=11 // pred_region
        _
      $region16: #{_lambda_.16} parent=11 // pred_fallthru
        _
      // Predicated region
      $region17: #{_lambda_.16} parent=11 // pred_check
        %p192 = pneg %p106
      $region18: #{_lambda_.16} parent=11 // pred_check_branch
        %194 = sbr.rel (%p192) target = $region20
      $region19: #{_lambda_.16} parent=11 // pred_region
        _
      $region20: #{_lambda_.16} parent=11 // pred_fallthru
        _
      // Predicated region
      $region21: #{_lambda_.16} parent=11 // pred_check
        %p195 = pneg %p127
      $region22: #{_lambda_.16} parent=11 // pred_check_branch
        %197 = sbr.rel (%p195) target = $region24
      $region23: #{_lambda_.16} parent=11 // pred_region
        _
      $region24: #{_lambda_.16} parent=11 // pred_fallthru
        _
      // Predicated region
      $region25: #{_lambda_.16} parent=11 // pred_check
        %p198 = pneg %p148
      $region26: #{_lambda_.16} parent=11 // pred_check_branch
        %200 = sbr.rel (%p198) target = $region28
      $region27: #{_lambda_.16} parent=11 // pred_region
        _
      $region28: #{_lambda_.16} parent=11 // pred_fallthru
        _
    $region12: #{_lambda_.16} parent=5 // pred_fallthru
      _
    %p201 = scmp.lt.s32.totalorder %s12, 2
    // Predicated region
    $region29: #{_lambda_.16} parent=5 // pred_check
      %p202 = pneg %p201
    $region30: #{_lambda_.16} parent=5 // pred_check_branch
      %204 = sbr.rel (%p202) target = $region32
    $region31: #{_lambda_.16} parent=5 // pred_region
      // Predicated region
      $region33: #{_lambda_.16} parent=31 // pred_check
        %p205 = pneg %p32
      $region34: #{_lambda_.16} parent=31 // pred_check_branch
        %207 = sbr.rel (%p205) target = $region36
      $region35: #{_lambda_.16} parent=31 // pred_region
        %s208 = smul.u32 2, %s12
        %p209 = scmp.lt.s32.totalorder %s208, 3
        %s210 = scalar_select %p209, %s208, 3
        %s211 = smul.addr %s210, 5
        %s212 = smul.addr %s211, 4
        %s213 = scalar_lea.vmem %s0, %s212
        %s214 = smul.u32 2, %s12
      $region36: #{_lambda_.16} parent=31 // pred_fallthru
        _
      // Predicated region
      $region37: #{_lambda_.16} parent=31 // pred_check
        %p215 = pneg %p58
      $region38: #{_lambda_.16} parent=31 // pred_check_branch
        %217 = sbr.rel (%p215) target = $region40
      $region39: #{_lambda_.16} parent=31 // pred_region
        %s218 = smul.u32 2, %s12
        %p219 = scmp.lt.s32.totalorder %s218, 3
        %s220 = scalar_select %p219, %s218, 3
        %s221 = smul.addr %s220, 5
        %s222 = smul.addr %s221, 4
        %s223 = scalar_lea.vmem %s1, %s222
        %s224 = smul.u32 2, %s12
      $region40: #{_lambda_.16} parent=31 // pred_fallthru
        _
    $region32: #{_lambda_.16} parent=5 // pred_fallthru
      _
    %p225 = scmp.le.s32.totalorder 1, %s12
    %p226 = scmp.lt.s32.totalorder %s12, 3
    %p227 = pnand %p225, %p226
    %p228 = pneg %p227
    // Predicated region
    $region41: #{_lambda_.16} parent=5 // pred_check
      _
    $region42: #{_lambda_.16} parent=5 // pred_check_branch
      %230 = sbr.rel (%p227) target = $region44
    $region43: #{_lambda_.16} parent=5 // pred_region
      %s231 = ssub.s32 %s12, 1
      %s232 = smul.u32 2, %s17
      %p233 = scmp.lt.s32.totalorder %s232, 3
      %s234 = scalar_select %p233, %s232, 3
      %s235 = smul.addr %s234, 5
      %s236 = smul.addr %s235, 4
      %s237 = scalar_lea.vmem %s0, %s236
      %p238 = pneg %p38
      %p239 = pneg %p35
      %s240 = smul.u32 2, %s17
      %p241 = scmp.lt.s32.totalorder %s240, 3
      %s242 = scalar_select %p241, %s240, 3
      %s243 = smul.addr %s242, 5
      %s244 = smul.addr %s243, 4
      %s245 = scalar_lea.vmem %s1, %s244
      %p246 = pneg %p64
      %p247 = pneg %p61
      %p248 = pneg %p85
      %p249 = pneg %p82
      %p250 = pneg %p106
      %p251 = pneg %p103
      %p252 = pneg %p127
      %p253 = pneg %p124
      %p254 = pneg %p148
      %p255 = pneg %p145
      %p256 = pneg %p174
      %p257 = pneg %p171
      %s258 = smul.u32 2, %s17
      %p259 = scmp.lt.s32.totalorder %s258, 3
      %s260 = scalar_select %p259, %s258, 3
      %s261 = smul.addr %s260, 2
      %s262 = smul.addr %s261, 4
      %s263 = scalar_lea.vmem %s6, %s262
      %s264 = smul.u32 2, %s17
      %p265 = scmp.lt.s32.totalorder %s264, 3
      %s266 = scalar_select %p265, %s264, 3
      %s267 = smul.addr %s266, 5
      %s268 = smul.addr %s267, 4
      %s269 = scalar_lea.vmem %s0, %s268
      %s270 = smul.u32 2, %s17
      %s271 = smul.u32 2, %s17
      %p272 = scmp.lt.s32.totalorder %s271, 3
      %s273 = scalar_select %p272, %s271, 3
      %s274 = smul.addr %s273, 5
      %s275 = smul.addr %s274, 4
      %s276 = scalar_lea.vmem %s1, %s275
      %s277 = smul.u32 2, %s17
      %s278 = smul.u32 2, %s17
      %p279 = scmp.lt.s32.totalorder %s278, 3
      %s280 = scalar_select %p279, %s278, 3
      %s281 = smul.addr %s280, 2
      %s282 = smul.addr %s281, 4
      %s283 = scalar_lea.vmem %s6, %s282
      %s284 = smul.u32 2, %s17
      %v286 = vld [vmem:[%s269] sm:$0xff]
      %v287 = vld [vmem:[%s269 + $0x8] sm:$0xff]
      %v288 = vld [vmem:[%s269 + $0x10] sm:$0xf]
      %v289 = vld [vmem:[%s269 + $0x14] sm:$0xff]
      %v290 = vld [vmem:[%s269 + $0x1c] sm:$0xff]
      %v291 = vld [vmem:[%s269 + $0x24] sm:$0xf]
      %v292 = vld [vmem:[%s2] sm:$0xf]
      %v293 = vld [vmem:[%s2 + $0x4] sm:$0xf]
      %v294 = vld [vmem:[%s2 + $0x8] sm:$0xf]
      %v295 = vld [vmem:[%s2 + $0xc] sm:$0xf]
      %v296 = vld [vmem:[%s2 + $0x10] sm:$0xf]
      %v297 = vld [vmem:[%s2 + $0x14] sm:$0xf]
      %v298 = vld [vmem:[%s2 + $0x18] sm:$0xf]
      %v299 = vld [vmem:[%s2 + $0x1c] sm:$0xf]
      %v300 = vld [vmem:[%s2 + $0x20] sm:$0xf]
      %v301 = vld [vmem:[%s2 + $0x24] sm:$0xf]
      %v302 = vld [vmem:[%s2 + $0x28] sm:$0xf]
      %v303 = vld [vmem:[%s2 + $0x2c] sm:$0xf]
      %v304 = vld [vmem:[%s2 + $0x30] sm:$0xf]
      %v305 = vld [vmem:[%s2 + $0x34] sm:$0xf]
      %v306 = vld [vmem:[%s2 + $0x38] sm:$0xf]
      %v307 = vld [vmem:[%s2 + $0x3c] sm:$0xf]
      %v308 = vld [vmem:[%s2 + $0x40] sm:$0xf]
      %v309 = vld [vmem:[%s2 + $0x44] sm:$0xf]
      %v310 = vld [vmem:[%s2 + $0x48] sm:$0xf]
      %v311 = vld [vmem:[%s2 + $0x4c] sm:$0xf]
      %v312 = vld [vmem:[%s2 + $0x50] sm:$0xf]
      %v313 = vld [vmem:[%s2 + $0x54] sm:$0xf]
      %v314 = vld [vmem:[%s2 + $0x58] sm:$0xf]
      %v315 = vld [vmem:[%s2 + $0x5c] sm:$0xf]
      %v316 = vld [vmem:[%s2 + $0x60] sm:$0xf]
      %v317 = vld [vmem:[%s2 + $0x64] sm:$0xf]
      %v318 = vld [vmem:[%s2 + $0x68] sm:$0xf]
      %v319 = vld [vmem:[%s2 + $0x6c] sm:$0xf]
      %v320 = vld [vmem:[%s2 + $0x70] sm:$0xf]
      %v321 = vld [vmem:[%s2 + $0x74] sm:$0xf]
      %v322 = vld [vmem:[%s2 + $0x78] sm:$0xf]
      %v323 = vld [vmem:[%s2 + $0x7c] sm:$0xf]
      %v324 = vld [vmem:[%s2 + $0x80] sm:$0xf]
      %v325 = vld [vmem:[%s2 + $0x84] sm:$0xf]
      %v326 = vld [vmem:[%s2 + $0x88] sm:$0xf]
      %v327 = vld [vmem:[%s2 + $0x8c] sm:$0xf]
      %v328 = vld [vmem:[%s2 + $0x90] sm:$0xf]
      %v329 = vld [vmem:[%s2 + $0x94] sm:$0xf]
      %v330 = vld [vmem:[%s2 + $0x98] sm:$0xf]
      %v331 = vld [vmem:[%s2 + $0x9c] sm:$0xf]
      %v332 = vld [vmem:[%s2 + $0xa0] sm:$0xf]
      %v333 = vld [vmem:[%s2 + $0xa4] sm:$0xf]
      %v334 = vld [vmem:[%s2 + $0xa8] sm:$0xf]
      %v335 = vld [vmem:[%s2 + $0xac] sm:$0xf]
      %v336 = vld [vmem:[%s2 + $0xb0] sm:$0xf]
      %v337 = vld [vmem:[%s2 + $0xb4] sm:$0xf]
      %v338 = vld [vmem:[%s2 + $0xb8] sm:$0xf]
      %v339 = vld [vmem:[%s2 + $0xbc] sm:$0xf]
      %v340 = vld [vmem:[%s2 + $0xc0] sm:$0xf]
      %v341 = vld [vmem:[%s2 + $0xc4] sm:$0xf]
      %v342 = vld [vmem:[%s2 + $0xc8] sm:$0xf]
      %v343 = vld [vmem:[%s2 + $0xcc] sm:$0xf]
      %v344 = vld [vmem:[%s2 + $0xd0] sm:$0xf]
      %v345 = vld [vmem:[%s2 + $0xd4] sm:$0xf]
      %v346 = vld [vmem:[%s2 + $0xd8] sm:$0xf]
      %v347 = vld [vmem:[%s2 + $0xdc] sm:$0xf]
      %v348 = vld [vmem:[%s2 + $0xe0] sm:$0xf]
      %v349 = vld [vmem:[%s2 + $0xe4] sm:$0xf]
      %v350 = vld [vmem:[%s2 + $0xe8] sm:$0xf]
      %v351 = vld [vmem:[%s2 + $0xec] sm:$0xf]
      %v352 = vld [vmem:[%s2 + $0xf0] sm:$0xf]
      %v353 = vld [vmem:[%s2 + $0xf4] sm:$0xf]
      %v354 = vld [vmem:[%s2 + $0xf8] sm:$0xf]
      %v355 = vld [vmem:[%s2 + $0xfc] sm:$0xf]
      %v356 = vld [vmem:[%s2 + $0x100] sm:$0xf]
      %v357 = vld [vmem:[%s2 + $0x104] sm:$0xf]
      %v358 = vld [vmem:[%s2 + $0x108] sm:$0xf]
      %v359 = vld [vmem:[%s2 + $0x10c] sm:$0xf]
      %v360 = vld [vmem:[%s2 + $0x110] sm:$0xf]
      %v361 = vld [vmem:[%s2 + $0x114] sm:$0xf]
      %v362 = vld [vmem:[%s2 + $0x118] sm:$0xf]
      %v363 = vld [vmem:[%s2 + $0x11c] sm:$0xf]
      %v364 = vld [vmem:[%s4] sm:$0x1]
      %v366 = vlaneseq
      %v367 = vshrl.u32 %v366, 7
      %v368 = vsub.s32 0, %v367
      %v369 = vrot.slane %v364, %v368
      %v377 = vunpack.c.l.b16 %v286
      %v378 = vunpack.c.h.b16 %v286
      %v379 = vunpack.c.l.b16 %v287
      %v380 = vunpack.c.h.b16 %v287
      %v381 = vunpack.c.l.b16 %v288
      %v382 = vunpack.c.l.b16 %v289
      %v383 = vunpack.c.h.b16 %v289
      %v384 = vunpack.c.l.b16 %v290
      %v385 = vunpack.c.h.b16 %v290
      %v386 = vunpack.c.l.b16 %v291
      %v387 = vpack.c.b16 %v382, %v377
      %v388 = vpack.c.b16 %v383, %v378
      %v389 = vpack.c.b16 %v384, %v379
      %v390 = vpack.c.b16 %v385, %v380
      %v391 = vpack.c.b16 %v386, %v381
      %v468 = vunpack.c.l.b16 %v292
      %v469 = vunpack.c.l.b16 %v293
      %v470 = vunpack.c.l.b16 %v294
      %v471 = vunpack.c.l.b16 %v295
      %v472 = vunpack.c.l.b16 %v296
      %v473 = vunpack.c.l.b16 %v297
      %v474 = vunpack.c.l.b16 %v298
      %v475 = vunpack.c.l.b16 %v299
      %v476 = vunpack.c.l.b16 %v300
      %v477 = vunpack.c.l.b16 %v301
      %v478 = vunpack.c.l.b16 %v302
      %v479 = vunpack.c.l.b16 %v303
      %v480 = vunpack.c.l.b16 %v304
      %v481 = vunpack.c.l.b16 %v305
      %v482 = vunpack.c.l.b16 %v306
      %v483 = vunpack.c.l.b16 %v307
      %v484 = vunpack.c.l.b16 %v308
      %v485 = vunpack.c.l.b16 %v309
      %v486 = vunpack.c.l.b16 %v310
      %v487 = vunpack.c.l.b16 %v311
      %v488 = vunpack.c.l.b16 %v312
      %v489 = vunpack.c.l.b16 %v313
      %v490 = vunpack.c.l.b16 %v314
      %v491 = vunpack.c.l.b16 %v315
      %v492 = vunpack.c.l.b16 %v316
      %v493 = vunpack.c.l.b16 %v317
      %v494 = vunpack.c.l.b16 %v318
      %v495 = vunpack.c.l.b16 %v319
      %v496 = vunpack.c.l.b16 %v320
      %v497 = vunpack.c.l.b16 %v321
      %v498 = vunpack.c.l.b16 %v322
      %v499 = vunpack.c.l.b16 %v323
      %v500 = vunpack.c.l.b16 %v324
      %v501 = vunpack.c.l.b16 %v325
      %v502 = vunpack.c.l.b16 %v326
      %v503 = vunpack.c.l.b16 %v327
      %v504 = vunpack.c.l.b16 %v328
      %v505 = vunpack.c.l.b16 %v329
      %v506 = vunpack.c.l.b16 %v330
      %v507 = vunpack.c.l.b16 %v331
      %v508 = vunpack.c.l.b16 %v332
      %v509 = vunpack.c.l.b16 %v333
      %v510 = vunpack.c.l.b16 %v334
      %v511 = vunpack.c.l.b16 %v335
      %v512 = vunpack.c.l.b16 %v336
      %v513 = vunpack.c.l.b16 %v337
      %v514 = vunpack.c.l.b16 %v338
      %v515 = vunpack.c.l.b16 %v339
      %v516 = vunpack.c.l.b16 %v340
      %v517 = vunpack.c.l.b16 %v341
      %v518 = vunpack.c.l.b16 %v342
      %v519 = vunpack.c.l.b16 %v343
      %v520 = vunpack.c.l.b16 %v344
      %v521 = vunpack.c.l.b16 %v345
      %v522 = vunpack.c.l.b16 %v346
      %v523 = vunpack.c.l.b16 %v347
      %v524 = vunpack.c.l.b16 %v348
      %v525 = vunpack.c.l.b16 %v349
      %v526 = vunpack.c.l.b16 %v350
      %v527 = vunpack.c.l.b16 %v351
      %v528 = vunpack.c.l.b16 %v352
      %v529 = vunpack.c.l.b16 %v353
      %v530 = vunpack.c.l.b16 %v354
      %v531 = vunpack.c.l.b16 %v355
      %v532 = vunpack.c.l.b16 %v356
      %v533 = vunpack.c.l.b16 %v357
      %v534 = vunpack.c.l.b16 %v358
      %v535 = vunpack.c.l.b16 %v359
      %v536 = vunpack.c.l.b16 %v360
      %v537 = vunpack.c.l.b16 %v361
      %v538 = vunpack.c.l.b16 %v362
      %v539 = vunpack.c.l.b16 %v363
      %v540 = vpack.c.b16 %v469, %v468
      %v541 = vpack.c.b16 %v471, %v470
      %v542 = vpack.c.b16 %v473, %v472
      %v543 = vpack.c.b16 %v475, %v474
      %v544 = vpack.c.b16 %v477, %v476
      %v545 = vpack.c.b16 %v479, %v478
      %v546 = vpack.c.b16 %v481, %v480
      %v547 = vpack.c.b16 %v483, %v482
      %v548 = vpack.c.b16 %v485, %v484
      %v549 = vpack.c.b16 %v487, %v486
      %v550 = vpack.c.b16 %v489, %v488
      %v551 = vpack.c.b16 %v491, %v490
      %v552 = vpack.c.b16 %v493, %v492
      %v553 = vpack.c.b16 %v495, %v494
      %v554 = vpack.c.b16 %v497, %v496
      %v555 = vpack.c.b16 %v499, %v498
      %v556 = vpack.c.b16 %v501, %v500
      %v557 = vpack.c.b16 %v503, %v502
      %v558 = vpack.c.b16 %v505, %v504
      %v559 = vpack.c.b16 %v507, %v506
      %v560 = vpack.c.b16 %v509, %v508
      %v561 = vpack.c.b16 %v511, %v510
      %v562 = vpack.c.b16 %v513, %v512
      %v563 = vpack.c.b16 %v515, %v514
      %v564 = vpack.c.b16 %v517, %v516
      %v565 = vpack.c.b16 %v519, %v518
      %v566 = vpack.c.b16 %v521, %v520
      %v567 = vpack.c.b16 %v523, %v522
      %v568 = vpack.c.b16 %v525, %v524
      %v569 = vpack.c.b16 %v527, %v526
      %v570 = vpack.c.b16 %v529, %v528
      %v571 = vpack.c.b16 %v531, %v530
      %v572 = vpack.c.b16 %v533, %v532
      %v573 = vpack.c.b16 %v535, %v534
      %v574 = vpack.c.b16 %v537, %v536
      %v575 = vpack.c.b16 %v539, %v538
      %vm612 = vcmask 523264
      %v614 = vsel %vm612, %v391, 0
      %616 = vmatprep.subr.bf16.mxu0 0
      %617 = vmatpush1.bf16.msra.mxu0 %v540
      %618 = vmatprep.subr.bf16.mxu0 0
      %619 = vmatpush1.bf16.msra.mxu0 %v541
      %620 = vmatprep.subr.bf16.mxu0 0
      %621 = vmatpush1.bf16.msra.mxu0 %v542
      %622 = vmatprep.subr.bf16.mxu0 0
      %623 = vmatpush1.bf16.msra.mxu0 %v543
      %624 = vmatprep.subr.bf16.mxu0 0
      %625 = vmatpush1.bf16.msra.mxu0 %v544
      %626 = vmatprep.subr.bf16.mxu0 0
      %627 = vmatpush1.bf16.msra.mxu0 %v545
      %628 = vmatprep.subr.bf16.mxu0 0
      %629 = vmatpush1.bf16.msra.mxu0 %v546
      %630 = vmatprep.subr.bf16.mxu0 0
      %631 = vmatpush1.bf16.msra.mxu0 %v547
      %632 = vmatprep.subr.bf16.mxu0 0
      %633 = vmatpush1.bf16.msra.mxu0 %v548
      %634 = vmatprep.subr.bf16.mxu0 0
      %635 = vmatpush1.bf16.msra.mxu0 %v549
      %636 = vmatprep.subr.bf16.mxu0 0
      %637 = vmatpush1.bf16.msra.mxu0 %v550
      %638 = vmatprep.subr.bf16.mxu0 0
      %639 = vmatpush1.bf16.msra.mxu0 %v551
      %640 = vmatprep.subr.bf16.mxu0 0
      %641 = vmatpush1.bf16.msra.mxu0 %v552
      %642 = vmatprep.subr.bf16.mxu0 0
      %643 = vmatpush1.bf16.msra.mxu0 %v553
      %644 = vmatprep.subr.bf16.mxu0 0
      %645 = vmatpush1.bf16.msra.mxu0 %v554
      %646 = vmatprep.subr.bf16.mxu0 0
      %647 = vmatpush1.bf16.msra.mxu0 %v555
      %648 = vmatprep.mubr.bf16.mxu0 %v388
      %649 = vmatmul.mubr.bf16.gmra.mrb[0].mxu0 %v387
      %v650 = vpop.f32.mrb[0].mxu0
      %v651 = vadd.f32 %v369, %v650
      %v652 = vpop.f32.mrb[0].mxu0
      %v653 = vpop.f32.mrb[0].mxu0
      %v654 = vadd.f32 %v369, %v653
      %v655 = vpop.f32.mrb[0].mxu0
      %656 = vdwg.mxu0
      %657 = vmatprep.subr.bf16.mxu0 0
      %658 = vmatpush1.bf16.msra.mxu0 %v556
      %659 = vmatprep.subr.bf16.mxu0 0
      %660 = vmatpush1.bf16.msra.mxu0 %v557
      %661 = vmatprep.subr.bf16.mxu0 0
      %662 = vmatpush1.bf16.msra.mxu0 %v558
      %663 = vmatprep.subr.bf16.mxu0 0
      %664 = vmatpush1.bf16.msra.mxu0 %v559
      %665 = vmatprep.subr.bf16.mxu0 0
      %666 = vmatpush1.bf16.msra.mxu0 %v560
      %667 = vmatprep.subr.bf16.mxu0 0
      %668 = vmatpush1.bf16.msra.mxu0 %v561
      %669 = vmatprep.subr.bf16.mxu0 0
      %670 = vmatpush1.bf16.msra.mxu0 %v562
      %671 = vmatprep.subr.bf16.mxu0 0
      %672 = vmatpush1.bf16.msra.mxu0 %v563
      %673 = vmatprep.subr.bf16.mxu0 0
      %674 = vmatpush1.bf16.msra.mxu0 %v564
      %675 = vmatprep.subr.bf16.mxu0 0
      %676 = vmatpush1.bf16.msra.mxu0 %v565
      %677 = vmatprep.subr.bf16.mxu0 0
      %678 = vmatpush1.bf16.msra.mxu0 %v566
      %679 = vmatprep.subr.bf16.mxu0 0
      %680 = vmatpush1.bf16.msra.mxu0 %v567
      %681 = vmatprep.subr.bf16.mxu0 0
      %682 = vmatpush1.bf16.msra.mxu0 %v568
      %683 = vmatprep.subr.bf16.mxu0 0
      %684 = vmatpush1.bf16.msra.mxu0 %v569
      %685 = vmatprep.subr.bf16.mxu0 0
      %686 = vmatpush1.bf16.msra.mxu0 %v570
      %687 = vmatprep.subr.bf16.mxu0 0
      %688 = vmatpush1.bf16.msra.mxu0 %v571
      %689 = vmatprep.mubr.bf16.mxu0 %v390
      %690 = vmatmul.mubr.bf16.gmra.mrb[0].mxu0 %v389
      %v691 = vpop.f32.mrb[0].mxu0
      %v692 = vadd.f32 %v651, %v691
      %v693 = vpop.f32.mrb[0].mxu0
      %v694 = vpop.f32.mrb[0].mxu0
      %v695 = vadd.f32 %v654, %v694
      %v696 = vpop.f32.mrb[0].mxu0
      %697 = vdwg.mxu0
      %698 = vmatprep.subr.bf16.mxu0 0
      %699 = vmatpush1.bf16.msra.mxu0 %v572
      %700 = vmatprep.subr.bf16.mxu0 0
      %701 = vmatpush1.bf16.msra.mxu0 %v573
      %702 = vmatprep.subr.bf16.mxu0 0
      %703 = vmatpush1.bf16.msra.mxu0 %v574
      %704 = vmatprep.subr.bf16.mxu0 0
      %705 = vmatpush1.bf16.msra.mxu0 %v575
      %706 = vmatprep.subr.bf16.mxu0 0
      %707 = vmatpush1.bf16.msra.mxu0 0
      %708 = vmatprep.subr.bf16.mxu0 0
      %709 = vmatpush1.bf16.msra.mxu0 0
      %710 = vmatprep.subr.bf16.mxu0 0
      %711 = vmatpush1.bf16.msra.mxu0 0
      %712 = vmatprep.subr.bf16.mxu0 0
      %713 = vmatpush1.bf16.msra.mxu0 0
      %714 = vmatprep.subr.bf16.mxu0 0
      %715 = vmatpush1.bf16.msra.mxu0 0
      %716 = vmatprep.subr.bf16.mxu0 0
      %717 = vmatpush1.bf16.msra.mxu0 0
      %718 = vmatprep.subr.bf16.mxu0 0
      %719 = vmatpush1.bf16.msra.mxu0 0
      %720 = vmatprep.subr.bf16.mxu0 0
      %721 = vmatpush1.bf16.msra.mxu0 0
      %722 = vmatprep.subr.bf16.mxu0 0
      %723 = vmatpush1.bf16.msra.mxu0 0
      %724 = vmatprep.subr.bf16.mxu0 0
      %725 = vmatpush1.bf16.msra.mxu0 0
      %726 = vmatprep.subr.bf16.mxu0 0
      %727 = vmatpush1.bf16.msra.mxu0 0
      %728 = vmatprep.subr.bf16.mxu0 0
      %729 = vmatpush1.bf16.msra.mxu0 0
      %730 = vmatprep.mubr.bf16.mxu0 0
      %731 = vmatmul.mubr.bf16.gmra.mrb[0].mxu0 %v614
      %v732 = vpop.f32.mrb[0].mxu0
      %v733 = vadd.f32 %v692, %v732
      %v734 = vpop.f32.mrb[0].mxu0
      %v735 = vpop.f32.mrb[0].mxu0
      %v736 = vadd.f32 %v695, %v735
      %v737 = vpop.f32.mrb[0].mxu0
      %738 = vdwg.mxu0
      %v739 = vmax.f32 %v733, 0.0
      %v740 = vmax.f32 %v736, 0.0
      %v741 = vld [vmem:[%s276] sm:$0xff]
      %v742 = vld [vmem:[%s276 + $0x8] sm:$0xff]
      %v743 = vld [vmem:[%s276 + $0x10] sm:$0xf]
      %v744 = vld [vmem:[%s276 + $0x14] sm:$0xff]
      %v745 = vld [vmem:[%s276 + $0x1c] sm:$0xff]
      %v746 = vld [vmem:[%s276 + $0x24] sm:$0xf]
      %v747 = vld [vmem:[%s3] sm:$0xf]
      %v748 = vld [vmem:[%s3 + $0x4] sm:$0xf]
      %v749 = vld [vmem:[%s3 + $0x8] sm:$0xf]
      %v750 = vld [vmem:[%s3 + $0xc] sm:$0xf]
      %v751 = vld [vmem:[%s3 + $0x10] sm:$0xf]
      %v752 = vld [vmem:[%s3 + $0x14] sm:$0xf]
      %v753 = vld [vmem:[%s3 + $0x18] sm:$0xf]
      %v754 = vld [vmem:[%s3 + $0x1c] sm:$0xf]
      %v755 = vld [vmem:[%s3 + $0x20] sm:$0xf]
      %v756 = vld [vmem:[%s3 + $0x24] sm:$0xf]
      %v757 = vld [vmem:[%s3 + $0x28] sm:$0xf]
      %v758 = vld [vmem:[%s3 + $0x2c] sm:$0xf]
      %v759 = vld [vmem:[%s3 + $0x30] sm:$0xf]
      %v760 = vld [vmem:[%s3 + $0x34] sm:$0xf]
      %v761 = vld [vmem:[%s3 + $0x38] sm:$0xf]
      %v762 = vld [vmem:[%s3 + $0x3c] sm:$0xf]
      %v763 = vld [vmem:[%s3 + $0x40] sm:$0xf]
      %v764 = vld [vmem:[%s3 + $0x44] sm:$0xf]
      %v765 = vld [vmem:[%s3 + $0x48] sm:$0xf]
      %v766 = vld [vmem:[%s3 + $0x4c] sm:$0xf]
      %v767 = vld [vmem:[%s3 + $0x50] sm:$0xf]
      %v768 = vld [vmem:[%s3 + $0x54] sm:$0xf]
      %v769 = vld [vmem:[%s3 + $0x58] sm:$0xf]
      %v770 = vld [vmem:[%s3 + $0x5c] sm:$0xf]
      %v771 = vld [vmem:[%s3 + $0x60] sm:$0xf]
      %v772 = vld [vmem:[%s3 + $0x64] sm:$0xf]
      %v773 = vld [vmem:[%s3 + $0x68] sm:$0xf]
      %v774 = vld [vmem:[%s3 + $0x6c] sm:$0xf]
      %v775 = vld [vmem:[%s3 + $0x70] sm:$0xf]
      %v776 = vld [vmem:[%s3 + $0x74] sm:$0xf]
      %v777 = vld [vmem:[%s3 + $0x78] sm:$0xf]
      %v778 = vld [vmem:[%s3 + $0x7c] sm:$0xf]
      %v779 = vld [vmem:[%s3 + $0x80] sm:$0xf]
      %v780 = vld [vmem:[%s3 + $0x84] sm:$0xf]
      %v781 = vld [vmem:[%s3 + $0x88] sm:$0xf]
      %v782 = vld [vmem:[%s3 + $0x8c] sm:$0xf]
      %v783 = vld [vmem:[%s3 + $0x90] sm:$0xf]
      %v784 = vld [vmem:[%s3 + $0x94] sm:$0xf]
      %v785 = vld [vmem:[%s3 + $0x98] sm:$0xf]
      %v786 = vld [vmem:[%s3 + $0x9c] sm:$0xf]
      %v787 = vld [vmem:[%s3 + $0xa0] sm:$0xf]
      %v788 = vld [vmem:[%s3 + $0xa4] sm:$0xf]
      %v789 = vld [vmem:[%s3 + $0xa8] sm:$0xf]
      %v790 = vld [vmem:[%s3 + $0xac] sm:$0xf]
      %v791 = vld [vmem:[%s3 + $0xb0] sm:$0xf]
      %v792 = vld [vmem:[%s3 + $0xb4] sm:$0xf]
      %v793 = vld [vmem:[%s3 + $0xb8] sm:$0xf]
      %v794 = vld [vmem:[%s3 + $0xbc] sm:$0xf]
      %v795 = vld [vmem:[%s3 + $0xc0] sm:$0xf]
      %v796 = vld [vmem:[%s3 + $0xc4] sm:$0xf]
      %v797 = vld [vmem:[%s3 + $0xc8] sm:$0xf]
      %v798 = vld [vmem:[%s3 + $0xcc] sm:$0xf]
      %v799 = vld [vmem:[%s3 + $0xd0] sm:$0xf]
      %v800 = vld [vmem:[%s3 + $0xd4] sm:$0xf]
      %v801 = vld [vmem:[%s3 + $0xd8] sm:$0xf]
      %v802 = vld [vmem:[%s3 + $0xdc] sm:$0xf]
      %v803 = vld [vmem:[%s3 + $0xe0] sm:$0xf]
      %v804 = vld [vmem:[%s3 + $0xe4] sm:$0xf]
      %v805 = vld [vmem:[%s3 + $0xe8] sm:$0xf]
      %v806 = vld [vmem:[%s3 + $0xec] sm:$0xf]
      %v807 = vld [vmem:[%s3 + $0xf0] sm:$0xf]
      %v808 = vld [vmem:[%s3 + $0xf4] sm:$0xf]
      %v809 = vld [vmem:[%s3 + $0xf8] sm:$0xf]
      %v810 = vld [vmem:[%s3 + $0xfc] sm:$0xf]
      %v811 = vld [vmem:[%s3 + $0x100] sm:$0xf]
      %v812 = vld [vmem:[%s3 + $0x104] sm:$0xf]
      %v813 = vld [vmem:[%s3 + $0x108] sm:$0xf]
      %v814 = vld [vmem:[%s3 + $0x10c] sm:$0xf]
      %v815 = vld [vmem:[%s3 + $0x110] sm:$0xf]
      %v816 = vld [vmem:[%s3 + $0x114] sm:$0xf]
      %v817 = vld [vmem:[%s3 + $0x118] sm:$0xf]
      %v818 = vld [vmem:[%s3 + $0x11c] sm:$0xf]
      %v819 = vld [vmem:[%s5] sm:$0x1]
      %v821 = vlaneseq
      %v822 = vshrl.u32 %v821, 7
      %v823 = vsub.s32 0, %v822
      %v824 = vrot.slane %v819, %v823
      %v832 = vunpack.c.l.b16 %v741
      %v833 = vunpack.c.h.b16 %v741
      %v834 = vunpack.c.l.b16 %v742
      %v835 = vunpack.c.h.b16 %v742
      %v836 = vunpack.c.l.b16 %v743
      %v837 = vunpack.c.l.b16 %v744
      %v838 = vunpack.c.h.b16 %v744
      %v839 = vunpack.c.l.b16 %v745
      %v840 = vunpack.c.h.b16 %v745
      %v841 = vunpack.c.l.b16 %v746
      %v842 = vpack.c.b16 %v837, %v832
      %v843 = vpack.c.b16 %v838, %v833
      %v844 = vpack.c.b16 %v839, %v834
      %v845 = vpack.c.b16 %v840, %v835
      %v846 = vpack.c.b16 %v841, %v836
      %v923 = vunpack.c.l.b16 %v747
      %v924 = vunpack.c.l.b16 %v748
      %v925 = vunpack.c.l.b16 %v749
      %v926 = vunpack.c.l.b16 %v750
      %v927 = vunpack.c.l.b16 %v751
      %v928 = vunpack.c.l.b16 %v752
      %v929 = vunpack.c.l.b16 %v753
      %v930 = vunpack.c.l.b16 %v754
      %v931 = vunpack.c.l.b16 %v755
      %v932 = vunpack.c.l.b16 %v756
      %v933 = vunpack.c.l.b16 %v757
      %v934 = vunpack.c.l.b16 %v758
      %v935 = vunpack.c.l.b16 %v759
      %v936 = vunpack.c.l.b16 %v760
      %v937 = vunpack.c.l.b16 %v761
      %v938 = vunpack.c.l.b16 %v762
      %v939 = vunpack.c.l.b16 %v763
      %v940 = vunpack.c.l.b16 %v764
      %v941 = vunpack.c.l.b16 %v765
      %v942 = vunpack.c.l.b16 %v766
      %v943 = vunpack.c.l.b16 %v767
      %v944 = vunpack.c.l.b16 %v768
      %v945 = vunpack.c.l.b16 %v769
      %v946 = vunpack.c.l.b16 %v770
      %v947 = vunpack.c.l.b16 %v771
      %v948 = vunpack.c.l.b16 %v772
      %v949 = vunpack.c.l.b16 %v773
      %v950 = vunpack.c.l.b16 %v774
      %v951 = vunpack.c.l.b16 %v775
      %v952 = vunpack.c.l.b16 %v776
      %v953 = vunpack.c.l.b16 %v777
      %v954 = vunpack.c.l.b16 %v778
      %v955 = vunpack.c.l.b16 %v779
      %v956 = vunpack.c.l.b16 %v780
      %v957 = vunpack.c.l.b16 %v781
      %v958 = vunpack.c.l.b16 %v782
      %v959 = vunpack.c.l.b16 %v783
      %v960 = vunpack.c.l.b16 %v784
      %v961 = vunpack.c.l.b16 %v785
      %v962 = vunpack.c.l.b16 %v786
      %v963 = vunpack.c.l.b16 %v787
      %v964 = vunpack.c.l.b16 %v788
      %v965 = vunpack.c.l.b16 %v789
      %v966 = vunpack.c.l.b16 %v790
      %v967 = vunpack.c.l.b16 %v791
      %v968 = vunpack.c.l.b16 %v792
      %v969 = vunpack.c.l.b16 %v793
      %v970 = vunpack.c.l.b16 %v794
      %v971 = vunpack.c.l.b16 %v795
      %v972 = vunpack.c.l.b16 %v796
      %v973 = vunpack.c.l.b16 %v797
      %v974 = vunpack.c.l.b16 %v798
      %v975 = vunpack.c.l.b16 %v799
      %v976 = vunpack.c.l.b16 %v800
      %v977 = vunpack.c.l.b16 %v801
      %v978 = vunpack.c.l.b16 %v802
      %v979 = vunpack.c.l.b16 %v803
      %v980 = vunpack.c.l.b16 %v804
      %v981 = vunpack.c.l.b16 %v805
      %v982 = vunpack.c.l.b16 %v806
      %v983 = vunpack.c.l.b16 %v807
      %v984 = vunpack.c.l.b16 %v808
      %v985 = vunpack.c.l.b16 %v809
      %v986 = vunpack.c.l.b16 %v810
      %v987 = vunpack.c.l.b16 %v811
      %v988 = vunpack.c.l.b16 %v812
      %v989 = vunpack.c.l.b16 %v813
      %v990 = vunpack.c.l.b16 %v814
      %v991 = vunpack.c.l.b16 %v815
      %v992 = vunpack.c.l.b16 %v816
      %v993 = vunpack.c.l.b16 %v817
      %v994 = vunpack.c.l.b16 %v818
      %v995 = vpack.c.b16 %v924, %v923
      %v996 = vpack.c.b16 %v926, %v925
      %v997 = vpack.c.b16 %v928, %v927
      %v998 = vpack.c.b16 %v930, %v929
      %v999 = vpack.c.b16 %v932, %v931
      %v1000 = vpack.c.b16 %v934, %v933
      %v1001 = vpack.c.b16 %v936, %v935
      %v1002 = vpack.c.b16 %v938, %v937
      %v1003 = vpack.c.b16 %v940, %v939
      %v1004 = vpack.c.b16 %v942, %v941
      %v1005 = vpack.c.b16 %v944, %v943
      %v1006 = vpack.c.b16 %v946, %v945
      %v1007 = vpack.c.b16 %v948, %v947
      %v1008 = vpack.c.b16 %v950, %v949
      %v1009 = vpack.c.b16 %v952, %v951
      %v1010 = vpack.c.b16 %v954, %v953
      %v1011 = vpack.c.b16 %v956, %v955
      %v1012 = vpack.c.b16 %v958, %v957
      %v1013 = vpack.c.b16 %v960, %v959
      %v1014 = vpack.c.b16 %v962, %v961
      %v1015 = vpack.c.b16 %v964, %v963
      %v1016 = vpack.c.b16 %v966, %v965
      %v1017 = vpack.c.b16 %v968, %v967
      %v1018 = vpack.c.b16 %v970, %v969
      %v1019 = vpack.c.b16 %v972, %v971
      %v1020 = vpack.c.b16 %v974, %v973
      %v1021 = vpack.c.b16 %v976, %v975
      %v1022 = vpack.c.b16 %v978, %v977
      %v1023 = vpack.c.b16 %v980, %v979
      %v1024 = vpack.c.b16 %v982, %v981
      %v1025 = vpack.c.b16 %v984, %v983
      %v1026 = vpack.c.b16 %v986, %v985
      %v1027 = vpack.c.b16 %v988, %v987
      %v1028 = vpack.c.b16 %v990, %v989
      %v1029 = vpack.c.b16 %v992, %v991
      %v1030 = vpack.c.b16 %v994, %v993
      %v1068 = vsel %vm612, %v846, 0
      %1070 = vmatprep.subr.bf16.mxu0 0
      %1071 = vmatpush1.bf16.msra.mxu0 %v995
      %1072 = vmatprep.subr.bf16.mxu0 0
      %1073 = vmatpush1.bf16.msra.mxu0 %v996
      %1074 = vmatprep.subr.bf16.mxu0 0
      %1075 = vmatpush1.bf16.msra.mxu0 %v997
      %1076 = vmatprep.subr.bf16.mxu0 0
      %1077 = vmatpush1.bf16.msra.mxu0 %v998
      %1078 = vmatprep.subr.bf16.mxu0 0
      %1079 = vmatpush1.bf16.msra.mxu0 %v999
      %1080 = vmatprep.subr.bf16.mxu0 0
      %1081 = vmatpush1.bf16.msra.mxu0 %v1000
      %1082 = vmatprep.subr.bf16.mxu0 0
      %1083 = vmatpush1.bf16.msra.mxu0 %v1001
      %1084 = vmatprep.subr.bf16.mxu0 0
      %1085 = vmatpush1.bf16.msra.mxu0 %v1002
      %1086 = vmatprep.subr.bf16.mxu0 0
      %1087 = vmatpush1.bf16.msra.mxu0 %v1003
      %1088 = vmatprep.subr.bf16.mxu0 0
      %1089 = vmatpush1.bf16.msra.mxu0 %v1004
      %1090 = vmatprep.subr.bf16.mxu0 0
      %1091 = vmatpush1.bf16.msra.mxu0 %v1005
      %1092 = vmatprep.subr.bf16.mxu0 0
      %1093 = vmatpush1.bf16.msra.mxu0 %v1006
      %1094 = vmatprep.subr.bf16.mxu0 0
      %1095 = vmatpush1.bf16.msra.mxu0 %v1007
      %1096 = vmatprep.subr.bf16.mxu0 0
      %1097 = vmatpush1.bf16.msra.mxu0 %v1008
      %1098 = vmatprep.subr.bf16.mxu0 0
      %1099 = vmatpush1.bf16.msra.mxu0 %v1009
      %1100 = vmatprep.subr.bf16.mxu0 0
      %1101 = vmatpush1.bf16.msra.mxu0 %v1010
      %1102 = vmatprep.mubr.bf16.mxu0 %v843
      %1103 = vmatmul.mubr.bf16.gmra.mrb[0].mxu0 %v842
      %v1104 = vpop.f32.mrb[0].mxu0
      %v1105 = vadd.f32 %v824, %v1104
      %v1106 = vpop.f32.mrb[0].mxu0
      %v1107 = vpop.f32.mrb[0].mxu0
      %v1108 = vadd.f32 %v824, %v1107
      %v1109 = vpop.f32.mrb[0].mxu0
      %1110 = vdwg.mxu0
      %1111 = vmatprep.subr.bf16.mxu0 0
      %1112 = vmatpush1.bf16.msra.mxu0 %v1011
      %1113 = vmatprep.subr.bf16.mxu0 0
      %1114 = vmatpush1.bf16.msra.mxu0 %v1012
      %1115 = vmatprep.subr.bf16.mxu0 0
      %1116 = vmatpush1.bf16.msra.mxu0 %v1013
      %1117 = vmatprep.subr.bf16.mxu0 0
      %1118 = vmatpush1.bf16.msra.mxu0 %v1014
      %1119 = vmatprep.subr.bf16.mxu0 0
      %1120 = vmatpush1.bf16.msra.mxu0 %v1015
      %1121 = vmatprep.subr.bf16.mxu0 0
      %1122 = vmatpush1.bf16.msra.mxu0 %v1016
      %1123 = vmatprep.subr.bf16.mxu0 0
      %1124 = vmatpush1.bf16.msra.mxu0 %v1017
      %1125 = vmatprep.subr.bf16.mxu0 0
      %1126 = vmatpush1.bf16.msra.mxu0 %v1018
      %1127 = vmatprep.subr.bf16.mxu0 0
      %1128 = vmatpush1.bf16.msra.mxu0 %v1019
      %1129 = vmatprep.subr.bf16.mxu0 0
      %1130 = vmatpush1.bf16.msra.mxu0 %v1020
      %1131 = vmatprep.subr.bf16.mxu0 0
      %1132 = vmatpush1.bf16.msra.mxu0 %v1021
      %1133 = vmatprep.subr.bf16.mxu0 0
      %1134 = vmatpush1.bf16.msra.mxu0 %v1022
      %1135 = vmatprep.subr.bf16.mxu0 0
      %1136 = vmatpush1.bf16.msra.mxu0 %v1023
      %1137 = vmatprep.subr.bf16.mxu0 0
      %1138 = vmatpush1.bf16.msra.mxu0 %v1024
      %1139 = vmatprep.subr.bf16.mxu0 0
      %1140 = vmatpush1.bf16.msra.mxu0 %v1025
      %1141 = vmatprep.subr.bf16.mxu0 0
      %1142 = vmatpush1.bf16.msra.mxu0 %v1026
      %1143 = vmatprep.mubr.bf16.mxu0 %v845
      %1144 = vmatmul.mubr.bf16.gmra.mrb[0].mxu0 %v844
      %v1145 = vpop.f32.mrb[0].mxu0
      %v1146 = vadd.f32 %v1105, %v1145
      %v1147 = vpop.f32.mrb[0].mxu0
      %v1148 = vpop.f32.mrb[0].mxu0
      %v1149 = vadd.f32 %v1108, %v1148
      %v1150 = vpop.f32.mrb[0].mxu0
      %1151 = vdwg.mxu0
      %1152 = vmatprep.subr.bf16.mxu0 0
      %1153 = vmatpush1.bf16.msra.mxu0 %v1027
      %1154 = vmatprep.subr.bf16.mxu0 0
      %1155 = vmatpush1.bf16.msra.mxu0 %v1028
      %1156 = vmatprep.subr.bf16.mxu0 0
      %1157 = vmatpush1.bf16.msra.mxu0 %v1029
      %1158 = vmatprep.subr.bf16.mxu0 0
      %1159 = vmatpush1.bf16.msra.mxu0 %v1030
      %1160 = vmatprep.subr.bf16.mxu0 0
      %1161 = vmatpush1.bf16.msra.mxu0 0
      %1162 = vmatprep.subr.bf16.mxu0 0
      %1163 = vmatpush1.bf16.msra.mxu0 0
      %1164 = vmatprep.subr.bf16.mxu0 0
      %1165 = vmatpush1.bf16.msra.mxu0 0
      %1166 = vmatprep.subr.bf16.mxu0 0
      %1167 = vmatpush1.bf16.msra.mxu0 0
      %1168 = vmatprep.subr.bf16.mxu0 0
      %1169 = vmatpush1.bf16.msra.mxu0 0
      %1170 = vmatprep.subr.bf16.mxu0 0
      %1171 = vmatpush1.bf16.msra.mxu0 0
      %1172 = vmatprep.subr.bf16.mxu0 0
      %1173 = vmatpush1.bf16.msra.mxu0 0
      %1174 = vmatprep.subr.bf16.mxu0 0
      %1175 = vmatpush1.bf16.msra.mxu0 0
      %1176 = vmatprep.subr.bf16.mxu0 0
      %1177 = vmatpush1.bf16.msra.mxu0 0
      %1178 = vmatprep.subr.bf16.mxu0 0
      %1179 = vmatpush1.bf16.msra.mxu0 0
      %1180 = vmatprep.subr.bf16.mxu0 0
      %1181 = vmatpush1.bf16.msra.mxu0 0
      %1182 = vmatprep.subr.bf16.mxu0 0
      %1183 = vmatpush1.bf16.msra.mxu0 0
      %1184 = vmatprep.mubr.bf16.mxu0 0
      %1185 = vmatmul.mubr.bf16.gmra.mrb[0].mxu0 %v1068
      %v1186 = vpop.f32.mrb[0].mxu0
      %v1187 = vadd.f32 %v1146, %v1186
      %v1188 = vpop.f32.mrb[0].mxu0
      %v1189 = vpop.f32.mrb[0].mxu0
      %v1190 = vadd.f32 %v1149, %v1189
      %v1191 = vpop.f32.mrb[0].mxu0
      %1192 = vdwg.mxu0
      %v1193 = vmax.f32 %v1187, 0.0
      %v1194 = vmax.f32 %v1190, 0.0
      %1197 = vrot.lane.b32.xlu0 %v1193, 96
      %v1198 = vpop.permute.xlu0 %1197
      %1199 = vrot.lane.b32.xlu0 %v1194, 96
      %v1200 = vpop.permute.xlu0 %1199
      %vm1203 = vcmask 785408
      %v1204 = vsel %vm1203, %v739, %v1198
      %v1205 = vsel %vm1203, %v740, %v1200
      %v1206 = vpack.c.bf16 %v1205, %v1204
      %v1207 = vpack.c.bf16 %v1200, %v1198
      %v1210 = vunpack.c.l.b16 %v1206
      %v1211 = vunpack.c.l.b16 %v1207
      %v1212 = vunpack.c.h.b16 %v1206
      %v1213 = vunpack.c.h.b16 %v1207
      %v1214 = vpack.c.b16 %v1211, %v1210
      %v1215 = vpack.c.b16 %v1213, %v1212
      %vm1218 = vcmask 1043456
      %vm1219 = vcmask 523268
      %vm1220 = vmor %vm1219, %vm1218
      %1221 = vst.msk [vmem:[%s283] sm:$0xff] %vm1220, %v1214
      %1222 = vst.msk [vmem:[%s283 + $0x8] sm:$0xff] %vm1220, %v1215
      %s1223 = smul.u32 2, %s17
      %p1224 = scmp.lt.s32.totalorder %s1223, 3
      %s1225 = scalar_select %p1224, %s1223, 3
      %s1226 = smul.addr %s1225, 2
      %s1227 = smul.addr %s1226, 4
      %s1228 = scalar_lea.vmem %s6, %s1227
      // Predicated region
      $region45: #{_lambda_.16} parent=43 // pred_check
        %p1229 = pneg %p171
      $region46: #{_lambda_.16} parent=43 // pred_check_branch
        %1231 = sbr.rel (%p1229) target = $region48
      $region47: #{_lambda_.16} parent=43 // pred_region
        %s1232 = smul.u32 2, %s17
      $region48: #{_lambda_.16} parent=43 // pred_fallthru
        _
    $region44: #{_lambda_.16} parent=5 // pred_fallthru
      _
    %p1233 = scmp.le.s32.totalorder 2, %s12
    // Predicated region
    $region49: #{_lambda_.16} parent=5 // pred_check
      %p1234 = pneg %p1233
    $region50: #{_lambda_.16} parent=5 // pred_check_branch
      %1236 = sbr.rel (%p1234) target = $region52
    $region51: #{_lambda_.16} parent=5 // pred_region
      %s1237 = ssub.s32 %s12, 2
      // Predicated region
      $region53: #{_lambda_.16} parent=51 // pred_check
        %p1238 = pneg %p177
      $region54: #{_lambda_.16} parent=51 // pred_check_branch
        %1240 = sbr.rel (%p1238) target = $region56
      $region55: #{_lambda_.16} parent=51 // pred_region
        %s1241 = smul.u32 2, %s18
        %p1242 = scmp.lt.s32.totalorder %s1241, 3
        %s1243 = scalar_select %p1242, %s1241, 3
        %s1244 = smul.addr %s1243, 2
        %s1245 = smul.addr %s1244, 4
        %s1246 = scalar_lea.vmem %s6, %s1245
      $region56: #{_lambda_.16} parent=51 // pred_fallthru
        _
    $region52: #{_lambda_.16} parent=5 // pred_fallthru
      _
  $region6: #{_lambda_.16} parent=0 // loop_footer
    %s16 = sadd.s32 1, %s12
  $region7: #{_lambda_.16} parent=0 // loop_footer_branch
    %11 = sbr.rel target = $region3
  $region8: #{_lambda_.16} parent=0 // loop_exit
    _

// kernel: _lambda_.17
$region0: #{_lambda_.17}
  #allocation0 [shape = 'u32[]', space=smem, size = 0x4, offset = 0x4, fixed_abs, tag = 'smem constant byte address 0x4 - core index']
  #allocation1 [shape = 'u32[144,128]{1,0:T(1,128)}', space=vmem, size = 0x12000, scoped, tag = 'internal scratch']
  %s0 = inlined_call_operand.vmem [shape: bf16[2,1728], index: 0, kind: input, shape index: {}]
  %s1 = inlined_call_operand.vmem [shape: bf16[1728,192], index: 1, kind: input, shape index: {}]
  %s2 = inlined_call_operand.vmem [shape: f32[1,192], index: 2, kind: input, shape index: {}]
  %s3 = inlined_call_operand.vmem [shape: bf16[2,192], index: 3, kind: output, shape index: {}]
  %s4 = sld [smem:[#allocation0]]
  $region52: #{_lambda_.17} parent=0
    _
  %s6 = ssub.s32 1, %s4
  %s7 = scalar_select 0, %s6, %s4
  $region1: #{_lambda_.17} parent=0
    #allocation2 [shape = 'u8[4096]{0}', space=vmem, size = 0x1000, scoped, tag = 'output window, operand 0, single buffered']
    // Predicated region
    $region2: #{_lambda_.17} parent=1 // pred_check
      _
    $region3: #{_lambda_.17} parent=1 // pred_check_branch
      %9 = sbr.rel (0) target = $region5
    $region4: #{_lambda_.17} parent=1 // pred_region
      _
    $region5: #{_lambda_.17} parent=1 // pred_fallthru
      _
    // Predicated region
    $region6: #{_lambda_.17} parent=1 // pred_check
      _
    $region7: #{_lambda_.17} parent=1 // pred_check_branch
      %11 = sbr.rel (0) target = $region9
    $region8: #{_lambda_.17} parent=1 // pred_region
      _
    $region9: #{_lambda_.17} parent=1 // pred_fallthru
      _
    // Predicated region
    $region10: #{_lambda_.17} parent=1 // pred_check
      _
    $region11: #{_lambda_.17} parent=1 // pred_check_branch
      %13 = sbr.rel (0) target = $region13
    $region12: #{_lambda_.17} parent=1 // pred_region
      _
    $region13: #{_lambda_.17} parent=1 // pred_fallthru
      _
    %v15 = vld [vmem:[%s0] sm:$0xff]
    %v16 = vld [vmem:[%s0 + $0x8] sm:$0x3f]
    %v17 = vld [vmem:[%s0 + $0xe] sm:$0xff]
    %v18 = vld [vmem:[%s0 + $0x16] sm:$0x3f]
    %v19 = vld [vmem:[%s0 + $0x1c] sm:$0xff]
    %v20 = vld [vmem:[%s0 + $0x24] sm:$0x3f]
    %v21 = vld [vmem:[%s0 + $0x2a] sm:$0xff]
    %v22 = vld [vmem:[%s0 + $0x32] sm:$0x3f]
    %v23 = vld [vmem:[%s1] sm:$0xff]
    %v24 = vld [vmem:[%s1 + $0x8] sm:$0xff]
    %v25 = vld [vmem:[%s1 + $0x10] sm:$0xff]
    %v26 = vld [vmem:[%s1 + $0x18] sm:$0xff]
    %v27 = vld [vmem:[%s1 + $0x20] sm:$0xff]
    %v28 = vld [vmem:[%s1 + $0x28] sm:$0xff]
    %v29 = vld [vmem:[%s1 + $0x30] sm:$0xff]
    %v30 = vld [vmem:[%s1 + $0x38] sm:$0xff]
    %v31 = vld [vmem:[%s1 + $0x40] sm:$0xff]
    %v32 = vld [vmem:[%s1 + $0x48] sm:$0xff]
    %v33 = vld [vmem:[%s1 + $0x50] sm:$0xff]
    %v34 = vld [vmem:[%s1 + $0x58] sm:$0xff]
    %v35 = vld [vmem:[%s1 + $0x60] sm:$0xff]
    %v36 = vld [vmem:[%s1 + $0x68] sm:$0xff]
    %v37 = vld [vmem:[%s1 + $0x70] sm:$0xff]
    %v38 = vld [vmem:[%s1 + $0x78] sm:$0xff]
    %v39 = vld [vmem:[%s1 + $0x80] sm:$0xff]
    %v40 = vld [vmem:[%s1 + $0x88] sm:$0xff]
    %v41 = vld [vmem:[%s1 + $0x90] sm:$0xff]
    %v42 = vld [vmem:[%s1 + $0x98] sm:$0xff]
    %v43 = vld [vmem:[%s1 + $0xa0] sm:$0xff]
    %v44 = vld [vmem:[%s1 + $0xa8] sm:$0xff]
    %v45 = vld [vmem:[%s1 + $0xb0] sm:$0xff]
    %v46 = vld [vmem:[%s1 + $0xb8] sm:$0xff]
    %v47 = vld [vmem:[%s1 + $0xc0] sm:$0xff]
    %v48 = vld [vmem:[%s1 + $0xc8] sm:$0xff]
    %v49 = vld [vmem:[%s1 + $0xd0] sm:$0xff]
    %v50 = vld [vmem:[%s1 + $0xd8] sm:$0xff]
    %v51 = vld [vmem:[%s1 + $0xe0] sm:$0xff]
    %v52 = vld [vmem:[%s1 + $0xe8] sm:$0xff]
    %v53 = vld [vmem:[%s1 + $0xf0] sm:$0xff]
    %v54 = vld [vmem:[%s1 + $0xf8] sm:$0xff]
    %v55 = vld [vmem:[%s1 + $0x100] sm:$0xff]
    %v56 = vld [vmem:[%s1 + $0x108] sm:$0xff]
    %v57 = vld [vmem:[%s1 + $0x110] sm:$0xff]
    %v58 = vld [vmem:[%s1 + $0x118] sm:$0xff]
    %v59 = vld [vmem:[%s1 + $0x120] sm:$0xff]
    %v60 = vld [vmem:[%s1 + $0x128] sm:$0xff]
    %v61 = vld [vmem:[%s1 + $0x130] sm:$0xff]
    %v62 = vld [vmem:[%s1 + $0x138] sm:$0xff]
    %v63 = vld [vmem:[%s1 + $0x140] sm:$0xff]
    %v64 = vld [vmem:[%s1 + $0x148] sm:$0xff]
    %v65 = vld [vmem:[%s1 + $0x150] sm:$0xff]
    %v66 = vld [vmem:[%s1 + $0x158] sm:$0xff]
    %v67 = vld [vmem:[%s1 + $0x160] sm:$0xff]
    %v68 = vld [vmem:[%s1 + $0x168] sm:$0xff]
    %v69 = vld [vmem:[%s1 + $0x170] sm:$0xff]
    %v70 = vld [vmem:[%s1 + $0x178] sm:$0xff]
    %v71 = vld [vmem:[%s1 + $0x180] sm:$0xff]
    %v72 = vld [vmem:[%s1 + $0x188] sm:$0xff]
    %v73 = vld [vmem:[%s1 + $0x190] sm:$0xff]
    %v74 = vld [vmem:[%s1 + $0x198] sm:$0xff]
    %v75 = vld [vmem:[%s1 + $0x1a0] sm:$0xff]
    %v76 = vld [vmem:[%s1 + $0x1a8] sm:$0xff]
    %v77 = vld [vmem:[%s1 + $0x1b0] sm:$0xff]
    %v78 = vld [vmem:[%s1 + $0x1b8] sm:$0xff]
    %v79 = vld [vmem:[%s1 + $0x1c0] sm:$0xff]
    %v80 = vld [vmem:[%s1 + $0x1c8] sm:$0xff]
    %v81 = vld [vmem:[%s1 + $0x1d0] sm:$0xff]
    %v82 = vld [vmem:[%s1 + $0x1d8] sm:$0xff]
    %v83 = vld [vmem:[%s1 + $0x1e0] sm:$0xff]
    %v84 = vld [vmem:[%s1 + $0x1e8] sm:$0xff]
    %v85 = vld [vmem:[%s1 + $0x1f0] sm:$0xff]
    %v86 = vld [vmem:[%s1 + $0x1f8] sm:$0xff]
    %v87 = vld [vmem:[%s1 + $0x200] sm:$0xff]
    %v88 = vld [vmem:[%s1 + $0x208] sm:$0xff]
    %v89 = vld [vmem:[%s1 + $0x210] sm:$0xff]
    %v90 = vld [vmem:[%s1 + $0x218] sm:$0xff]
    %v91 = vld [vmem:[%s1 + $0x220] sm:$0xff]
    %v92 = vld [vmem:[%s1 + $0x228] sm:$0xff]
    %v93 = vld [vmem:[%s1 + $0x230] sm:$0xff]
    %v94 = vld [vmem:[%s1 + $0x238] sm:$0xff]
    %v95 = vld [vmem:[%s1 + $0x240] sm:$0xff]
    %v96 = vld [vmem:[%s1 + $0x248] sm:$0xff]
    %v97 = vld [vmem:[%s1 + $0x250] sm:$0xff]
    %v98 = vld [vmem:[%s1 + $0x258] sm:$0xff]
    %v99 = vld [vmem:[%s1 + $0x260] sm:$0xff]
    %v100 = vld [vmem:[%s1 + $0x268] sm:$0xff]
    %v101 = vld [vmem:[%s1 + $0x270] sm:$0xff]
    %v102 = vld [vmem:[%s1 + $0x278] sm:$0xff]
    %v103 = vld [vmem:[%s1 + $0x280] sm:$0xff]
    %v104 = vld [vmem:[%s1 + $0x288] sm:$0xff]
    %v105 = vld [vmem:[%s1 + $0x290] sm:$0xff]
    %v106 = vld [vmem:[%s1 + $0x298] sm:$0xff]
    %v107 = vld [vmem:[%s1 + $0x2a0] sm:$0xff]
    %v108 = vld [vmem:[%s1 + $0x2a8] sm:$0xff]
    %v109 = vld [vmem:[%s1 + $0x2b0] sm:$0xff]
    %v110 = vld [vmem:[%s1 + $0x2b8] sm:$0xff]
    %v111 = vld [vmem:[%s1 + $0x2c0] sm:$0xff]
    %v112 = vld [vmem:[%s1 + $0x2c8] sm:$0xff]
    %v113 = vld [vmem:[%s1 + $0x2d0] sm:$0xff]
    %v114 = vld [vmem:[%s1 + $0x2d8] sm:$0xff]
    %v115 = vld [vmem:[%s1 + $0x2e0] sm:$0xff]
    %v116 = vld [vmem:[%s1 + $0x2e8] sm:$0xff]
    %v117 = vld [vmem:[%s1 + $0x2f0] sm:$0xff]
    %v118 = vld [vmem:[%s1 + $0x2f8] sm:$0xff]
    %v119 = vld [vmem:[%s1 + $0x300] sm:$0xff]
    %v120 = vld [vmem:[%s1 + $0x308] sm:$0xff]
    %v121 = vld [vmem:[%s1 + $0x310] sm:$0xff]
    %v122 = vld [vmem:[%s1 + $0x318] sm:$0xff]
    %v123 = vld [vmem:[%s1 + $0x320] sm:$0xff]
    %v124 = vld [vmem:[%s1 + $0x328] sm:$0xff]
    %v125 = vld [vmem:[%s1 + $0x330] sm:$0xff]
    %v126 = vld [vmem:[%s1 + $0x338] sm:$0xff]
    %v127 = vld [vmem:[%s1 + $0x340] sm:$0xff]
    %v128 = vld [vmem:[%s1 + $0x348] sm:$0xff]
    %v129 = vld [vmem:[%s1 + $0x350] sm:$0xff]
    %v130 = vld [vmem:[%s1 + $0x358] sm:$0xff]
    %v131 = vld [vmem:[%s1 + $0x360] sm:$0xff]
    %v132 = vld [vmem:[%s1 + $0x368] sm:$0xff]
    %v133 = vld [vmem:[%s1 + $0x370] sm:$0xff]
    %v134 = vld [vmem:[%s1 + $0x378] sm:$0xff]
    %v135 = vld [vmem:[%s1 + $0x380] sm:$0xff]
    %v136 = vld [vmem:[%s1 + $0x388] sm:$0xff]
    %v137 = vld [vmem:[%s1 + $0x390] sm:$0xff]
    %v138 = vld [vmem:[%s1 + $0x398] sm:$0xff]
    %v139 = vld [vmem:[%s1 + $0x3a0] sm:$0xff]
    %v140 = vld [vmem:[%s1 + $0x3a8] sm:$0xff]
    %v141 = vld [vmem:[%s1 + $0x3b0] sm:$0xff]
    %v142 = vld [vmem:[%s1 + $0x3b8] sm:$0xff]
    %v143 = vld [vmem:[%s1 + $0x3c0] sm:$0xff]
    %v144 = vld [vmem:[%s1 + $0x3c8] sm:$0xff]
    %v145 = vld [vmem:[%s1 + $0x3d0] sm:$0xff]
    %v146 = vld [vmem:[%s1 + $0x3d8] sm:$0xff]
    %v147 = vld [vmem:[%s1 + $0x3e0] sm:$0xff]
    %v148 = vld [vmem:[%s1 + $0x3e8] sm:$0xff]
    %v149 = vld [vmem:[%s1 + $0x3f0] sm:$0xff]
    %v150 = vld [vmem:[%s1 + $0x3f8] sm:$0xff]
    %v151 = vld [vmem:[%s1 + $0x400] sm:$0xff]
    %v152 = vld [vmem:[%s1 + $0x408] sm:$0xff]
    %v153 = vld [vmem:[%s1 + $0x410] sm:$0xff]
    %v154 = vld [vmem:[%s1 + $0x418] sm:$0xff]
    %v155 = vld [vmem:[%s1 + $0x420] sm:$0xff]
    %v156 = vld [vmem:[%s1 + $0x428] sm:$0xff]
    %v157 = vld [vmem:[%s1 + $0x430] sm:$0xff]
    %v158 = vld [vmem:[%s1 + $0x438] sm:$0xff]
    %v159 = vld [vmem:[%s1 + $0x440] sm:$0xff]
    %v160 = vld [vmem:[%s1 + $0x448] sm:$0xff]
    %v161 = vld [vmem:[%s1 + $0x450] sm:$0xff]
    %v162 = vld [vmem:[%s1 + $0x458] sm:$0xff]
    %v163 = vld [vmem:[%s1 + $0x460] sm:$0xff]
    %v164 = vld [vmem:[%s1 + $0x468] sm:$0xff]
    %v165 = vld [vmem:[%s1 + $0x470] sm:$0xff]
    %v166 = vld [vmem:[%s1 + $0x478] sm:$0xff]
    %v167 = vld [vmem:[%s1 + $0x480] sm:$0xff]
    %v168 = vld [vmem:[%s1 + $0x488] sm:$0xff]
    %v169 = vld [vmem:[%s1 + $0x490] sm:$0xff]
    %v170 = vld [vmem:[%s1 + $0x498] sm:$0xff]
    %v171 = vld [vmem:[%s1 + $0x4a0] sm:$0xff]
    %v172 = vld [vmem:[%s1 + $0x4a8] sm:$0xff]
    %v173 = vld [vmem:[%s1 + $0x4b0] sm:$0xff]
    %v174 = vld [vmem:[%s1 + $0x4b8] sm:$0xff]
    %v175 = vld [vmem:[%s1 + $0x4c0] sm:$0xff]
    %v176 = vld [vmem:[%s1 + $0x4c8] sm:$0xff]
    %v177 = vld [vmem:[%s1 + $0x4d0] sm:$0xff]
    %v178 = vld [vmem:[%s1 + $0x4d8] sm:$0xff]
    %v179 = vld [vmem:[%s1 + $0x4e0] sm:$0xff]
    %v180 = vld [vmem:[%s1 + $0x4e8] sm:$0xff]
    %v181 = vld [vmem:[%s1 + $0x4f0] sm:$0xff]
    %v182 = vld [vmem:[%s1 + $0x4f8] sm:$0xff]
    %v183 = vld [vmem:[%s1 + $0x500] sm:$0xff]
    %v184 = vld [vmem:[%s1 + $0x508] sm:$0xff]
    %v185 = vld [vmem:[%s1 + $0x510] sm:$0xff]
    %v186 = vld [vmem:[%s1 + $0x518] sm:$0xff]
    %v187 = vld [vmem:[%s1 + $0x520] sm:$0xff]
    %v188 = vld [vmem:[%s1 + $0x528] sm:$0xff]
    %v189 = vld [vmem:[%s1 + $0x530] sm:$0xff]
    %v190 = vld [vmem:[%s1 + $0x538] sm:$0xff]
    %v191 = vld [vmem:[%s1 + $0x540] sm:$0xff]
    %v192 = vld [vmem:[%s1 + $0x548] sm:$0xff]
    %v193 = vld [vmem:[%s1 + $0x550] sm:$0xff]
    %v194 = vld [vmem:[%s1 + $0x558] sm:$0xff]
    %v195 = vld [vmem:[%s1 + $0x560] sm:$0xff]
    %v196 = vld [vmem:[%s1 + $0x568] sm:$0xff]
    %v197 = vld [vmem:[%s1 + $0x570] sm:$0xff]
    %v198 = vld [vmem:[%s1 + $0x578] sm:$0xff]
    %v199 = vld [vmem:[%s1 + $0x580] sm:$0xff]
    %v200 = vld [vmem:[%s1 + $0x588] sm:$0xff]
    %v201 = vld [vmem:[%s1 + $0x590] sm:$0xff]
    %v202 = vld [vmem:[%s1 + $0x598] sm:$0xff]
    %v203 = vld [vmem:[%s1 + $0x5a0] sm:$0xff]
    %v204 = vld [vmem:[%s1 + $0x5a8] sm:$0xff]
    %v205 = vld [vmem:[%s1 + $0x5b0] sm:$0xff]
    %v206 = vld [vmem:[%s1 + $0x5b8] sm:$0xff]
    %v207 = vld [vmem:[%s1 + $0x5c0] sm:$0xff]
    %v208 = vld [vmem:[%s1 + $0x5c8] sm:$0xff]
    %v209 = vld [vmem:[%s1 + $0x5d0] sm:$0xff]
    %v210 = vld [vmem:[%s1 + $0x5d8] sm:$0xff]
    %v211 = vld [vmem:[%s1 + $0x5e0] sm:$0xff]
    %v212 = vld [vmem:[%s1 + $0x5e8] sm:$0xff]
    %v213 = vld [vmem:[%s1 + $0x5f0] sm:$0xff]
    %v214 = vld [vmem:[%s1 + $0x5f8] sm:$0xff]
    %v215 = vld [vmem:[%s1 + $0x600] sm:$0xff]
    %v216 = vld [vmem:[%s1 + $0x608] sm:$0xff]
    %v217 = vld [vmem:[%s1 + $0x610] sm:$0xff]
    %v218 = vld [vmem:[%s1 + $0x618] sm:$0xff]
    %v219 = vld [vmem:[%s1 + $0x620] sm:$0xff]
    %v220 = vld [vmem:[%s1 + $0x628] sm:$0xff]
    %v221 = vld [vmem:[%s1 + $0x630] sm:$0xff]
    %v222 = vld [vmem:[%s1 + $0x638] sm:$0xff]
    %v223 = vld [vmem:[%s1 + $0x640] sm:$0xff]
    %v224 = vld [vmem:[%s1 + $0x648] sm:$0xff]
    %v225 = vld [vmem:[%s1 + $0x650] sm:$0xff]
    %v226 = vld [vmem:[%s1 + $0x658] sm:$0xff]
    %v227 = vld [vmem:[%s1 + $0x660] sm:$0xff]
    %v228 = vld [vmem:[%s1 + $0x668] sm:$0xff]
    %v229 = vld [vmem:[%s1 + $0x670] sm:$0xff]
    %v230 = vld [vmem:[%s1 + $0x678] sm:$0xff]
    %v231 = vld [vmem:[%s1 + $0x680] sm:$0xff]
    %v232 = vld [vmem:[%s1 + $0x688] sm:$0xff]
    %v233 = vld [vmem:[%s1 + $0x690] sm:$0xff]
    %v234 = vld [vmem:[%s1 + $0x698] sm:$0xff]
    %v235 = vld [vmem:[%s1 + $0x6a0] sm:$0xff]
    %v236 = vld [vmem:[%s1 + $0x6a8] sm:$0xff]
    %v237 = vld [vmem:[%s1 + $0x6b0] sm:$0xff]
    %v238 = vld [vmem:[%s1 + $0x6b8] sm:$0xff]
    %v239 = vld [vmem:[%s2] sm:$0x3]
    %v241 = vlaneseq
    %v242 = vshrl.u32 %v241, 7
    %v243 = vsub.s32 0, %v242
    %v244 = vrot.slane %v239, %v243
    %v245 = vlaneseq
    %v246 = vshrl.u32 %v245, 7
    %v247 = vsub.s32 1, %v246
    %v248 = vrot.slane %v239, %v247
    %v259 = vcombine.low %v15, %v17
    %v260 = vcombine.high %v15, %v17
    %v261 = vcombine.low %v19, %v21
    %v262 = vcombine.high %v19, %v21
    %v264 = vunpack.c.l.s4 1966171168
    %v265 = vunpack.c.0.s8 %v264
    %v266 = vlaneseq
    %v267 = vshrl.u32 %v266, 7
    %v268 = vsub.s32 %v265, %v267
    %v269 = vrot.slane %v259, %v268
    %v271 = vunpack.c.l.s4 1966171168
    %v272 = vunpack.c.0.s8 %v271
    %v273 = vlaneseq
    %v274 = vshrl.u32 %v273, 7
    %v275 = vsub.s32 %v272, %v274
    %v276 = vrot.slane %v260, %v275
    %v278 = vunpack.c.l.s4 1966171168
    %v279 = vunpack.c.0.s8 %v278
    %v280 = vlaneseq
    %v281 = vshrl.u32 %v280, 7
    %v282 = vsub.s32 %v279, %v281
    %v283 = vrot.slane %v261, %v282
    %v285 = vunpack.c.l.s4 1966171168
    %v286 = vunpack.c.0.s8 %v285
    %v287 = vlaneseq
    %v288 = vshrl.u32 %v287, 7
    %v289 = vsub.s32 %v286, %v288
    %v290 = vrot.slane %v262, %v289
    %v291 = vcombine.low %v269, %v283
    %v292 = vcombine.high %v269, %v283
    %v293 = vcombine.low %v276, %v290
    %v294 = vcombine.high %v276, %v290
    %v296 = vunpack.c.l.s4 1966171168
    %v297 = vunpack.c.0.s8 %v296
    %v298 = vlaneseq
    %v299 = vshrl.u32 %v298, 7
    %v300 = vsub.s32 %v297, %v299
    %v301 = vrot.slane %v291, %v300
    %v303 = vunpack.c.l.s4 1966171168
    %v304 = vunpack.c.0.s8 %v303
    %v305 = vlaneseq
    %v306 = vshrl.u32 %v305, 7
    %v307 = vsub.s32 %v304, %v306
    %v308 = vrot.slane %v293, %v307
    %v310 = vunpack.c.l.s4 1966171168
    %v311 = vunpack.c.0.s8 %v310
    %v312 = vlaneseq
    %v313 = vshrl.u32 %v312, 7
    %v314 = vsub.s32 %v311, %v313
    %v315 = vrot.slane %v292, %v314
    %v317 = vunpack.c.l.s4 1966171168
    %v318 = vunpack.c.0.s8 %v317
    %v319 = vlaneseq
    %v320 = vshrl.u32 %v319, 7
    %v321 = vsub.s32 %v318, %v320
    %v322 = vrot.slane %v294, %v321
    %v323 = vcombine.high %v301, %v301
    %v324 = vcombine.high %v308, %v308
    %v325 = vcombine.high %v315, %v315
    %v326 = vcombine.high %v322, %v322
    %v327 = vcombine.low %v16, %v18
    %v328 = vcombine.high %v16, %v18
    %v329 = vcombine.low %v20, %v22
    %v330 = vcombine.high %v20, %v22
    %v332 = vunpack.c.l.s4 1966171168
    %v333 = vunpack.c.0.s8 %v332
    %v334 = vlaneseq
    %v335 = vshrl.u32 %v334, 7
    %v336 = vsub.s32 %v333, %v335
    %v337 = vrot.slane %v327, %v336
    %v339 = vunpack.c.l.s4 1966171168
    %v340 = vunpack.c.0.s8 %v339
    %v341 = vlaneseq
    %v342 = vshrl.u32 %v341, 7
    %v343 = vsub.s32 %v340, %v342
    %v344 = vrot.slane %v328, %v343
    %v346 = vunpack.c.l.s4 1966171168
    %v347 = vunpack.c.0.s8 %v346
    %v348 = vlaneseq
    %v349 = vshrl.u32 %v348, 7
    %v350 = vsub.s32 %v347, %v349
    %v351 = vrot.slane %v329, %v350
    %v353 = vunpack.c.l.s4 1966171168
    %v354 = vunpack.c.0.s8 %v353
    %v355 = vlaneseq
    %v356 = vshrl.u32 %v355, 7
    %v357 = vsub.s32 %v354, %v356
    %v358 = vrot.slane %v330, %v357
    %v359 = vcombine.low %v337, %v351
    %v360 = vcombine.high %v337, %v351
    %v361 = vcombine.low %v344, %v358
    %v362 = vcombine.high %v344, %v358
    %v364 = vunpack.c.l.s4 1966171168
    %v365 = vunpack.c.0.s8 %v364
    %v366 = vlaneseq
    %v367 = vshrl.u32 %v366, 7
    %v368 = vsub.s32 %v365, %v367
    %v369 = vrot.slane %v359, %v368
    %v371 = vunpack.c.l.s4 1966171168
    %v372 = vunpack.c.0.s8 %v371
    %v373 = vlaneseq
    %v374 = vshrl.u32 %v373, 7
    %v375 = vsub.s32 %v372, %v374
    %v376 = vrot.slane %v361, %v375
    %v378 = vunpack.c.l.s4 1966171168
    %v379 = vunpack.c.0.s8 %v378
    %v380 = vlaneseq
    %v381 = vshrl.u32 %v380, 7
    %v382 = vsub.s32 %v379, %v381
    %v383 = vrot.slane %v360, %v382
    %v385 = vunpack.c.l.s4 1966171168
    %v386 = vunpack.c.0.s8 %v385
    %v387 = vlaneseq
    %v388 = vshrl.u32 %v387, 7
    %v389 = vsub.s32 %v386, %v388
    %v390 = vrot.slane %v362, %v389
    %v391 = vcombine.high %v369, %v369
    %v392 = vcombine.high %v383, %v383
    %v622 = vunpack.c.l.b16 %v23
    %v623 = vunpack.c.h.b16 %v23
    %v624 = vunpack.c.l.b16 %v24
    %v625 = vunpack.c.h.b16 %v24
    %v626 = vunpack.c.l.b16 %v25
    %v627 = vunpack.c.h.b16 %v25
    %v628 = vunpack.c.l.b16 %v26
    %v629 = vunpack.c.h.b16 %v26
    %v630 = vunpack.c.l.b16 %v27
    %v631 = vunpack.c.h.b16 %v27
    %v632 = vunpack.c.l.b16 %v28
    %v633 = vunpack.c.h.b16 %v28
    %v634 = vunpack.c.l.b16 %v29
    %v635 = vunpack.c.h.b16 %v29
    %v636 = vunpack.c.l.b16 %v30
    %v637 = vunpack.c.h.b16 %v30
    %v638 = vunpack.c.l.b16 %v31
    %v639 = vunpack.c.h.b16 %v31
    %v640 = vunpack.c.l.b16 %v32
    %v641 = vunpack.c.h.b16 %v32
    %v642 = vunpack.c.l.b16 %v33
    %v643 = vunpack.c.h.b16 %v33
    %v644 = vunpack.c.l.b16 %v34
    %v645 = vunpack.c.h.b16 %v34
    %v646 = vunpack.c.l.b16 %v35
    %v647 = vunpack.c.h.b16 %v35
    %v648 = vunpack.c.l.b16 %v36
    %v649 = vunpack.c.h.b16 %v36
    %v650 = vunpack.c.l.b16 %v37
    %v651 = vunpack.c.h.b16 %v37
    %v652 = vunpack.c.l.b16 %v38
    %v653 = vunpack.c.h.b16 %v38
    %v654 = vunpack.c.l.b16 %v39
    %v655 = vunpack.c.h.b16 %v39
    %v656 = vunpack.c.l.b16 %v40
    %v657 = vunpack.c.h.b16 %v40
    %v658 = vunpack.c.l.b16 %v41
    %v659 = vunpack.c.h.b16 %v41
    %v660 = vunpack.c.l.b16 %v42
    %v661 = vunpack.c.h.b16 %v42
    %v662 = vunpack.c.l.b16 %v43
    %v663 = vunpack.c.h.b16 %v43
    %v664 = vunpack.c.l.b16 %v44
    %v665 = vunpack.c.h.b16 %v44
    %v666 = vunpack.c.l.b16 %v45
    %v667 = vunpack.c.h.b16 %v45
    %v668 = vunpack.c.l.b16 %v46
    %v669 = vunpack.c.h.b16 %v46
    %v670 = vunpack.c.l.b16 %v47
    %v671 = vunpack.c.h.b16 %v47
    %v672 = vunpack.c.l.b16 %v48
    %v673 = vunpack.c.h.b16 %v48
    %v674 = vunpack.c.l.b16 %v49
    %v675 = vunpack.c.h.b16 %v49
    %v676 = vunpack.c.l.b16 %v50
    %v677 = vunpack.c.h.b16 %v50
    %v678 = vunpack.c.l.b16 %v51
    %v679 = vunpack.c.h.b16 %v51
    %v680 = vunpack.c.l.b16 %v52
    %v681 = vunpack.c.h.b16 %v52
    %v682 = vunpack.c.l.b16 %v53
    %v683 = vunpack.c.h.b16 %v53
    %v684 = vunpack.c.l.b16 %v54
    %v685 = vunpack.c.h.b16 %v54
    %v686 = vunpack.c.l.b16 %v55
    %v687 = vunpack.c.h.b16 %v55
    %v688 = vunpack.c.l.b16 %v56
    %v689 = vunpack.c.h.b16 %v56
    %v690 = vunpack.c.l.b16 %v57
    %v691 = vunpack.c.h.b16 %v57
    %v692 = vunpack.c.l.b16 %v58
    %v693 = vunpack.c.h.b16 %v58
    %v694 = vunpack.c.l.b16 %v59
    %v695 = vunpack.c.h.b16 %v59
    %v696 = vunpack.c.l.b16 %v60
    %v697 = vunpack.c.h.b16 %v60
    %v698 = vunpack.c.l.b16 %v61
    %v699 = vunpack.c.h.b16 %v61
    %v700 = vunpack.c.l.b16 %v62
    %v701 = vunpack.c.h.b16 %v62
    %v702 = vunpack.c.l.b16 %v63
    %v703 = vunpack.c.h.b16 %v63
    %v704 = vunpack.c.l.b16 %v64
    %v705 = vunpack.c.h.b16 %v64
    %v706 = vunpack.c.l.b16 %v65
    %v707 = vunpack.c.h.b16 %v65
    %v708 = vunpack.c.l.b16 %v66
    %v709 = vunpack.c.h.b16 %v66
    %v710 = vunpack.c.l.b16 %v67
    %v711 = vunpack.c.h.b16 %v67
    %v712 = vunpack.c.l.b16 %v68
    %v713 = vunpack.c.h.b16 %v68
    %v714 = vunpack.c.l.b16 %v69
    %v715 = vunpack.c.h.b16 %v69
    %v716 = vunpack.c.l.b16 %v70
    %v717 = vunpack.c.h.b16 %v70
    %v718 = vunpack.c.l.b16 %v71
    %v719 = vunpack.c.h.b16 %v71
    %v720 = vunpack.c.l.b16 %v72
    %v721 = vunpack.c.h.b16 %v72
    %v722 = vunpack.c.l.b16 %v73
    %v723 = vunpack.c.h.b16 %v73
    %v724 = vunpack.c.l.b16 %v74
    %v725 = vunpack.c.h.b16 %v74
    %v726 = vunpack.c.l.b16 %v75
    %v727 = vunpack.c.h.b16 %v75
    %v728 = vunpack.c.l.b16 %v76
    %v729 = vunpack.c.h.b16 %v76
    %v730 = vunpack.c.l.b16 %v77
    %v731 = vunpack.c.h.b16 %v77
    %v732 = vunpack.c.l.b16 %v78
    %v733 = vunpack.c.h.b16 %v78
    %v734 = vunpack.c.l.b16 %v79
    %v735 = vunpack.c.h.b16 %v79
    %v736 = vunpack.c.l.b16 %v80
    %v737 = vunpack.c.h.b16 %v80
    %v738 = vunpack.c.l.b16 %v81
    %v739 = vunpack.c.h.b16 %v81
    %v740 = vunpack.c.l.b16 %v82
    %v741 = vunpack.c.h.b16 %v82
    %v742 = vunpack.c.l.b16 %v83
    %v743 = vunpack.c.h.b16 %v83
    %v744 = vunpack.c.l.b16 %v84
    %v745 = vunpack.c.h.b16 %v84
    %v746 = vunpack.c.l.b16 %v85
    %v747 = vunpack.c.h.b16 %v85
    %v748 = vunpack.c.l.b16 %v86
    %v749 = vunpack.c.h.b16 %v86
    %v750 = vunpack.c.l.b16 %v87
    %v751 = vunpack.c.h.b16 %v87
    %v752 = vunpack.c.l.b16 %v88
    %v753 = vunpack.c.h.b16 %v88
    %v754 = vunpack.c.l.b16 %v89
    %v755 = vunpack.c.h.b16 %v89
    %v756 = vunpack.c.l.b16 %v90
    %v757 = vunpack.c.h.b16 %v90
    %v758 = vunpack.c.l.b16 %v91
    %v759 = vunpack.c.h.b16 %v91
    %v760 = vunpack.c.l.b16 %v92
    %v761 = vunpack.c.h.b16 %v92
    %v762 = vunpack.c.l.b16 %v93
    %v763 = vunpack.c.h.b16 %v93
    %v764 = vunpack.c.l.b16 %v94
    %v765 = vunpack.c.h.b16 %v94
    %v766 = vunpack.c.l.b16 %v95
    %v767 = vunpack.c.h.b16 %v95
    %v768 = vunpack.c.l.b16 %v96
    %v769 = vunpack.c.h.b16 %v96
    %v770 = vunpack.c.l.b16 %v97
    %v771 = vunpack.c.h.b16 %v97
    %v772 = vunpack.c.l.b16 %v98
    %v773 = vunpack.c.h.b16 %v98
    %v774 = vunpack.c.l.b16 %v99
    %v775 = vunpack.c.h.b16 %v99
    %v776 = vunpack.c.l.b16 %v100
    %v777 = vunpack.c.h.b16 %v100
    %v778 = vunpack.c.l.b16 %v101
    %v779 = vunpack.c.h.b16 %v101
    %v780 = vunpack.c.l.b16 %v102
    %v781 = vunpack.c.h.b16 %v102
    %v782 = vunpack.c.l.b16 %v103
    %v783 = vunpack.c.h.b16 %v103
    %v784 = vunpack.c.l.b16 %v104
    %v785 = vunpack.c.h.b16 %v104
    %v786 = vunpack.c.l.b16 %v105
    %v787 = vunpack.c.h.b16 %v105
    %v788 = vunpack.c.l.b16 %v106
    %v789 = vunpack.c.h.b16 %v106
    %v790 = vunpack.c.l.b16 %v107
    %v791 = vunpack.c.h.b16 %v107
    %v792 = vunpack.c.l.b16 %v108
    %v793 = vunpack.c.h.b16 %v108
    %v794 = vunpack.c.l.b16 %v109
    %v795 = vunpack.c.h.b16 %v109
    %v796 = vunpack.c.l.b16 %v110
    %v797 = vunpack.c.h.b16 %v110
    %v798 = vunpack.c.l.b16 %v111
    %v799 = vunpack.c.h.b16 %v111
    %v800 = vunpack.c.l.b16 %v112
    %v801 = vunpack.c.h.b16 %v112
    %v802 = vunpack.c.l.b16 %v113
    %v803 = vunpack.c.h.b16 %v113
    %v804 = vunpack.c.l.b16 %v114
    %v805 = vunpack.c.h.b16 %v114
    %v806 = vunpack.c.l.b16 %v115
    %v807 = vunpack.c.h.b16 %v115
    %v808 = vunpack.c.l.b16 %v116
    %v809 = vunpack.c.h.b16 %v116
    %v810 = vunpack.c.l.b16 %v117
    %v811 = vunpack.c.h.b16 %v117
    %v812 = vunpack.c.l.b16 %v118
    %v813 = vunpack.c.h.b16 %v118
    %v814 = vunpack.c.l.b16 %v119
    %v815 = vunpack.c.h.b16 %v119
    %v816 = vunpack.c.l.b16 %v120
    %v817 = vunpack.c.h.b16 %v120
    %v818 = vunpack.c.l.b16 %v121
    %v819 = vunpack.c.h.b16 %v121
    %v820 = vunpack.c.l.b16 %v122
    %v821 = vunpack.c.h.b16 %v122
    %v822 = vunpack.c.l.b16 %v123
    %v823 = vunpack.c.h.b16 %v123
    %v824 = vunpack.c.l.b16 %v124
    %v825 = vunpack.c.h.b16 %v124
    %v826 = vunpack.c.l.b16 %v125
    %v827 = vunpack.c.h.b16 %v125
    %v828 = vunpack.c.l.b16 %v126
    %v829 = vunpack.c.h.b16 %v126
    %v830 = vunpack.c.l.b16 %v127
    %v831 = vunpack.c.h.b16 %v127
    %v832 = vunpack.c.l.b16 %v128
    %v833 = vunpack.c.h.b16 %v128
    %v834 = vunpack.c.l.b16 %v129
    %v835 = vunpack.c.h.b16 %v129
    %v836 = vunpack.c.l.b16 %v130
    %v837 = vunpack.c.h.b16 %v130
    %v838 = vunpack.c.l.b16 %v131
    %v839 = vunpack.c.h.b16 %v131
    %v840 = vunpack.c.l.b16 %v132
    %v841 = vunpack.c.h.b16 %v132
    %v842 = vunpack.c.l.b16 %v133
    %v843 = vunpack.c.h.b16 %v133
    %v844 = vunpack.c.l.b16 %v134
    %v845 = vunpack.c.h.b16 %v134
    %v846 = vunpack.c.l.b16 %v135
    %v847 = vunpack.c.h.b16 %v135
    %v848 = vunpack.c.l.b16 %v136
    %v849 = vunpack.c.h.b16 %v136
    %v850 = vunpack.c.l.b16 %v137
    %v851 = vunpack.c.h.b16 %v137
    %v852 = vunpack.c.l.b16 %v138
    %v853 = vunpack.c.h.b16 %v138
    %v854 = vunpack.c.l.b16 %v139
    %v855 = vunpack.c.h.b16 %v139
    %v856 = vunpack.c.l.b16 %v140
    %v857 = vunpack.c.h.b16 %v140
    %v858 = vunpack.c.l.b16 %v141
    %v859 = vunpack.c.h.b16 %v141
    %v860 = vunpack.c.l.b16 %v142
    %v861 = vunpack.c.h.b16 %v142
    %v862 = vunpack.c.l.b16 %v143
    %v863 = vunpack.c.h.b16 %v143
    %v864 = vunpack.c.l.b16 %v144
    %v865 = vunpack.c.h.b16 %v144
    %v866 = vunpack.c.l.b16 %v145
    %v867 = vunpack.c.h.b16 %v145
    %v868 = vunpack.c.l.b16 %v146
    %v869 = vunpack.c.h.b16 %v146
    %v870 = vunpack.c.l.b16 %v147
    %v871 = vunpack.c.h.b16 %v147
    %v872 = vunpack.c.l.b16 %v148
    %v873 = vunpack.c.h.b16 %v148
    %v874 = vunpack.c.l.b16 %v149
    %v875 = vunpack.c.h.b16 %v149
    %v876 = vunpack.c.l.b16 %v150
    %v877 = vunpack.c.h.b16 %v150
    %v878 = vunpack.c.l.b16 %v151
    %v879 = vunpack.c.h.b16 %v151
    %v880 = vunpack.c.l.b16 %v152
    %v881 = vunpack.c.h.b16 %v152
    %v882 = vunpack.c.l.b16 %v153
    %v883 = vunpack.c.h.b16 %v153
    %v884 = vunpack.c.l.b16 %v154
    %v885 = vunpack.c.h.b16 %v154
    %v886 = vunpack.c.l.b16 %v155
    %v887 = vunpack.c.h.b16 %v155
    %v888 = vunpack.c.l.b16 %v156
    %v889 = vunpack.c.h.b16 %v156
    %v890 = vunpack.c.l.b16 %v157
    %v891 = vunpack.c.h.b16 %v157
    %v892 = vunpack.c.l.b16 %v158
    %v893 = vunpack.c.h.b16 %v158
    %v894 = vunpack.c.l.b16 %v159
    %v895 = vunpack.c.h.b16 %v159
    %v896 = vunpack.c.l.b16 %v160
    %v897 = vunpack.c.h.b16 %v160
    %v898 = vunpack.c.l.b16 %v161
    %v899 = vunpack.c.h.b16 %v161
    %v900 = vunpack.c.l.b16 %v162
    %v901 = vunpack.c.h.b16 %v162
    %v902 = vunpack.c.l.b16 %v163
    %v903 = vunpack.c.h.b16 %v163
    %v904 = vunpack.c.l.b16 %v164
    %v905 = vunpack.c.h.b16 %v164
    %v906 = vunpack.c.l.b16 %v165
    %v907 = vunpack.c.h.b16 %v165
    %v908 = vunpack.c.l.b16 %v166
    %v909 = vunpack.c.h.b16 %v166
    %v910 = vunpack.c.l.b16 %v167
    %v911 = vunpack.c.h.b16 %v167
    %v912 = vunpack.c.l.b16 %v168
    %v913 = vunpack.c.h.b16 %v168
    %v914 = vunpack.c.l.b16 %v169
    %v915 = vunpack.c.h.b16 %v169
    %v916 = vunpack.c.l.b16 %v170
    %v917 = vunpack.c.h.b16 %v170
    %v918 = vunpack.c.l.b16 %v171
    %v919 = vunpack.c.h.b16 %v171
    %v920 = vunpack.c.l.b16 %v172
    %v921 = vunpack.c.h.b16 %v172
    %v922 = vunpack.c.l.b16 %v173
    %v923 = vunpack.c.h.b16 %v173
    %v924 = vunpack.c.l.b16 %v174
    %v925 = vunpack.c.h.b16 %v174
    %v926 = vunpack.c.l.b16 %v175
    %v927 = vunpack.c.h.b16 %v175
    %v928 = vunpack.c.l.b16 %v176
    %v929 = vunpack.c.h.b16 %v176
    %v930 = vunpack.c.l.b16 %v177
    %v931 = vunpack.c.h.b16 %v177
    %v932 = vunpack.c.l.b16 %v178
    %v933 = vunpack.c.h.b16 %v178
    %v934 = vunpack.c.l.b16 %v179
    %v935 = vunpack.c.h.b16 %v179
    %v936 = vunpack.c.l.b16 %v180
    %v937 = vunpack.c.h.b16 %v180
    %v938 = vunpack.c.l.b16 %v181
    %v939 = vunpack.c.h.b16 %v181
    %v940 = vunpack.c.l.b16 %v182
    %v941 = vunpack.c.h.b16 %v182
    %v942 = vunpack.c.l.b16 %v183
    %v943 = vunpack.c.h.b16 %v183
    %v944 = vunpack.c.l.b16 %v184
    %v945 = vunpack.c.h.b16 %v184
    %v946 = vunpack.c.l.b16 %v185
    %v947 = vunpack.c.h.b16 %v185
    %v948 = vunpack.c.l.b16 %v186
    %v949 = vunpack.c.h.b16 %v186
    %v950 = vunpack.c.l.b16 %v187
    %v951 = vunpack.c.h.b16 %v187
    %v952 = vunpack.c.l.b16 %v188
    %v953 = vunpack.c.h.b16 %v188
    %v954 = vunpack.c.l.b16 %v189
    %v955 = vunpack.c.h.b16 %v189
    %v956 = vunpack.c.l.b16 %v190
    %v957 = vunpack.c.h.b16 %v190
    %v958 = vunpack.c.l.b16 %v191
    %v959 = vunpack.c.h.b16 %v191
    %v960 = vunpack.c.l.b16 %v192
    %v961 = vunpack.c.h.b16 %v192
    %v962 = vunpack.c.l.b16 %v193
    %v963 = vunpack.c.h.b16 %v193
    %v964 = vunpack.c.l.b16 %v194
    %v965 = vunpack.c.h.b16 %v194
    %v966 = vunpack.c.l.b16 %v195
    %v967 = vunpack.c.h.b16 %v195
    %v968 = vunpack.c.l.b16 %v196
    %v969 = vunpack.c.h.b16 %v196
    %v970 = vunpack.c.l.b16 %v197
    %v971 = vunpack.c.h.b16 %v197
    %v972 = vunpack.c.l.b16 %v198
    %v973 = vunpack.c.h.b16 %v198
    %v974 = vunpack.c.l.b16 %v199
    %v975 = vunpack.c.h.b16 %v199
    %v976 = vunpack.c.l.b16 %v200
    %v977 = vunpack.c.h.b16 %v200
    %v978 = vunpack.c.l.b16 %v201
    %v979 = vunpack.c.h.b16 %v201
    %v980 = vunpack.c.l.b16 %v202
    %v981 = vunpack.c.h.b16 %v202
    %v982 = vunpack.c.l.b16 %v203
    %v983 = vunpack.c.h.b16 %v203
    %v984 = vunpack.c.l.b16 %v204
    %v985 = vunpack.c.h.b16 %v204
    %v986 = vunpack.c.l.b16 %v205
    %v987 = vunpack.c.h.b16 %v205
    %v988 = vunpack.c.l.b16 %v206
    %v989 = vunpack.c.h.b16 %v206
    %v990 = vunpack.c.l.b16 %v207
    %v991 = vunpack.c.h.b16 %v207
    %v992 = vunpack.c.l.b16 %v208
    %v993 = vunpack.c.h.b16 %v208
    %v994 = vunpack.c.l.b16 %v209
    %v995 = vunpack.c.h.b16 %v209
    %v996 = vunpack.c.l.b16 %v210
    %v997 = vunpack.c.h.b16 %v210
    %v998 = vunpack.c.l.b16 %v211
    %v999 = vunpack.c.h.b16 %v211
    %v1000 = vunpack.c.l.b16 %v212
    %v1001 = vunpack.c.h.b16 %v212
    %v1002 = vunpack.c.l.b16 %v213
    %v1003 = vunpack.c.h.b16 %v213
    %v1004 = vunpack.c.l.b16 %v214
    %v1005 = vunpack.c.h.b16 %v214
    %v1006 = vunpack.c.l.b16 %v215
    %v1007 = vunpack.c.h.b16 %v215
    %v1008 = vunpack.c.l.b16 %v216
    %v1009 = vunpack.c.h.b16 %v216
    %v1010 = vunpack.c.l.b16 %v217
    %v1011 = vunpack.c.h.b16 %v217
    %v1012 = vunpack.c.l.b16 %v218
    %v1013 = vunpack.c.h.b16 %v218
    %v1014 = vunpack.c.l.b16 %v219
    %v1015 = vunpack.c.h.b16 %v219
    %v1016 = vunpack.c.l.b16 %v220
    %v1017 = vunpack.c.h.b16 %v220
    %v1018 = vunpack.c.l.b16 %v221
    %v1019 = vunpack.c.h.b16 %v221
    %v1020 = vunpack.c.l.b16 %v222
    %v1021 = vunpack.c.h.b16 %v222
    %v1022 = vunpack.c.l.b16 %v223
    %v1023 = vunpack.c.h.b16 %v223
    %v1024 = vunpack.c.l.b16 %v224
    %v1025 = vunpack.c.h.b16 %v224
    %v1026 = vunpack.c.l.b16 %v225
    %v1027 = vunpack.c.h.b16 %v225
    %v1028 = vunpack.c.l.b16 %v226
    %v1029 = vunpack.c.h.b16 %v226
    %v1030 = vunpack.c.l.b16 %v227
    %v1031 = vunpack.c.h.b16 %v227
    %v1032 = vunpack.c.l.b16 %v228
    %v1033 = vunpack.c.h.b16 %v228
    %v1034 = vunpack.c.l.b16 %v229
    %v1035 = vunpack.c.h.b16 %v229
    %v1036 = vunpack.c.l.b16 %v230
    %v1037 = vunpack.c.h.b16 %v230
    %v1038 = vunpack.c.l.b16 %v231
    %v1039 = vunpack.c.h.b16 %v231
    %v1040 = vunpack.c.l.b16 %v232
    %v1041 = vunpack.c.h.b16 %v232
    %v1042 = vunpack.c.l.b16 %v233
    %v1043 = vunpack.c.h.b16 %v233
    %v1044 = vunpack.c.l.b16 %v234
    %v1045 = vunpack.c.h.b16 %v234
    %v1046 = vunpack.c.l.b16 %v235
    %v1047 = vunpack.c.h.b16 %v235
    %v1048 = vunpack.c.l.b16 %v236
    %v1049 = vunpack.c.h.b16 %v236
    %v1050 = vunpack.c.l.b16 %v237
    %v1051 = vunpack.c.h.b16 %v237
    %v1052 = vunpack.c.l.b16 %v238
    %v1053 = vunpack.c.h.b16 %v238
    %v1054 = vpack.c.b16 %v624, %v622
    %v1055 = vpack.c.b16 %v625, %v623
    %v1056 = vpack.c.b16 %v628, %v626
    %v1057 = vpack.c.b16 %v629, %v627
    %v1058 = vpack.c.b16 %v632, %v630
    %v1059 = vpack.c.b16 %v633, %v631
    %v1060 = vpack.c.b16 %v636, %v634
    %v1061 = vpack.c.b16 %v637, %v635
    %v1062 = vpack.c.b16 %v640, %v638
    %v1063 = vpack.c.b16 %v641, %v639
    %v1064 = vpack.c.b16 %v644, %v642
    %v1065 = vpack.c.b16 %v645, %v643
    %v1066 = vpack.c.b16 %v648, %v646
    %v1067 = vpack.c.b16 %v649, %v647
    %v1068 = vpack.c.b16 %v652, %v650
    %v1069 = vpack.c.b16 %v653, %v651
    %v1070 = vpack.c.b16 %v656, %v654
    %v1071 = vpack.c.b16 %v657, %v655
    %v1072 = vpack.c.b16 %v660, %v658
    %v1073 = vpack.c.b16 %v661, %v659
    %v1074 = vpack.c.b16 %v664, %v662
    %v1075 = vpack.c.b16 %v665, %v663
    %v1076 = vpack.c.b16 %v668, %v666
    %v1077 = vpack.c.b16 %v669, %v667
    %v1078 = vpack.c.b16 %v672, %v670
    %v1079 = vpack.c.b16 %v673, %v671
    %v1080 = vpack.c.b16 %v676, %v674
    %v1081 = vpack.c.b16 %v677, %v675
    %v1082 = vpack.c.b16 %v680, %v678
    %v1083 = vpack.c.b16 %v681, %v679
    %v1084 = vpack.c.b16 %v684, %v682
    %v1085 = vpack.c.b16 %v685, %v683
    %v1086 = vpack.c.b16 %v688, %v686
    %v1087 = vpack.c.b16 %v689, %v687
    %v1088 = vpack.c.b16 %v692, %v690
    %v1089 = vpack.c.b16 %v693, %v691
    %v1090 = vpack.c.b16 %v696, %v694
    %v1091 = vpack.c.b16 %v697, %v695
    %v1092 = vpack.c.b16 %v700, %v698
    %v1093 = vpack.c.b16 %v701, %v699
    %v1094 = vpack.c.b16 %v704, %v702
    %v1095 = vpack.c.b16 %v705, %v703
    %v1096 = vpack.c.b16 %v708, %v706
    %v1097 = vpack.c.b16 %v709, %v707
    %v1098 = vpack.c.b16 %v712, %v710
    %v1099 = vpack.c.b16 %v713, %v711
    %v1100 = vpack.c.b16 %v716, %v714
    %v1101 = vpack.c.b16 %v717, %v715
    %v1102 = vpack.c.b16 %v720, %v718
    %v1103 = vpack.c.b16 %v721, %v719
    %v1104 = vpack.c.b16 %v724, %v722
    %v1105 = vpack.c.b16 %v725, %v723
    %v1106 = vpack.c.b16 %v728, %v726
    %v1107 = vpack.c.b16 %v729, %v727
    %v1108 = vpack.c.b16 %v732, %v730
    %v1109 = vpack.c.b16 %v733, %v731
    %v1110 = vpack.c.b16 %v736, %v734
    %v1111 = vpack.c.b16 %v737, %v735
    %v1112 = vpack.c.b16 %v740, %v738
    %v1113 = vpack.c.b16 %v741, %v739
    %v1114 = vpack.c.b16 %v744, %v742
    %v1115 = vpack.c.b16 %v745, %v743
    %v1116 = vpack.c.b16 %v748, %v746
    %v1117 = vpack.c.b16 %v749, %v747
    %v1118 = vpack.c.b16 %v752, %v750
    %v1119 = vpack.c.b16 %v753, %v751
    %v1120 = vpack.c.b16 %v756, %v754
    %v1121 = vpack.c.b16 %v757, %v755
    %v1122 = vpack.c.b16 %v760, %v758
    %v1123 = vpack.c.b16 %v761, %v759
    %v1124 = vpack.c.b16 %v764, %v762
    %v1125 = vpack.c.b16 %v765, %v763
    %v1126 = vpack.c.b16 %v768, %v766
    %v1127 = vpack.c.b16 %v769, %v767
    %v1128 = vpack.c.b16 %v772, %v770
    %v1129 = vpack.c.b16 %v773, %v771
    %v1130 = vpack.c.b16 %v776, %v774
    %v1131 = vpack.c.b16 %v777, %v775
    %v1132 = vpack.c.b16 %v780, %v778
    %v1133 = vpack.c.b16 %v781, %v779
    %v1134 = vpack.c.b16 %v784, %v782
    %v1135 = vpack.c.b16 %v785, %v783
    %v1136 = vpack.c.b16 %v788, %v786
    %v1137 = vpack.c.b16 %v789, %v787
    %v1138 = vpack.c.b16 %v792, %v790
    %v1139 = vpack.c.b16 %v793, %v791
    %v1140 = vpack.c.b16 %v796, %v794
    %v1141 = vpack.c.b16 %v797, %v795
    %v1142 = vpack.c.b16 %v800, %v798
    %v1143 = vpack.c.b16 %v801, %v799
    %v1144 = vpack.c.b16 %v804, %v802
    %v1145 = vpack.c.b16 %v805, %v803
    %v1146 = vpack.c.b16 %v808, %v806
    %v1147 = vpack.c.b16 %v809, %v807
    %v1148 = vpack.c.b16 %v812, %v810
    %v1149 = vpack.c.b16 %v813, %v811
    %v1150 = vpack.c.b16 %v816, %v814
    %v1151 = vpack.c.b16 %v817, %v815
    %v1152 = vpack.c.b16 %v820, %v818
    %v1153 = vpack.c.b16 %v821, %v819
    %v1154 = vpack.c.b16 %v824, %v822
    %v1155 = vpack.c.b16 %v825, %v823
    %v1156 = vpack.c.b16 %v828, %v826
    %v1157 = vpack.c.b16 %v829, %v827
    %v1158 = vpack.c.b16 %v832, %v830
    %v1159 = vpack.c.b16 %v833, %v831
    %v1160 = vpack.c.b16 %v836, %v834
    %v1161 = vpack.c.b16 %v837, %v835
    %v1162 = vpack.c.b16 %v840, %v838
    %v1163 = vpack.c.b16 %v841, %v839
    %v1164 = vpack.c.b16 %v844, %v842
    %v1165 = vpack.c.b16 %v845, %v843
    %v1166 = vpack.c.b16 %v848, %v846
    %v1167 = vpack.c.b16 %v849, %v847
    %v1168 = vpack.c.b16 %v852, %v850
    %v1169 = vpack.c.b16 %v853, %v851
    %v1170 = vpack.c.b16 %v856, %v854
    %v1171 = vpack.c.b16 %v857, %v855
    %v1172 = vpack.c.b16 %v860, %v858
    %v1173 = vpack.c.b16 %v861, %v859
    %v1174 = vpack.c.b16 %v864, %v862
    %v1175 = vpack.c.b16 %v865, %v863
    %v1176 = vpack.c.b16 %v868, %v866
    %v1177 = vpack.c.b16 %v869, %v867
    %v1178 = vpack.c.b16 %v872, %v870
    %v1179 = vpack.c.b16 %v873, %v871
    %v1180 = vpack.c.b16 %v876, %v874
    %v1181 = vpack.c.b16 %v877, %v875
    %v1182 = vpack.c.b16 %v880, %v878
    %v1183 = vpack.c.b16 %v881, %v879
    %v1184 = vpack.c.b16 %v884, %v882
    %v1185 = vpack.c.b16 %v885, %v883
    %v1186 = vpack.c.b16 %v888, %v886
    %v1187 = vpack.c.b16 %v889, %v887
    %v1188 = vpack.c.b16 %v892, %v890
    %v1189 = vpack.c.b16 %v893, %v891
    %v1190 = vpack.c.b16 %v896, %v894
    %v1191 = vpack.c.b16 %v897, %v895
    %v1192 = vpack.c.b16 %v900, %v898
    %v1193 = vpack.c.b16 %v901, %v899
    %v1194 = vpack.c.b16 %v904, %v902
    %v1195 = vpack.c.b16 %v905, %v903
    %v1196 = vpack.c.b16 %v908, %v906
    %v1197 = vpack.c.b16 %v909, %v907
    %v1198 = vpack.c.b16 %v912, %v910
    %v1199 = vpack.c.b16 %v913, %v911
    %v1200 = vpack.c.b16 %v916, %v914
    %v1201 = vpack.c.b16 %v917, %v915
    %v1202 = vpack.c.b16 %v920, %v918
    %v1203 = vpack.c.b16 %v921, %v919
    %v1204 = vpack.c.b16 %v924, %v922
    %v1205 = vpack.c.b16 %v925, %v923
    %v1206 = vpack.c.b16 %v928, %v926
    %v1207 = vpack.c.b16 %v929, %v927
    %v1208 = vpack.c.b16 %v932, %v930
    %v1209 = vpack.c.b16 %v933, %v931
    %v1210 = vpack.c.b16 %v936, %v934
    %v1211 = vpack.c.b16 %v937, %v935
    %v1212 = vpack.c.b16 %v940, %v938
    %v1213 = vpack.c.b16 %v941, %v939
    %v1214 = vpack.c.b16 %v944, %v942
    %v1215 = vpack.c.b16 %v945, %v943
    %v1216 = vpack.c.b16 %v948, %v946
    %v1217 = vpack.c.b16 %v949, %v947
    %v1218 = vpack.c.b16 %v952, %v950
    %v1219 = vpack.c.b16 %v953, %v951
    %v1220 = vpack.c.b16 %v956, %v954
    %v1221 = vpack.c.b16 %v957, %v955
    %v1222 = vpack.c.b16 %v960, %v958
    %v1223 = vpack.c.b16 %v961, %v959
    %v1224 = vpack.c.b16 %v964, %v962
    %v1225 = vpack.c.b16 %v965, %v963
    %v1226 = vpack.c.b16 %v968, %v966
    %v1227 = vpack.c.b16 %v969, %v967
    %v1228 = vpack.c.b16 %v972, %v970
    %v1229 = vpack.c.b16 %v973, %v971
    %v1230 = vpack.c.b16 %v976, %v974
    %v1231 = vpack.c.b16 %v977, %v975
    %v1232 = vpack.c.b16 %v980, %v978
    %v1233 = vpack.c.b16 %v981, %v979
    %v1234 = vpack.c.b16 %v984, %v982
    %v1235 = vpack.c.b16 %v985, %v983
    %v1236 = vpack.c.b16 %v988, %v986
    %v1237 = vpack.c.b16 %v989, %v987
    %v1238 = vpack.c.b16 %v992, %v990
    %v1239 = vpack.c.b16 %v993, %v991
    %v1240 = vpack.c.b16 %v996, %v994
    %v1241 = vpack.c.b16 %v997, %v995
    %v1242 = vpack.c.b16 %v1000, %v998
    %v1243 = vpack.c.b16 %v1001, %v999
    %v1244 = vpack.c.b16 %v1004, %v1002
    %v1245 = vpack.c.b16 %v1005, %v1003
    %v1246 = vpack.c.b16 %v1008, %v1006
    %v1247 = vpack.c.b16 %v1009, %v1007
    %v1248 = vpack.c.b16 %v1012, %v1010
    %v1249 = vpack.c.b16 %v1013, %v1011
    %v1250 = vpack.c.b16 %v1016, %v1014
    %v1251 = vpack.c.b16 %v1017, %v1015
    %v1252 = vpack.c.b16 %v1020, %v1018
    %v1253 = vpack.c.b16 %v1021, %v1019
    %v1254 = vpack.c.b16 %v1024, %v1022
    %v1255 = vpack.c.b16 %v1025, %v1023
    %v1256 = vpack.c.b16 %v1028, %v1026
    %v1257 = vpack.c.b16 %v1029, %v1027
    %v1258 = vpack.c.b16 %v1032, %v1030
    %v1259 = vpack.c.b16 %v1033, %v1031
    %v1260 = vpack.c.b16 %v1036, %v1034
    %v1261 = vpack.c.b16 %v1037, %v1035
    %v1262 = vpack.c.b16 %v1040, %v1038
    %v1263 = vpack.c.b16 %v1041, %v1039
    %v1264 = vpack.c.b16 %v1044, %v1042
    %v1265 = vpack.c.b16 %v1045, %v1043
    %v1266 = vpack.c.b16 %v1048, %v1046
    %v1267 = vpack.c.b16 %v1049, %v1047
    %v1268 = vpack.c.b16 %v1052, %v1050
    %v1269 = vpack.c.b16 %v1053, %v1051
    %vm1486 = vcmask 523264
    %v1488 = vsel %vm1486, %v390, 0
    %1490 = vmatprep.subr.bf16.mxu0 %v1055
    %1491 = vmatpush1.bf16.msra.mxu0 %v1054
    %1492 = vmatprep.subr.bf16.mxu0 %v1057
    %1493 = vmatpush1.bf16.msra.mxu0 %v1056
    %1494 = vmatprep.subr.bf16.mxu0 %v1059
    %1495 = vmatpush1.bf16.msra.mxu0 %v1058
    %1496 = vmatprep.subr.bf16.mxu0 %v1061
    %1497 = vmatpush1.bf16.msra.mxu0 %v1060
    %1498 = vmatprep.subr.bf16.mxu0 %v1063
    %1499 = vmatpush1.bf16.msra.mxu0 %v1062
    %1500 = vmatprep.subr.bf16.mxu0 %v1065
    %1501 = vmatpush1.bf16.msra.mxu0 %v1064
    %1502 = vmatprep.subr.bf16.mxu0 %v1067
    %1503 = vmatpush1.bf16.msra.mxu0 %v1066
    %1504 = vmatprep.subr.bf16.mxu0 %v1069
    %1505 = vmatpush1.bf16.msra.mxu0 %v1068
    %1506 = vmatprep.subr.bf16.mxu0 %v1071
    %1507 = vmatpush1.bf16.msra.mxu0 %v1070
    %1508 = vmatprep.subr.bf16.mxu0 %v1073
    %1509 = vmatpush1.bf16.msra.mxu0 %v1072
    %1510 = vmatprep.subr.bf16.mxu0 %v1075
    %1511 = vmatpush1.bf16.msra.mxu0 %v1074
    %1512 = vmatprep.subr.bf16.mxu0 %v1077
    %1513 = vmatpush1.bf16.msra.mxu0 %v1076
    %1514 = vmatprep.subr.bf16.mxu0 %v1079
    %1515 = vmatpush1.bf16.msra.mxu0 %v1078
    %1516 = vmatprep.subr.bf16.mxu0 %v1081
    %1517 = vmatpush1.bf16.msra.mxu0 %v1080
    %1518 = vmatprep.subr.bf16.mxu0 %v1083
    %1519 = vmatpush1.bf16.msra.mxu0 %v1082
    %1520 = vmatprep.subr.bf16.mxu0 %v1085
    %1521 = vmatpush1.bf16.msra.mxu0 %v1084
    %1522 = vmatprep.mubr.bf16.mxu0 %v315
    %1523 = vmatmul.mubr.bf16.gmra.mrb[0].mxu0 %v301
    %v1524 = vpop.f32.mrb[0].mxu0
    %v1525 = vadd.f32 %v244, %v1524
    %v1526 = vpop.f32.mrb[0].mxu0
    %v1527 = vadd.f32 %v248, %v1526
    %v1528 = vpop.f32.mrb[0].mxu0
    %v1529 = vpop.f32.mrb[0].mxu0
    %1530 = vdwg.mxu0
    %1531 = vmatprep.subr.bf16.mxu0 %v1087
    %1532 = vmatpush1.bf16.msra.mxu0 %v1086
    %1533 = vmatprep.subr.bf16.mxu0 %v1089
    %1534 = vmatpush1.bf16.msra.mxu0 %v1088
    %1535 = vmatprep.subr.bf16.mxu0 %v1091
    %1536 = vmatpush1.bf16.msra.mxu0 %v1090
    %1537 = vmatprep.subr.bf16.mxu0 %v1093
    %1538 = vmatpush1.bf16.msra.mxu0 %v1092
    %1539 = vmatprep.subr.bf16.mxu0 %v1095
    %1540 = vmatpush1.bf16.msra.mxu0 %v1094
    %1541 = vmatprep.subr.bf16.mxu0 %v1097
    %1542 = vmatpush1.bf16.msra.mxu0 %v1096
    %1543 = vmatprep.subr.bf16.mxu0 %v1099
    %1544 = vmatpush1.bf16.msra.mxu0 %v1098
    %1545 = vmatprep.subr.bf16.mxu0 %v1101
    %1546 = vmatpush1.bf16.msra.mxu0 %v1100
    %1547 = vmatprep.subr.bf16.mxu0 %v1103
    %1548 = vmatpush1.bf16.msra.mxu0 %v1102
    %1549 = vmatprep.subr.bf16.mxu0 %v1105
    %1550 = vmatpush1.bf16.msra.mxu0 %v1104
    %1551 = vmatprep.subr.bf16.mxu0 %v1107
    %1552 = vmatpush1.bf16.msra.mxu0 %v1106
    %1553 = vmatprep.subr.bf16.mxu0 %v1109
    %1554 = vmatpush1.bf16.msra.mxu0 %v1108
    %1555 = vmatprep.subr.bf16.mxu0 %v1111
    %1556 = vmatpush1.bf16.msra.mxu0 %v1110
    %1557 = vmatprep.subr.bf16.mxu0 %v1113
    %1558 = vmatpush1.bf16.msra.mxu0 %v1112
    %1559 = vmatprep.subr.bf16.mxu0 %v1115
    %1560 = vmatpush1.bf16.msra.mxu0 %v1114
    %1561 = vmatprep.subr.bf16.mxu0 %v1117
    %1562 = vmatpush1.bf16.msra.mxu0 %v1116
    %1563 = vmatprep.mubr.bf16.mxu0 %v325
    %1564 = vmatmul.mubr.bf16.gmra.mrb[0].mxu0 %v323
    %v1565 = vpop.f32.mrb[0].mxu0
    %v1566 = vadd.f32 %v1525, %v1565
    %v1567 = vpop.f32.mrb[0].mxu0
    %v1568 = vadd.f32 %v1527, %v1567
    %v1569 = vpop.f32.mrb[0].mxu0
    %v1570 = vpop.f32.mrb[0].mxu0
    %1571 = vdwg.mxu0
    %1572 = vmatprep.subr.bf16.mxu0 %v1119
    %1573 = vmatpush1.bf16.msra.mxu0 %v1118
    %1574 = vmatprep.subr.bf16.mxu0 %v1121
    %1575 = vmatpush1.bf16.msra.mxu0 %v1120
    %1576 = vmatprep.subr.bf16.mxu0 %v1123
    %1577 = vmatpush1.bf16.msra.mxu0 %v1122
    %1578 = vmatprep.subr.bf16.mxu0 %v1125
    %1579 = vmatpush1.bf16.msra.mxu0 %v1124
    %1580 = vmatprep.subr.bf16.mxu0 %v1127
    %1581 = vmatpush1.bf16.msra.mxu0 %v1126
    %1582 = vmatprep.subr.bf16.mxu0 %v1129
    %1583 = vmatpush1.bf16.msra.mxu0 %v1128
    %1584 = vmatprep.subr.bf16.mxu0 %v1131
    %1585 = vmatpush1.bf16.msra.mxu0 %v1130
    %1586 = vmatprep.subr.bf16.mxu0 %v1133
    %1587 = vmatpush1.bf16.msra.mxu0 %v1132
    %1588 = vmatprep.subr.bf16.mxu0 %v1135
    %1589 = vmatpush1.bf16.msra.mxu0 %v1134
    %1590 = vmatprep.subr.bf16.mxu0 %v1137
    %1591 = vmatpush1.bf16.msra.mxu0 %v1136
    %1592 = vmatprep.subr.bf16.mxu0 %v1139
    %1593 = vmatpush1.bf16.msra.mxu0 %v1138
    %1594 = vmatprep.subr.bf16.mxu0 %v1141
    %1595 = vmatpush1.bf16.msra.mxu0 %v1140
    %1596 = vmatprep.subr.bf16.mxu0 %v1143
    %1597 = vmatpush1.bf16.msra.mxu0 %v1142
    %1598 = vmatprep.subr.bf16.mxu0 %v1145
    %1599 = vmatpush1.bf16.msra.mxu0 %v1144
    %1600 = vmatprep.subr.bf16.mxu0 %v1147
    %1601 = vmatpush1.bf16.msra.mxu0 %v1146
    %1602 = vmatprep.subr.bf16.mxu0 %v1149
    %1603 = vmatpush1.bf16.msra.mxu0 %v1148
    %1604 = vmatprep.mubr.bf16.mxu0 %v322
    %1605 = vmatmul.mubr.bf16.gmra.mrb[0].mxu0 %v308
    %v1606 = vpop.f32.mrb[0].mxu0
    %v1607 = vadd.f32 %v1566, %v1606
    %v1608 = vpop.f32.mrb[0].mxu0
    %v1609 = vadd.f32 %v1568, %v1608
    %v1610 = vpop.f32.mrb[0].mxu0
    %v1611 = vpop.f32.mrb[0].mxu0
    %1612 = vdwg.mxu0
    %1613 = vmatprep.subr.bf16.mxu0 %v1151
    %1614 = vmatpush1.bf16.msra.mxu0 %v1150
    %1615 = vmatprep.subr.bf16.mxu0 %v1153
    %1616 = vmatpush1.bf16.msra.mxu0 %v1152
    %1617 = vmatprep.subr.bf16.mxu0 %v1155
    %1618 = vmatpush1.bf16.msra.mxu0 %v1154
    %1619 = vmatprep.subr.bf16.mxu0 %v1157
    %1620 = vmatpush1.bf16.msra.mxu0 %v1156
    %1621 = vmatprep.subr.bf16.mxu0 %v1159
    %1622 = vmatpush1.bf16.msra.mxu0 %v1158
    %1623 = vmatprep.subr.bf16.mxu0 %v1161
    %1624 = vmatpush1.bf16.msra.mxu0 %v1160
    %1625 = vmatprep.subr.bf16.mxu0 %v1163
    %1626 = vmatpush1.bf16.msra.mxu0 %v1162
    %1627 = vmatprep.subr.bf16.mxu0 %v1165
    %1628 = vmatpush1.bf16.msra.mxu0 %v1164
    %1629 = vmatprep.subr.bf16.mxu0 %v1167
    %1630 = vmatpush1.bf16.msra.mxu0 %v1166
    %1631 = vmatprep.subr.bf16.mxu0 %v1169
    %1632 = vmatpush1.bf16.msra.mxu0 %v1168
    %1633 = vmatprep.subr.bf16.mxu0 %v1171
    %1634 = vmatpush1.bf16.msra.mxu0 %v1170
    %1635 = vmatprep.subr.bf16.mxu0 %v1173
    %1636 = vmatpush1.bf16.msra.mxu0 %v1172
    %1637 = vmatprep.subr.bf16.mxu0 %v1175
    %1638 = vmatpush1.bf16.msra.mxu0 %v1174
    %1639 = vmatprep.subr.bf16.mxu0 %v1177
    %1640 = vmatpush1.bf16.msra.mxu0 %v1176
    %1641 = vmatprep.subr.bf16.mxu0 %v1179
    %1642 = vmatpush1.bf16.msra.mxu0 %v1178
    %1643 = vmatprep.subr.bf16.mxu0 %v1181
    %1644 = vmatpush1.bf16.msra.mxu0 %v1180
    %1645 = vmatprep.mubr.bf16.mxu0 %v326
    %1646 = vmatmul.mubr.bf16.gmra.mrb[0].mxu0 %v324
    %v1647 = vpop.f32.mrb[0].mxu0
    %v1648 = vadd.f32 %v1607, %v1647
    %v1649 = vpop.f32.mrb[0].mxu0
    %v1650 = vadd.f32 %v1609, %v1649
    %v1651 = vpop.f32.mrb[0].mxu0
    %v1652 = vpop.f32.mrb[0].mxu0
    %1653 = vdwg.mxu0
    %1654 = vmatprep.subr.bf16.mxu0 %v1183
    %1655 = vmatpush1.bf16.msra.mxu0 %v1182
    %1656 = vmatprep.subr.bf16.mxu0 %v1185
    %1657 = vmatpush1.bf16.msra.mxu0 %v1184
    %1658 = vmatprep.subr.bf16.mxu0 %v1187
    %1659 = vmatpush1.bf16.msra.mxu0 %v1186
    %1660 = vmatprep.subr.bf16.mxu0 %v1189
    %1661 = vmatpush1.bf16.msra.mxu0 %v1188
    %1662 = vmatprep.subr.bf16.mxu0 %v1191
    %1663 = vmatpush1.bf16.msra.mxu0 %v1190
    %1664 = vmatprep.subr.bf16.mxu0 %v1193
    %1665 = vmatpush1.bf16.msra.mxu0 %v1192
    %1666 = vmatprep.subr.bf16.mxu0 %v1195
    %1667 = vmatpush1.bf16.msra.mxu0 %v1194
    %1668 = vmatprep.subr.bf16.mxu0 %v1197
    %1669 = vmatpush1.bf16.msra.mxu0 %v1196
    %1670 = vmatprep.subr.bf16.mxu0 %v1199
    %1671 = vmatpush1.bf16.msra.mxu0 %v1198
    %1672 = vmatprep.subr.bf16.mxu0 %v1201
    %1673 = vmatpush1.bf16.msra.mxu0 %v1200
    %1674 = vmatprep.subr.bf16.mxu0 %v1203
    %1675 = vmatpush1.bf16.msra.mxu0 %v1202
    %1676 = vmatprep.subr.bf16.mxu0 %v1205
    %1677 = vmatpush1.bf16.msra.mxu0 %v1204
    %1678 = vmatprep.subr.bf16.mxu0 %v1207
    %1679 = vmatpush1.bf16.msra.mxu0 %v1206
    %1680 = vmatprep.subr.bf16.mxu0 %v1209
    %1681 = vmatpush1.bf16.msra.mxu0 %v1208
    %1682 = vmatprep.subr.bf16.mxu0 %v1211
    %1683 = vmatpush1.bf16.msra.mxu0 %v1210
    %1684 = vmatprep.subr.bf16.mxu0 %v1213
    %1685 = vmatpush1.bf16.msra.mxu0 %v1212
    %1686 = vmatprep.mubr.bf16.mxu0 %v383
    %1687 = vmatmul.mubr.bf16.gmra.mrb[0].mxu0 %v369
    %v1688 = vpop.f32.mrb[0].mxu0
    %v1689 = vadd.f32 %v1648, %v1688
    %v1690 = vpop.f32.mrb[0].mxu0
    %v1691 = vadd.f32 %v1650, %v1690
    %v1692 = vpop.f32.mrb[0].mxu0
    %v1693 = vpop.f32.mrb[0].mxu0
    %1694 = vdwg.mxu0
    %1695 = vmatprep.subr.bf16.mxu0 %v1215
    %1696 = vmatpush1.bf16.msra.mxu0 %v1214
    %1697 = vmatprep.subr.bf16.mxu0 %v1217
    %1698 = vmatpush1.bf16.msra.mxu0 %v1216
    %1699 = vmatprep.subr.bf16.mxu0 %v1219
    %1700 = vmatpush1.bf16.msra.mxu0 %v1218
    %1701 = vmatprep.subr.bf16.mxu0 %v1221
    %1702 = vmatpush1.bf16.msra.mxu0 %v1220
    %1703 = vmatprep.subr.bf16.mxu0 %v1223
    %1704 = vmatpush1.bf16.msra.mxu0 %v1222
    %1705 = vmatprep.subr.bf16.mxu0 %v1225
    %1706 = vmatpush1.bf16.msra.mxu0 %v1224
    %1707 = vmatprep.subr.bf16.mxu0 %v1227
    %1708 = vmatpush1.bf16.msra.mxu0 %v1226
    %1709 = vmatprep.subr.bf16.mxu0 %v1229
    %1710 = vmatpush1.bf16.msra.mxu0 %v1228
    %1711 = vmatprep.subr.bf16.mxu0 %v1231
    %1712 = vmatpush1.bf16.msra.mxu0 %v1230
    %1713 = vmatprep.subr.bf16.mxu0 %v1233
    %1714 = vmatpush1.bf16.msra.mxu0 %v1232
    %1715 = vmatprep.subr.bf16.mxu0 %v1235
    %1716 = vmatpush1.bf16.msra.mxu0 %v1234
    %1717 = vmatprep.subr.bf16.mxu0 %v1237
    %1718 = vmatpush1.bf16.msra.mxu0 %v1236
    %1719 = vmatprep.subr.bf16.mxu0 %v1239
    %1720 = vmatpush1.bf16.msra.mxu0 %v1238
    %1721 = vmatprep.subr.bf16.mxu0 %v1241
    %1722 = vmatpush1.bf16.msra.mxu0 %v1240
    %1723 = vmatprep.subr.bf16.mxu0 %v1243
    %1724 = vmatpush1.bf16.msra.mxu0 %v1242
    %1725 = vmatprep.subr.bf16.mxu0 %v1245
    %1726 = vmatpush1.bf16.msra.mxu0 %v1244
    %1727 = vmatprep.mubr.bf16.mxu0 %v392
    %1728 = vmatmul.mubr.bf16.gmra.mrb[0].mxu0 %v391
    %v1729 = vpop.f32.mrb[0].mxu0
    %v1730 = vadd.f32 %v1689, %v1729
    %v1731 = vpop.f32.mrb[0].mxu0
    %v1732 = vadd.f32 %v1691, %v1731
    %v1733 = vpop.f32.mrb[0].mxu0
    %v1734 = vpop.f32.mrb[0].mxu0
    %1735 = vdwg.mxu0
    %1736 = vmatprep.subr.bf16.mxu0 %v1247
    %1737 = vmatpush1.bf16.msra.mxu0 %v1246
    %1738 = vmatprep.subr.bf16.mxu0 %v1249
    %1739 = vmatpush1.bf16.msra.mxu0 %v1248
    %1740 = vmatprep.subr.bf16.mxu0 %v1251
    %1741 = vmatpush1.bf16.msra.mxu0 %v1250
    %1742 = vmatprep.subr.bf16.mxu0 %v1253
    %1743 = vmatpush1.bf16.msra.mxu0 %v1252
    %1744 = vmatprep.subr.bf16.mxu0 %v1255
    %1745 = vmatpush1.bf16.msra.mxu0 %v1254
    %1746 = vmatprep.subr.bf16.mxu0 %v1257
    %1747 = vmatpush1.bf16.msra.mxu0 %v1256
    %1748 = vmatprep.subr.bf16.mxu0 %v1259
    %1749 = vmatpush1.bf16.msra.mxu0 %v1258
    %1750 = vmatprep.subr.bf16.mxu0 %v1261
    %1751 = vmatpush1.bf16.msra.mxu0 %v1260
    %1752 = vmatprep.subr.bf16.mxu0 %v1263
    %1753 = vmatpush1.bf16.msra.mxu0 %v1262
    %1754 = vmatprep.subr.bf16.mxu0 %v1265
    %1755 = vmatpush1.bf16.msra.mxu0 %v1264
    %1756 = vmatprep.subr.bf16.mxu0 %v1267
    %1757 = vmatpush1.bf16.msra.mxu0 %v1266
    %1758 = vmatprep.subr.bf16.mxu0 %v1269
    %1759 = vmatpush1.bf16.msra.mxu0 %v1268
    %1760 = vmatprep.subr.bf16.mxu0 0
    %1761 = vmatpush1.bf16.msra.mxu0 0
    %1762 = vmatprep.subr.bf16.mxu0 0
    %1763 = vmatpush1.bf16.msra.mxu0 0
    %1764 = vmatprep.subr.bf16.mxu0 0
    %1765 = vmatpush1.bf16.msra.mxu0 0
    %1766 = vmatprep.subr.bf16.mxu0 0
    %1767 = vmatpush1.bf16.msra.mxu0 0
    %1768 = vmatprep.mubr.bf16.mxu0 %v1488
    %1769 = vmatmul.mubr.bf16.gmra.mrb[0].mxu0 %v376
    %v1770 = vpop.f32.mrb[0].mxu0
    %v1771 = vadd.f32 %v1730, %v1770
    %v1772 = vpop.f32.mrb[0].mxu0
    %v1773 = vadd.f32 %v1732, %v1772
    %v1774 = vpop.f32.mrb[0].mxu0
    %v1775 = vpop.f32.mrb[0].mxu0
    %1776 = vdwg.mxu0
    %v1777 = vmax.f32 %v1771, 0.0
    %v1778 = vmax.f32 %v1773, 0.0
    %v1779 = vpack.c.bf16 %v1777, %v1777
    %v1780 = vpack.c.bf16 %v1778, %v1778
    %v1783 = vcombine.low %v1779, %v1780
    %v1785 = vunpack.c.l.s4 1966171168
    %v1786 = vunpack.c.0.s8 %v1785
    %v1787 = vlaneseq
    %v1788 = vshrl.u32 %v1787, 7
    %v1789 = vsub.s32 %v1786, %v1788
    %v1790 = vrot.slane %v1783, %v1789
    %v1791 = vcombine.high %v1790, %v1790
    %v1793 = vunpack.c.l.s4 1966171168
    %v1794 = vunpack.c.0.s8 %v1793
    %v1795 = vlaneseq
    %v1796 = vshrl.u32 %v1795, 7
    %v1797 = vsub.s32 %v1794, %v1796
    %v1798 = vrot.slane %v1790, %v1797
    %v1800 = vunpack.c.l.s4 1966171168
    %v1801 = vunpack.c.0.s8 %v1800
    %v1802 = vlaneseq
    %v1803 = vshrl.u32 %v1802, 7
    %v1804 = vsub.s32 %v1801, %v1803
    %v1805 = vrot.slane %v1791, %v1804
    %v1806 = vcombine.high %v1798, %v1798
    %v1807 = vcombine.high %v1805, %v1805
    %vm1812 = vcmask 1040384
    %vm1813 = vcmask 517121
    %vm1814 = vmor %vm1813, %vm1812
    %1815 = vst.msk [vmem:[#allocation2] sm:$0x3] %vm1814, %v1798
    %1816 = vst.msk [vmem:[#allocation2 + $0x2] sm:$0x3] %vm1814, %v1805
    %1817 = vst.msk [vmem:[#allocation2 + $0x4] sm:$0x3] %vm1814, %v1806
    %1818 = vst.msk [vmem:[#allocation2 + $0x6] sm:$0x3] %vm1814, %v1807
    // Predicated region
    $region14: #{_lambda_.17} parent=1 // pred_check
      _
    $region15: #{_lambda_.17} parent=1 // pred_check_branch
      %1820 = sbr.rel (0) target = $region17
    $region16: #{_lambda_.17} parent=1 // pred_region
      // Predicated region
      $region18: #{_lambda_.17} parent=16 // pred_check
        _
      $region19: #{_lambda_.17} parent=16 // pred_check_branch
        %1822 = sbr.rel (0) target = $region21
      $region20: #{_lambda_.17} parent=16 // pred_region
        // Predicated region
        $region22: #{_lambda_.17} parent=20 // pred_check
          _
        $region23: #{_lambda_.17} parent=20 // pred_check_branch
          %1824 = sbr.rel target = $region25
        $region24: #{_lambda_.17} parent=20 // pred_region
          // Predicated region
          $region37: #{_lambda_.17} parent=24 // pred_check
            _
          $region38: #{_lambda_.17} parent=24 // pred_check_branch
            %1839 = sbr.rel (0) target = $region40
          $region39: #{_lambda_.17} parent=24 // pred_region
            loop: start=0, step=1, limit=1
            $region41: #{_lambda_.17} parent=39 // loop_pre_header
              _
            $region42: #{_lambda_.17} parent=39 // loop_header
              %s1842 = sphi 0, %s1846
              %p1843 = scmp.ge.s32.totalorder %s1842, 1
              %s1847 = sphi [#allocation2], [#allocation2]
              %s1848 = sphi %s3, %s3
            $region43: #{_lambda_.17} parent=39 // loop_header_branch
              %1845 = sbr.rel (%p1843) target = $region47
            $region44: #{_lambda_.17} parent=39 // loop_body
              %v1849 = vld [vmem:[%s1847] sm:$0x3]
              %1850 = vst [vmem:[%s1848] sm:$0x3] %v1849
            $region45: #{_lambda_.17} parent=39 // loop_footer
              %s1846 = sadd.s32 1, %s1842
            $region46: #{_lambda_.17} parent=39 // loop_footer_branch
              %1841 = sbr.rel target = $region42
            $region47: #{_lambda_.17} parent=39 // loop_exit
              _
          $region40: #{_lambda_.17} parent=24 // pred_fallthru
            _
        $region25: #{_lambda_.17} parent=20 // pred_fallthru
          _
        // Predicated region
        $region26: #{_lambda_.17} parent=20 // pred_check
          _
        $region27: #{_lambda_.17} parent=20 // pred_check_branch
          %1826 = sbr.rel (0) target = $region29
        $region28: #{_lambda_.17} parent=20 // pred_region
          loop: start=0, step=1, limit=1
          $region30: #{_lambda_.17} parent=28 // loop_pre_header
            _
          $region31: #{_lambda_.17} parent=28 // loop_header
            %s1829 = sphi 0, %s1833
            %p1830 = scmp.ge.s32.totalorder %s1829, 1
            %s1834 = sphi [#allocation2], [#allocation2]
            %s1835 = sphi %s3, %s3
          $region32: #{_lambda_.17} parent=28 // loop_header_branch
            %1832 = sbr.rel (%p1830) target = $region36
          $region33: #{_lambda_.17} parent=28 // loop_body
            %v1836 = vld [vmem:[%s1834] sm:$0x3]
            %1837 = vst [vmem:[%s1835] sm:$0x3] %v1836
          $region34: #{_lambda_.17} parent=28 // loop_footer
            %s1833 = sadd.s32 1, %s1829
          $region35: #{_lambda_.17} parent=28 // loop_footer_branch
            %1828 = sbr.rel target = $region31
          $region36: #{_lambda_.17} parent=28 // loop_exit
            _
        $region29: #{_lambda_.17} parent=20 // pred_fallthru
          _
      $region21: #{_lambda_.17} parent=16 // pred_fallthru
        _
      %1851 = vnop
    $region17: #{_lambda_.17} parent=1 // pred_fallthru
      _
    // Predicated region
    $region48: #{_lambda_.17} parent=1 // pred_check
      _
    $region49: #{_lambda_.17} parent=1 // pred_check_branch
      %1853 = sbr.rel (0) target = $region51
    $region50: #{_lambda_.17} parent=1 // pred_region
      _
    $region51: #{_lambda_.17} parent=1 // pred_fallthru
      _

</llo_original>
